<compile_context>
chip_gen: v5e
topology: v5e:2x2
jax: 0.10.0
libtpu: 0.0.40
codegen_flags: <defaults>
</compile_context>

<pallas_src>
import functools

import jax
import jax.numpy as jnp
from jax.experimental import pallas as pl
from jax.experimental.pallas import tpu as pltpu


def _mbnm_kernel(x_ref, w1_ref, w2_ref, s1_ref, b1_ref, s2_ref, b2_ref,
                 o_ref, pad_ref, col_ref, *, k: int, p: int, c_in: int):
    # x_ref  : (1, H, W, C)            unpadded input block, NHWC
    # w*_ref : (k*k*Cp, Cp)  bf16      im2col weights (expand + channel-pad folded in)
    # s*/b*  : (1, Cp)       f32       folded BN scale / shift
    # o_ref  : (1, H, W, Cp)           lane-dense output block
    # pad_ref: (H+2p, W+2p, Cp) bf16   zero-padded activation scratch (x, then h1)
    # col_ref: (H, W, k*k*Cp)   bf16   im2col scratch
    _, h, w, _ = x_ref.shape
    hp, wp, cp = pad_ref.shape
    hw = h * w
    kk = k * k

    # Zero only the p-wide spatial border each step (cheap: O(p*(hp+wp)*Cp)).
    # Not guarded by pl.when(first step): under megacore sharding the scratch
    # is per-core, so a program_id==0 guard would leave one core uninitialised.
    zrow = jnp.zeros((p, wp, cp), jnp.bfloat16)
    pad_ref[0:p, :, :] = zrow
    pad_ref[hp - p:hp, :, :] = zrow
    zcol = jnp.zeros((hp, p, cp), jnp.bfloat16)
    pad_ref[:, 0:p, :] = zcol
    pad_ref[:, wp - p:wp, :] = zcol

    xb = x_ref[0]                                   # (h, w, C) aligned read
    if cp > c_in:                                   # zero the channel tail of the interior
        pad_ref[p:p + h, p:p + w, c_in:] = jnp.zeros((h, w, cp - c_in), jnp.bfloat16)
    pad_ref[p:p + h, p:p + w, :c_in] = xb.astype(jnp.bfloat16)

    def im2col():
        # k*k aligned copies (dest lane offsets are multiples of Cp=128).
        for t in range(kk):
            dy, dx = t // k, t % k
            col_ref[:, :, t * cp:(t + 1) * cp] = pad_ref[dy:dy + h, dx:dx + w, :]

    def conv(w_ref):
        # Contiguous leading-dim merge (no relayout), then one bf16 MXU matmul
        # with f32 accumulation over the k*k*Cp contraction dim.
        col = col_ref[...].reshape(hw, kk * cp)
        return jnp.dot(col, w_ref[...], preferred_element_type=jnp.float32)

    # ---- conv1 -> BN1 -> ReLU ----
    im2col()
    h1 = jnp.maximum(conv(w1_ref) * s1_ref[...] + b1_ref[...], 0.0)     # (hw, Cp) f32

    # Reuse pad_ref for the padded intermediate: borders are still zero and the
    # padded channel tail of h1 is exactly zero (zero weights + zero BN affine).
    pad_ref[p:p + h, p:p + w, :] = h1.reshape(h, w, cp).astype(jnp.bfloat16)

    # ---- conv2 -> BN2 -> residual add -> ReLU ----
    im2col()
    h2 = conv(w2_ref) * s2_ref[...] + b2_ref[...]                       # (hw, Cp) f32

    res = xb.reshape(hw, c_in).astype(jnp.float32)                      # aligned residual
    if cp > c_in:
        res = jnp.concatenate(
            [res, jnp.zeros((hw, cp - c_in), jnp.float32)], axis=-1)
    out = jnp.maximum(h2 + res, 0.0)
    o_ref[0] = out.reshape(h, w, cp).astype(o_ref.dtype)


def mbnm_forward(x, w1, w2, gamma1, beta1, gamma2, beta2,
                 *, kernel_size: int, groups: int,
                 mean1=None, var1=None, mean2=None, var2=None, eps: float = 1e-5):
    """Pallas forward of MBNM.  x: (B, C, H, W) NCHW; w*: (C//g, C, k, k)."""
    b, c, hgt, wid = x.shape
    k = kernel_size
    p = k // 2
    assert c % groups == 0
    pg = c // groups
    assert w1.shape == (pg, c, k, k) and w2.shape == (pg, c, k, k)

    # Lane-dense channel padding (no-op when C is already a multiple of 128).
    cp = -(-c // 128) * 128

    # Fold BN (inference mode) into per-channel scale & shift, zero-padded to Cp.
    def fold(gamma, beta, mean, var):
        mean = jnp.zeros((c,), jnp.float32) if mean is None else mean.astype(jnp.float32)
        var = jnp.ones((c,), jnp.float32) if var is None else var.astype(jnp.float32)
        scale = gamma.astype(jnp.float32) / jnp.sqrt(var + eps)
        shift = beta.astype(jnp.float32) - mean * scale
        return (jnp.pad(scale, (0, cp - c)).reshape(1, cp),
                jnp.pad(shift, (0, cp - c)).reshape(1, cp))

    s1, sh1 = fold(gamma1, beta1, mean1, var1)
    s2, sh2 = fold(gamma2, beta2, mean2, var2)

    # Per-tap weights; fold the channel tiling ("expand") into the output dim,
    # zero-pad both channel dims to Cp, flatten taps into the contraction dim.
    def prep_w(wt):
        wt = jnp.transpose(wt, (2, 3, 1, 0)).reshape(k * k, c, pg)   # [tap, cin, pg]
        wt = jnp.tile(wt, (1, 1, groups))                            # [tap, cin, C]
        wt = jnp.pad(wt, ((0, 0), (0, cp - c), (0, cp - c)))         # [tap, Cp, Cp]
        return wt.reshape(k * k * cp, cp).astype(jnp.bfloat16)

    w1m = prep_w(w1)
    w2m = prep_w(w2)

    x_nhwc = jnp.transpose(x, (0, 2, 3, 1))          # NCHW -> NHWC (no host pad)
    hp, wp = hgt + 2 * p, wid + 2 * p

    kern = functools.partial(_mbnm_kernel, k=k, p=p, c_in=c)

    flops = 2 * (2 * b * hgt * wid * c * c * k * k)                  # two convs
    bytes_accessed = (b * hgt * wid * c * x.dtype.itemsize           # input
                      + b * hgt * wid * cp * x.dtype.itemsize        # padded output
                      + 2 * k * k * cp * cp * 2)                     # bf16 weights

    # VMEM budget: double-buffered in/out blocks + weights + the two scratches.
    itemsize = x.dtype.itemsize
    vmem_needed = (2 * hgt * wid * c * itemsize
                   + 2 * hgt * wid * cp * itemsize
                   + 2 * 2 * k * k * cp * cp * 2
                   + hp * wp * cp * 2
                   + hgt * wid * k * k * cp * 2)
    vmem_limit = int(min(max(2 * vmem_needed, 32 * (1 << 20)), 100 * (1 << 20)))

    out_nhwc = pl.pallas_call(
        kern,
        out_shape=jax.ShapeDtypeStruct((b, hgt, wid, cp), x.dtype),
        grid=(b,),
        in_specs=[
            pl.BlockSpec((1, hgt, wid, c), lambda bi: (bi, 0, 0, 0)),
            pl.BlockSpec((k * k * cp, cp), lambda bi: (0, 0)),
            pl.BlockSpec((k * k * cp, cp), lambda bi: (0, 0)),
            pl.BlockSpec((1, cp), lambda bi: (0, 0)),
            pl.BlockSpec((1, cp), lambda bi: (0, 0)),
            pl.BlockSpec((1, cp), lambda bi: (0, 0)),
            pl.BlockSpec((1, cp), lambda bi: (0, 0)),
        ],
        out_specs=pl.BlockSpec((1, hgt, wid, cp), lambda bi: (bi, 0, 0, 0)),
        scratch_shapes=[
            pltpu.VMEM((hp, wp, cp), jnp.bfloat16),            # padded activations
            pltpu.VMEM((hgt, wid, k * k * cp), jnp.bfloat16),  # im2col slab
        ],
        compiler_params=pltpu.CompilerParams(
            dimension_semantics=("parallel",),
            vmem_limit_bytes=vmem_limit,
        ),
        cost_estimate=pl.CostEstimate(
            flops=flops, transcendentals=0, bytes_accessed=bytes_accessed),
    )(x_nhwc, w1m, w2m, s1, sh1, s2, sh2)

    # Drop the lane padding and return NCHW.
    return jnp.transpose(out_nhwc[..., :c], (0, 3, 1, 2))


def make_bn_params(c: int, groups: int, a: float = 0.1):
    """Replicates the bn_weight / bn_bias construction in my_conv.__init__."""
    pg = c // groups
    gamma, beta = [], []
    w = 1.0
    for i in range(groups):
        gamma += [w] * pg
        if i < 2:
            beta += [0.0] * pg
        else:
            beta += [((i + 2) // 4) * a * ((-1.0) ** (i // 2))] * pg
        w = -w
    return jnp.array(gamma, jnp.float32), jnp.array(beta, jnp.float32)


def _reference(x, w1, w2, gamma1, beta1, gamma2, beta2,
               *, kernel_size: int, groups: int, eps: float = 1e-5):
    """Pure-JAX transcription of the PyTorch forward (inference-mode BN).

    Operands are rounded to bf16 at the same points as the kernel's MXU inputs
    so the comparison stays tight while matching the kernel's numerics.
    """
    pad = kernel_size // 2

    def q(a):
        return a.astype(jnp.bfloat16).astype(jnp.float32)

    def my_conv(inp, wt, gamma, beta):
        out = jax.lax.conv_general_dilated(
            q(inp), q(wt), window_strides=(1, 1),
            padding=[(pad, pad), (pad, pad)],
            dimension_numbers=("NCHW", "OIHW", "NCHW"),
            precision=jax.lax.Precision.HIGHEST)
        if groups > 1:
            out = jnp.tile(out, (1, groups, 1, 1))
        scale = gamma / jnp.sqrt(1.0 + eps)   # running_var = 1
        shift = beta                          # running_mean = 0
        return out * scale[None, :, None, None] + shift[None, :, None, None]

    h1 = jax.nn.relu(my_conv(x, w1, gamma1, beta1))
    h2 = my_conv(h1, w2, gamma2, beta2)
    return jax.nn.relu(h2 + x)


if __name__ == "__main__":
    B, C, H, W = 2, 16, 16, 16
    K, G = 3, 4                       # kernel_size=3, groups=4 -> per_groups=4

    key = jax.random.PRNGKey(0)
    kx, k1, k2 = jax.random.split(key, 3)
    x = jax.random.normal(kx, (B, C, H, W), dtype=jnp.float32)
    pg = C // G
    w1 = jax.random.normal(k1, (pg, C, K, K), dtype=jnp.float32) * 0.1
    w2 = jax.random.normal(k2, (pg, C, K, K), dtype=jnp.float32) * 0.1

    gamma1, beta1 = make_bn_params(C, G)
    gamma2, beta2 = make_bn_params(C, G)

    out = mbnm_forward(x, w1, w2, gamma1, beta1, gamma2, beta2,
                       kernel_size=K, groups=G)
    out = jax.block_until_ready(out)

    ref = _reference(x, w1, w2, gamma1, beta1, gamma2, beta2,
                     kernel_size=K, groups=G)
    assert out.shape == (B, C, H, W)
    err = float(jnp.max(jnp.abs(out - ref)))
    assert jnp.allclose(out, ref, atol=5e-3, rtol=5e-3), err

    print("KERNEL_OK")
</pallas_src>

<mosaic_0001>
module attributes {stable_mosaic.version = 11 : i64} {
  func.func @_mbnm_kernel(%arg0: i32, %arg1: memref<1x16x16x16xf32, #tpu.memory_space<vmem>>, %arg2: memref<1152x128xbf16, #tpu.memory_space<vmem>>, %arg3: memref<1152x128xbf16, #tpu.memory_space<vmem>>, %arg4: memref<1x128xf32, #tpu.memory_space<vmem>>, %arg5: memref<1x128xf32, #tpu.memory_space<vmem>>, %arg6: memref<1x128xf32, #tpu.memory_space<vmem>>, %arg7: memref<1x128xf32, #tpu.memory_space<vmem>>, %arg8: memref<1x16x16x128xf32, #tpu.memory_space<vmem>>, %arg9: memref<18x18x128xbf16, #tpu.memory_space<vmem>>, %arg10: memref<16x16x1152xbf16, #tpu.memory_space<vmem>>) attributes {dimension_semantics = [#tpu.dimension_semantics<parallel>], iteration_bounds = array<i64: 2>, scalar_prefetch = 0 : i64, scratch_operands = 2 : i64, tpu.core_type = #tpu.core_type<tc>, window_params = [{transform_indices = @transform_0, window_bounds = array<i64: 1, 16, 16, 16>}, {pipeline_mode = #tpu.pipeline_mode<synchronous>, transform_indices = @transform_1, window_bounds = array<i64: 1152, 128>}, {pipeline_mode = #tpu.pipeline_mode<synchronous>, transform_indices = @transform_2, window_bounds = array<i64: 1152, 128>}, {pipeline_mode = #tpu.pipeline_mode<synchronous>, transform_indices = @transform_3, window_bounds = array<i64: 1, 128>}, {pipeline_mode = #tpu.pipeline_mode<synchronous>, transform_indices = @transform_4, window_bounds = array<i64: 1, 128>}, {pipeline_mode = #tpu.pipeline_mode<synchronous>, transform_indices = @transform_5, window_bounds = array<i64: 1, 128>}, {pipeline_mode = #tpu.pipeline_mode<synchronous>, transform_indices = @transform_6, window_bounds = array<i64: 1, 128>}, {transform_indices = @transform_7, window_bounds = array<i64: 1, 16, 16, 128>}]} {
    %cst = arith.constant 0.000000e+00 : bf16
    %0 = vector.broadcast %cst : bf16 to vector<1x18x128xbf16>
    %c0 = arith.constant 0 : index
    %c0_0 = arith.constant 0 : index
    %c0_1 = arith.constant 0 : index
    %1 = vector.load %arg9[%c0, %c0_0, %c0_1] : memref<18x18x128xbf16, #tpu.memory_space<vmem>>, vector<1x18x128xbf16>
    tpu.vector_store %arg9[%c0, %c0_0, %c0_1], %0 {strides = array<i32>} : memref<18x18x128xbf16, #tpu.memory_space<vmem>>, vector<1x18x128xbf16>,
    %c17 = arith.constant 17 : index
    %c0_2 = arith.constant 0 : index
    %c0_3 = arith.constant 0 : index
    %2 = vector.load %arg9[%c17, %c0_2, %c0_3] : memref<18x18x128xbf16, #tpu.memory_space<vmem>>, vector<1x18x128xbf16>
    tpu.vector_store %arg9[%c17, %c0_2, %c0_3], %0 {strides = array<i32>} : memref<18x18x128xbf16, #tpu.memory_space<vmem>>, vector<1x18x128xbf16>,
    %cst_4 = arith.constant 0.000000e+00 : bf16
    %3 = vector.broadcast %cst_4 : bf16 to vector<18x1x128xbf16>
    %c0_5 = arith.constant 0 : index
    %c0_6 = arith.constant 0 : index
    %c0_7 = arith.constant 0 : index
    %4 = vector.load %arg9[%c0_5, %c0_6, %c0_7] : memref<18x18x128xbf16, #tpu.memory_space<vmem>>, vector<18x1x128xbf16>
    tpu.vector_store %arg9[%c0_5, %c0_6, %c0_7], %3 {strides = array<i32>} : memref<18x18x128xbf16, #tpu.memory_space<vmem>>, vector<18x1x128xbf16>,
    %c0_8 = arith.constant 0 : index
    %c17_9 = arith.constant 17 : index
    %c0_10 = arith.constant 0 : index
    %5 = vector.load %arg9[%c0_8, %c17_9, %c0_10] : memref<18x18x128xbf16, #tpu.memory_space<vmem>>, vector<18x1x128xbf16>
    tpu.vector_store %arg9[%c0_8, %c17_9, %c0_10], %3 {strides = array<i32>} : memref<18x18x128xbf16, #tpu.memory_space<vmem>>, vector<18x1x128xbf16>,
    %c0_11 = arith.constant 0 : index
    %c0_12 = arith.constant 0 : index
    %c0_13 = arith.constant 0 : index
    %c0_14 = arith.constant 0 : index
    %6 = vector.load %arg1[%c0_11, %c0_12, %c0_13, %c0_14] : memref<1x16x16x16xf32, #tpu.memory_space<vmem>>, vector<1x16x16x16xf32>
    %7 = vector.shape_cast %6 : vector<1x16x16x16xf32> to vector<16x16x16xf32>
    %cst_15 = arith.constant 0.000000e+00 : bf16
    %8 = vector.broadcast %cst_15 : bf16 to vector<16x16x112xbf16>
    %c1 = arith.constant 1 : index
    %c1_16 = arith.constant 1 : index
    %c16 = arith.constant 16 : index
    %9 = vector.load %arg9[%c1, %c1_16, %c16] : memref<18x18x128xbf16, #tpu.memory_space<vmem>>, vector<16x16x112xbf16>
    tpu.vector_store %arg9[%c1, %c1_16, %c16], %8 {strides = array<i32>} : memref<18x18x128xbf16, #tpu.memory_space<vmem>>, vector<16x16x112xbf16>,
    %10 = arith.truncf %7 : vector<16x16x16xf32> to vector<16x16x16xbf16>
    %c1_17 = arith.constant 1 : index
    %c1_18 = arith.constant 1 : index
    %c0_19 = arith.constant 0 : index
    %11 = vector.load %arg9[%c1_17, %c1_18, %c0_19] : memref<18x18x128xbf16, #tpu.memory_space<vmem>>, vector<16x16x16xbf16>
    tpu.vector_store %arg9[%c1_17, %c1_18, %c0_19], %10 {strides = array<i32>} : memref<18x18x128xbf16, #tpu.memory_space<vmem>>, vector<16x16x16xbf16>,
    %c0_20 = arith.constant 0 : index
    %c0_21 = arith.constant 0 : index
    %c0_22 = arith.constant 0 : index
    %12 = vector.load %arg9[%c0_20, %c0_21, %c0_22] : memref<18x18x128xbf16, #tpu.memory_space<vmem>>, vector<16x16x128xbf16>
    %c0_23 = arith.constant 0 : index
    %c0_24 = arith.constant 0 : index
    %c0_25 = arith.constant 0 : index
    %13 = vector.load %arg10[%c0_23, %c0_24, %c0_25] : memref<16x16x1152xbf16, #tpu.memory_space<vmem>>, vector<16x16x128xbf16>
    tpu.vector_store %arg10[%c0_23, %c0_24, %c0_25], %12 {strides = array<i32>} : memref<16x16x1152xbf16, #tpu.memory_space<vmem>>, vector<16x16x128xbf16>,
    %c0_26 = arith.constant 0 : index
    %c1_27 = arith.constant 1 : index
    %c0_28 = arith.constant 0 : index
    %14 = vector.load %arg9[%c0_26, %c1_27, %c0_28] : memref<18x18x128xbf16, #tpu.memory_space<vmem>>, vector<16x16x128xbf16>
    %c0_29 = arith.constant 0 : index
    %c0_30 = arith.constant 0 : index
    %c128 = arith.constant 128 : index
    %15 = vector.load %arg10[%c0_29, %c0_30, %c128] : memref<16x16x1152xbf16, #tpu.memory_space<vmem>>, vector<16x16x128xbf16>
    tpu.vector_store %arg10[%c0_29, %c0_30, %c128], %14 {strides = array<i32>} : memref<16x16x1152xbf16, #tpu.memory_space<vmem>>, vector<16x16x128xbf16>,
    %c0_31 = arith.constant 0 : index
    %c2 = arith.constant 2 : index
    %c0_32 = arith.constant 0 : index
    %16 = vector.load %arg9[%c0_31, %c2, %c0_32] : memref<18x18x128xbf16, #tpu.memory_space<vmem>>, vector<16x16x128xbf16>
    %c0_33 = arith.constant 0 : index
    %c0_34 = arith.constant 0 : index
    %c256 = arith.constant 256 : index
    %17 = vector.load %arg10[%c0_33, %c0_34, %c256] : memref<16x16x1152xbf16, #tpu.memory_space<vmem>>, vector<16x16x128xbf16>
    tpu.vector_store %arg10[%c0_33, %c0_34, %c256], %16 {strides = array<i32>} : memref<16x16x1152xbf16, #tpu.memory_space<vmem>>, vector<16x16x128xbf16>,
    %c1_35 = arith.constant 1 : index
    %c0_36 = arith.constant 0 : index
    %c0_37 = arith.constant 0 : index
    %18 = vector.load %arg9[%c1_35, %c0_36, %c0_37] : memref<18x18x128xbf16, #tpu.memory_space<vmem>>, vector<16x16x128xbf16>
    %c0_38 = arith.constant 0 : index
    %c0_39 = arith.constant 0 : index
    %c384 = arith.constant 384 : index
    %19 = vector.load %arg10[%c0_38, %c0_39, %c384] : memref<16x16x1152xbf16, #tpu.memory_space<vmem>>, vector<16x16x128xbf16>
    tpu.vector_store %arg10[%c0_38, %c0_39, %c384], %18 {strides = array<i32>} : memref<16x16x1152xbf16, #tpu.memory_space<vmem>>, vector<16x16x128xbf16>,
    %c1_40 = arith.constant 1 : index
    %c1_41 = arith.constant 1 : index
    %c0_42 = arith.constant 0 : index
    %20 = vector.load %arg9[%c1_40, %c1_41, %c0_42] : memref<18x18x128xbf16, #tpu.memory_space<vmem>>, vector<16x16x128xbf16>
    %c0_43 = arith.constant 0 : index
    %c0_44 = arith.constant 0 : index
    %c512 = arith.constant 512 : index
    %21 = vector.load %arg10[%c0_43, %c0_44, %c512] : memref<16x16x1152xbf16, #tpu.memory_space<vmem>>, vector<16x16x128xbf16>
    tpu.vector_store %arg10[%c0_43, %c0_44, %c512], %20 {strides = array<i32>} : memref<16x16x1152xbf16, #tpu.memory_space<vmem>>, vector<16x16x128xbf16>,
    %c1_45 = arith.constant 1 : index
    %c2_46 = arith.constant 2 : index
    %c0_47 = arith.constant 0 : index
    %22 = vector.load %arg9[%c1_45, %c2_46, %c0_47] : memref<18x18x128xbf16, #tpu.memory_space<vmem>>, vector<16x16x128xbf16>
    %c0_48 = arith.constant 0 : index
    %c0_49 = arith.constant 0 : index
    %c640 = arith.constant 640 : index
    %23 = vector.load %arg10[%c0_48, %c0_49, %c640] : memref<16x16x1152xbf16, #tpu.memory_space<vmem>>, vector<16x16x128xbf16>
    tpu.vector_store %arg10[%c0_48, %c0_49, %c640], %22 {strides = array<i32>} : memref<16x16x1152xbf16, #tpu.memory_space<vmem>>, vector<16x16x128xbf16>,
    %c2_50 = arith.constant 2 : index
    %c0_51 = arith.constant 0 : index
    %c0_52 = arith.constant 0 : index
    %24 = vector.load %arg9[%c2_50, %c0_51, %c0_52] : memref<18x18x128xbf16, #tpu.memory_space<vmem>>, vector<16x16x128xbf16>
    %c0_53 = arith.constant 0 : index
    %c0_54 = arith.constant 0 : index
    %c768 = arith.constant 768 : index
    %25 = vector.load %arg10[%c0_53, %c0_54, %c768] : memref<16x16x1152xbf16, #tpu.memory_space<vmem>>, vector<16x16x128xbf16>
    tpu.vector_store %arg10[%c0_53, %c0_54, %c768], %24 {strides = array<i32>} : memref<16x16x1152xbf16, #tpu.memory_space<vmem>>, vector<16x16x128xbf16>,
    %c2_55 = arith.constant 2 : index
    %c1_56 = arith.constant 1 : index
    %c0_57 = arith.constant 0 : index
    %26 = vector.load %arg9[%c2_55, %c1_56, %c0_57] : memref<18x18x128xbf16, #tpu.memory_space<vmem>>, vector<16x16x128xbf16>
    %c0_58 = arith.constant 0 : index
    %c0_59 = arith.constant 0 : index
    %c896 = arith.constant 896 : index
    %27 = vector.load %arg10[%c0_58, %c0_59, %c896] : memref<16x16x1152xbf16, #tpu.memory_space<vmem>>, vector<16x16x128xbf16>
    tpu.vector_store %arg10[%c0_58, %c0_59, %c896], %26 {strides = array<i32>} : memref<16x16x1152xbf16, #tpu.memory_space<vmem>>, vector<16x16x128xbf16>,
    %c2_60 = arith.constant 2 : index
    %c2_61 = arith.constant 2 : index
    %c0_62 = arith.constant 0 : index
    %28 = vector.load %arg9[%c2_60, %c2_61, %c0_62] : memref<18x18x128xbf16, #tpu.memory_space<vmem>>, vector<16x16x128xbf16>
    %c0_63 = arith.constant 0 : index
    %c0_64 = arith.constant 0 : index
    %c1024 = arith.constant 1024 : index
    %29 = vector.load %arg10[%c0_63, %c0_64, %c1024] : memref<16x16x1152xbf16, #tpu.memory_space<vmem>>, vector<16x16x128xbf16>
    tpu.vector_store %arg10[%c0_63, %c0_64, %c1024], %28 {strides = array<i32>} : memref<16x16x1152xbf16, #tpu.memory_space<vmem>>, vector<16x16x128xbf16>,
    %c0_65 = arith.constant 0 : index
    %c0_66 = arith.constant 0 : index
    %c0_67 = arith.constant 0 : index
    %30 = vector.load %arg10[%c0_65, %c0_66, %c0_67] : memref<16x16x1152xbf16, #tpu.memory_space<vmem>>, vector<16x16x1152xbf16>
    %31 = vector.shape_cast %30 : vector<16x16x1152xbf16> to vector<256x1152xbf16>
    %c0_68 = arith.constant 0 : index
    %c0_69 = arith.constant 0 : index
    %32 = vector.load %arg2[%c0_68, %c0_69] : memref<1152x128xbf16, #tpu.memory_space<vmem>>, vector<1152x128xbf16>
    %cst_70 = arith.constant dense<0.000000e+00> : vector<256x128xf32>
    %33 = tpu.matmul %31, %32, %cst_70 {dimension_numbers = #tpu.dot_dimension_numbers<[1], [0], [0], [1], [0, 0, 1, 1], [], []>} : vector<256x1152xbf16>, vector<1152x128xbf16>, vector<256x128xf32> -> vector<256x128xf32>
    %c0_71 = arith.constant 0 : index
    %c0_72 = arith.constant 0 : index
    %34 = vector.load %arg4[%c0_71, %c0_72] : memref<1x128xf32, #tpu.memory_space<vmem>>, vector<1x128xf32>
    %35 = vector.broadcast %34 : vector<1x128xf32> to vector<256x128xf32>
    %36 = arith.mulf %33, %35 : vector<256x128xf32>
    %c0_73 = arith.constant 0 : index
    %c0_74 = arith.constant 0 : index
    %37 = vector.load %arg5[%c0_73, %c0_74] : memref<1x128xf32, #tpu.memory_space<vmem>>, vector<1x128xf32>
    %38 = vector.broadcast %37 : vector<1x128xf32> to vector<256x128xf32>
    %39 = arith.addf %36, %38 : vector<256x128xf32>
    %cst_75 = arith.constant 0.000000e+00 : f32
    %40 = vector.broadcast %cst_75 : f32 to vector<256x128xf32>
    %41 = arith.maximumf %39, %40 : vector<256x128xf32>
    %42 = vector.shape_cast %41 : vector<256x128xf32> to vector<16x16x128xf32>
    %43 = arith.truncf %42 : vector<16x16x128xf32> to vector<16x16x128xbf16>
    %c1_76 = arith.constant 1 : index
    %c1_77 = arith.constant 1 : index
    %c0_78 = arith.constant 0 : index
    %44 = vector.load %arg9[%c1_76, %c1_77, %c0_78] : memref<18x18x128xbf16, #tpu.memory_space<vmem>>, vector<16x16x128xbf16>
    tpu.vector_store %arg9[%c1_76, %c1_77, %c0_78], %43 {strides = array<i32>} : memref<18x18x128xbf16, #tpu.memory_space<vmem>>, vector<16x16x128xbf16>,
    %c0_79 = arith.constant 0 : index
    %c0_80 = arith.constant 0 : index
    %c0_81 = arith.constant 0 : index
    %45 = vector.load %arg9[%c0_79, %c0_80, %c0_81] : memref<18x18x128xbf16, #tpu.memory_space<vmem>>, vector<16x16x128xbf16>
    %c0_82 = arith.constant 0 : index
    %c0_83 = arith.constant 0 : index
    %c0_84 = arith.constant 0 : index
    %46 = vector.load %arg10[%c0_82, %c0_83, %c0_84] : memref<16x16x1152xbf16, #tpu.memory_space<vmem>>, vector<16x16x128xbf16>
    tpu.vector_store %arg10[%c0_82, %c0_83, %c0_84], %45 {strides = array<i32>} : memref<16x16x1152xbf16, #tpu.memory_space<vmem>>, vector<16x16x128xbf16>,
    %c0_85 = arith.constant 0 : index
    %c1_86 = arith.constant 1 : index
    %c0_87 = arith.constant 0 : index
    %47 = vector.load %arg9[%c0_85, %c1_86, %c0_87] : memref<18x18x128xbf16, #tpu.memory_space<vmem>>, vector<16x16x128xbf16>
    %c0_88 = arith.constant 0 : index
    %c0_89 = arith.constant 0 : index
    %c128_90 = arith.constant 128 : index
    %48 = vector.load %arg10[%c0_88, %c0_89, %c128_90] : memref<16x16x1152xbf16, #tpu.memory_space<vmem>>, vector<16x16x128xbf16>
    tpu.vector_store %arg10[%c0_88, %c0_89, %c128_90], %47 {strides = array<i32>} : memref<16x16x1152xbf16, #tpu.memory_space<vmem>>, vector<16x16x128xbf16>,
    %c0_91 = arith.constant 0 : index
    %c2_92 = arith.constant 2 : index
    %c0_93 = arith.constant 0 : index
    %49 = vector.load %arg9[%c0_91, %c2_92, %c0_93] : memref<18x18x128xbf16, #tpu.memory_space<vmem>>, vector<16x16x128xbf16>
    %c0_94 = arith.constant 0 : index
    %c0_95 = arith.constant 0 : index
    %c256_96 = arith.constant 256 : index
    %50 = vector.load %arg10[%c0_94, %c0_95, %c256_96] : memref<16x16x1152xbf16, #tpu.memory_space<vmem>>, vector<16x16x128xbf16>
    tpu.vector_store %arg10[%c0_94, %c0_95, %c256_96], %49 {strides = array<i32>} : memref<16x16x1152xbf16, #tpu.memory_space<vmem>>, vector<16x16x128xbf16>,
    %c1_97 = arith.constant 1 : index
    %c0_98 = arith.constant 0 : index
    %c0_99 = arith.constant 0 : index
    %51 = vector.load %arg9[%c1_97, %c0_98, %c0_99] : memref<18x18x128xbf16, #tpu.memory_space<vmem>>, vector<16x16x128xbf16>
    %c0_100 = arith.constant 0 : index
    %c0_101 = arith.constant 0 : index
    %c384_102 = arith.constant 384 : index
    %52 = vector.load %arg10[%c0_100, %c0_101, %c384_102] : memref<16x16x1152xbf16, #tpu.memory_space<vmem>>, vector<16x16x128xbf16>
    tpu.vector_store %arg10[%c0_100, %c0_101, %c384_102], %51 {strides = array<i32>} : memref<16x16x1152xbf16, #tpu.memory_space<vmem>>, vector<16x16x128xbf16>,
    %c1_103 = arith.constant 1 : index
    %c1_104 = arith.constant 1 : index
    %c0_105 = arith.constant 0 : index
    %53 = vector.load %arg9[%c1_103, %c1_104, %c0_105] : memref<18x18x128xbf16, #tpu.memory_space<vmem>>, vector<16x16x128xbf16>
    %c0_106 = arith.constant 0 : index
    %c0_107 = arith.constant 0 : index
    %c512_108 = arith.constant 512 : index
    %54 = vector.load %arg10[%c0_106, %c0_107, %c512_108] : memref<16x16x1152xbf16, #tpu.memory_space<vmem>>, vector<16x16x128xbf16>
    tpu.vector_store %arg10[%c0_106, %c0_107, %c512_108], %53 {strides = array<i32>} : memref<16x16x1152xbf16, #tpu.memory_space<vmem>>, vector<16x16x128xbf16>,
    %c1_109 = arith.constant 1 : index
    %c2_110 = arith.constant 2 : index
    %c0_111 = arith.constant 0 : index
    %55 = vector.load %arg9[%c1_109, %c2_110, %c0_111] : memref<18x18x128xbf16, #tpu.memory_space<vmem>>, vector<16x16x128xbf16>
    %c0_112 = arith.constant 0 : index
    %c0_113 = arith.constant 0 : index
    %c640_114 = arith.constant 640 : index
    %56 = vector.load %arg10[%c0_112, %c0_113, %c640_114] : memref<16x16x1152xbf16, #tpu.memory_space<vmem>>, vector<16x16x128xbf16>
    tpu.vector_store %arg10[%c0_112, %c0_113, %c640_114], %55 {strides = array<i32>} : memref<16x16x1152xbf16, #tpu.memory_space<vmem>>, vector<16x16x128xbf16>,
    %c2_115 = arith.constant 2 : index
    %c0_116 = arith.constant 0 : index
    %c0_117 = arith.constant 0 : index
    %57 = vector.load %arg9[%c2_115, %c0_116, %c0_117] : memref<18x18x128xbf16, #tpu.memory_space<vmem>>, vector<16x16x128xbf16>
    %c0_118 = arith.constant 0 : index
    %c0_119 = arith.constant 0 : index
    %c768_120 = arith.constant 768 : index
    %58 = vector.load %arg10[%c0_118, %c0_119, %c768_120] : memref<16x16x1152xbf16, #tpu.memory_space<vmem>>, vector<16x16x128xbf16>
    tpu.vector_store %arg10[%c0_118, %c0_119, %c768_120], %57 {strides = array<i32>} : memref<16x16x1152xbf16, #tpu.memory_space<vmem>>, vector<16x16x128xbf16>,
    %c2_121 = arith.constant 2 : index
    %c1_122 = arith.constant 1 : index
    %c0_123 = arith.constant 0 : index
    %59 = vector.load %arg9[%c2_121, %c1_122, %c0_123] : memref<18x18x128xbf16, #tpu.memory_space<vmem>>, vector<16x16x128xbf16>
    %c0_124 = arith.constant 0 : index
    %c0_125 = arith.constant 0 : index
    %c896_126 = arith.constant 896 : index
    %60 = vector.load %arg10[%c0_124, %c0_125, %c896_126] : memref<16x16x1152xbf16, #tpu.memory_space<vmem>>, vector<16x16x128xbf16>
    tpu.vector_store %arg10[%c0_124, %c0_125, %c896_126], %59 {strides = array<i32>} : memref<16x16x1152xbf16, #tpu.memory_space<vmem>>, vector<16x16x128xbf16>,
    %c2_127 = arith.constant 2 : index
    %c2_128 = arith.constant 2 : index
    %c0_129 = arith.constant 0 : index
    %61 = vector.load %arg9[%c2_127, %c2_128, %c0_129] : memref<18x18x128xbf16, #tpu.memory_space<vmem>>, vector<16x16x128xbf16>
    %c0_130 = arith.constant 0 : index
    %c0_131 = arith.constant 0 : index
    %c1024_132 = arith.constant 1024 : index
    %62 = vector.load %arg10[%c0_130, %c0_131, %c1024_132] : memref<16x16x1152xbf16, #tpu.memory_space<vmem>>, vector<16x16x128xbf16>
    tpu.vector_store %arg10[%c0_130, %c0_131, %c1024_132], %61 {strides = array<i32>} : memref<16x16x1152xbf16, #tpu.memory_space<vmem>>, vector<16x16x128xbf16>,
    %c0_133 = arith.constant 0 : index
    %c0_134 = arith.constant 0 : index
    %c0_135 = arith.constant 0 : index
    %63 = vector.load %arg10[%c0_133, %c0_134, %c0_135] : memref<16x16x1152xbf16, #tpu.memory_space<vmem>>, vector<16x16x1152xbf16>
    %64 = vector.shape_cast %63 : vector<16x16x1152xbf16> to vector<256x1152xbf16>
    %c0_136 = arith.constant 0 : index
    %c0_137 = arith.constant 0 : index
    %65 = vector.load %arg3[%c0_136, %c0_137] : memref<1152x128xbf16, #tpu.memory_space<vmem>>, vector<1152x128xbf16>
    %cst_138 = arith.constant dense<0.000000e+00> : vector<256x128xf32>
    %66 = tpu.matmul %64, %65, %cst_138 {dimension_numbers = #tpu.dot_dimension_numbers<[1], [0], [0], [1], [0, 0, 1, 1], [], []>} : vector<256x1152xbf16>, vector<1152x128xbf16>, vector<256x128xf32> -> vector<256x128xf32>
    %c0_139 = arith.constant 0 : index
    %c0_140 = arith.constant 0 : index
    %67 = vector.load %arg6[%c0_139, %c0_140] : memref<1x128xf32, #tpu.memory_space<vmem>>, vector<1x128xf32>
    %68 = vector.broadcast %67 : vector<1x128xf32> to vector<256x128xf32>
    %69 = arith.mulf %66, %68 : vector<256x128xf32>
    %c0_141 = arith.constant 0 : index
    %c0_142 = arith.constant 0 : index
    %70 = vector.load %arg7[%c0_141, %c0_142] : memref<1x128xf32, #tpu.memory_space<vmem>>, vector<1x128xf32>
    %71 = vector.broadcast %70 : vector<1x128xf32> to vector<256x128xf32>
    %72 = arith.addf %69, %71 : vector<256x128xf32>
    %73 = vector.shape_cast %7 : vector<16x16x16xf32> to vector<256x16xf32>
    %cst_143 = arith.constant 0.000000e+00 : f32
    %74 = vector.broadcast %cst_143 : f32 to vector<256x112xf32>
    %75 = tpu.concatenate %73, %74 in 1 : vector<256x16xf32>, vector<256x112xf32> -> vector<256x128xf32>
    %76 = arith.addf %72, %75 : vector<256x128xf32>
    %cst_144 = arith.constant 0.000000e+00 : f32
    %77 = vector.broadcast %cst_144 : f32 to vector<256x128xf32>
    %78 = arith.maximumf %76, %77 : vector<256x128xf32>
    %79 = vector.shape_cast %78 : vector<256x128xf32> to vector<16x16x128xf32>
    %c0_145 = arith.constant 0 : index
    %c0_146 = arith.constant 0 : index
    %c0_147 = arith.constant 0 : index
    %c0_148 = arith.constant 0 : index
    %80 = vector.load %arg8[%c0_145, %c0_146, %c0_147, %c0_148] : memref<1x16x16x128xf32, #tpu.memory_space<vmem>>, vector<1x16x16x128xf32>
    %81 = vector.shape_cast %80 : vector<1x16x16x128xf32> to vector<16x16x128xf32>
    %82 = vector.shape_cast %79 : vector<16x16x128xf32> to vector<1x16x16x128xf32>
    tpu.vector_store %arg8[%c0_145, %c0_146, %c0_147, %c0_148], %82 {strides = array<i32>} : memref<1x16x16x128xf32, #tpu.memory_space<vmem>>, vector<1x16x16x128xf32>,
    return
  }
  func.func @transform_0(%arg0: i32) -> (i32, i32, i32, i32) {
    %c0_i32 = arith.constant 0 : i32
    %c0_i32_0 = arith.constant 0 : i32
    %c0_i32_1 = arith.constant 0 : i32
    %c0_i32_2 = arith.constant 0 : i32
    return %arg0, %c0_i32, %c0_i32_0, %c0_i32_1 : i32, i32, i32, i32
  }
  func.func @transform_1(%arg0: i32) -> (i32, i32) {
    %c0_i32 = arith.constant 0 : i32
    %c0_i32_0 = arith.constant 0 : i32
    %c0_i32_1 = arith.constant 0 : i32
    return %c0_i32, %c0_i32_0 : i32, i32
  }
  func.func @transform_2(%arg0: i32) -> (i32, i32) {
    %c0_i32 = arith.constant 0 : i32
    %c0_i32_0 = arith.constant 0 : i32
    %c0_i32_1 = arith.constant 0 : i32
    return %c0_i32, %c0_i32_0 : i32, i32
  }
  func.func @transform_3(%arg0: i32) -> (i32, i32) {
    %c0_i32 = arith.constant 0 : i32
    %c0_i32_0 = arith.constant 0 : i32
    %c0_i32_1 = arith.constant 0 : i32
    return %c0_i32, %c0_i32_0 : i32, i32
  }
  func.func @transform_4(%arg0: i32) -> (i32, i32) {
    %c0_i32 = arith.constant 0 : i32
    %c0_i32_0 = arith.constant 0 : i32
    %c0_i32_1 = arith.constant 0 : i32
    return %c0_i32, %c0_i32_0 : i32, i32
  }
  func.func @transform_5(%arg0: i32) -> (i32, i32) {
    %c0_i32 = arith.constant 0 : i32
    %c0_i32_0 = arith.constant 0 : i32
    %c0_i32_1 = arith.constant 0 : i32
    return %c0_i32, %c0_i32_0 : i32, i32
  }
  func.func @transform_6(%arg0: i32) -> (i32, i32) {
    %c0_i32 = arith.constant 0 : i32
    %c0_i32_0 = arith.constant 0 : i32
    %c0_i32_1 = arith.constant 0 : i32
    return %c0_i32, %c0_i32_0 : i32, i32
  }
  func.func @transform_7(%arg0: i32) -> (i32, i32, i32, i32) {
    %c0_i32 = arith.constant 0 : i32
    %c0_i32_0 = arith.constant 0 : i32
    %c0_i32_1 = arith.constant 0 : i32
    %c0_i32_2 = arith.constant 0 : i32
    return %arg0, %c0_i32, %c0_i32_0, %c0_i32_1 : i32, i32, i32, i32
  }
}

</mosaic_0001>

<llo_original>
// kernel: tpu_custom_call.1
$region0: #{tpu_custom_call.1}
  #allocation0 [shape = 'u32[]', space=smem, size = 0x4, offset = 0x4, fixed_abs, tag = 'smem constant byte address 0x4 - core index']
  #allocation1 [shape = 'u32[72,128]{1,0:T(1,128)}', space=vmem, size = 0x9000, scoped, tag = 'internal scratch']
  #allocation2 [shape = 'bf16[18,18,128]{2,1,0:T(8,128)(2,1)}', space=vmem, size = 0x1b000, scoped, tag = 'scratch operand']
  #allocation3 [shape = 'bf16[16,16,1152]{2,1,0:T(8,128)(2,1)}', space=vmem, size = 0x90000, scoped, tag = 'scratch operand']
  %s0 = inlined_call_operand.hbm [shape: f32[2,16,16,16], index: 0, kind: input, shape index: {}]
  %s1 = inlined_call_operand.hbm [shape: bf16[1152,128], index: 1, kind: input, shape index: {}]
  %s2 = inlined_call_operand.hbm [shape: bf16[1152,128], index: 2, kind: input, shape index: {}]
  %s3 = inlined_call_operand.vmem [shape: f32[1,128], index: 3, kind: input, shape index: {}]
  %s4 = inlined_call_operand.vmem [shape: f32[1,128], index: 4, kind: input, shape index: {}]
  %s5 = inlined_call_operand.vmem [shape: f32[1,128], index: 5, kind: input, shape index: {}]
  %s6 = inlined_call_operand.vmem [shape: f32[1,128], index: 6, kind: input, shape index: {}]
  %s7 = inlined_call_operand.hbm [shape: f32[2,16,16,128], index: 7, kind: output, shape index: {}]
  %s8 = sld [smem:[#allocation0]]
  $region73: #{tpu_custom_call.1} parent=0
    _
  %s10 = ssub.s32 1, %s8
  %s11 = scalar_select 0, %s10, %s8
  $region1: #{tpu_custom_call.1} parent=0
    #allocation4 [shape = 'u8[262144]{0}', space=vmem, size = 0x40000, scoped, tag = 'input window, operand 0']
    #allocation5 [shape = 's32[2]{0}', space=sflag, size = 0x8, scoped, tag = 'scoped memory for tpu_custom_call.1']
    #allocation6 [shape = 's32[2]{0}', space=sflag, size = 0x8, scoped, tag = 'scoped memory for tpu_custom_call.1']
    #allocation7 [shape = 'u8[294912]{0}', space=vmem, size = 0x48000, scoped, tag = 'input window, operand 1, single buffered']
    #allocation8 [shape = 's32[1]{0}', space=sflag, size = 0x4, scoped, tag = 'scoped memory for tpu_custom_call.1']
    #allocation9 [shape = 'u8[294912]{0}', space=vmem, size = 0x48000, scoped, tag = 'input window, operand 2, single buffered']
    #allocation10 [shape = 'u8[262144]{0}', space=vmem, size = 0x40000, scoped, tag = 'output window, operand 0']
    %12 = vsyncpa [#allocation5], 0
    %s13 = scalar_lea.sflag [#allocation5], 1
    %14 = vsyncpa %s13, 0
    %15 = vsyncpa [#allocation8], 0
    %16 = vsyncpa [#allocation6], 0
    %s17 = scalar_lea.sflag [#allocation6], 1
    %18 = vsyncpa %s17, 0
    loop: start=0, step=1, limit=4
    $region2: #{tpu_custom_call.1} parent=1 // loop_pre_header
      _
    $region3: #{tpu_custom_call.1} parent=1 // loop_header
      %s20 = sphi 0, %s24
      %p21 = scmp.ge.s32.totalorder %s20, 4
      %s30 = sphi 0, %s32
      %s33 = sphi 0, %s30
      %s34 = sphi 0, %s33
      %s50 = sphi 0, %s34
      %s54 = sphi 0, %s54
      %s56 = sphi 0, %s54
      %s57 = sphi 0, %s56
      %s71 = sphi 0, %s57
      %s75 = sphi 0, %s75
      %s77 = sphi 0, %s75
      %s78 = sphi 0, %s77
      %s92 = sphi 0, %s78
      %s96 = sphi 0, %s96
      %s98 = sphi 0, %s96
      %s99 = sphi 0, %s98
      %s113 = sphi 0, %s99
      %s117 = sphi 0, %s117
      %s119 = sphi 0, %s117
      %s120 = sphi 0, %s119
      %s134 = sphi 0, %s120
      %s138 = sphi 0, %s138
      %s140 = sphi 0, %s138
      %s141 = sphi 0, %s140
      %s155 = sphi 0, %s141
      %s159 = sphi 0, %s159
      %s161 = sphi 0, %s159
      %s162 = sphi 0, %s161
      %s176 = sphi 0, %s162
      %s182 = sphi 0, %s184
      %s185 = sphi 0, %s182
      %s186 = sphi 0, %s185
      %s202 = sphi 0, %s186
    $region4: #{tpu_custom_call.1} parent=1 // loop_header_branch
      %23 = sbr.rel (%p21) target = $region8
    $region5: #{tpu_custom_call.1} parent=1 // loop_body
      %s25 = ssub.s32 %s20, 1
      %s26 = ssub.s32 %s20, 2
      %s27 = sadd.s32 %s20, 1
      %s28 = ssub.s32 %s20, %s27
      %p29 = scmp.eq.s32.totalorder %s28, 0
      %s31 = sadd.s32 %s30, 1
      %s32 = scalar_select %p29, %s30, %s31
      %p35 = pneg %p29
      %p36 = scmp.eq.s32.totalorder %s20, 1
      %p37 = por %p35, %p36
      %p38 = scmp.ne.s32.totalorder %s30, %s33
      %p39 = scmp.eq.s32.totalorder %s20, 0
      %p40 = por %p38, %p39
      %p41 = scmp.ne.s32.totalorder %s30, %s33
      %p42 = scmp.eq.s32.totalorder %s25, 1
      %p43 = por %p41, %p42
      %p44 = scmp.ne.s32.totalorder %s33, %s34
      %p45 = scmp.eq.s32.totalorder %s25, 0
      %p46 = por %p44, %p45
      %p47 = scmp.ne.s32.totalorder %s33, %s34
      %p48 = scmp.eq.s32.totalorder %s26, 1
      %p49 = por %p47, %p48
      %p51 = scmp.ne.s32.totalorder %s34, %s50
      %p52 = scmp.eq.s32.totalorder %s26, 0
      %p53 = por %p51, %p52
      %s55 = sadd.s32 %s54, 1
      %p58 = scmp.eq.s32.totalorder %s20, 1
      %p59 = scmp.ne.s32.totalorder %s54, %s56
      %p60 = scmp.eq.s32.totalorder %s20, 0
      %p61 = por %p59, %p60
      %p62 = scmp.ne.s32.totalorder %s54, %s56
      %p63 = scmp.eq.s32.totalorder %s25, 1
      %p64 = por %p62, %p63
      %p65 = scmp.ne.s32.totalorder %s56, %s57
      %p66 = scmp.eq.s32.totalorder %s25, 0
      %p67 = por %p65, %p66
      %p68 = scmp.ne.s32.totalorder %s56, %s57
      %p69 = scmp.eq.s32.totalorder %s26, 1
      %p70 = por %p68, %p69
      %p72 = scmp.ne.s32.totalorder %s57, %s71
      %p73 = scmp.eq.s32.totalorder %s26, 0
      %p74 = por %p72, %p73
      %s76 = sadd.s32 %s75, 1
      %p79 = scmp.eq.s32.totalorder %s20, 1
      %p80 = scmp.ne.s32.totalorder %s75, %s77
      %p81 = scmp.eq.s32.totalorder %s20, 0
      %p82 = por %p80, %p81
      %p83 = scmp.ne.s32.totalorder %s75, %s77
      %p84 = scmp.eq.s32.totalorder %s25, 1
      %p85 = por %p83, %p84
      %p86 = scmp.ne.s32.totalorder %s77, %s78
      %p87 = scmp.eq.s32.totalorder %s25, 0
      %p88 = por %p86, %p87
      %p89 = scmp.ne.s32.totalorder %s77, %s78
      %p90 = scmp.eq.s32.totalorder %s26, 1
      %p91 = por %p89, %p90
      %p93 = scmp.ne.s32.totalorder %s78, %s92
      %p94 = scmp.eq.s32.totalorder %s26, 0
      %p95 = por %p93, %p94
      %s97 = sadd.s32 %s96, 1
      %p100 = scmp.eq.s32.totalorder %s20, 1
      %p101 = scmp.ne.s32.totalorder %s96, %s98
      %p102 = scmp.eq.s32.totalorder %s20, 0
      %p103 = por %p101, %p102
      %p104 = scmp.ne.s32.totalorder %s96, %s98
      %p105 = scmp.eq.s32.totalorder %s25, 1
      %p106 = por %p104, %p105
      %p107 = scmp.ne.s32.totalorder %s98, %s99
      %p108 = scmp.eq.s32.totalorder %s25, 0
      %p109 = por %p107, %p108
      %p110 = scmp.ne.s32.totalorder %s98, %s99
      %p111 = scmp.eq.s32.totalorder %s26, 1
      %p112 = por %p110, %p111
      %p114 = scmp.ne.s32.totalorder %s99, %s113
      %p115 = scmp.eq.s32.totalorder %s26, 0
      %p116 = por %p114, %p115
      %s118 = sadd.s32 %s117, 1
      %p121 = scmp.eq.s32.totalorder %s20, 1
      %p122 = scmp.ne.s32.totalorder %s117, %s119
      %p123 = scmp.eq.s32.totalorder %s20, 0
      %p124 = por %p122, %p123
      %p125 = scmp.ne.s32.totalorder %s117, %s119
      %p126 = scmp.eq.s32.totalorder %s25, 1
      %p127 = por %p125, %p126
      %p128 = scmp.ne.s32.totalorder %s119, %s120
      %p129 = scmp.eq.s32.totalorder %s25, 0
      %p130 = por %p128, %p129
      %p131 = scmp.ne.s32.totalorder %s119, %s120
      %p132 = scmp.eq.s32.totalorder %s26, 1
      %p133 = por %p131, %p132
      %p135 = scmp.ne.s32.totalorder %s120, %s134
      %p136 = scmp.eq.s32.totalorder %s26, 0
      %p137 = por %p135, %p136
      %s139 = sadd.s32 %s138, 1
      %p142 = scmp.eq.s32.totalorder %s20, 1
      %p143 = scmp.ne.s32.totalorder %s138, %s140
      %p144 = scmp.eq.s32.totalorder %s20, 0
      %p145 = por %p143, %p144
      %p146 = scmp.ne.s32.totalorder %s138, %s140
      %p147 = scmp.eq.s32.totalorder %s25, 1
      %p148 = por %p146, %p147
      %p149 = scmp.ne.s32.totalorder %s140, %s141
      %p150 = scmp.eq.s32.totalorder %s25, 0
      %p151 = por %p149, %p150
      %p152 = scmp.ne.s32.totalorder %s140, %s141
      %p153 = scmp.eq.s32.totalorder %s26, 1
      %p154 = por %p152, %p153
      %p156 = scmp.ne.s32.totalorder %s141, %s155
      %p157 = scmp.eq.s32.totalorder %s26, 0
      %p158 = por %p156, %p157
      %s160 = sadd.s32 %s159, 1
      %p163 = scmp.eq.s32.totalorder %s20, 1
      %p164 = scmp.ne.s32.totalorder %s159, %s161
      %p165 = scmp.eq.s32.totalorder %s20, 0
      %p166 = por %p164, %p165
      %p167 = scmp.ne.s32.totalorder %s159, %s161
      %p168 = scmp.eq.s32.totalorder %s25, 1
      %p169 = por %p167, %p168
      %p170 = scmp.ne.s32.totalorder %s161, %s162
      %p171 = scmp.eq.s32.totalorder %s25, 0
      %p172 = por %p170, %p171
      %p173 = scmp.ne.s32.totalorder %s161, %s162
      %p174 = scmp.eq.s32.totalorder %s26, 1
      %p175 = por %p173, %p174
      %p177 = scmp.ne.s32.totalorder %s162, %s176
      %p178 = scmp.eq.s32.totalorder %s26, 0
      %p179 = por %p177, %p178
      %s180 = ssub.s32 %s20, %s27
      %p181 = scmp.eq.s32.totalorder %s180, 0
      %s183 = sadd.s32 %s182, 1
      %s184 = scalar_select %p181, %s182, %s183
      %p187 = pneg %p181
      %p188 = scmp.eq.s32.totalorder %s20, 1
      %p189 = por %p187, %p188
      %p190 = scmp.ne.s32.totalorder %s182, %s185
      %p191 = scmp.eq.s32.totalorder %s20, 0
      %p192 = por %p190, %p191
      %p193 = scmp.ne.s32.totalorder %s182, %s185
      %p194 = scmp.eq.s32.totalorder %s25, 1
      %p195 = por %p193, %p194
      %p196 = scmp.ne.s32.totalorder %s185, %s186
      %p197 = scmp.eq.s32.totalorder %s25, 0
      %p198 = por %p196, %p197
      %p199 = scmp.ne.s32.totalorder %s185, %s186
      %p200 = scmp.eq.s32.totalorder %s26, 1
      %p201 = por %p199, %p200
      %p203 = scmp.ne.s32.totalorder %s186, %s202
      %p204 = scmp.eq.s32.totalorder %s26, 0
      %p205 = por %p203, %p204
      %p206 = scmp.le.s32.totalorder 1, %s20
      %p207 = scmp.lt.s32.totalorder %s20, 3
      %p208 = pnand %p206, %p207
      %p209 = pneg %p208
      // Predicated region
      $region9: #{tpu_custom_call.1} parent=5 // pred_check
        _
      $region10: #{tpu_custom_call.1} parent=5 // pred_check_branch
        %211 = sbr.rel (%p208) target = $region12
      $region11: #{tpu_custom_call.1} parent=5 // pred_region
        %s212 = ssub.s32 %s20, 1
        // Predicated region
        $region13: #{tpu_custom_call.1} parent=11 // pred_check
          %p213 = pneg %p67
        $region14: #{tpu_custom_call.1} parent=11 // pred_check_branch
          %215 = sbr.rel (%p213) target = $region16
        $region15: #{tpu_custom_call.1} parent=11 // pred_region
          %217 = vsyncadd [#allocation8], 0
          %s218 = sshll.u32 %s1, 4
          %s219 = int_to_ptr.hbm [resolvable:$true] %s218
          %s220 = sshll.u32 [#allocation7], 4
          %s221 = int_to_ptr.vmem [resolvable:$true] %s220
          %226 = dma.hbm_to_vmem [thread:$0]  %s219, 9216, %s221, [#allocation8], 64, 64, 4
        $region16: #{tpu_custom_call.1} parent=11 // pred_fallthru
          _
        // Predicated region
        $region17: #{tpu_custom_call.1} parent=11 // pred_check
          %p227 = pneg %p88
        $region18: #{tpu_custom_call.1} parent=11 // pred_check_branch
          %229 = sbr.rel (%p227) target = $region20
        $region19: #{tpu_custom_call.1} parent=11 // pred_region
          %231 = vsyncadd [#allocation8], 0
          %s232 = sshll.u32 %s2, 4
          %s233 = int_to_ptr.hbm [resolvable:$true] %s232
          %s234 = sshll.u32 [#allocation9], 4
          %s235 = int_to_ptr.vmem [resolvable:$true] %s234
          %240 = dma.hbm_to_vmem [thread:$0]  %s233, 9216, %s235, [#allocation8], 64, 64, 4
        $region20: #{tpu_custom_call.1} parent=11 // pred_fallthru
          _
        // Predicated region
        $region21: #{tpu_custom_call.1} parent=11 // pred_check
          %p241 = pneg %p109
        $region22: #{tpu_custom_call.1} parent=11 // pred_check_branch
          %243 = sbr.rel (%p241) target = $region24
        $region23: #{tpu_custom_call.1} parent=11 // pred_region
          _
        $region24: #{tpu_custom_call.1} parent=11 // pred_fallthru
          _
        // Predicated region
        $region25: #{tpu_custom_call.1} parent=11 // pred_check
          %p244 = pneg %p130
        $region26: #{tpu_custom_call.1} parent=11 // pred_check_branch
          %246 = sbr.rel (%p244) target = $region28
        $region27: #{tpu_custom_call.1} parent=11 // pred_region
          _
        $region28: #{tpu_custom_call.1} parent=11 // pred_fallthru
          _
        // Predicated region
        $region29: #{tpu_custom_call.1} parent=11 // pred_check
          %p247 = pneg %p151
        $region30: #{tpu_custom_call.1} parent=11 // pred_check_branch
          %249 = sbr.rel (%p247) target = $region32
        $region31: #{tpu_custom_call.1} parent=11 // pred_region
          _
        $region32: #{tpu_custom_call.1} parent=11 // pred_fallthru
          _
        // Predicated region
        $region33: #{tpu_custom_call.1} parent=11 // pred_check
          %p250 = pneg %p172
        $region34: #{tpu_custom_call.1} parent=11 // pred_check_branch
          %252 = sbr.rel (%p250) target = $region36
        $region35: #{tpu_custom_call.1} parent=11 // pred_region
          _
        $region36: #{tpu_custom_call.1} parent=11 // pred_fallthru
          _
      $region12: #{tpu_custom_call.1} parent=5 // pred_fallthru
        _
      %p253 = scmp.lt.s32.totalorder %s20, 2
      // Predicated region
      $region37: #{tpu_custom_call.1} parent=5 // pred_check
        %p254 = pneg %p253
      $region38: #{tpu_custom_call.1} parent=5 // pred_check_branch
        %256 = sbr.rel (%p254) target = $region40
      $region39: #{tpu_custom_call.1} parent=5 // pred_region
        // Predicated region
        $region41: #{tpu_custom_call.1} parent=39 // pred_check
          %p257 = pneg %p40
        $region42: #{tpu_custom_call.1} parent=39 // pred_check_branch
          %259 = sbr.rel (%p257) target = $region44
        $region43: #{tpu_custom_call.1} parent=39 // pred_region
          %s260 = sand.u32 %s30, 1
          %s261 = scalar_lea.sflag [#allocation5], %s260
          %s262 = sand.u32 %s30, 1
          %s263 = smul.addr %s262, 256
          %s264 = scalar_lea.vmem [#allocation4], %s263
          %266 = vsyncadd %s261, 0
          %s267 = smul.addr %s20, 32
          %s268 = smul.addr %s267, 8
          %s269 = scalar_lea.hbm %s0, %s268
          %s270 = sshll.u32 %s269, 4
          %s271 = int_to_ptr.hbm [resolvable:$true] %s270
          %s272 = sshll.u32 %s264, 4
          %s273 = int_to_ptr.vmem [resolvable:$true] %s272
          %278 = dma.hbm_to_vmem [thread:$0]  %s271, 4096, %s273, %s261, 128, 128, 8
        $region44: #{tpu_custom_call.1} parent=39 // pred_fallthru
          _
      $region40: #{tpu_custom_call.1} parent=5 // pred_fallthru
        _
      %p279 = scmp.le.s32.totalorder 1, %s20
      %p280 = scmp.lt.s32.totalorder %s20, 3
      %p281 = pnand %p279, %p280
      %p282 = pneg %p281
      // Predicated region
      $region45: #{tpu_custom_call.1} parent=5 // pred_check
        _
      $region46: #{tpu_custom_call.1} parent=5 // pred_check_branch
        %284 = sbr.rel (%p281) target = $region48
      $region47: #{tpu_custom_call.1} parent=5 // pred_region
        %s285 = ssub.s32 %s20, 1
        %s286 = sand.u32 %s33, 1
        %s287 = scalar_lea.sflag [#allocation5], %s286
        %s288 = sand.u32 %s33, 1
        %s289 = smul.addr %s288, 256
        %s290 = scalar_lea.vmem [#allocation4], %s289
        // Predicated region
        $region49: #{tpu_custom_call.1} parent=47 // pred_check
          %p291 = pneg %p46
        $region50: #{tpu_custom_call.1} parent=47 // pred_check_branch
          %293 = sbr.rel (%p291) target = $region52
        $region51: #{tpu_custom_call.1} parent=47 // pred_region
          %295 = dma.done %s287, 4096
        $region52: #{tpu_custom_call.1} parent=47 // pred_fallthru
          _
        // Predicated region
        $region53: #{tpu_custom_call.1} parent=47 // pred_check
          %p296 = pneg %p67
        $region54: #{tpu_custom_call.1} parent=47 // pred_check_branch
          %298 = sbr.rel (%p296) target = $region56
        $region55: #{tpu_custom_call.1} parent=47 // pred_region
          %300 = dma.done [#allocation8], 9216
        $region56: #{tpu_custom_call.1} parent=47 // pred_fallthru
          _
        // Predicated region
        $region57: #{tpu_custom_call.1} parent=47 // pred_check
          %p301 = pneg %p88
        $region58: #{tpu_custom_call.1} parent=47 // pred_check_branch
          %303 = sbr.rel (%p301) target = $region60
        $region59: #{tpu_custom_call.1} parent=47 // pred_region
          %305 = dma.done [#allocation8], 9216
        $region60: #{tpu_custom_call.1} parent=47 // pred_fallthru
          _
        %s306 = sand.u32 %s33, 1
        %s307 = scalar_lea.sflag [#allocation5], %s306
        %s308 = sand.u32 %s33, 1
        %s309 = smul.addr %s308, 256
        %s310 = scalar_lea.vmem [#allocation4], %s309
        %p311 = pneg %p46
        %p312 = pneg %p43
        %p313 = pneg %p67
        %p314 = pneg %p64
        %p315 = pneg %p88
        %p316 = pneg %p85
        %p317 = pneg %p109
        %p318 = pneg %p106
        %p319 = pneg %p130
        %p320 = pneg %p127
        %p321 = pneg %p151
        %p322 = pneg %p148
        %p323 = pneg %p172
        %p324 = pneg %p169
        %p325 = pneg %p198
        %p326 = pneg %p195
        %s327 = sand.u32 %s185, 1
        %s328 = scalar_lea.sflag [#allocation6], %s327
        %s329 = sand.u32 %s185, 1
        %s330 = smul.addr %s329, 256
        %s331 = scalar_lea.vmem [#allocation10], %s330
        %333 = vst [vmem:[#allocation2] sm:$0xf] 0
        %334 = vst [vmem:[#allocation2 + $0x4] sm:$0xf] 0
        %335 = vst [vmem:[#allocation2 + $0x8] sm:$0x1] 0
        %s336 = scalar_lea.vmem [#allocation2], 204
        %337 = vst [vmem:[%s336] sm:$0xf] 0
        %338 = vst [vmem:[%s336 + $0x4] sm:$0xf] 0
        %339 = vst [vmem:[%s336 + $0x8] sm:$0x1] 0
        %vm340 = vcmask 1040384
        %vm341 = vsmask.f32 256
        %vm342 = vmand %vm340, %vm341
        %v343 = vld [vmem:[#allocation2] sm:$0x1]
        %v344 = vsel %vm342, 0, %v343
        %345 = vst [vmem:[#allocation2] sm:$0x1] %v344
        %v346 = vld [vmem:[#allocation2 + $0xc] sm:$0x1]
        %v347 = vsel %vm342, 0, %v346
        %348 = vst [vmem:[#allocation2 + $0xc] sm:$0x1] %v347
        %v349 = vld [vmem:[#allocation2 + $0x18] sm:$0x1]
        %v350 = vsel %vm342, 0, %v349
        %351 = vst [vmem:[#allocation2 + $0x18] sm:$0x1] %v350
        %v352 = vld [vmem:[#allocation2 + $0x24] sm:$0x1]
        %v353 = vsel %vm342, 0, %v352
        %354 = vst [vmem:[#allocation2 + $0x24] sm:$0x1] %v353
        %v355 = vld [vmem:[#allocation2 + $0x30] sm:$0x1]
        %v356 = vsel %vm342, 0, %v355
        %357 = vst [vmem:[#allocation2 + $0x30] sm:$0x1] %v356
        %v358 = vld [vmem:[#allocation2 + $0x3c] sm:$0x1]
        %v359 = vsel %vm342, 0, %v358
        %360 = vst [vmem:[#allocation2 + $0x3c] sm:$0x1] %v359
        %v361 = vld [vmem:[#allocation2 + $0x48] sm:$0x1]
        %v362 = vsel %vm342, 0, %v361
        %363 = vst [vmem:[#allocation2 + $0x48] sm:$0x1] %v362
        %v364 = vld [vmem:[#allocation2 + $0x54] sm:$0x1]
        %v365 = vsel %vm342, 0, %v364
        %366 = vst [vmem:[#allocation2 + $0x54] sm:$0x1] %v365
        %v367 = vld [vmem:[#allocation2 + $0x60] sm:$0x1]
        %v368 = vsel %vm342, 0, %v367
        %369 = vst [vmem:[#allocation2 + $0x60] sm:$0x1] %v368
        %v370 = vld [vmem:[#allocation2 + $0x6c] sm:$0x1]
        %v371 = vsel %vm342, 0, %v370
        %372 = vst [vmem:[#allocation2 + $0x6c] sm:$0x1] %v371
        %v373 = vld [vmem:[#allocation2 + $0x78] sm:$0x1]
        %v374 = vsel %vm342, 0, %v373
        %375 = vst [vmem:[#allocation2 + $0x78] sm:$0x1] %v374
        %v376 = vld [vmem:[#allocation2 + $0x84] sm:$0x1]
        %v377 = vsel %vm342, 0, %v376
        %378 = vst [vmem:[#allocation2 + $0x84] sm:$0x1] %v377
        %v379 = vld [vmem:[#allocation2 + $0x90] sm:$0x1]
        %v380 = vsel %vm342, 0, %v379
        %381 = vst [vmem:[#allocation2 + $0x90] sm:$0x1] %v380
        %v382 = vld [vmem:[#allocation2 + $0x9c] sm:$0x1]
        %v383 = vsel %vm342, 0, %v382
        %384 = vst [vmem:[#allocation2 + $0x9c] sm:$0x1] %v383
        %v385 = vld [vmem:[#allocation2 + $0xa8] sm:$0x1]
        %v386 = vsel %vm342, 0, %v385
        %387 = vst [vmem:[#allocation2 + $0xa8] sm:$0x1] %v386
        %v388 = vld [vmem:[#allocation2 + $0xb4] sm:$0x1]
        %v389 = vsel %vm342, 0, %v388
        %390 = vst [vmem:[#allocation2 + $0xb4] sm:$0x1] %v389
        %v391 = vld [vmem:[#allocation2 + $0xc0] sm:$0x1]
        %v392 = vsel %vm342, 0, %v391
        %393 = vst [vmem:[#allocation2 + $0xc0] sm:$0x1] %v392
        %v394 = vld [vmem:[#allocation2 + $0xcc] sm:$0x1]
        %v395 = vsel %vm342, 0, %v394
        %396 = vst [vmem:[#allocation2 + $0xcc] sm:$0x1] %v395
        %vm397 = vsmask.f32 7938
        %vm398 = vmand %vm340, %vm397
        %v399 = vld [vmem:[#allocation2 + $0x8] sm:$0x1]
        %v400 = vsel %vm398, 0, %v399
        %401 = vst [vmem:[#allocation2 + $0x8] sm:$0x1] %v400
        %v402 = vld [vmem:[#allocation2 + $0x14] sm:$0x1]
        %v403 = vsel %vm398, 0, %v402
        %404 = vst [vmem:[#allocation2 + $0x14] sm:$0x1] %v403
        %v405 = vld [vmem:[#allocation2 + $0x20] sm:$0x1]
        %v406 = vsel %vm398, 0, %v405
        %407 = vst [vmem:[#allocation2 + $0x20] sm:$0x1] %v406
        %v408 = vld [vmem:[#allocation2 + $0x2c] sm:$0x1]
        %v409 = vsel %vm398, 0, %v408
        %410 = vst [vmem:[#allocation2 + $0x2c] sm:$0x1] %v409
        %v411 = vld [vmem:[#allocation2 + $0x38] sm:$0x1]
        %v412 = vsel %vm398, 0, %v411
        %413 = vst [vmem:[#allocation2 + $0x38] sm:$0x1] %v412
        %v414 = vld [vmem:[#allocation2 + $0x44] sm:$0x1]
        %v415 = vsel %vm398, 0, %v414
        %416 = vst [vmem:[#allocation2 + $0x44] sm:$0x1] %v415
        %v417 = vld [vmem:[#allocation2 + $0x50] sm:$0x1]
        %v418 = vsel %vm398, 0, %v417
        %419 = vst [vmem:[#allocation2 + $0x50] sm:$0x1] %v418
        %v420 = vld [vmem:[#allocation2 + $0x5c] sm:$0x1]
        %v421 = vsel %vm398, 0, %v420
        %422 = vst [vmem:[#allocation2 + $0x5c] sm:$0x1] %v421
        %v423 = vld [vmem:[#allocation2 + $0x68] sm:$0x1]
        %v424 = vsel %vm398, 0, %v423
        %425 = vst [vmem:[#allocation2 + $0x68] sm:$0x1] %v424
        %v426 = vld [vmem:[#allocation2 + $0x74] sm:$0x1]
        %v427 = vsel %vm398, 0, %v426
        %428 = vst [vmem:[#allocation2 + $0x74] sm:$0x1] %v427
        %v429 = vld [vmem:[#allocation2 + $0x80] sm:$0x1]
        %v430 = vsel %vm398, 0, %v429
        %431 = vst [vmem:[#allocation2 + $0x80] sm:$0x1] %v430
        %v432 = vld [vmem:[#allocation2 + $0x8c] sm:$0x1]
        %v433 = vsel %vm398, 0, %v432
        %434 = vst [vmem:[#allocation2 + $0x8c] sm:$0x1] %v433
        %v435 = vld [vmem:[#allocation2 + $0x98] sm:$0x1]
        %v436 = vsel %vm398, 0, %v435
        %437 = vst [vmem:[#allocation2 + $0x98] sm:$0x1] %v436
        %v438 = vld [vmem:[#allocation2 + $0xa4] sm:$0x1]
        %v439 = vsel %vm398, 0, %v438
        %440 = vst [vmem:[#allocation2 + $0xa4] sm:$0x1] %v439
        %v441 = vld [vmem:[#allocation2 + $0xb0] sm:$0x1]
        %v442 = vsel %vm398, 0, %v441
        %443 = vst [vmem:[#allocation2 + $0xb0] sm:$0x1] %v442
        %v444 = vld [vmem:[#allocation2 + $0xbc] sm:$0x1]
        %v445 = vsel %vm398, 0, %v444
        %446 = vst [vmem:[#allocation2 + $0xbc] sm:$0x1] %v445
        %v447 = vld [vmem:[#allocation2 + $0xc8] sm:$0x1]
        %v448 = vsel %vm398, 0, %v447
        %449 = vst [vmem:[#allocation2 + $0xc8] sm:$0x1] %v448
        %v450 = vld [vmem:[#allocation2 + $0xd4] sm:$0x1]
        %v451 = vsel %vm398, 0, %v450
        %452 = vst [vmem:[#allocation2 + $0xd4] sm:$0x1] %v451
        %v453 = vld [vmem:[%s290] sm:$0xff]
        %v454 = vld [vmem:[%s290 + $0x8] sm:$0xff]
        %v455 = vld [vmem:[%s290 + $0x10] sm:$0xff]
        %v456 = vld [vmem:[%s290 + $0x18] sm:$0xff]
        %v457 = vld [vmem:[%s290 + $0x20] sm:$0xff]
        %v458 = vld [vmem:[%s290 + $0x28] sm:$0xff]
        %v459 = vld [vmem:[%s290 + $0x30] sm:$0xff]
        %v460 = vld [vmem:[%s290 + $0x38] sm:$0xff]
        %v461 = vld [vmem:[%s290 + $0x40] sm:$0xff]
        %v462 = vld [vmem:[%s290 + $0x48] sm:$0xff]
        %v463 = vld [vmem:[%s290 + $0x50] sm:$0xff]
        %v464 = vld [vmem:[%s290 + $0x58] sm:$0xff]
        %v465 = vld [vmem:[%s290 + $0x60] sm:$0xff]
        %v466 = vld [vmem:[%s290 + $0x68] sm:$0xff]
        %v467 = vld [vmem:[%s290 + $0x70] sm:$0xff]
        %v468 = vld [vmem:[%s290 + $0x78] sm:$0xff]
        %v469 = vld [vmem:[%s290 + $0x80] sm:$0xff]
        %v470 = vld [vmem:[%s290 + $0x88] sm:$0xff]
        %v471 = vld [vmem:[%s290 + $0x90] sm:$0xff]
        %v472 = vld [vmem:[%s290 + $0x98] sm:$0xff]
        %v473 = vld [vmem:[%s290 + $0xa0] sm:$0xff]
        %v474 = vld [vmem:[%s290 + $0xa8] sm:$0xff]
        %v475 = vld [vmem:[%s290 + $0xb0] sm:$0xff]
        %v476 = vld [vmem:[%s290 + $0xb8] sm:$0xff]
        %v477 = vld [vmem:[%s290 + $0xc0] sm:$0xff]
        %v478 = vld [vmem:[%s290 + $0xc8] sm:$0xff]
        %v479 = vld [vmem:[%s290 + $0xd0] sm:$0xff]
        %v480 = vld [vmem:[%s290 + $0xd8] sm:$0xff]
        %v481 = vld [vmem:[%s290 + $0xe0] sm:$0xff]
        %v482 = vld [vmem:[%s290 + $0xe8] sm:$0xff]
        %v483 = vld [vmem:[%s290 + $0xf0] sm:$0xff]
        %v484 = vld [vmem:[%s290 + $0xf8] sm:$0xff]
        %s485 = scalar_lea.vmem [#allocation2], 12
        %vm486 = vcmask 1043584
        %vm487 = vmand %vm486, %vm397
        %v488 = vld [vmem:[%s485] sm:$0xf]
        %v489 = vsel %vm487, 0, %v488
        %490 = vst [vmem:[%s485] sm:$0xf] %v489
        %vm491 = vcmask 1043584
        %492 = vst.msk [vmem:[%s485 + $0x4] sm:$0xf] %vm491, 0
        %vm493 = vcmask 1040512
        %vm494 = vmand %vm493, %vm341
        %v495 = vld [vmem:[%s485 + $0x8] sm:$0x1]
        %v496 = vsel %vm494, 0, %v495
        %497 = vst [vmem:[%s485 + $0x8] sm:$0x1] %v496
        %v498 = vld [vmem:[%s485 + $0xc] sm:$0xf]
        %v499 = vsel %vm487, 0, %v498
        %500 = vst [vmem:[%s485 + $0xc] sm:$0xf] %v499
        %501 = vst.msk [vmem:[%s485 + $0x10] sm:$0xf] %vm491, 0
        %v502 = vld [vmem:[%s485 + $0x14] sm:$0x1]
        %v503 = vsel %vm494, 0, %v502
        %504 = vst [vmem:[%s485 + $0x14] sm:$0x1] %v503
        %v505 = vld [vmem:[%s485 + $0x18] sm:$0xf]
        %v506 = vsel %vm487, 0, %v505
        %507 = vst [vmem:[%s485 + $0x18] sm:$0xf] %v506
        %508 = vst.msk [vmem:[%s485 + $0x1c] sm:$0xf] %vm491, 0
        %v509 = vld [vmem:[%s485 + $0x20] sm:$0x1]
        %v510 = vsel %vm494, 0, %v509
        %511 = vst [vmem:[%s485 + $0x20] sm:$0x1] %v510
        %v512 = vld [vmem:[%s485 + $0x24] sm:$0xf]
        %v513 = vsel %vm487, 0, %v512
        %514 = vst [vmem:[%s485 + $0x24] sm:$0xf] %v513
        %515 = vst.msk [vmem:[%s485 + $0x28] sm:$0xf] %vm491, 0
        %v516 = vld [vmem:[%s485 + $0x2c] sm:$0x1]
        %v517 = vsel %vm494, 0, %v516
        %518 = vst [vmem:[%s485 + $0x2c] sm:$0x1] %v517
        %v519 = vld [vmem:[%s485 + $0x30] sm:$0xf]
        %v520 = vsel %vm487, 0, %v519
        %521 = vst [vmem:[%s485 + $0x30] sm:$0xf] %v520
        %522 = vst.msk [vmem:[%s485 + $0x34] sm:$0xf] %vm491, 0
        %v523 = vld [vmem:[%s485 + $0x38] sm:$0x1]
        %v524 = vsel %vm494, 0, %v523
        %525 = vst [vmem:[%s485 + $0x38] sm:$0x1] %v524
        %v526 = vld [vmem:[%s485 + $0x3c] sm:$0xf]
        %v527 = vsel %vm487, 0, %v526
        %528 = vst [vmem:[%s485 + $0x3c] sm:$0xf] %v527
        %529 = vst.msk [vmem:[%s485 + $0x40] sm:$0xf] %vm491, 0
        %v530 = vld [vmem:[%s485 + $0x44] sm:$0x1]
        %v531 = vsel %vm494, 0, %v530
        %532 = vst [vmem:[%s485 + $0x44] sm:$0x1] %v531
        %v533 = vld [vmem:[%s485 + $0x48] sm:$0xf]
        %v534 = vsel %vm487, 0, %v533
        %535 = vst [vmem:[%s485 + $0x48] sm:$0xf] %v534
        %536 = vst.msk [vmem:[%s485 + $0x4c] sm:$0xf] %vm491, 0
        %v537 = vld [vmem:[%s485 + $0x50] sm:$0x1]
        %v538 = vsel %vm494, 0, %v537
        %539 = vst [vmem:[%s485 + $0x50] sm:$0x1] %v538
        %v540 = vld [vmem:[%s485 + $0x54] sm:$0xf]
        %v541 = vsel %vm487, 0, %v540
        %542 = vst [vmem:[%s485 + $0x54] sm:$0xf] %v541
        %543 = vst.msk [vmem:[%s485 + $0x58] sm:$0xf] %vm491, 0
        %v544 = vld [vmem:[%s485 + $0x5c] sm:$0x1]
        %v545 = vsel %vm494, 0, %v544
        %546 = vst [vmem:[%s485 + $0x5c] sm:$0x1] %v545
        %v547 = vld [vmem:[%s485 + $0x60] sm:$0xf]
        %v548 = vsel %vm487, 0, %v547
        %549 = vst [vmem:[%s485 + $0x60] sm:$0xf] %v548
        %550 = vst.msk [vmem:[%s485 + $0x64] sm:$0xf] %vm491, 0
        %v551 = vld [vmem:[%s485 + $0x68] sm:$0x1]
        %v552 = vsel %vm494, 0, %v551
        %553 = vst [vmem:[%s485 + $0x68] sm:$0x1] %v552
        %v554 = vld [vmem:[%s485 + $0x6c] sm:$0xf]
        %v555 = vsel %vm487, 0, %v554
        %556 = vst [vmem:[%s485 + $0x6c] sm:$0xf] %v555
        %557 = vst.msk [vmem:[%s485 + $0x70] sm:$0xf] %vm491, 0
        %v558 = vld [vmem:[%s485 + $0x74] sm:$0x1]
        %v559 = vsel %vm494, 0, %v558
        %560 = vst [vmem:[%s485 + $0x74] sm:$0x1] %v559
        %v561 = vld [vmem:[%s485 + $0x78] sm:$0xf]
        %v562 = vsel %vm487, 0, %v561
        %563 = vst [vmem:[%s485 + $0x78] sm:$0xf] %v562
        %564 = vst.msk [vmem:[%s485 + $0x7c] sm:$0xf] %vm491, 0
        %v565 = vld [vmem:[%s485 + $0x80] sm:$0x1]
        %v566 = vsel %vm494, 0, %v565
        %567 = vst [vmem:[%s485 + $0x80] sm:$0x1] %v566
        %v568 = vld [vmem:[%s485 + $0x84] sm:$0xf]
        %v569 = vsel %vm487, 0, %v568
        %570 = vst [vmem:[%s485 + $0x84] sm:$0xf] %v569
        %571 = vst.msk [vmem:[%s485 + $0x88] sm:$0xf] %vm491, 0
        %v572 = vld [vmem:[%s485 + $0x8c] sm:$0x1]
        %v573 = vsel %vm494, 0, %v572
        %574 = vst [vmem:[%s485 + $0x8c] sm:$0x1] %v573
        %v575 = vld [vmem:[%s485 + $0x90] sm:$0xf]
        %v576 = vsel %vm487, 0, %v575
        %577 = vst [vmem:[%s485 + $0x90] sm:$0xf] %v576
        %578 = vst.msk [vmem:[%s485 + $0x94] sm:$0xf] %vm491, 0
        %v579 = vld [vmem:[%s485 + $0x98] sm:$0x1]
        %v580 = vsel %vm494, 0, %v579
        %581 = vst [vmem:[%s485 + $0x98] sm:$0x1] %v580
        %v582 = vld [vmem:[%s485 + $0x9c] sm:$0xf]
        %v583 = vsel %vm487, 0, %v582
        %584 = vst [vmem:[%s485 + $0x9c] sm:$0xf] %v583
        %585 = vst.msk [vmem:[%s485 + $0xa0] sm:$0xf] %vm491, 0
        %v586 = vld [vmem:[%s485 + $0xa4] sm:$0x1]
        %v587 = vsel %vm494, 0, %v586
        %588 = vst [vmem:[%s485 + $0xa4] sm:$0x1] %v587
        %v589 = vld [vmem:[%s485 + $0xa8] sm:$0xf]
        %v590 = vsel %vm487, 0, %v589
        %591 = vst [vmem:[%s485 + $0xa8] sm:$0xf] %v590
        %592 = vst.msk [vmem:[%s485 + $0xac] sm:$0xf] %vm491, 0
        %v593 = vld [vmem:[%s485 + $0xb0] sm:$0x1]
        %v594 = vsel %vm494, 0, %v593
        %595 = vst [vmem:[%s485 + $0xb0] sm:$0x1] %v594
        %v596 = vld [vmem:[%s485 + $0xb4] sm:$0xf]
        %v597 = vsel %vm487, 0, %v596
        %598 = vst [vmem:[%s485 + $0xb4] sm:$0xf] %v597
        %599 = vst.msk [vmem:[%s485 + $0xb8] sm:$0xf] %vm491, 0
        %v600 = vld [vmem:[%s485 + $0xbc] sm:$0x1]
        %v601 = vsel %vm494, 0, %v600
        %602 = vst [vmem:[%s485 + $0xbc] sm:$0x1] %v601
        %v603 = vpack.c.bf16 %v453, %v453
        %v604 = vpack.c.bf16 %v454, %v454
        %v605 = vpack.c.bf16 %v455, %v455
        %v606 = vpack.c.bf16 %v456, %v456
        %v607 = vpack.c.bf16 %v457, %v457
        %v608 = vpack.c.bf16 %v458, %v458
        %v609 = vpack.c.bf16 %v459, %v459
        %v610 = vpack.c.bf16 %v460, %v460
        %v611 = vpack.c.bf16 %v461, %v461
        %v612 = vpack.c.bf16 %v462, %v462
        %v613 = vpack.c.bf16 %v463, %v463
        %v614 = vpack.c.bf16 %v464, %v464
        %v615 = vpack.c.bf16 %v465, %v465
        %v616 = vpack.c.bf16 %v466, %v466
        %v617 = vpack.c.bf16 %v467, %v467
        %v618 = vpack.c.bf16 %v468, %v468
        %v619 = vpack.c.bf16 %v469, %v469
        %v620 = vpack.c.bf16 %v470, %v470
        %v621 = vpack.c.bf16 %v471, %v471
        %v622 = vpack.c.bf16 %v472, %v472
        %v623 = vpack.c.bf16 %v473, %v473
        %v624 = vpack.c.bf16 %v474, %v474
        %v625 = vpack.c.bf16 %v475, %v475
        %v626 = vpack.c.bf16 %v476, %v476
        %v627 = vpack.c.bf16 %v477, %v477
        %v628 = vpack.c.bf16 %v478, %v478
        %v629 = vpack.c.bf16 %v479, %v479
        %v630 = vpack.c.bf16 %v480, %v480
        %v631 = vpack.c.bf16 %v481, %v481
        %v632 = vpack.c.bf16 %v482, %v482
        %v633 = vpack.c.bf16 %v483, %v483
        %v634 = vpack.c.bf16 %v484, %v484
        %vm635 = vsmask.f32 4368
        %vm636 = vmor %vm341, %vm635
        %v638 = vshrl.u32 %v603, 16
        %v640 = vrot.slane %v638, 7
        %v641 = vshll.u32 %v603, 16
        %v643 = vor.u32 %v640, %v641
        %v644 = vrot.slane %v640, 4
        %v646 = vshrl.u32 %v604, 16
        %v648 = vrot.slane %v646, 7
        %v649 = vshll.u32 %v604, 16
        %v651 = vor.u32 %v648, %v649
        %v652 = vsel %vm636, %v644, %v651
        %v653 = vrot.slane %v648, 4
        %v655 = vshrl.u32 %v605, 16
        %v657 = vrot.slane %v655, 7
        %v658 = vshll.u32 %v605, 16
        %v660 = vor.u32 %v657, %v658
        %v661 = vrot.slane %v657, 4
        %v663 = vshrl.u32 %v606, 16
        %v665 = vrot.slane %v663, 7
        %v666 = vshll.u32 %v606, 16
        %v668 = vor.u32 %v665, %v666
        %v669 = vsel %vm636, %v661, %v668
        %v670 = vrot.slane %v665, 4
        %v672 = vshrl.u32 %v607, 16
        %v674 = vrot.slane %v672, 7
        %v675 = vshll.u32 %v607, 16
        %v677 = vor.u32 %v674, %v675
        %v678 = vrot.slane %v674, 4
        %v680 = vshrl.u32 %v608, 16
        %v682 = vrot.slane %v680, 7
        %v683 = vshll.u32 %v608, 16
        %v685 = vor.u32 %v682, %v683
        %v686 = vsel %vm636, %v678, %v685
        %v687 = vrot.slane %v682, 4
        %v689 = vshrl.u32 %v609, 16
        %v691 = vrot.slane %v689, 7
        %v692 = vshll.u32 %v609, 16
        %v694 = vor.u32 %v691, %v692
        %v695 = vrot.slane %v691, 4
        %v697 = vshrl.u32 %v610, 16
        %v699 = vrot.slane %v697, 7
        %v700 = vshll.u32 %v610, 16
        %v702 = vor.u32 %v699, %v700
        %v703 = vsel %vm636, %v695, %v702
        %v704 = vrot.slane %v699, 4
        %v706 = vshrl.u32 %v611, 16
        %v708 = vrot.slane %v706, 7
        %v709 = vshll.u32 %v611, 16
        %v711 = vor.u32 %v708, %v709
        %v712 = vrot.slane %v708, 4
        %v714 = vshrl.u32 %v612, 16
        %v716 = vrot.slane %v714, 7
        %v717 = vshll.u32 %v612, 16
        %v719 = vor.u32 %v716, %v717
        %v720 = vsel %vm636, %v712, %v719
        %v721 = vrot.slane %v716, 4
        %v723 = vshrl.u32 %v613, 16
        %v725 = vrot.slane %v723, 7
        %v726 = vshll.u32 %v613, 16
        %v728 = vor.u32 %v725, %v726
        %v729 = vrot.slane %v725, 4
        %v731 = vshrl.u32 %v614, 16
        %v733 = vrot.slane %v731, 7
        %v734 = vshll.u32 %v614, 16
        %v736 = vor.u32 %v733, %v734
        %v737 = vsel %vm636, %v729, %v736
        %v738 = vrot.slane %v733, 4
        %v740 = vshrl.u32 %v615, 16
        %v742 = vrot.slane %v740, 7
        %v743 = vshll.u32 %v615, 16
        %v745 = vor.u32 %v742, %v743
        %v746 = vrot.slane %v742, 4
        %v748 = vshrl.u32 %v616, 16
        %v750 = vrot.slane %v748, 7
        %v751 = vshll.u32 %v616, 16
        %v753 = vor.u32 %v750, %v751
        %v754 = vsel %vm636, %v746, %v753
        %v755 = vrot.slane %v750, 4
        %v757 = vshrl.u32 %v617, 16
        %v759 = vrot.slane %v757, 7
        %v760 = vshll.u32 %v617, 16
        %v762 = vor.u32 %v759, %v760
        %v763 = vrot.slane %v759, 4
        %v765 = vshrl.u32 %v618, 16
        %v767 = vrot.slane %v765, 7
        %v768 = vshll.u32 %v618, 16
        %v770 = vor.u32 %v767, %v768
        %v771 = vsel %vm636, %v763, %v770
        %v772 = vrot.slane %v767, 4
        %v774 = vshrl.u32 %v619, 16
        %v776 = vrot.slane %v774, 7
        %v777 = vshll.u32 %v619, 16
        %v779 = vor.u32 %v776, %v777
        %v780 = vrot.slane %v776, 4
        %v782 = vshrl.u32 %v620, 16
        %v784 = vrot.slane %v782, 7
        %v785 = vshll.u32 %v620, 16
        %v787 = vor.u32 %v784, %v785
        %v788 = vsel %vm636, %v780, %v787
        %v789 = vrot.slane %v784, 4
        %v791 = vshrl.u32 %v621, 16
        %v793 = vrot.slane %v791, 7
        %v794 = vshll.u32 %v621, 16
        %v796 = vor.u32 %v793, %v794
        %v797 = vrot.slane %v793, 4
        %v799 = vshrl.u32 %v622, 16
        %v801 = vrot.slane %v799, 7
        %v802 = vshll.u32 %v622, 16
        %v804 = vor.u32 %v801, %v802
        %v805 = vsel %vm636, %v797, %v804
        %v806 = vrot.slane %v801, 4
        %v808 = vshrl.u32 %v623, 16
        %v810 = vrot.slane %v808, 7
        %v811 = vshll.u32 %v623, 16
        %v813 = vor.u32 %v810, %v811
        %v814 = vrot.slane %v810, 4
        %v816 = vshrl.u32 %v624, 16
        %v818 = vrot.slane %v816, 7
        %v819 = vshll.u32 %v624, 16
        %v821 = vor.u32 %v818, %v819
        %v822 = vsel %vm636, %v814, %v821
        %v823 = vrot.slane %v818, 4
        %v825 = vshrl.u32 %v625, 16
        %v827 = vrot.slane %v825, 7
        %v828 = vshll.u32 %v625, 16
        %v830 = vor.u32 %v827, %v828
        %v831 = vrot.slane %v827, 4
        %v833 = vshrl.u32 %v626, 16
        %v835 = vrot.slane %v833, 7
        %v836 = vshll.u32 %v626, 16
        %v838 = vor.u32 %v835, %v836
        %v839 = vsel %vm636, %v831, %v838
        %v840 = vrot.slane %v835, 4
        %v842 = vshrl.u32 %v627, 16
        %v844 = vrot.slane %v842, 7
        %v845 = vshll.u32 %v627, 16
        %v847 = vor.u32 %v844, %v845
        %v848 = vrot.slane %v844, 4
        %v850 = vshrl.u32 %v628, 16
        %v852 = vrot.slane %v850, 7
        %v853 = vshll.u32 %v628, 16
        %v855 = vor.u32 %v852, %v853
        %v856 = vsel %vm636, %v848, %v855
        %v857 = vrot.slane %v852, 4
        %v859 = vshrl.u32 %v629, 16
        %v861 = vrot.slane %v859, 7
        %v862 = vshll.u32 %v629, 16
        %v864 = vor.u32 %v861, %v862
        %v865 = vrot.slane %v861, 4
        %v867 = vshrl.u32 %v630, 16
        %v869 = vrot.slane %v867, 7
        %v870 = vshll.u32 %v630, 16
        %v872 = vor.u32 %v869, %v870
        %v873 = vsel %vm636, %v865, %v872
        %v874 = vrot.slane %v869, 4
        %v876 = vshrl.u32 %v631, 16
        %v878 = vrot.slane %v876, 7
        %v879 = vshll.u32 %v631, 16
        %v881 = vor.u32 %v878, %v879
        %v882 = vrot.slane %v878, 4
        %v884 = vshrl.u32 %v632, 16
        %v886 = vrot.slane %v884, 7
        %v887 = vshll.u32 %v632, 16
        %v889 = vor.u32 %v886, %v887
        %v890 = vsel %vm636, %v882, %v889
        %v891 = vrot.slane %v886, 4
        %v893 = vshrl.u32 %v633, 16
        %v895 = vrot.slane %v893, 7
        %v896 = vshll.u32 %v633, 16
        %v898 = vor.u32 %v895, %v896
        %v899 = vrot.slane %v895, 4
        %v901 = vshrl.u32 %v634, 16
        %v903 = vrot.slane %v901, 7
        %v904 = vshll.u32 %v634, 16
        %v906 = vor.u32 %v903, %v904
        %v907 = vsel %vm636, %v899, %v906
        %v908 = vrot.slane %v903, 4
        %vm957 = vcmask 125952
        %vm958 = vmand %vm957, %vm397
        %v959 = vld [vmem:[%s485] sm:$0xf]
        %v960 = vsel %vm958, %v643, %v959
        %961 = vst [vmem:[%s485] sm:$0xf] %v960
        %vm962 = vcmask 125952
        %963 = vst.msk [vmem:[%s485 + $0x4] sm:$0xf] %vm962, %v652
        %vm964 = vcmask 122880
        %vm965 = vmand %vm964, %vm341
        %v966 = vld [vmem:[%s485 + $0x8] sm:$0x1]
        %v967 = vsel %vm965, %v653, %v966
        %968 = vst [vmem:[%s485 + $0x8] sm:$0x1] %v967
        %v969 = vld [vmem:[%s485 + $0xc] sm:$0xf]
        %v970 = vsel %vm958, %v660, %v969
        %971 = vst [vmem:[%s485 + $0xc] sm:$0xf] %v970
        %972 = vst.msk [vmem:[%s485 + $0x10] sm:$0xf] %vm962, %v669
        %v973 = vld [vmem:[%s485 + $0x14] sm:$0x1]
        %v974 = vsel %vm965, %v670, %v973
        %975 = vst [vmem:[%s485 + $0x14] sm:$0x1] %v974
        %v976 = vld [vmem:[%s485 + $0x18] sm:$0xf]
        %v977 = vsel %vm958, %v677, %v976
        %978 = vst [vmem:[%s485 + $0x18] sm:$0xf] %v977
        %979 = vst.msk [vmem:[%s485 + $0x1c] sm:$0xf] %vm962, %v686
        %v980 = vld [vmem:[%s485 + $0x20] sm:$0x1]
        %v981 = vsel %vm965, %v687, %v980
        %982 = vst [vmem:[%s485 + $0x20] sm:$0x1] %v981
        %v983 = vld [vmem:[%s485 + $0x24] sm:$0xf]
        %v984 = vsel %vm958, %v694, %v983
        %985 = vst [vmem:[%s485 + $0x24] sm:$0xf] %v984
        %986 = vst.msk [vmem:[%s485 + $0x28] sm:$0xf] %vm962, %v703
        %v987 = vld [vmem:[%s485 + $0x2c] sm:$0x1]
        %v988 = vsel %vm965, %v704, %v987
        %989 = vst [vmem:[%s485 + $0x2c] sm:$0x1] %v988
        %v990 = vld [vmem:[%s485 + $0x30] sm:$0xf]
        %v991 = vsel %vm958, %v711, %v990
        %992 = vst [vmem:[%s485 + $0x30] sm:$0xf] %v991
        %993 = vst.msk [vmem:[%s485 + $0x34] sm:$0xf] %vm962, %v720
        %v994 = vld [vmem:[%s485 + $0x38] sm:$0x1]
        %v995 = vsel %vm965, %v721, %v994
        %996 = vst [vmem:[%s485 + $0x38] sm:$0x1] %v995
        %v997 = vld [vmem:[%s485 + $0x3c] sm:$0xf]
        %v998 = vsel %vm958, %v728, %v997
        %999 = vst [vmem:[%s485 + $0x3c] sm:$0xf] %v998
        %1000 = vst.msk [vmem:[%s485 + $0x40] sm:$0xf] %vm962, %v737
        %v1001 = vld [vmem:[%s485 + $0x44] sm:$0x1]
        %v1002 = vsel %vm965, %v738, %v1001
        %1003 = vst [vmem:[%s485 + $0x44] sm:$0x1] %v1002
        %v1004 = vld [vmem:[%s485 + $0x48] sm:$0xf]
        %v1005 = vsel %vm958, %v745, %v1004
        %1006 = vst [vmem:[%s485 + $0x48] sm:$0xf] %v1005
        %1007 = vst.msk [vmem:[%s485 + $0x4c] sm:$0xf] %vm962, %v754
        %v1008 = vld [vmem:[%s485 + $0x50] sm:$0x1]
        %v1009 = vsel %vm965, %v755, %v1008
        %1010 = vst [vmem:[%s485 + $0x50] sm:$0x1] %v1009
        %v1011 = vld [vmem:[%s485 + $0x54] sm:$0xf]
        %v1012 = vsel %vm958, %v762, %v1011
        %1013 = vst [vmem:[%s485 + $0x54] sm:$0xf] %v1012
        %1014 = vst.msk [vmem:[%s485 + $0x58] sm:$0xf] %vm962, %v771
        %v1015 = vld [vmem:[%s485 + $0x5c] sm:$0x1]
        %v1016 = vsel %vm965, %v772, %v1015
        %1017 = vst [vmem:[%s485 + $0x5c] sm:$0x1] %v1016
        %v1018 = vld [vmem:[%s485 + $0x60] sm:$0xf]
        %v1019 = vsel %vm958, %v779, %v1018
        %1020 = vst [vmem:[%s485 + $0x60] sm:$0xf] %v1019
        %1021 = vst.msk [vmem:[%s485 + $0x64] sm:$0xf] %vm962, %v788
        %v1022 = vld [vmem:[%s485 + $0x68] sm:$0x1]
        %v1023 = vsel %vm965, %v789, %v1022
        %1024 = vst [vmem:[%s485 + $0x68] sm:$0x1] %v1023
        %v1025 = vld [vmem:[%s485 + $0x6c] sm:$0xf]
        %v1026 = vsel %vm958, %v796, %v1025
        %1027 = vst [vmem:[%s485 + $0x6c] sm:$0xf] %v1026
        %1028 = vst.msk [vmem:[%s485 + $0x70] sm:$0xf] %vm962, %v805
        %v1029 = vld [vmem:[%s485 + $0x74] sm:$0x1]
        %v1030 = vsel %vm965, %v806, %v1029
        %1031 = vst [vmem:[%s485 + $0x74] sm:$0x1] %v1030
        %v1032 = vld [vmem:[%s485 + $0x78] sm:$0xf]
        %v1033 = vsel %vm958, %v813, %v1032
        %1034 = vst [vmem:[%s485 + $0x78] sm:$0xf] %v1033
        %1035 = vst.msk [vmem:[%s485 + $0x7c] sm:$0xf] %vm962, %v822
        %v1036 = vld [vmem:[%s485 + $0x80] sm:$0x1]
        %v1037 = vsel %vm965, %v823, %v1036
        %1038 = vst [vmem:[%s485 + $0x80] sm:$0x1] %v1037
        %v1039 = vld [vmem:[%s485 + $0x84] sm:$0xf]
        %v1040 = vsel %vm958, %v830, %v1039
        %1041 = vst [vmem:[%s485 + $0x84] sm:$0xf] %v1040
        %1042 = vst.msk [vmem:[%s485 + $0x88] sm:$0xf] %vm962, %v839
        %v1043 = vld [vmem:[%s485 + $0x8c] sm:$0x1]
        %v1044 = vsel %vm965, %v840, %v1043
        %1045 = vst [vmem:[%s485 + $0x8c] sm:$0x1] %v1044
        %v1046 = vld [vmem:[%s485 + $0x90] sm:$0xf]
        %v1047 = vsel %vm958, %v847, %v1046
        %1048 = vst [vmem:[%s485 + $0x90] sm:$0xf] %v1047
        %1049 = vst.msk [vmem:[%s485 + $0x94] sm:$0xf] %vm962, %v856
        %v1050 = vld [vmem:[%s485 + $0x98] sm:$0x1]
        %v1051 = vsel %vm965, %v857, %v1050
        %1052 = vst [vmem:[%s485 + $0x98] sm:$0x1] %v1051
        %v1053 = vld [vmem:[%s485 + $0x9c] sm:$0xf]
        %v1054 = vsel %vm958, %v864, %v1053
        %1055 = vst [vmem:[%s485 + $0x9c] sm:$0xf] %v1054
        %1056 = vst.msk [vmem:[%s485 + $0xa0] sm:$0xf] %vm962, %v873
        %v1057 = vld [vmem:[%s485 + $0xa4] sm:$0x1]
        %v1058 = vsel %vm965, %v874, %v1057
        %1059 = vst [vmem:[%s485 + $0xa4] sm:$0x1] %v1058
        %v1060 = vld [vmem:[%s485 + $0xa8] sm:$0xf]
        %v1061 = vsel %vm958, %v881, %v1060
        %1062 = vst [vmem:[%s485 + $0xa8] sm:$0xf] %v1061
        %1063 = vst.msk [vmem:[%s485 + $0xac] sm:$0xf] %vm962, %v890
        %v1064 = vld [vmem:[%s485 + $0xb0] sm:$0x1]
        %v1065 = vsel %vm965, %v891, %v1064
        %1066 = vst [vmem:[%s485 + $0xb0] sm:$0x1] %v1065
        %v1067 = vld [vmem:[%s485 + $0xb4] sm:$0xf]
        %v1068 = vsel %vm958, %v898, %v1067
        %1069 = vst [vmem:[%s485 + $0xb4] sm:$0xf] %v1068
        %1070 = vst.msk [vmem:[%s485 + $0xb8] sm:$0xf] %vm962, %v907
        %v1071 = vld [vmem:[%s485 + $0xbc] sm:$0x1]
        %v1072 = vsel %vm965, %v908, %v1071
        %1073 = vst [vmem:[%s485 + $0xbc] sm:$0x1] %v1072
        %v1074 = vld [vmem:[#allocation2] sm:$0xf]
        %v1075 = vld [vmem:[#allocation2 + $0x4] sm:$0xf]
        %v1076 = vld [vmem:[#allocation2 + $0xc] sm:$0xf]
        %v1077 = vld [vmem:[#allocation2 + $0x10] sm:$0xf]
        %v1078 = vld [vmem:[#allocation2 + $0x18] sm:$0xf]
        %v1079 = vld [vmem:[#allocation2 + $0x1c] sm:$0xf]
        %v1080 = vld [vmem:[#allocation2 + $0x24] sm:$0xf]
        %v1081 = vld [vmem:[#allocation2 + $0x28] sm:$0xf]
        %v1082 = vld [vmem:[#allocation2 + $0x30] sm:$0xf]
        %v1083 = vld [vmem:[#allocation2 + $0x34] sm:$0xf]
        %v1084 = vld [vmem:[#allocation2 + $0x3c] sm:$0xf]
        %v1085 = vld [vmem:[#allocation2 + $0x40] sm:$0xf]
        %v1086 = vld [vmem:[#allocation2 + $0x48] sm:$0xf]
        %v1087 = vld [vmem:[#allocation2 + $0x4c] sm:$0xf]
        %v1088 = vld [vmem:[#allocation2 + $0x54] sm:$0xf]
        %v1089 = vld [vmem:[#allocation2 + $0x58] sm:$0xf]
        %v1090 = vld [vmem:[#allocation2 + $0x60] sm:$0xf]
        %v1091 = vld [vmem:[#allocation2 + $0x64] sm:$0xf]
        %v1092 = vld [vmem:[#allocation2 + $0x6c] sm:$0xf]
        %v1093 = vld [vmem:[#allocation2 + $0x70] sm:$0xf]
        %v1094 = vld [vmem:[#allocation2 + $0x78] sm:$0xf]
        %v1095 = vld [vmem:[#allocation2 + $0x7c] sm:$0xf]
        %v1096 = vld [vmem:[#allocation2 + $0x84] sm:$0xf]
        %v1097 = vld [vmem:[#allocation2 + $0x88] sm:$0xf]
        %v1098 = vld [vmem:[#allocation2 + $0x90] sm:$0xf]
        %v1099 = vld [vmem:[#allocation2 + $0x94] sm:$0xf]
        %v1100 = vld [vmem:[#allocation2 + $0x9c] sm:$0xf]
        %v1101 = vld [vmem:[#allocation2 + $0xa0] sm:$0xf]
        %v1102 = vld [vmem:[#allocation2 + $0xa8] sm:$0xf]
        %v1103 = vld [vmem:[#allocation2 + $0xac] sm:$0xf]
        %v1104 = vld [vmem:[#allocation2 + $0xb4] sm:$0xf]
        %v1105 = vld [vmem:[#allocation2 + $0xb8] sm:$0xf]
        %1106 = vst [vmem:[#allocation3] sm:$0xf] %v1074
        %1107 = vst [vmem:[#allocation3 + $0x24] sm:$0xf] %v1075
        %1108 = vst [vmem:[#allocation3 + $0x48] sm:$0xf] %v1076
        %1109 = vst [vmem:[#allocation3 + $0x6c] sm:$0xf] %v1077
        %1110 = vst [vmem:[#allocation3 + $0x90] sm:$0xf] %v1078
        %1111 = vst [vmem:[#allocation3 + $0xb4] sm:$0xf] %v1079
        %1112 = vst [vmem:[#allocation3 + $0xd8] sm:$0xf] %v1080
        %1113 = vst [vmem:[#allocation3 + $0xfc] sm:$0xf] %v1081
        %1114 = vst [vmem:[#allocation3 + $0x120] sm:$0xf] %v1082
        %1115 = vst [vmem:[#allocation3 + $0x144] sm:$0xf] %v1083
        %1116 = vst [vmem:[#allocation3 + $0x168] sm:$0xf] %v1084
        %1117 = vst [vmem:[#allocation3 + $0x18c] sm:$0xf] %v1085
        %1118 = vst [vmem:[#allocation3 + $0x1b0] sm:$0xf] %v1086
        %1119 = vst [vmem:[#allocation3 + $0x1d4] sm:$0xf] %v1087
        %1120 = vst [vmem:[#allocation3 + $0x1f8] sm:$0xf] %v1088
        %1121 = vst [vmem:[#allocation3 + $0x21c] sm:$0xf] %v1089
        %1122 = vst [vmem:[#allocation3 + $0x240] sm:$0xf] %v1090
        %1123 = vst [vmem:[#allocation3 + $0x264] sm:$0xf] %v1091
        %1124 = vst [vmem:[#allocation3 + $0x288] sm:$0xf] %v1092
        %1125 = vst [vmem:[#allocation3 + $0x2ac] sm:$0xf] %v1093
        %1126 = vst [vmem:[#allocation3 + $0x2d0] sm:$0xf] %v1094
        %1127 = vst [vmem:[#allocation3 + $0x2f4] sm:$0xf] %v1095
        %1128 = vst [vmem:[#allocation3 + $0x318] sm:$0xf] %v1096
        %1129 = vst [vmem:[#allocation3 + $0x33c] sm:$0xf] %v1097
        %1130 = vst [vmem:[#allocation3 + $0x360] sm:$0xf] %v1098
        %1131 = vst [vmem:[#allocation3 + $0x384] sm:$0xf] %v1099
        %1132 = vst [vmem:[#allocation3 + $0x3a8] sm:$0xf] %v1100
        %1133 = vst [vmem:[#allocation3 + $0x3cc] sm:$0xf] %v1101
        %1134 = vst [vmem:[#allocation3 + $0x3f0] sm:$0xf] %v1102
        %1135 = vst [vmem:[#allocation3 + $0x414] sm:$0xf] %v1103
        %1136 = vst [vmem:[#allocation3 + $0x438] sm:$0xf] %v1104
        %1137 = vst [vmem:[#allocation3 + $0x45c] sm:$0xf] %v1105
        %v1138 = vld [vmem:[#allocation2] sm:$0xf]
        %v1139 = vld [vmem:[#allocation2 + $0x4] sm:$0xf]
        %v1140 = vld [vmem:[#allocation2 + $0x8] sm:$0x1]
        %v1141 = vld [vmem:[#allocation2 + $0xc] sm:$0xf]
        %v1142 = vld [vmem:[#allocation2 + $0x10] sm:$0xf]
        %v1143 = vld [vmem:[#allocation2 + $0x14] sm:$0x1]
        %v1144 = vld [vmem:[#allocation2 + $0x18] sm:$0xf]
        %v1145 = vld [vmem:[#allocation2 + $0x1c] sm:$0xf]
        %v1146 = vld [vmem:[#allocation2 + $0x20] sm:$0x1]
        %v1147 = vld [vmem:[#allocation2 + $0x24] sm:$0xf]
        %v1148 = vld [vmem:[#allocation2 + $0x28] sm:$0xf]
        %v1149 = vld [vmem:[#allocation2 + $0x2c] sm:$0x1]
        %v1150 = vld [vmem:[#allocation2 + $0x30] sm:$0xf]
        %v1151 = vld [vmem:[#allocation2 + $0x34] sm:$0xf]
        %v1152 = vld [vmem:[#allocation2 + $0x38] sm:$0x1]
        %v1153 = vld [vmem:[#allocation2 + $0x3c] sm:$0xf]
        %v1154 = vld [vmem:[#allocation2 + $0x40] sm:$0xf]
        %v1155 = vld [vmem:[#allocation2 + $0x44] sm:$0x1]
        %v1156 = vld [vmem:[#allocation2 + $0x48] sm:$0xf]
        %v1157 = vld [vmem:[#allocation2 + $0x4c] sm:$0xf]
        %v1158 = vld [vmem:[#allocation2 + $0x50] sm:$0x1]
        %v1159 = vld [vmem:[#allocation2 + $0x54] sm:$0xf]
        %v1160 = vld [vmem:[#allocation2 + $0x58] sm:$0xf]
        %v1161 = vld [vmem:[#allocation2 + $0x5c] sm:$0x1]
        %v1162 = vld [vmem:[#allocation2 + $0x60] sm:$0xf]
        %v1163 = vld [vmem:[#allocation2 + $0x64] sm:$0xf]
        %v1164 = vld [vmem:[#allocation2 + $0x68] sm:$0x1]
        %v1165 = vld [vmem:[#allocation2 + $0x6c] sm:$0xf]
        %v1166 = vld [vmem:[#allocation2 + $0x70] sm:$0xf]
        %v1167 = vld [vmem:[#allocation2 + $0x74] sm:$0x1]
        %v1168 = vld [vmem:[#allocation2 + $0x78] sm:$0xf]
        %v1169 = vld [vmem:[#allocation2 + $0x7c] sm:$0xf]
        %v1170 = vld [vmem:[#allocation2 + $0x80] sm:$0x1]
        %v1171 = vld [vmem:[#allocation2 + $0x84] sm:$0xf]
        %v1172 = vld [vmem:[#allocation2 + $0x88] sm:$0xf]
        %v1173 = vld [vmem:[#allocation2 + $0x8c] sm:$0x1]
        %v1174 = vld [vmem:[#allocation2 + $0x90] sm:$0xf]
        %v1175 = vld [vmem:[#allocation2 + $0x94] sm:$0xf]
        %v1176 = vld [vmem:[#allocation2 + $0x98] sm:$0x1]
        %v1177 = vld [vmem:[#allocation2 + $0x9c] sm:$0xf]
        %v1178 = vld [vmem:[#allocation2 + $0xa0] sm:$0xf]
        %v1179 = vld [vmem:[#allocation2 + $0xa4] sm:$0x1]
        %v1180 = vld [vmem:[#allocation2 + $0xa8] sm:$0xf]
        %v1181 = vld [vmem:[#allocation2 + $0xac] sm:$0xf]
        %v1182 = vld [vmem:[#allocation2 + $0xb0] sm:$0x1]
        %v1183 = vld [vmem:[#allocation2 + $0xb4] sm:$0xf]
        %v1184 = vld [vmem:[#allocation2 + $0xb8] sm:$0xf]
        %v1185 = vld [vmem:[#allocation2 + $0xbc] sm:$0x1]
        %vm1186 = vsmask.f32 3328
        %vm1187 = vsmask.f32 7440
        %vm1188 = vmor %vm1186, %vm1187
        %v1190 = vshrl.u32 %v1138, 16
        %v1192 = vrot.slane %v1190, 4
        %v1193 = vshll.u32 %v1138, 16
        %v1195 = vrot.slane %v1193, 5
        %v1196 = vor.u32 %v1192, %v1195
        %v1197 = vrot.slane %v1196, 4
        %v1199 = vshll.u32 %v1139, 16
        %v1201 = vrot.slane %v1199, 5
        %v1202 = vsel %vm1188, %v1197, %v1201
        %v1203 = vshrl.u32 %v1139, 16
        %v1205 = vrot.slane %v1203, 4
        %v1206 = vor.u32 %v1205, %v1201
        %v1207 = vrot.slane %v1206, 4
        %v1209 = vshll.u32 %v1140, 16
        %v1211 = vrot.slane %v1209, 5
        %v1212 = vsel %vm1188, %v1207, %v1211
        %v1214 = vshrl.u32 %v1141, 16
        %v1216 = vrot.slane %v1214, 4
        %v1217 = vshll.u32 %v1141, 16
        %v1219 = vrot.slane %v1217, 5
        %v1220 = vor.u32 %v1216, %v1219
        %v1221 = vrot.slane %v1220, 4
        %v1223 = vshll.u32 %v1142, 16
        %v1225 = vrot.slane %v1223, 5
        %v1226 = vsel %vm1188, %v1221, %v1225
        %v1227 = vshrl.u32 %v1142, 16
        %v1229 = vrot.slane %v1227, 4
        %v1230 = vor.u32 %v1229, %v1225
        %v1231 = vrot.slane %v1230, 4
        %v1233 = vshll.u32 %v1143, 16
        %v1235 = vrot.slane %v1233, 5
        %v1236 = vsel %vm1188, %v1231, %v1235
        %v1238 = vshrl.u32 %v1144, 16
        %v1240 = vrot.slane %v1238, 4
        %v1241 = vshll.u32 %v1144, 16
        %v1243 = vrot.slane %v1241, 5
        %v1244 = vor.u32 %v1240, %v1243
        %v1245 = vrot.slane %v1244, 4
        %v1247 = vshll.u32 %v1145, 16
        %v1249 = vrot.slane %v1247, 5
        %v1250 = vsel %vm1188, %v1245, %v1249
        %v1251 = vshrl.u32 %v1145, 16
        %v1253 = vrot.slane %v1251, 4
        %v1254 = vor.u32 %v1253, %v1249
        %v1255 = vrot.slane %v1254, 4
        %v1257 = vshll.u32 %v1146, 16
        %v1259 = vrot.slane %v1257, 5
        %v1260 = vsel %vm1188, %v1255, %v1259
        %v1262 = vshrl.u32 %v1147, 16
        %v1264 = vrot.slane %v1262, 4
        %v1265 = vshll.u32 %v1147, 16
        %v1267 = vrot.slane %v1265, 5
        %v1268 = vor.u32 %v1264, %v1267
        %v1269 = vrot.slane %v1268, 4
        %v1271 = vshll.u32 %v1148, 16
        %v1273 = vrot.slane %v1271, 5
        %v1274 = vsel %vm1188, %v1269, %v1273
        %v1275 = vshrl.u32 %v1148, 16
        %v1277 = vrot.slane %v1275, 4
        %v1278 = vor.u32 %v1277, %v1273
        %v1279 = vrot.slane %v1278, 4
        %v1281 = vshll.u32 %v1149, 16
        %v1283 = vrot.slane %v1281, 5
        %v1284 = vsel %vm1188, %v1279, %v1283
        %v1286 = vshrl.u32 %v1150, 16
        %v1288 = vrot.slane %v1286, 4
        %v1289 = vshll.u32 %v1150, 16
        %v1291 = vrot.slane %v1289, 5
        %v1292 = vor.u32 %v1288, %v1291
        %v1293 = vrot.slane %v1292, 4
        %v1295 = vshll.u32 %v1151, 16
        %v1297 = vrot.slane %v1295, 5
        %v1298 = vsel %vm1188, %v1293, %v1297
        %v1299 = vshrl.u32 %v1151, 16
        %v1301 = vrot.slane %v1299, 4
        %v1302 = vor.u32 %v1301, %v1297
        %v1303 = vrot.slane %v1302, 4
        %v1305 = vshll.u32 %v1152, 16
        %v1307 = vrot.slane %v1305, 5
        %v1308 = vsel %vm1188, %v1303, %v1307
        %v1310 = vshrl.u32 %v1153, 16
        %v1312 = vrot.slane %v1310, 4
        %v1313 = vshll.u32 %v1153, 16
        %v1315 = vrot.slane %v1313, 5
        %v1316 = vor.u32 %v1312, %v1315
        %v1317 = vrot.slane %v1316, 4
        %v1319 = vshll.u32 %v1154, 16
        %v1321 = vrot.slane %v1319, 5
        %v1322 = vsel %vm1188, %v1317, %v1321
        %v1323 = vshrl.u32 %v1154, 16
        %v1325 = vrot.slane %v1323, 4
        %v1326 = vor.u32 %v1325, %v1321
        %v1327 = vrot.slane %v1326, 4
        %v1329 = vshll.u32 %v1155, 16
        %v1331 = vrot.slane %v1329, 5
        %v1332 = vsel %vm1188, %v1327, %v1331
        %v1334 = vshrl.u32 %v1156, 16
        %v1336 = vrot.slane %v1334, 4
        %v1337 = vshll.u32 %v1156, 16
        %v1339 = vrot.slane %v1337, 5
        %v1340 = vor.u32 %v1336, %v1339
        %v1341 = vrot.slane %v1340, 4
        %v1343 = vshll.u32 %v1157, 16
        %v1345 = vrot.slane %v1343, 5
        %v1346 = vsel %vm1188, %v1341, %v1345
        %v1347 = vshrl.u32 %v1157, 16
        %v1349 = vrot.slane %v1347, 4
        %v1350 = vor.u32 %v1349, %v1345
        %v1351 = vrot.slane %v1350, 4
        %v1353 = vshll.u32 %v1158, 16
        %v1355 = vrot.slane %v1353, 5
        %v1356 = vsel %vm1188, %v1351, %v1355
        %v1358 = vshrl.u32 %v1159, 16
        %v1360 = vrot.slane %v1358, 4
        %v1361 = vshll.u32 %v1159, 16
        %v1363 = vrot.slane %v1361, 5
        %v1364 = vor.u32 %v1360, %v1363
        %v1365 = vrot.slane %v1364, 4
        %v1367 = vshll.u32 %v1160, 16
        %v1369 = vrot.slane %v1367, 5
        %v1370 = vsel %vm1188, %v1365, %v1369
        %v1371 = vshrl.u32 %v1160, 16
        %v1373 = vrot.slane %v1371, 4
        %v1374 = vor.u32 %v1373, %v1369
        %v1375 = vrot.slane %v1374, 4
        %v1377 = vshll.u32 %v1161, 16
        %v1379 = vrot.slane %v1377, 5
        %v1380 = vsel %vm1188, %v1375, %v1379
        %v1382 = vshrl.u32 %v1162, 16
        %v1384 = vrot.slane %v1382, 4
        %v1385 = vshll.u32 %v1162, 16
        %v1387 = vrot.slane %v1385, 5
        %v1388 = vor.u32 %v1384, %v1387
        %v1389 = vrot.slane %v1388, 4
        %v1391 = vshll.u32 %v1163, 16
        %v1393 = vrot.slane %v1391, 5
        %v1394 = vsel %vm1188, %v1389, %v1393
        %v1395 = vshrl.u32 %v1163, 16
        %v1397 = vrot.slane %v1395, 4
        %v1398 = vor.u32 %v1397, %v1393
        %v1399 = vrot.slane %v1398, 4
        %v1401 = vshll.u32 %v1164, 16
        %v1403 = vrot.slane %v1401, 5
        %v1404 = vsel %vm1188, %v1399, %v1403
        %v1406 = vshrl.u32 %v1165, 16
        %v1408 = vrot.slane %v1406, 4
        %v1409 = vshll.u32 %v1165, 16
        %v1411 = vrot.slane %v1409, 5
        %v1412 = vor.u32 %v1408, %v1411
        %v1413 = vrot.slane %v1412, 4
        %v1415 = vshll.u32 %v1166, 16
        %v1417 = vrot.slane %v1415, 5
        %v1418 = vsel %vm1188, %v1413, %v1417
        %v1419 = vshrl.u32 %v1166, 16
        %v1421 = vrot.slane %v1419, 4
        %v1422 = vor.u32 %v1421, %v1417
        %v1423 = vrot.slane %v1422, 4
        %v1425 = vshll.u32 %v1167, 16
        %v1427 = vrot.slane %v1425, 5
        %v1428 = vsel %vm1188, %v1423, %v1427
        %v1430 = vshrl.u32 %v1168, 16
        %v1432 = vrot.slane %v1430, 4
        %v1433 = vshll.u32 %v1168, 16
        %v1435 = vrot.slane %v1433, 5
        %v1436 = vor.u32 %v1432, %v1435
        %v1437 = vrot.slane %v1436, 4
        %v1439 = vshll.u32 %v1169, 16
        %v1441 = vrot.slane %v1439, 5
        %v1442 = vsel %vm1188, %v1437, %v1441
        %v1443 = vshrl.u32 %v1169, 16
        %v1445 = vrot.slane %v1443, 4
        %v1446 = vor.u32 %v1445, %v1441
        %v1447 = vrot.slane %v1446, 4
        %v1449 = vshll.u32 %v1170, 16
        %v1451 = vrot.slane %v1449, 5
        %v1452 = vsel %vm1188, %v1447, %v1451
        %v1454 = vshrl.u32 %v1171, 16
        %v1456 = vrot.slane %v1454, 4
        %v1457 = vshll.u32 %v1171, 16
        %v1459 = vrot.slane %v1457, 5
        %v1460 = vor.u32 %v1456, %v1459
        %v1461 = vrot.slane %v1460, 4
        %v1463 = vshll.u32 %v1172, 16
        %v1465 = vrot.slane %v1463, 5
        %v1466 = vsel %vm1188, %v1461, %v1465
        %v1467 = vshrl.u32 %v1172, 16
        %v1469 = vrot.slane %v1467, 4
        %v1470 = vor.u32 %v1469, %v1465
        %v1471 = vrot.slane %v1470, 4
        %v1473 = vshll.u32 %v1173, 16
        %v1475 = vrot.slane %v1473, 5
        %v1476 = vsel %vm1188, %v1471, %v1475
        %v1478 = vshrl.u32 %v1174, 16
        %v1480 = vrot.slane %v1478, 4
        %v1481 = vshll.u32 %v1174, 16
        %v1483 = vrot.slane %v1481, 5
        %v1484 = vor.u32 %v1480, %v1483
        %v1485 = vrot.slane %v1484, 4
        %v1487 = vshll.u32 %v1175, 16
        %v1489 = vrot.slane %v1487, 5
        %v1490 = vsel %vm1188, %v1485, %v1489
        %v1491 = vshrl.u32 %v1175, 16
        %v1493 = vrot.slane %v1491, 4
        %v1494 = vor.u32 %v1493, %v1489
        %v1495 = vrot.slane %v1494, 4
        %v1497 = vshll.u32 %v1176, 16
        %v1499 = vrot.slane %v1497, 5
        %v1500 = vsel %vm1188, %v1495, %v1499
        %v1502 = vshrl.u32 %v1177, 16
        %v1504 = vrot.slane %v1502, 4
        %v1505 = vshll.u32 %v1177, 16
        %v1507 = vrot.slane %v1505, 5
        %v1508 = vor.u32 %v1504, %v1507
        %v1509 = vrot.slane %v1508, 4
        %v1511 = vshll.u32 %v1178, 16
        %v1513 = vrot.slane %v1511, 5
        %v1514 = vsel %vm1188, %v1509, %v1513
        %v1515 = vshrl.u32 %v1178, 16
        %v1517 = vrot.slane %v1515, 4
        %v1518 = vor.u32 %v1517, %v1513
        %v1519 = vrot.slane %v1518, 4
        %v1521 = vshll.u32 %v1179, 16
        %v1523 = vrot.slane %v1521, 5
        %v1524 = vsel %vm1188, %v1519, %v1523
        %v1526 = vshrl.u32 %v1180, 16
        %v1528 = vrot.slane %v1526, 4
        %v1529 = vshll.u32 %v1180, 16
        %v1531 = vrot.slane %v1529, 5
        %v1532 = vor.u32 %v1528, %v1531
        %v1533 = vrot.slane %v1532, 4
        %v1535 = vshll.u32 %v1181, 16
        %v1537 = vrot.slane %v1535, 5
        %v1538 = vsel %vm1188, %v1533, %v1537
        %v1539 = vshrl.u32 %v1181, 16
        %v1541 = vrot.slane %v1539, 4
        %v1542 = vor.u32 %v1541, %v1537
        %v1543 = vrot.slane %v1542, 4
        %v1545 = vshll.u32 %v1182, 16
        %v1547 = vrot.slane %v1545, 5
        %v1548 = vsel %vm1188, %v1543, %v1547
        %v1550 = vshrl.u32 %v1183, 16
        %v1552 = vrot.slane %v1550, 4
        %v1553 = vshll.u32 %v1183, 16
        %v1555 = vrot.slane %v1553, 5
        %v1556 = vor.u32 %v1552, %v1555
        %v1557 = vrot.slane %v1556, 4
        %v1559 = vshll.u32 %v1184, 16
        %v1561 = vrot.slane %v1559, 5
        %v1562 = vsel %vm1188, %v1557, %v1561
        %v1563 = vshrl.u32 %v1184, 16
        %v1565 = vrot.slane %v1563, 4
        %v1566 = vor.u32 %v1565, %v1561
        %v1567 = vrot.slane %v1566, 4
        %v1569 = vshll.u32 %v1185, 16
        %v1571 = vrot.slane %v1569, 5
        %v1572 = vsel %vm1188, %v1567, %v1571
        %1605 = vst [vmem:[#allocation3 + $0x4] sm:$0xf] %v1202
        %1606 = vst [vmem:[#allocation3 + $0x28] sm:$0xf] %v1212
        %1607 = vst [vmem:[#allocation3 + $0x4c] sm:$0xf] %v1226
        %1608 = vst [vmem:[#allocation3 + $0x70] sm:$0xf] %v1236
        %1609 = vst [vmem:[#allocation3 + $0x94] sm:$0xf] %v1250
        %1610 = vst [vmem:[#allocation3 + $0xb8] sm:$0xf] %v1260
        %1611 = vst [vmem:[#allocation3 + $0xdc] sm:$0xf] %v1274
        %1612 = vst [vmem:[#allocation3 + $0x100] sm:$0xf] %v1284
        %1613 = vst [vmem:[#allocation3 + $0x124] sm:$0xf] %v1298
        %1614 = vst [vmem:[#allocation3 + $0x148] sm:$0xf] %v1308
        %1615 = vst [vmem:[#allocation3 + $0x16c] sm:$0xf] %v1322
        %1616 = vst [vmem:[#allocation3 + $0x190] sm:$0xf] %v1332
        %1617 = vst [vmem:[#allocation3 + $0x1b4] sm:$0xf] %v1346
        %1618 = vst [vmem:[#allocation3 + $0x1d8] sm:$0xf] %v1356
        %1619 = vst [vmem:[#allocation3 + $0x1fc] sm:$0xf] %v1370
        %1620 = vst [vmem:[#allocation3 + $0x220] sm:$0xf] %v1380
        %1621 = vst [vmem:[#allocation3 + $0x244] sm:$0xf] %v1394
        %1622 = vst [vmem:[#allocation3 + $0x268] sm:$0xf] %v1404
        %1623 = vst [vmem:[#allocation3 + $0x28c] sm:$0xf] %v1418
        %1624 = vst [vmem:[#allocation3 + $0x2b0] sm:$0xf] %v1428
        %1625 = vst [vmem:[#allocation3 + $0x2d4] sm:$0xf] %v1442
        %1626 = vst [vmem:[#allocation3 + $0x2f8] sm:$0xf] %v1452
        %1627 = vst [vmem:[#allocation3 + $0x31c] sm:$0xf] %v1466
        %1628 = vst [vmem:[#allocation3 + $0x340] sm:$0xf] %v1476
        %1629 = vst [vmem:[#allocation3 + $0x364] sm:$0xf] %v1490
        %1630 = vst [vmem:[#allocation3 + $0x388] sm:$0xf] %v1500
        %1631 = vst [vmem:[#allocation3 + $0x3ac] sm:$0xf] %v1514
        %1632 = vst [vmem:[#allocation3 + $0x3d0] sm:$0xf] %v1524
        %1633 = vst [vmem:[#allocation3 + $0x3f4] sm:$0xf] %v1538
        %1634 = vst [vmem:[#allocation3 + $0x418] sm:$0xf] %v1548
        %1635 = vst [vmem:[#allocation3 + $0x43c] sm:$0xf] %v1562
        %1636 = vst [vmem:[#allocation3 + $0x460] sm:$0xf] %v1572
        %v1637 = vld [vmem:[#allocation2] sm:$0xe]
        %v1638 = vld [vmem:[#allocation2 + $0x4] sm:$0xf]
        %v1639 = vld [vmem:[#allocation2 + $0x8] sm:$0x1]
        %v1640 = vld [vmem:[#allocation2 + $0xc] sm:$0xe]
        %v1641 = vld [vmem:[#allocation2 + $0x10] sm:$0xf]
        %v1642 = vld [vmem:[#allocation2 + $0x14] sm:$0x1]
        %v1643 = vld [vmem:[#allocation2 + $0x18] sm:$0xe]
        %v1644 = vld [vmem:[#allocation2 + $0x1c] sm:$0xf]
        %v1645 = vld [vmem:[#allocation2 + $0x20] sm:$0x1]
        %v1646 = vld [vmem:[#allocation2 + $0x24] sm:$0xe]
        %v1647 = vld [vmem:[#allocation2 + $0x28] sm:$0xf]
        %v1648 = vld [vmem:[#allocation2 + $0x2c] sm:$0x1]
        %v1649 = vld [vmem:[#allocation2 + $0x30] sm:$0xe]
        %v1650 = vld [vmem:[#allocation2 + $0x34] sm:$0xf]
        %v1651 = vld [vmem:[#allocation2 + $0x38] sm:$0x1]
        %v1652 = vld [vmem:[#allocation2 + $0x3c] sm:$0xe]
        %v1653 = vld [vmem:[#allocation2 + $0x40] sm:$0xf]
        %v1654 = vld [vmem:[#allocation2 + $0x44] sm:$0x1]
        %v1655 = vld [vmem:[#allocation2 + $0x48] sm:$0xe]
        %v1656 = vld [vmem:[#allocation2 + $0x4c] sm:$0xf]
        %v1657 = vld [vmem:[#allocation2 + $0x50] sm:$0x1]
        %v1658 = vld [vmem:[#allocation2 + $0x54] sm:$0xe]
        %v1659 = vld [vmem:[#allocation2 + $0x58] sm:$0xf]
        %v1660 = vld [vmem:[#allocation2 + $0x5c] sm:$0x1]
        %v1661 = vld [vmem:[#allocation2 + $0x60] sm:$0xe]
        %v1662 = vld [vmem:[#allocation2 + $0x64] sm:$0xf]
        %v1663 = vld [vmem:[#allocation2 + $0x68] sm:$0x1]
        %v1664 = vld [vmem:[#allocation2 + $0x6c] sm:$0xe]
        %v1665 = vld [vmem:[#allocation2 + $0x70] sm:$0xf]
        %v1666 = vld [vmem:[#allocation2 + $0x74] sm:$0x1]
        %v1667 = vld [vmem:[#allocation2 + $0x78] sm:$0xe]
        %v1668 = vld [vmem:[#allocation2 + $0x7c] sm:$0xf]
        %v1669 = vld [vmem:[#allocation2 + $0x80] sm:$0x1]
        %v1670 = vld [vmem:[#allocation2 + $0x84] sm:$0xe]
        %v1671 = vld [vmem:[#allocation2 + $0x88] sm:$0xf]
        %v1672 = vld [vmem:[#allocation2 + $0x8c] sm:$0x1]
        %v1673 = vld [vmem:[#allocation2 + $0x90] sm:$0xe]
        %v1674 = vld [vmem:[#allocation2 + $0x94] sm:$0xf]
        %v1675 = vld [vmem:[#allocation2 + $0x98] sm:$0x1]
        %v1676 = vld [vmem:[#allocation2 + $0x9c] sm:$0xe]
        %v1677 = vld [vmem:[#allocation2 + $0xa0] sm:$0xf]
        %v1678 = vld [vmem:[#allocation2 + $0xa4] sm:$0x1]
        %v1679 = vld [vmem:[#allocation2 + $0xa8] sm:$0xe]
        %v1680 = vld [vmem:[#allocation2 + $0xac] sm:$0xf]
        %v1681 = vld [vmem:[#allocation2 + $0xb0] sm:$0x1]
        %v1682 = vld [vmem:[#allocation2 + $0xb4] sm:$0xe]
        %v1683 = vld [vmem:[#allocation2 + $0xb8] sm:$0xf]
        %v1684 = vld [vmem:[#allocation2 + $0xbc] sm:$0x1]
        %vm1733 = vcmask 1042432
        %vm1734 = vcmask 1046532
        %vm1735 = vmor %vm1733, %vm1734
        %v1736 = vrot.slane %v1637, 5
        %v1737 = vrot.slane %v1736, 4
        %v1738 = vrot.slane %v1638, 5
        %v1739 = vsel %vm1735, %v1737, %v1738
        %v1740 = vrot.slane %v1738, 4
        %v1741 = vrot.slane %v1639, 5
        %v1742 = vsel %vm1735, %v1740, %v1741
        %v1743 = vrot.slane %v1640, 5
        %v1744 = vrot.slane %v1743, 4
        %v1745 = vrot.slane %v1641, 5
        %v1746 = vsel %vm1735, %v1744, %v1745
        %v1747 = vrot.slane %v1745, 4
        %v1748 = vrot.slane %v1642, 5
        %v1749 = vsel %vm1735, %v1747, %v1748
        %v1750 = vrot.slane %v1643, 5
        %v1751 = vrot.slane %v1750, 4
        %v1752 = vrot.slane %v1644, 5
        %v1753 = vsel %vm1735, %v1751, %v1752
        %v1754 = vrot.slane %v1752, 4
        %v1755 = vrot.slane %v1645, 5
        %v1756 = vsel %vm1735, %v1754, %v1755
        %v1757 = vrot.slane %v1646, 5
        %v1758 = vrot.slane %v1757, 4
        %v1759 = vrot.slane %v1647, 5
        %v1760 = vsel %vm1735, %v1758, %v1759
        %v1761 = vrot.slane %v1759, 4
        %v1762 = vrot.slane %v1648, 5
        %v1763 = vsel %vm1735, %v1761, %v1762
        %v1764 = vrot.slane %v1649, 5
        %v1765 = vrot.slane %v1764, 4
        %v1766 = vrot.slane %v1650, 5
        %v1767 = vsel %vm1735, %v1765, %v1766
        %v1768 = vrot.slane %v1766, 4
        %v1769 = vrot.slane %v1651, 5
        %v1770 = vsel %vm1735, %v1768, %v1769
        %v1771 = vrot.slane %v1652, 5
        %v1772 = vrot.slane %v1771, 4
        %v1773 = vrot.slane %v1653, 5
        %v1774 = vsel %vm1735, %v1772, %v1773
        %v1775 = vrot.slane %v1773, 4
        %v1776 = vrot.slane %v1654, 5
        %v1777 = vsel %vm1735, %v1775, %v1776
        %v1778 = vrot.slane %v1655, 5
        %v1779 = vrot.slane %v1778, 4
        %v1780 = vrot.slane %v1656, 5
        %v1781 = vsel %vm1735, %v1779, %v1780
        %v1782 = vrot.slane %v1780, 4
        %v1783 = vrot.slane %v1657, 5
        %v1784 = vsel %vm1735, %v1782, %v1783
        %v1785 = vrot.slane %v1658, 5
        %v1786 = vrot.slane %v1785, 4
        %v1787 = vrot.slane %v1659, 5
        %v1788 = vsel %vm1735, %v1786, %v1787
        %v1789 = vrot.slane %v1787, 4
        %v1790 = vrot.slane %v1660, 5
        %v1791 = vsel %vm1735, %v1789, %v1790
        %v1792 = vrot.slane %v1661, 5
        %v1793 = vrot.slane %v1792, 4
        %v1794 = vrot.slane %v1662, 5
        %v1795 = vsel %vm1735, %v1793, %v1794
        %v1796 = vrot.slane %v1794, 4
        %v1797 = vrot.slane %v1663, 5
        %v1798 = vsel %vm1735, %v1796, %v1797
        %v1799 = vrot.slane %v1664, 5
        %v1800 = vrot.slane %v1799, 4
        %v1801 = vrot.slane %v1665, 5
        %v1802 = vsel %vm1735, %v1800, %v1801
        %v1803 = vrot.slane %v1801, 4
        %v1804 = vrot.slane %v1666, 5
        %v1805 = vsel %vm1735, %v1803, %v1804
        %v1806 = vrot.slane %v1667, 5
        %v1807 = vrot.slane %v1806, 4
        %v1808 = vrot.slane %v1668, 5
        %v1809 = vsel %vm1735, %v1807, %v1808
        %v1810 = vrot.slane %v1808, 4
        %v1811 = vrot.slane %v1669, 5
        %v1812 = vsel %vm1735, %v1810, %v1811
        %v1813 = vrot.slane %v1670, 5
        %v1814 = vrot.slane %v1813, 4
        %v1815 = vrot.slane %v1671, 5
        %v1816 = vsel %vm1735, %v1814, %v1815
        %v1817 = vrot.slane %v1815, 4
        %v1818 = vrot.slane %v1672, 5
        %v1819 = vsel %vm1735, %v1817, %v1818
        %v1820 = vrot.slane %v1673, 5
        %v1821 = vrot.slane %v1820, 4
        %v1822 = vrot.slane %v1674, 5
        %v1823 = vsel %vm1735, %v1821, %v1822
        %v1824 = vrot.slane %v1822, 4
        %v1825 = vrot.slane %v1675, 5
        %v1826 = vsel %vm1735, %v1824, %v1825
        %v1827 = vrot.slane %v1676, 5
        %v1828 = vrot.slane %v1827, 4
        %v1829 = vrot.slane %v1677, 5
        %v1830 = vsel %vm1735, %v1828, %v1829
        %v1831 = vrot.slane %v1829, 4
        %v1832 = vrot.slane %v1678, 5
        %v1833 = vsel %vm1735, %v1831, %v1832
        %v1834 = vrot.slane %v1679, 5
        %v1835 = vrot.slane %v1834, 4
        %v1836 = vrot.slane %v1680, 5
        %v1837 = vsel %vm1735, %v1835, %v1836
        %v1838 = vrot.slane %v1836, 4
        %v1839 = vrot.slane %v1681, 5
        %v1840 = vsel %vm1735, %v1838, %v1839
        %v1841 = vrot.slane %v1682, 5
        %v1842 = vrot.slane %v1841, 4
        %v1843 = vrot.slane %v1683, 5
        %v1844 = vsel %vm1735, %v1842, %v1843
        %v1845 = vrot.slane %v1843, 4
        %v1846 = vrot.slane %v1684, 5
        %v1847 = vsel %vm1735, %v1845, %v1846
        %1880 = vst [vmem:[#allocation3 + $0x8] sm:$0xf] %v1739
        %1881 = vst [vmem:[#allocation3 + $0x2c] sm:$0xf] %v1742
        %1882 = vst [vmem:[#allocation3 + $0x50] sm:$0xf] %v1746
        %1883 = vst [vmem:[#allocation3 + $0x74] sm:$0xf] %v1749
        %1884 = vst [vmem:[#allocation3 + $0x98] sm:$0xf] %v1753
        %1885 = vst [vmem:[#allocation3 + $0xbc] sm:$0xf] %v1756
        %1886 = vst [vmem:[#allocation3 + $0xe0] sm:$0xf] %v1760
        %1887 = vst [vmem:[#allocation3 + $0x104] sm:$0xf] %v1763
        %1888 = vst [vmem:[#allocation3 + $0x128] sm:$0xf] %v1767
        %1889 = vst [vmem:[#allocation3 + $0x14c] sm:$0xf] %v1770
        %1890 = vst [vmem:[#allocation3 + $0x170] sm:$0xf] %v1774
        %1891 = vst [vmem:[#allocation3 + $0x194] sm:$0xf] %v1777
        %1892 = vst [vmem:[#allocation3 + $0x1b8] sm:$0xf] %v1781
        %1893 = vst [vmem:[#allocation3 + $0x1dc] sm:$0xf] %v1784
        %1894 = vst [vmem:[#allocation3 + $0x200] sm:$0xf] %v1788
        %1895 = vst [vmem:[#allocation3 + $0x224] sm:$0xf] %v1791
        %1896 = vst [vmem:[#allocation3 + $0x248] sm:$0xf] %v1795
        %1897 = vst [vmem:[#allocation3 + $0x26c] sm:$0xf] %v1798
        %1898 = vst [vmem:[#allocation3 + $0x290] sm:$0xf] %v1802
        %1899 = vst [vmem:[#allocation3 + $0x2b4] sm:$0xf] %v1805
        %1900 = vst [vmem:[#allocation3 + $0x2d8] sm:$0xf] %v1809
        %1901 = vst [vmem:[#allocation3 + $0x2fc] sm:$0xf] %v1812
        %1902 = vst [vmem:[#allocation3 + $0x320] sm:$0xf] %v1816
        %1903 = vst [vmem:[#allocation3 + $0x344] sm:$0xf] %v1819
        %1904 = vst [vmem:[#allocation3 + $0x368] sm:$0xf] %v1823
        %1905 = vst [vmem:[#allocation3 + $0x38c] sm:$0xf] %v1826
        %1906 = vst [vmem:[#allocation3 + $0x3b0] sm:$0xf] %v1830
        %1907 = vst [vmem:[#allocation3 + $0x3d4] sm:$0xf] %v1833
        %1908 = vst [vmem:[#allocation3 + $0x3f8] sm:$0xf] %v1837
        %1909 = vst [vmem:[#allocation3 + $0x41c] sm:$0xf] %v1840
        %1910 = vst [vmem:[#allocation3 + $0x440] sm:$0xf] %v1844
        %1911 = vst [vmem:[#allocation3 + $0x464] sm:$0xf] %v1847
        %v1912 = vld [vmem:[%s485] sm:$0xf]
        %v1913 = vld [vmem:[%s485 + $0x4] sm:$0xf]
        %v1914 = vld [vmem:[%s485 + $0xc] sm:$0xf]
        %v1915 = vld [vmem:[%s485 + $0x10] sm:$0xf]
        %v1916 = vld [vmem:[%s485 + $0x18] sm:$0xf]
        %v1917 = vld [vmem:[%s485 + $0x1c] sm:$0xf]
        %v1918 = vld [vmem:[%s485 + $0x24] sm:$0xf]
        %v1919 = vld [vmem:[%s485 + $0x28] sm:$0xf]
        %v1920 = vld [vmem:[%s485 + $0x30] sm:$0xf]
        %v1921 = vld [vmem:[%s485 + $0x34] sm:$0xf]
        %v1922 = vld [vmem:[%s485 + $0x3c] sm:$0xf]
        %v1923 = vld [vmem:[%s485 + $0x40] sm:$0xf]
        %v1924 = vld [vmem:[%s485 + $0x48] sm:$0xf]
        %v1925 = vld [vmem:[%s485 + $0x4c] sm:$0xf]
        %v1926 = vld [vmem:[%s485 + $0x54] sm:$0xf]
        %v1927 = vld [vmem:[%s485 + $0x58] sm:$0xf]
        %v1928 = vld [vmem:[%s485 + $0x60] sm:$0xf]
        %v1929 = vld [vmem:[%s485 + $0x64] sm:$0xf]
        %v1930 = vld [vmem:[%s485 + $0x6c] sm:$0xf]
        %v1931 = vld [vmem:[%s485 + $0x70] sm:$0xf]
        %v1932 = vld [vmem:[%s485 + $0x78] sm:$0xf]
        %v1933 = vld [vmem:[%s485 + $0x7c] sm:$0xf]
        %v1934 = vld [vmem:[%s485 + $0x84] sm:$0xf]
        %v1935 = vld [vmem:[%s485 + $0x88] sm:$0xf]
        %v1936 = vld [vmem:[%s485 + $0x90] sm:$0xf]
        %v1937 = vld [vmem:[%s485 + $0x94] sm:$0xf]
        %v1938 = vld [vmem:[%s485 + $0x9c] sm:$0xf]
        %v1939 = vld [vmem:[%s485 + $0xa0] sm:$0xf]
        %v1940 = vld [vmem:[%s485 + $0xa8] sm:$0xf]
        %v1941 = vld [vmem:[%s485 + $0xac] sm:$0xf]
        %v1942 = vld [vmem:[%s485 + $0xb4] sm:$0xf]
        %v1943 = vld [vmem:[%s485 + $0xb8] sm:$0xf]
        %1944 = vst [vmem:[#allocation3 + $0xc] sm:$0xf] %v1912
        %1945 = vst [vmem:[#allocation3 + $0x30] sm:$0xf] %v1913
        %1946 = vst [vmem:[#allocation3 + $0x54] sm:$0xf] %v1914
        %1947 = vst [vmem:[#allocation3 + $0x78] sm:$0xf] %v1915
        %1948 = vst [vmem:[#allocation3 + $0x9c] sm:$0xf] %v1916
        %1949 = vst [vmem:[#allocation3 + $0xc0] sm:$0xf] %v1917
        %1950 = vst [vmem:[#allocation3 + $0xe4] sm:$0xf] %v1918
        %1951 = vst [vmem:[#allocation3 + $0x108] sm:$0xf] %v1919
        %1952 = vst [vmem:[#allocation3 + $0x12c] sm:$0xf] %v1920
        %1953 = vst [vmem:[#allocation3 + $0x150] sm:$0xf] %v1921
        %1954 = vst [vmem:[#allocation3 + $0x174] sm:$0xf] %v1922
        %1955 = vst [vmem:[#allocation3 + $0x198] sm:$0xf] %v1923
        %1956 = vst [vmem:[#allocation3 + $0x1bc] sm:$0xf] %v1924
        %1957 = vst [vmem:[#allocation3 + $0x1e0] sm:$0xf] %v1925
        %1958 = vst [vmem:[#allocation3 + $0x204] sm:$0xf] %v1926
        %1959 = vst [vmem:[#allocation3 + $0x228] sm:$0xf] %v1927
        %1960 = vst [vmem:[#allocation3 + $0x24c] sm:$0xf] %v1928
        %1961 = vst [vmem:[#allocation3 + $0x270] sm:$0xf] %v1929
        %1962 = vst [vmem:[#allocation3 + $0x294] sm:$0xf] %v1930
        %1963 = vst [vmem:[#allocation3 + $0x2b8] sm:$0xf] %v1931
        %1964 = vst [vmem:[#allocation3 + $0x2dc] sm:$0xf] %v1932
        %1965 = vst [vmem:[#allocation3 + $0x300] sm:$0xf] %v1933
        %1966 = vst [vmem:[#allocation3 + $0x324] sm:$0xf] %v1934
        %1967 = vst [vmem:[#allocation3 + $0x348] sm:$0xf] %v1935
        %1968 = vst [vmem:[#allocation3 + $0x36c] sm:$0xf] %v1936
        %1969 = vst [vmem:[#allocation3 + $0x390] sm:$0xf] %v1937
        %1970 = vst [vmem:[#allocation3 + $0x3b4] sm:$0xf] %v1938
        %1971 = vst [vmem:[#allocation3 + $0x3d8] sm:$0xf] %v1939
        %1972 = vst [vmem:[#allocation3 + $0x3fc] sm:$0xf] %v1940
        %1973 = vst [vmem:[#allocation3 + $0x420] sm:$0xf] %v1941
        %1974 = vst [vmem:[#allocation3 + $0x444] sm:$0xf] %v1942
        %1975 = vst [vmem:[#allocation3 + $0x468] sm:$0xf] %v1943
        %v1976 = vld [vmem:[%s485] sm:$0xf]
        %v1977 = vld [vmem:[%s485 + $0x4] sm:$0xf]
        %v1978 = vld [vmem:[%s485 + $0x8] sm:$0x1]
        %v1979 = vld [vmem:[%s485 + $0xc] sm:$0xf]
        %v1980 = vld [vmem:[%s485 + $0x10] sm:$0xf]
        %v1981 = vld [vmem:[%s485 + $0x14] sm:$0x1]
        %v1982 = vld [vmem:[%s485 + $0x18] sm:$0xf]
        %v1983 = vld [vmem:[%s485 + $0x1c] sm:$0xf]
        %v1984 = vld [vmem:[%s485 + $0x20] sm:$0x1]
        %v1985 = vld [vmem:[%s485 + $0x24] sm:$0xf]
        %v1986 = vld [vmem:[%s485 + $0x28] sm:$0xf]
        %v1987 = vld [vmem:[%s485 + $0x2c] sm:$0x1]
        %v1988 = vld [vmem:[%s485 + $0x30] sm:$0xf]
        %v1989 = vld [vmem:[%s485 + $0x34] sm:$0xf]
        %v1990 = vld [vmem:[%s485 + $0x38] sm:$0x1]
        %v1991 = vld [vmem:[%s485 + $0x3c] sm:$0xf]
        %v1992 = vld [vmem:[%s485 + $0x40] sm:$0xf]
        %v1993 = vld [vmem:[%s485 + $0x44] sm:$0x1]
        %v1994 = vld [vmem:[%s485 + $0x48] sm:$0xf]
        %v1995 = vld [vmem:[%s485 + $0x4c] sm:$0xf]
        %v1996 = vld [vmem:[%s485 + $0x50] sm:$0x1]
        %v1997 = vld [vmem:[%s485 + $0x54] sm:$0xf]
        %v1998 = vld [vmem:[%s485 + $0x58] sm:$0xf]
        %v1999 = vld [vmem:[%s485 + $0x5c] sm:$0x1]
        %v2000 = vld [vmem:[%s485 + $0x60] sm:$0xf]
        %v2001 = vld [vmem:[%s485 + $0x64] sm:$0xf]
        %v2002 = vld [vmem:[%s485 + $0x68] sm:$0x1]
        %v2003 = vld [vmem:[%s485 + $0x6c] sm:$0xf]
        %v2004 = vld [vmem:[%s485 + $0x70] sm:$0xf]
        %v2005 = vld [vmem:[%s485 + $0x74] sm:$0x1]
        %v2006 = vld [vmem:[%s485 + $0x78] sm:$0xf]
        %v2007 = vld [vmem:[%s485 + $0x7c] sm:$0xf]
        %v2008 = vld [vmem:[%s485 + $0x80] sm:$0x1]
        %v2009 = vld [vmem:[%s485 + $0x84] sm:$0xf]
        %v2010 = vld [vmem:[%s485 + $0x88] sm:$0xf]
        %v2011 = vld [vmem:[%s485 + $0x8c] sm:$0x1]
        %v2012 = vld [vmem:[%s485 + $0x90] sm:$0xf]
        %v2013 = vld [vmem:[%s485 + $0x94] sm:$0xf]
        %v2014 = vld [vmem:[%s485 + $0x98] sm:$0x1]
        %v2015 = vld [vmem:[%s485 + $0x9c] sm:$0xf]
        %v2016 = vld [vmem:[%s485 + $0xa0] sm:$0xf]
        %v2017 = vld [vmem:[%s485 + $0xa4] sm:$0x1]
        %v2018 = vld [vmem:[%s485 + $0xa8] sm:$0xf]
        %v2019 = vld [vmem:[%s485 + $0xac] sm:$0xf]
        %v2020 = vld [vmem:[%s485 + $0xb0] sm:$0x1]
        %v2021 = vld [vmem:[%s485 + $0xb4] sm:$0xf]
        %v2022 = vld [vmem:[%s485 + $0xb8] sm:$0xf]
        %v2023 = vld [vmem:[%s485 + $0xbc] sm:$0x1]
        %v2025 = vshrl.u32 %v1976, 16
        %v2027 = vrot.slane %v2025, 4
        %v2028 = vshll.u32 %v1976, 16
        %v2030 = vrot.slane %v2028, 5
        %v2031 = vor.u32 %v2027, %v2030
        %v2032 = vrot.slane %v2031, 4
        %v2034 = vshll.u32 %v1977, 16
        %v2036 = vrot.slane %v2034, 5
        %v2037 = vsel %vm1188, %v2032, %v2036
        %v2038 = vshrl.u32 %v1977, 16
        %v2040 = vrot.slane %v2038, 4
        %v2041 = vor.u32 %v2040, %v2036
        %v2042 = vrot.slane %v2041, 4
        %v2044 = vshll.u32 %v1978, 16
        %v2046 = vrot.slane %v2044, 5
        %v2047 = vsel %vm1188, %v2042, %v2046
        %v2049 = vshrl.u32 %v1979, 16
        %v2051 = vrot.slane %v2049, 4
        %v2052 = vshll.u32 %v1979, 16
        %v2054 = vrot.slane %v2052, 5
        %v2055 = vor.u32 %v2051, %v2054
        %v2056 = vrot.slane %v2055, 4
        %v2058 = vshll.u32 %v1980, 16
        %v2060 = vrot.slane %v2058, 5
        %v2061 = vsel %vm1188, %v2056, %v2060
        %v2062 = vshrl.u32 %v1980, 16
        %v2064 = vrot.slane %v2062, 4
        %v2065 = vor.u32 %v2064, %v2060
        %v2066 = vrot.slane %v2065, 4
        %v2068 = vshll.u32 %v1981, 16
        %v2070 = vrot.slane %v2068, 5
        %v2071 = vsel %vm1188, %v2066, %v2070
        %v2073 = vshrl.u32 %v1982, 16
        %v2075 = vrot.slane %v2073, 4
        %v2076 = vshll.u32 %v1982, 16
        %v2078 = vrot.slane %v2076, 5
        %v2079 = vor.u32 %v2075, %v2078
        %v2080 = vrot.slane %v2079, 4
        %v2082 = vshll.u32 %v1983, 16
        %v2084 = vrot.slane %v2082, 5
        %v2085 = vsel %vm1188, %v2080, %v2084
        %v2086 = vshrl.u32 %v1983, 16
        %v2088 = vrot.slane %v2086, 4
        %v2089 = vor.u32 %v2088, %v2084
        %v2090 = vrot.slane %v2089, 4
        %v2092 = vshll.u32 %v1984, 16
        %v2094 = vrot.slane %v2092, 5
        %v2095 = vsel %vm1188, %v2090, %v2094
        %v2097 = vshrl.u32 %v1985, 16
        %v2099 = vrot.slane %v2097, 4
        %v2100 = vshll.u32 %v1985, 16
        %v2102 = vrot.slane %v2100, 5
        %v2103 = vor.u32 %v2099, %v2102
        %v2104 = vrot.slane %v2103, 4
        %v2106 = vshll.u32 %v1986, 16
        %v2108 = vrot.slane %v2106, 5
        %v2109 = vsel %vm1188, %v2104, %v2108
        %v2110 = vshrl.u32 %v1986, 16
        %v2112 = vrot.slane %v2110, 4
        %v2113 = vor.u32 %v2112, %v2108
        %v2114 = vrot.slane %v2113, 4
        %v2116 = vshll.u32 %v1987, 16
        %v2118 = vrot.slane %v2116, 5
        %v2119 = vsel %vm1188, %v2114, %v2118
        %v2121 = vshrl.u32 %v1988, 16
        %v2123 = vrot.slane %v2121, 4
        %v2124 = vshll.u32 %v1988, 16
        %v2126 = vrot.slane %v2124, 5
        %v2127 = vor.u32 %v2123, %v2126
        %v2128 = vrot.slane %v2127, 4
        %v2130 = vshll.u32 %v1989, 16
        %v2132 = vrot.slane %v2130, 5
        %v2133 = vsel %vm1188, %v2128, %v2132
        %v2134 = vshrl.u32 %v1989, 16
        %v2136 = vrot.slane %v2134, 4
        %v2137 = vor.u32 %v2136, %v2132
        %v2138 = vrot.slane %v2137, 4
        %v2140 = vshll.u32 %v1990, 16
        %v2142 = vrot.slane %v2140, 5
        %v2143 = vsel %vm1188, %v2138, %v2142
        %v2145 = vshrl.u32 %v1991, 16
        %v2147 = vrot.slane %v2145, 4
        %v2148 = vshll.u32 %v1991, 16
        %v2150 = vrot.slane %v2148, 5
        %v2151 = vor.u32 %v2147, %v2150
        %v2152 = vrot.slane %v2151, 4
        %v2154 = vshll.u32 %v1992, 16
        %v2156 = vrot.slane %v2154, 5
        %v2157 = vsel %vm1188, %v2152, %v2156
        %v2158 = vshrl.u32 %v1992, 16
        %v2160 = vrot.slane %v2158, 4
        %v2161 = vor.u32 %v2160, %v2156
        %v2162 = vrot.slane %v2161, 4
        %v2164 = vshll.u32 %v1993, 16
        %v2166 = vrot.slane %v2164, 5
        %v2167 = vsel %vm1188, %v2162, %v2166
        %v2169 = vshrl.u32 %v1994, 16
        %v2171 = vrot.slane %v2169, 4
        %v2172 = vshll.u32 %v1994, 16
        %v2174 = vrot.slane %v2172, 5
        %v2175 = vor.u32 %v2171, %v2174
        %v2176 = vrot.slane %v2175, 4
        %v2178 = vshll.u32 %v1995, 16
        %v2180 = vrot.slane %v2178, 5
        %v2181 = vsel %vm1188, %v2176, %v2180
        %v2182 = vshrl.u32 %v1995, 16
        %v2184 = vrot.slane %v2182, 4
        %v2185 = vor.u32 %v2184, %v2180
        %v2186 = vrot.slane %v2185, 4
        %v2188 = vshll.u32 %v1996, 16
        %v2190 = vrot.slane %v2188, 5
        %v2191 = vsel %vm1188, %v2186, %v2190
        %v2193 = vshrl.u32 %v1997, 16
        %v2195 = vrot.slane %v2193, 4
        %v2196 = vshll.u32 %v1997, 16
        %v2198 = vrot.slane %v2196, 5
        %v2199 = vor.u32 %v2195, %v2198
        %v2200 = vrot.slane %v2199, 4
        %v2202 = vshll.u32 %v1998, 16
        %v2204 = vrot.slane %v2202, 5
        %v2205 = vsel %vm1188, %v2200, %v2204
        %v2206 = vshrl.u32 %v1998, 16
        %v2208 = vrot.slane %v2206, 4
        %v2209 = vor.u32 %v2208, %v2204
        %v2210 = vrot.slane %v2209, 4
        %v2212 = vshll.u32 %v1999, 16
        %v2214 = vrot.slane %v2212, 5
        %v2215 = vsel %vm1188, %v2210, %v2214
        %v2217 = vshrl.u32 %v2000, 16
        %v2219 = vrot.slane %v2217, 4
        %v2220 = vshll.u32 %v2000, 16
        %v2222 = vrot.slane %v2220, 5
        %v2223 = vor.u32 %v2219, %v2222
        %v2224 = vrot.slane %v2223, 4
        %v2226 = vshll.u32 %v2001, 16
        %v2228 = vrot.slane %v2226, 5
        %v2229 = vsel %vm1188, %v2224, %v2228
        %v2230 = vshrl.u32 %v2001, 16
        %v2232 = vrot.slane %v2230, 4
        %v2233 = vor.u32 %v2232, %v2228
        %v2234 = vrot.slane %v2233, 4
        %v2236 = vshll.u32 %v2002, 16
        %v2238 = vrot.slane %v2236, 5
        %v2239 = vsel %vm1188, %v2234, %v2238
        %v2241 = vshrl.u32 %v2003, 16
        %v2243 = vrot.slane %v2241, 4
        %v2244 = vshll.u32 %v2003, 16
        %v2246 = vrot.slane %v2244, 5
        %v2247 = vor.u32 %v2243, %v2246
        %v2248 = vrot.slane %v2247, 4
        %v2250 = vshll.u32 %v2004, 16
        %v2252 = vrot.slane %v2250, 5
        %v2253 = vsel %vm1188, %v2248, %v2252
        %v2254 = vshrl.u32 %v2004, 16
        %v2256 = vrot.slane %v2254, 4
        %v2257 = vor.u32 %v2256, %v2252
        %v2258 = vrot.slane %v2257, 4
        %v2260 = vshll.u32 %v2005, 16
        %v2262 = vrot.slane %v2260, 5
        %v2263 = vsel %vm1188, %v2258, %v2262
        %v2265 = vshrl.u32 %v2006, 16
        %v2267 = vrot.slane %v2265, 4
        %v2268 = vshll.u32 %v2006, 16
        %v2270 = vrot.slane %v2268, 5
        %v2271 = vor.u32 %v2267, %v2270
        %v2272 = vrot.slane %v2271, 4
        %v2274 = vshll.u32 %v2007, 16
        %v2276 = vrot.slane %v2274, 5
        %v2277 = vsel %vm1188, %v2272, %v2276
        %v2278 = vshrl.u32 %v2007, 16
        %v2280 = vrot.slane %v2278, 4
        %v2281 = vor.u32 %v2280, %v2276
        %v2282 = vrot.slane %v2281, 4
        %v2284 = vshll.u32 %v2008, 16
        %v2286 = vrot.slane %v2284, 5
        %v2287 = vsel %vm1188, %v2282, %v2286
        %v2289 = vshrl.u32 %v2009, 16
        %v2291 = vrot.slane %v2289, 4
        %v2292 = vshll.u32 %v2009, 16
        %v2294 = vrot.slane %v2292, 5
        %v2295 = vor.u32 %v2291, %v2294
        %v2296 = vrot.slane %v2295, 4
        %v2298 = vshll.u32 %v2010, 16
        %v2300 = vrot.slane %v2298, 5
        %v2301 = vsel %vm1188, %v2296, %v2300
        %v2302 = vshrl.u32 %v2010, 16
        %v2304 = vrot.slane %v2302, 4
        %v2305 = vor.u32 %v2304, %v2300
        %v2306 = vrot.slane %v2305, 4
        %v2308 = vshll.u32 %v2011, 16
        %v2310 = vrot.slane %v2308, 5
        %v2311 = vsel %vm1188, %v2306, %v2310
        %v2313 = vshrl.u32 %v2012, 16
        %v2315 = vrot.slane %v2313, 4
        %v2316 = vshll.u32 %v2012, 16
        %v2318 = vrot.slane %v2316, 5
        %v2319 = vor.u32 %v2315, %v2318
        %v2320 = vrot.slane %v2319, 4
        %v2322 = vshll.u32 %v2013, 16
        %v2324 = vrot.slane %v2322, 5
        %v2325 = vsel %vm1188, %v2320, %v2324
        %v2326 = vshrl.u32 %v2013, 16
        %v2328 = vrot.slane %v2326, 4
        %v2329 = vor.u32 %v2328, %v2324
        %v2330 = vrot.slane %v2329, 4
        %v2332 = vshll.u32 %v2014, 16
        %v2334 = vrot.slane %v2332, 5
        %v2335 = vsel %vm1188, %v2330, %v2334
        %v2337 = vshrl.u32 %v2015, 16
        %v2339 = vrot.slane %v2337, 4
        %v2340 = vshll.u32 %v2015, 16
        %v2342 = vrot.slane %v2340, 5
        %v2343 = vor.u32 %v2339, %v2342
        %v2344 = vrot.slane %v2343, 4
        %v2346 = vshll.u32 %v2016, 16
        %v2348 = vrot.slane %v2346, 5
        %v2349 = vsel %vm1188, %v2344, %v2348
        %v2350 = vshrl.u32 %v2016, 16
        %v2352 = vrot.slane %v2350, 4
        %v2353 = vor.u32 %v2352, %v2348
        %v2354 = vrot.slane %v2353, 4
        %v2356 = vshll.u32 %v2017, 16
        %v2358 = vrot.slane %v2356, 5
        %v2359 = vsel %vm1188, %v2354, %v2358
        %v2361 = vshrl.u32 %v2018, 16
        %v2363 = vrot.slane %v2361, 4
        %v2364 = vshll.u32 %v2018, 16
        %v2366 = vrot.slane %v2364, 5
        %v2367 = vor.u32 %v2363, %v2366
        %v2368 = vrot.slane %v2367, 4
        %v2370 = vshll.u32 %v2019, 16
        %v2372 = vrot.slane %v2370, 5
        %v2373 = vsel %vm1188, %v2368, %v2372
        %v2374 = vshrl.u32 %v2019, 16
        %v2376 = vrot.slane %v2374, 4
        %v2377 = vor.u32 %v2376, %v2372
        %v2378 = vrot.slane %v2377, 4
        %v2380 = vshll.u32 %v2020, 16
        %v2382 = vrot.slane %v2380, 5
        %v2383 = vsel %vm1188, %v2378, %v2382
        %v2385 = vshrl.u32 %v2021, 16
        %v2387 = vrot.slane %v2385, 4
        %v2388 = vshll.u32 %v2021, 16
        %v2390 = vrot.slane %v2388, 5
        %v2391 = vor.u32 %v2387, %v2390
        %v2392 = vrot.slane %v2391, 4
        %v2394 = vshll.u32 %v2022, 16
        %v2396 = vrot.slane %v2394, 5
        %v2397 = vsel %vm1188, %v2392, %v2396
        %v2398 = vshrl.u32 %v2022, 16
        %v2400 = vrot.slane %v2398, 4
        %v2401 = vor.u32 %v2400, %v2396
        %v2402 = vrot.slane %v2401, 4
        %v2404 = vshll.u32 %v2023, 16
        %v2406 = vrot.slane %v2404, 5
        %v2407 = vsel %vm1188, %v2402, %v2406
        %2440 = vst [vmem:[#allocation3 + $0x10] sm:$0xf] %v2037
        %2441 = vst [vmem:[#allocation3 + $0x34] sm:$0xf] %v2047
        %2442 = vst [vmem:[#allocation3 + $0x58] sm:$0xf] %v2061
        %2443 = vst [vmem:[#allocation3 + $0x7c] sm:$0xf] %v2071
        %2444 = vst [vmem:[#allocation3 + $0xa0] sm:$0xf] %v2085
        %2445 = vst [vmem:[#allocation3 + $0xc4] sm:$0xf] %v2095
        %2446 = vst [vmem:[#allocation3 + $0xe8] sm:$0xf] %v2109
        %2447 = vst [vmem:[#allocation3 + $0x10c] sm:$0xf] %v2119
        %2448 = vst [vmem:[#allocation3 + $0x130] sm:$0xf] %v2133
        %2449 = vst [vmem:[#allocation3 + $0x154] sm:$0xf] %v2143
        %2450 = vst [vmem:[#allocation3 + $0x178] sm:$0xf] %v2157
        %2451 = vst [vmem:[#allocation3 + $0x19c] sm:$0xf] %v2167
        %2452 = vst [vmem:[#allocation3 + $0x1c0] sm:$0xf] %v2181
        %2453 = vst [vmem:[#allocation3 + $0x1e4] sm:$0xf] %v2191
        %2454 = vst [vmem:[#allocation3 + $0x208] sm:$0xf] %v2205
        %2455 = vst [vmem:[#allocation3 + $0x22c] sm:$0xf] %v2215
        %2456 = vst [vmem:[#allocation3 + $0x250] sm:$0xf] %v2229
        %2457 = vst [vmem:[#allocation3 + $0x274] sm:$0xf] %v2239
        %2458 = vst [vmem:[#allocation3 + $0x298] sm:$0xf] %v2253
        %2459 = vst [vmem:[#allocation3 + $0x2bc] sm:$0xf] %v2263
        %2460 = vst [vmem:[#allocation3 + $0x2e0] sm:$0xf] %v2277
        %2461 = vst [vmem:[#allocation3 + $0x304] sm:$0xf] %v2287
        %2462 = vst [vmem:[#allocation3 + $0x328] sm:$0xf] %v2301
        %2463 = vst [vmem:[#allocation3 + $0x34c] sm:$0xf] %v2311
        %2464 = vst [vmem:[#allocation3 + $0x370] sm:$0xf] %v2325
        %2465 = vst [vmem:[#allocation3 + $0x394] sm:$0xf] %v2335
        %2466 = vst [vmem:[#allocation3 + $0x3b8] sm:$0xf] %v2349
        %2467 = vst [vmem:[#allocation3 + $0x3dc] sm:$0xf] %v2359
        %2468 = vst [vmem:[#allocation3 + $0x400] sm:$0xf] %v2373
        %2469 = vst [vmem:[#allocation3 + $0x424] sm:$0xf] %v2383
        %2470 = vst [vmem:[#allocation3 + $0x448] sm:$0xf] %v2397
        %2471 = vst [vmem:[#allocation3 + $0x46c] sm:$0xf] %v2407
        %v2472 = vld [vmem:[%s485] sm:$0xe]
        %v2473 = vld [vmem:[%s485 + $0x4] sm:$0xf]
        %v2474 = vld [vmem:[%s485 + $0x8] sm:$0x1]
        %v2475 = vld [vmem:[%s485 + $0xc] sm:$0xe]
        %v2476 = vld [vmem:[%s485 + $0x10] sm:$0xf]
        %v2477 = vld [vmem:[%s485 + $0x14] sm:$0x1]
        %v2478 = vld [vmem:[%s485 + $0x18] sm:$0xe]
        %v2479 = vld [vmem:[%s485 + $0x1c] sm:$0xf]
        %v2480 = vld [vmem:[%s485 + $0x20] sm:$0x1]
        %v2481 = vld [vmem:[%s485 + $0x24] sm:$0xe]
        %v2482 = vld [vmem:[%s485 + $0x28] sm:$0xf]
        %v2483 = vld [vmem:[%s485 + $0x2c] sm:$0x1]
        %v2484 = vld [vmem:[%s485 + $0x30] sm:$0xe]
        %v2485 = vld [vmem:[%s485 + $0x34] sm:$0xf]
        %v2486 = vld [vmem:[%s485 + $0x38] sm:$0x1]
        %v2487 = vld [vmem:[%s485 + $0x3c] sm:$0xe]
        %v2488 = vld [vmem:[%s485 + $0x40] sm:$0xf]
        %v2489 = vld [vmem:[%s485 + $0x44] sm:$0x1]
        %v2490 = vld [vmem:[%s485 + $0x48] sm:$0xe]
        %v2491 = vld [vmem:[%s485 + $0x4c] sm:$0xf]
        %v2492 = vld [vmem:[%s485 + $0x50] sm:$0x1]
        %v2493 = vld [vmem:[%s485 + $0x54] sm:$0xe]
        %v2494 = vld [vmem:[%s485 + $0x58] sm:$0xf]
        %v2495 = vld [vmem:[%s485 + $0x5c] sm:$0x1]
        %v2496 = vld [vmem:[%s485 + $0x60] sm:$0xe]
        %v2497 = vld [vmem:[%s485 + $0x64] sm:$0xf]
        %v2498 = vld [vmem:[%s485 + $0x68] sm:$0x1]
        %v2499 = vld [vmem:[%s485 + $0x6c] sm:$0xe]
        %v2500 = vld [vmem:[%s485 + $0x70] sm:$0xf]
        %v2501 = vld [vmem:[%s485 + $0x74] sm:$0x1]
        %v2502 = vld [vmem:[%s485 + $0x78] sm:$0xe]
        %v2503 = vld [vmem:[%s485 + $0x7c] sm:$0xf]
        %v2504 = vld [vmem:[%s485 + $0x80] sm:$0x1]
        %v2505 = vld [vmem:[%s485 + $0x84] sm:$0xe]
        %v2506 = vld [vmem:[%s485 + $0x88] sm:$0xf]
        %v2507 = vld [vmem:[%s485 + $0x8c] sm:$0x1]
        %v2508 = vld [vmem:[%s485 + $0x90] sm:$0xe]
        %v2509 = vld [vmem:[%s485 + $0x94] sm:$0xf]
        %v2510 = vld [vmem:[%s485 + $0x98] sm:$0x1]
        %v2511 = vld [vmem:[%s485 + $0x9c] sm:$0xe]
        %v2512 = vld [vmem:[%s485 + $0xa0] sm:$0xf]
        %v2513 = vld [vmem:[%s485 + $0xa4] sm:$0x1]
        %v2514 = vld [vmem:[%s485 + $0xa8] sm:$0xe]
        %v2515 = vld [vmem:[%s485 + $0xac] sm:$0xf]
        %v2516 = vld [vmem:[%s485 + $0xb0] sm:$0x1]
        %v2517 = vld [vmem:[%s485 + $0xb4] sm:$0xe]
        %v2518 = vld [vmem:[%s485 + $0xb8] sm:$0xf]
        %v2519 = vld [vmem:[%s485 + $0xbc] sm:$0x1]
        %v2568 = vrot.slane %v2472, 5
        %v2569 = vrot.slane %v2568, 4
        %v2570 = vrot.slane %v2473, 5
        %v2571 = vsel %vm1735, %v2569, %v2570
        %v2572 = vrot.slane %v2570, 4
        %v2573 = vrot.slane %v2474, 5
        %v2574 = vsel %vm1735, %v2572, %v2573
        %v2575 = vrot.slane %v2475, 5
        %v2576 = vrot.slane %v2575, 4
        %v2577 = vrot.slane %v2476, 5
        %v2578 = vsel %vm1735, %v2576, %v2577
        %v2579 = vrot.slane %v2577, 4
        %v2580 = vrot.slane %v2477, 5
        %v2581 = vsel %vm1735, %v2579, %v2580
        %v2582 = vrot.slane %v2478, 5
        %v2583 = vrot.slane %v2582, 4
        %v2584 = vrot.slane %v2479, 5
        %v2585 = vsel %vm1735, %v2583, %v2584
        %v2586 = vrot.slane %v2584, 4
        %v2587 = vrot.slane %v2480, 5
        %v2588 = vsel %vm1735, %v2586, %v2587
        %v2589 = vrot.slane %v2481, 5
        %v2590 = vrot.slane %v2589, 4
        %v2591 = vrot.slane %v2482, 5
        %v2592 = vsel %vm1735, %v2590, %v2591
        %v2593 = vrot.slane %v2591, 4
        %v2594 = vrot.slane %v2483, 5
        %v2595 = vsel %vm1735, %v2593, %v2594
        %v2596 = vrot.slane %v2484, 5
        %v2597 = vrot.slane %v2596, 4
        %v2598 = vrot.slane %v2485, 5
        %v2599 = vsel %vm1735, %v2597, %v2598
        %v2600 = vrot.slane %v2598, 4
        %v2601 = vrot.slane %v2486, 5
        %v2602 = vsel %vm1735, %v2600, %v2601
        %v2603 = vrot.slane %v2487, 5
        %v2604 = vrot.slane %v2603, 4
        %v2605 = vrot.slane %v2488, 5
        %v2606 = vsel %vm1735, %v2604, %v2605
        %v2607 = vrot.slane %v2605, 4
        %v2608 = vrot.slane %v2489, 5
        %v2609 = vsel %vm1735, %v2607, %v2608
        %v2610 = vrot.slane %v2490, 5
        %v2611 = vrot.slane %v2610, 4
        %v2612 = vrot.slane %v2491, 5
        %v2613 = vsel %vm1735, %v2611, %v2612
        %v2614 = vrot.slane %v2612, 4
        %v2615 = vrot.slane %v2492, 5
        %v2616 = vsel %vm1735, %v2614, %v2615
        %v2617 = vrot.slane %v2493, 5
        %v2618 = vrot.slane %v2617, 4
        %v2619 = vrot.slane %v2494, 5
        %v2620 = vsel %vm1735, %v2618, %v2619
        %v2621 = vrot.slane %v2619, 4
        %v2622 = vrot.slane %v2495, 5
        %v2623 = vsel %vm1735, %v2621, %v2622
        %v2624 = vrot.slane %v2496, 5
        %v2625 = vrot.slane %v2624, 4
        %v2626 = vrot.slane %v2497, 5
        %v2627 = vsel %vm1735, %v2625, %v2626
        %v2628 = vrot.slane %v2626, 4
        %v2629 = vrot.slane %v2498, 5
        %v2630 = vsel %vm1735, %v2628, %v2629
        %v2631 = vrot.slane %v2499, 5
        %v2632 = vrot.slane %v2631, 4
        %v2633 = vrot.slane %v2500, 5
        %v2634 = vsel %vm1735, %v2632, %v2633
        %v2635 = vrot.slane %v2633, 4
        %v2636 = vrot.slane %v2501, 5
        %v2637 = vsel %vm1735, %v2635, %v2636
        %v2638 = vrot.slane %v2502, 5
        %v2639 = vrot.slane %v2638, 4
        %v2640 = vrot.slane %v2503, 5
        %v2641 = vsel %vm1735, %v2639, %v2640
        %v2642 = vrot.slane %v2640, 4
        %v2643 = vrot.slane %v2504, 5
        %v2644 = vsel %vm1735, %v2642, %v2643
        %v2645 = vrot.slane %v2505, 5
        %v2646 = vrot.slane %v2645, 4
        %v2647 = vrot.slane %v2506, 5
        %v2648 = vsel %vm1735, %v2646, %v2647
        %v2649 = vrot.slane %v2647, 4
        %v2650 = vrot.slane %v2507, 5
        %v2651 = vsel %vm1735, %v2649, %v2650
        %v2652 = vrot.slane %v2508, 5
        %v2653 = vrot.slane %v2652, 4
        %v2654 = vrot.slane %v2509, 5
        %v2655 = vsel %vm1735, %v2653, %v2654
        %v2656 = vrot.slane %v2654, 4
        %v2657 = vrot.slane %v2510, 5
        %v2658 = vsel %vm1735, %v2656, %v2657
        %v2659 = vrot.slane %v2511, 5
        %v2660 = vrot.slane %v2659, 4
        %v2661 = vrot.slane %v2512, 5
        %v2662 = vsel %vm1735, %v2660, %v2661
        %v2663 = vrot.slane %v2661, 4
        %v2664 = vrot.slane %v2513, 5
        %v2665 = vsel %vm1735, %v2663, %v2664
        %v2666 = vrot.slane %v2514, 5
        %v2667 = vrot.slane %v2666, 4
        %v2668 = vrot.slane %v2515, 5
        %v2669 = vsel %vm1735, %v2667, %v2668
        %v2670 = vrot.slane %v2668, 4
        %v2671 = vrot.slane %v2516, 5
        %v2672 = vsel %vm1735, %v2670, %v2671
        %v2673 = vrot.slane %v2517, 5
        %v2674 = vrot.slane %v2673, 4
        %v2675 = vrot.slane %v2518, 5
        %v2676 = vsel %vm1735, %v2674, %v2675
        %v2677 = vrot.slane %v2675, 4
        %v2678 = vrot.slane %v2519, 5
        %v2679 = vsel %vm1735, %v2677, %v2678
        %2712 = vst [vmem:[#allocation3 + $0x14] sm:$0xf] %v2571
        %2713 = vst [vmem:[#allocation3 + $0x38] sm:$0xf] %v2574
        %2714 = vst [vmem:[#allocation3 + $0x5c] sm:$0xf] %v2578
        %2715 = vst [vmem:[#allocation3 + $0x80] sm:$0xf] %v2581
        %2716 = vst [vmem:[#allocation3 + $0xa4] sm:$0xf] %v2585
        %2717 = vst [vmem:[#allocation3 + $0xc8] sm:$0xf] %v2588
        %2718 = vst [vmem:[#allocation3 + $0xec] sm:$0xf] %v2592
        %2719 = vst [vmem:[#allocation3 + $0x110] sm:$0xf] %v2595
        %2720 = vst [vmem:[#allocation3 + $0x134] sm:$0xf] %v2599
        %2721 = vst [vmem:[#allocation3 + $0x158] sm:$0xf] %v2602
        %2722 = vst [vmem:[#allocation3 + $0x17c] sm:$0xf] %v2606
        %2723 = vst [vmem:[#allocation3 + $0x1a0] sm:$0xf] %v2609
        %2724 = vst [vmem:[#allocation3 + $0x1c4] sm:$0xf] %v2613
        %2725 = vst [vmem:[#allocation3 + $0x1e8] sm:$0xf] %v2616
        %2726 = vst [vmem:[#allocation3 + $0x20c] sm:$0xf] %v2620
        %2727 = vst [vmem:[#allocation3 + $0x230] sm:$0xf] %v2623
        %2728 = vst [vmem:[#allocation3 + $0x254] sm:$0xf] %v2627
        %2729 = vst [vmem:[#allocation3 + $0x278] sm:$0xf] %v2630
        %2730 = vst [vmem:[#allocation3 + $0x29c] sm:$0xf] %v2634
        %2731 = vst [vmem:[#allocation3 + $0x2c0] sm:$0xf] %v2637
        %2732 = vst [vmem:[#allocation3 + $0x2e4] sm:$0xf] %v2641
        %2733 = vst [vmem:[#allocation3 + $0x308] sm:$0xf] %v2644
        %2734 = vst [vmem:[#allocation3 + $0x32c] sm:$0xf] %v2648
        %2735 = vst [vmem:[#allocation3 + $0x350] sm:$0xf] %v2651
        %2736 = vst [vmem:[#allocation3 + $0x374] sm:$0xf] %v2655
        %2737 = vst [vmem:[#allocation3 + $0x398] sm:$0xf] %v2658
        %2738 = vst [vmem:[#allocation3 + $0x3bc] sm:$0xf] %v2662
        %2739 = vst [vmem:[#allocation3 + $0x3e0] sm:$0xf] %v2665
        %2740 = vst [vmem:[#allocation3 + $0x404] sm:$0xf] %v2669
        %2741 = vst [vmem:[#allocation3 + $0x428] sm:$0xf] %v2672
        %2742 = vst [vmem:[#allocation3 + $0x44c] sm:$0xf] %v2676
        %2743 = vst [vmem:[#allocation3 + $0x470] sm:$0xf] %v2679
        %s2744 = scalar_lea.vmem [#allocation2], 24
        %v2745 = vld [vmem:[%s2744] sm:$0xf]
        %v2746 = vld [vmem:[%s2744 + $0x4] sm:$0xf]
        %v2747 = vld [vmem:[%s2744 + $0xc] sm:$0xf]
        %v2748 = vld [vmem:[%s2744 + $0x10] sm:$0xf]
        %v2749 = vld [vmem:[%s2744 + $0x18] sm:$0xf]
        %v2750 = vld [vmem:[%s2744 + $0x1c] sm:$0xf]
        %v2751 = vld [vmem:[%s2744 + $0x24] sm:$0xf]
        %v2752 = vld [vmem:[%s2744 + $0x28] sm:$0xf]
        %v2753 = vld [vmem:[%s2744 + $0x30] sm:$0xf]
        %v2754 = vld [vmem:[%s2744 + $0x34] sm:$0xf]
        %v2755 = vld [vmem:[%s2744 + $0x3c] sm:$0xf]
        %v2756 = vld [vmem:[%s2744 + $0x40] sm:$0xf]
        %v2757 = vld [vmem:[%s2744 + $0x48] sm:$0xf]
        %v2758 = vld [vmem:[%s2744 + $0x4c] sm:$0xf]
        %v2759 = vld [vmem:[%s2744 + $0x54] sm:$0xf]
        %v2760 = vld [vmem:[%s2744 + $0x58] sm:$0xf]
        %v2761 = vld [vmem:[%s2744 + $0x60] sm:$0xf]
        %v2762 = vld [vmem:[%s2744 + $0x64] sm:$0xf]
        %v2763 = vld [vmem:[%s2744 + $0x6c] sm:$0xf]
        %v2764 = vld [vmem:[%s2744 + $0x70] sm:$0xf]
        %v2765 = vld [vmem:[%s2744 + $0x78] sm:$0xf]
        %v2766 = vld [vmem:[%s2744 + $0x7c] sm:$0xf]
        %v2767 = vld [vmem:[%s2744 + $0x84] sm:$0xf]
        %v2768 = vld [vmem:[%s2744 + $0x88] sm:$0xf]
        %v2769 = vld [vmem:[%s2744 + $0x90] sm:$0xf]
        %v2770 = vld [vmem:[%s2744 + $0x94] sm:$0xf]
        %v2771 = vld [vmem:[%s2744 + $0x9c] sm:$0xf]
        %v2772 = vld [vmem:[%s2744 + $0xa0] sm:$0xf]
        %v2773 = vld [vmem:[%s2744 + $0xa8] sm:$0xf]
        %v2774 = vld [vmem:[%s2744 + $0xac] sm:$0xf]
        %v2775 = vld [vmem:[%s2744 + $0xb4] sm:$0xf]
        %v2776 = vld [vmem:[%s2744 + $0xb8] sm:$0xf]
        %2777 = vst [vmem:[#allocation3 + $0x18] sm:$0xf] %v2745
        %2778 = vst [vmem:[#allocation3 + $0x3c] sm:$0xf] %v2746
        %2779 = vst [vmem:[#allocation3 + $0x60] sm:$0xf] %v2747
        %2780 = vst [vmem:[#allocation3 + $0x84] sm:$0xf] %v2748
        %2781 = vst [vmem:[#allocation3 + $0xa8] sm:$0xf] %v2749
        %2782 = vst [vmem:[#allocation3 + $0xcc] sm:$0xf] %v2750
        %2783 = vst [vmem:[#allocation3 + $0xf0] sm:$0xf] %v2751
        %2784 = vst [vmem:[#allocation3 + $0x114] sm:$0xf] %v2752
        %2785 = vst [vmem:[#allocation3 + $0x138] sm:$0xf] %v2753
        %2786 = vst [vmem:[#allocation3 + $0x15c] sm:$0xf] %v2754
        %2787 = vst [vmem:[#allocation3 + $0x180] sm:$0xf] %v2755
        %2788 = vst [vmem:[#allocation3 + $0x1a4] sm:$0xf] %v2756
        %2789 = vst [vmem:[#allocation3 + $0x1c8] sm:$0xf] %v2757
        %2790 = vst [vmem:[#allocation3 + $0x1ec] sm:$0xf] %v2758
        %2791 = vst [vmem:[#allocation3 + $0x210] sm:$0xf] %v2759
        %2792 = vst [vmem:[#allocation3 + $0x234] sm:$0xf] %v2760
        %2793 = vst [vmem:[#allocation3 + $0x258] sm:$0xf] %v2761
        %2794 = vst [vmem:[#allocation3 + $0x27c] sm:$0xf] %v2762
        %2795 = vst [vmem:[#allocation3 + $0x2a0] sm:$0xf] %v2763
        %2796 = vst [vmem:[#allocation3 + $0x2c4] sm:$0xf] %v2764
        %2797 = vst [vmem:[#allocation3 + $0x2e8] sm:$0xf] %v2765
        %2798 = vst [vmem:[#allocation3 + $0x30c] sm:$0xf] %v2766
        %2799 = vst [vmem:[#allocation3 + $0x330] sm:$0xf] %v2767
        %2800 = vst [vmem:[#allocation3 + $0x354] sm:$0xf] %v2768
        %2801 = vst [vmem:[#allocation3 + $0x378] sm:$0xf] %v2769
        %2802 = vst [vmem:[#allocation3 + $0x39c] sm:$0xf] %v2770
        %2803 = vst [vmem:[#allocation3 + $0x3c0] sm:$0xf] %v2771
        %2804 = vst [vmem:[#allocation3 + $0x3e4] sm:$0xf] %v2772
        %2805 = vst [vmem:[#allocation3 + $0x408] sm:$0xf] %v2773
        %2806 = vst [vmem:[#allocation3 + $0x42c] sm:$0xf] %v2774
        %2807 = vst [vmem:[#allocation3 + $0x450] sm:$0xf] %v2775
        %2808 = vst [vmem:[#allocation3 + $0x474] sm:$0xf] %v2776
        %v2809 = vld [vmem:[%s2744] sm:$0xf]
        %v2810 = vld [vmem:[%s2744 + $0x4] sm:$0xf]
        %v2811 = vld [vmem:[%s2744 + $0x8] sm:$0x1]
        %v2812 = vld [vmem:[%s2744 + $0xc] sm:$0xf]
        %v2813 = vld [vmem:[%s2744 + $0x10] sm:$0xf]
        %v2814 = vld [vmem:[%s2744 + $0x14] sm:$0x1]
        %v2815 = vld [vmem:[%s2744 + $0x18] sm:$0xf]
        %v2816 = vld [vmem:[%s2744 + $0x1c] sm:$0xf]
        %v2817 = vld [vmem:[%s2744 + $0x20] sm:$0x1]
        %v2818 = vld [vmem:[%s2744 + $0x24] sm:$0xf]
        %v2819 = vld [vmem:[%s2744 + $0x28] sm:$0xf]
        %v2820 = vld [vmem:[%s2744 + $0x2c] sm:$0x1]
        %v2821 = vld [vmem:[%s2744 + $0x30] sm:$0xf]
        %v2822 = vld [vmem:[%s2744 + $0x34] sm:$0xf]
        %v2823 = vld [vmem:[%s2744 + $0x38] sm:$0x1]
        %v2824 = vld [vmem:[%s2744 + $0x3c] sm:$0xf]
        %v2825 = vld [vmem:[%s2744 + $0x40] sm:$0xf]
        %v2826 = vld [vmem:[%s2744 + $0x44] sm:$0x1]
        %v2827 = vld [vmem:[%s2744 + $0x48] sm:$0xf]
        %v2828 = vld [vmem:[%s2744 + $0x4c] sm:$0xf]
        %v2829 = vld [vmem:[%s2744 + $0x50] sm:$0x1]
        %v2830 = vld [vmem:[%s2744 + $0x54] sm:$0xf]
        %v2831 = vld [vmem:[%s2744 + $0x58] sm:$0xf]
        %v2832 = vld [vmem:[%s2744 + $0x5c] sm:$0x1]
        %v2833 = vld [vmem:[%s2744 + $0x60] sm:$0xf]
        %v2834 = vld [vmem:[%s2744 + $0x64] sm:$0xf]
        %v2835 = vld [vmem:[%s2744 + $0x68] sm:$0x1]
        %v2836 = vld [vmem:[%s2744 + $0x6c] sm:$0xf]
        %v2837 = vld [vmem:[%s2744 + $0x70] sm:$0xf]
        %v2838 = vld [vmem:[%s2744 + $0x74] sm:$0x1]
        %v2839 = vld [vmem:[%s2744 + $0x78] sm:$0xf]
        %v2840 = vld [vmem:[%s2744 + $0x7c] sm:$0xf]
        %v2841 = vld [vmem:[%s2744 + $0x80] sm:$0x1]
        %v2842 = vld [vmem:[%s2744 + $0x84] sm:$0xf]
        %v2843 = vld [vmem:[%s2744 + $0x88] sm:$0xf]
        %v2844 = vld [vmem:[%s2744 + $0x8c] sm:$0x1]
        %v2845 = vld [vmem:[%s2744 + $0x90] sm:$0xf]
        %v2846 = vld [vmem:[%s2744 + $0x94] sm:$0xf]
        %v2847 = vld [vmem:[%s2744 + $0x98] sm:$0x1]
        %v2848 = vld [vmem:[%s2744 + $0x9c] sm:$0xf]
        %v2849 = vld [vmem:[%s2744 + $0xa0] sm:$0xf]
        %v2850 = vld [vmem:[%s2744 + $0xa4] sm:$0x1]
        %v2851 = vld [vmem:[%s2744 + $0xa8] sm:$0xf]
        %v2852 = vld [vmem:[%s2744 + $0xac] sm:$0xf]
        %v2853 = vld [vmem:[%s2744 + $0xb0] sm:$0x1]
        %v2854 = vld [vmem:[%s2744 + $0xb4] sm:$0xf]
        %v2855 = vld [vmem:[%s2744 + $0xb8] sm:$0xf]
        %v2856 = vld [vmem:[%s2744 + $0xbc] sm:$0x1]
        %v2858 = vshrl.u32 %v2809, 16
        %v2860 = vrot.slane %v2858, 4
        %v2861 = vshll.u32 %v2809, 16
        %v2863 = vrot.slane %v2861, 5
        %v2864 = vor.u32 %v2860, %v2863
        %v2865 = vrot.slane %v2864, 4
        %v2867 = vshll.u32 %v2810, 16
        %v2869 = vrot.slane %v2867, 5
        %v2870 = vsel %vm1188, %v2865, %v2869
        %v2871 = vshrl.u32 %v2810, 16
        %v2873 = vrot.slane %v2871, 4
        %v2874 = vor.u32 %v2873, %v2869
        %v2875 = vrot.slane %v2874, 4
        %v2877 = vshll.u32 %v2811, 16
        %v2879 = vrot.slane %v2877, 5
        %v2880 = vsel %vm1188, %v2875, %v2879
        %v2882 = vshrl.u32 %v2812, 16
        %v2884 = vrot.slane %v2882, 4
        %v2885 = vshll.u32 %v2812, 16
        %v2887 = vrot.slane %v2885, 5
        %v2888 = vor.u32 %v2884, %v2887
        %v2889 = vrot.slane %v2888, 4
        %v2891 = vshll.u32 %v2813, 16
        %v2893 = vrot.slane %v2891, 5
        %v2894 = vsel %vm1188, %v2889, %v2893
        %v2895 = vshrl.u32 %v2813, 16
        %v2897 = vrot.slane %v2895, 4
        %v2898 = vor.u32 %v2897, %v2893
        %v2899 = vrot.slane %v2898, 4
        %v2901 = vshll.u32 %v2814, 16
        %v2903 = vrot.slane %v2901, 5
        %v2904 = vsel %vm1188, %v2899, %v2903
        %v2906 = vshrl.u32 %v2815, 16
        %v2908 = vrot.slane %v2906, 4
        %v2909 = vshll.u32 %v2815, 16
        %v2911 = vrot.slane %v2909, 5
        %v2912 = vor.u32 %v2908, %v2911
        %v2913 = vrot.slane %v2912, 4
        %v2915 = vshll.u32 %v2816, 16
        %v2917 = vrot.slane %v2915, 5
        %v2918 = vsel %vm1188, %v2913, %v2917
        %v2919 = vshrl.u32 %v2816, 16
        %v2921 = vrot.slane %v2919, 4
        %v2922 = vor.u32 %v2921, %v2917
        %v2923 = vrot.slane %v2922, 4
        %v2925 = vshll.u32 %v2817, 16
        %v2927 = vrot.slane %v2925, 5
        %v2928 = vsel %vm1188, %v2923, %v2927
        %v2930 = vshrl.u32 %v2818, 16
        %v2932 = vrot.slane %v2930, 4
        %v2933 = vshll.u32 %v2818, 16
        %v2935 = vrot.slane %v2933, 5
        %v2936 = vor.u32 %v2932, %v2935
        %v2937 = vrot.slane %v2936, 4
        %v2939 = vshll.u32 %v2819, 16
        %v2941 = vrot.slane %v2939, 5
        %v2942 = vsel %vm1188, %v2937, %v2941
        %v2943 = vshrl.u32 %v2819, 16
        %v2945 = vrot.slane %v2943, 4
        %v2946 = vor.u32 %v2945, %v2941
        %v2947 = vrot.slane %v2946, 4
        %v2949 = vshll.u32 %v2820, 16
        %v2951 = vrot.slane %v2949, 5
        %v2952 = vsel %vm1188, %v2947, %v2951
        %v2954 = vshrl.u32 %v2821, 16
        %v2956 = vrot.slane %v2954, 4
        %v2957 = vshll.u32 %v2821, 16
        %v2959 = vrot.slane %v2957, 5
        %v2960 = vor.u32 %v2956, %v2959
        %v2961 = vrot.slane %v2960, 4
        %v2963 = vshll.u32 %v2822, 16
        %v2965 = vrot.slane %v2963, 5
        %v2966 = vsel %vm1188, %v2961, %v2965
        %v2967 = vshrl.u32 %v2822, 16
        %v2969 = vrot.slane %v2967, 4
        %v2970 = vor.u32 %v2969, %v2965
        %v2971 = vrot.slane %v2970, 4
        %v2973 = vshll.u32 %v2823, 16
        %v2975 = vrot.slane %v2973, 5
        %v2976 = vsel %vm1188, %v2971, %v2975
        %v2978 = vshrl.u32 %v2824, 16
        %v2980 = vrot.slane %v2978, 4
        %v2981 = vshll.u32 %v2824, 16
        %v2983 = vrot.slane %v2981, 5
        %v2984 = vor.u32 %v2980, %v2983
        %v2985 = vrot.slane %v2984, 4
        %v2987 = vshll.u32 %v2825, 16
        %v2989 = vrot.slane %v2987, 5
        %v2990 = vsel %vm1188, %v2985, %v2989
        %v2991 = vshrl.u32 %v2825, 16
        %v2993 = vrot.slane %v2991, 4
        %v2994 = vor.u32 %v2993, %v2989
        %v2995 = vrot.slane %v2994, 4
        %v2997 = vshll.u32 %v2826, 16
        %v2999 = vrot.slane %v2997, 5
        %v3000 = vsel %vm1188, %v2995, %v2999
        %v3002 = vshrl.u32 %v2827, 16
        %v3004 = vrot.slane %v3002, 4
        %v3005 = vshll.u32 %v2827, 16
        %v3007 = vrot.slane %v3005, 5
        %v3008 = vor.u32 %v3004, %v3007
        %v3009 = vrot.slane %v3008, 4
        %v3011 = vshll.u32 %v2828, 16
        %v3013 = vrot.slane %v3011, 5
        %v3014 = vsel %vm1188, %v3009, %v3013
        %v3015 = vshrl.u32 %v2828, 16
        %v3017 = vrot.slane %v3015, 4
        %v3018 = vor.u32 %v3017, %v3013
        %v3019 = vrot.slane %v3018, 4
        %v3021 = vshll.u32 %v2829, 16
        %v3023 = vrot.slane %v3021, 5
        %v3024 = vsel %vm1188, %v3019, %v3023
        %v3026 = vshrl.u32 %v2830, 16
        %v3028 = vrot.slane %v3026, 4
        %v3029 = vshll.u32 %v2830, 16
        %v3031 = vrot.slane %v3029, 5
        %v3032 = vor.u32 %v3028, %v3031
        %v3033 = vrot.slane %v3032, 4
        %v3035 = vshll.u32 %v2831, 16
        %v3037 = vrot.slane %v3035, 5
        %v3038 = vsel %vm1188, %v3033, %v3037
        %v3039 = vshrl.u32 %v2831, 16
        %v3041 = vrot.slane %v3039, 4
        %v3042 = vor.u32 %v3041, %v3037
        %v3043 = vrot.slane %v3042, 4
        %v3045 = vshll.u32 %v2832, 16
        %v3047 = vrot.slane %v3045, 5
        %v3048 = vsel %vm1188, %v3043, %v3047
        %v3050 = vshrl.u32 %v2833, 16
        %v3052 = vrot.slane %v3050, 4
        %v3053 = vshll.u32 %v2833, 16
        %v3055 = vrot.slane %v3053, 5
        %v3056 = vor.u32 %v3052, %v3055
        %v3057 = vrot.slane %v3056, 4
        %v3059 = vshll.u32 %v2834, 16
        %v3061 = vrot.slane %v3059, 5
        %v3062 = vsel %vm1188, %v3057, %v3061
        %v3063 = vshrl.u32 %v2834, 16
        %v3065 = vrot.slane %v3063, 4
        %v3066 = vor.u32 %v3065, %v3061
        %v3067 = vrot.slane %v3066, 4
        %v3069 = vshll.u32 %v2835, 16
        %v3071 = vrot.slane %v3069, 5
        %v3072 = vsel %vm1188, %v3067, %v3071
        %v3074 = vshrl.u32 %v2836, 16
        %v3076 = vrot.slane %v3074, 4
        %v3077 = vshll.u32 %v2836, 16
        %v3079 = vrot.slane %v3077, 5
        %v3080 = vor.u32 %v3076, %v3079
        %v3081 = vrot.slane %v3080, 4
        %v3083 = vshll.u32 %v2837, 16
        %v3085 = vrot.slane %v3083, 5
        %v3086 = vsel %vm1188, %v3081, %v3085
        %v3087 = vshrl.u32 %v2837, 16
        %v3089 = vrot.slane %v3087, 4
        %v3090 = vor.u32 %v3089, %v3085
        %v3091 = vrot.slane %v3090, 4
        %v3093 = vshll.u32 %v2838, 16
        %v3095 = vrot.slane %v3093, 5
        %v3096 = vsel %vm1188, %v3091, %v3095
        %v3098 = vshrl.u32 %v2839, 16
        %v3100 = vrot.slane %v3098, 4
        %v3101 = vshll.u32 %v2839, 16
        %v3103 = vrot.slane %v3101, 5
        %v3104 = vor.u32 %v3100, %v3103
        %v3105 = vrot.slane %v3104, 4
        %v3107 = vshll.u32 %v2840, 16
        %v3109 = vrot.slane %v3107, 5
        %v3110 = vsel %vm1188, %v3105, %v3109
        %v3111 = vshrl.u32 %v2840, 16
        %v3113 = vrot.slane %v3111, 4
        %v3114 = vor.u32 %v3113, %v3109
        %v3115 = vrot.slane %v3114, 4
        %v3117 = vshll.u32 %v2841, 16
        %v3119 = vrot.slane %v3117, 5
        %v3120 = vsel %vm1188, %v3115, %v3119
        %v3122 = vshrl.u32 %v2842, 16
        %v3124 = vrot.slane %v3122, 4
        %v3125 = vshll.u32 %v2842, 16
        %v3127 = vrot.slane %v3125, 5
        %v3128 = vor.u32 %v3124, %v3127
        %v3129 = vrot.slane %v3128, 4
        %v3131 = vshll.u32 %v2843, 16
        %v3133 = vrot.slane %v3131, 5
        %v3134 = vsel %vm1188, %v3129, %v3133
        %v3135 = vshrl.u32 %v2843, 16
        %v3137 = vrot.slane %v3135, 4
        %v3138 = vor.u32 %v3137, %v3133
        %v3139 = vrot.slane %v3138, 4
        %v3141 = vshll.u32 %v2844, 16
        %v3143 = vrot.slane %v3141, 5
        %v3144 = vsel %vm1188, %v3139, %v3143
        %v3146 = vshrl.u32 %v2845, 16
        %v3148 = vrot.slane %v3146, 4
        %v3149 = vshll.u32 %v2845, 16
        %v3151 = vrot.slane %v3149, 5
        %v3152 = vor.u32 %v3148, %v3151
        %v3153 = vrot.slane %v3152, 4
        %v3155 = vshll.u32 %v2846, 16
        %v3157 = vrot.slane %v3155, 5
        %v3158 = vsel %vm1188, %v3153, %v3157
        %v3159 = vshrl.u32 %v2846, 16
        %v3161 = vrot.slane %v3159, 4
        %v3162 = vor.u32 %v3161, %v3157
        %v3163 = vrot.slane %v3162, 4
        %v3165 = vshll.u32 %v2847, 16
        %v3167 = vrot.slane %v3165, 5
        %v3168 = vsel %vm1188, %v3163, %v3167
        %v3170 = vshrl.u32 %v2848, 16
        %v3172 = vrot.slane %v3170, 4
        %v3173 = vshll.u32 %v2848, 16
        %v3175 = vrot.slane %v3173, 5
        %v3176 = vor.u32 %v3172, %v3175
        %v3177 = vrot.slane %v3176, 4
        %v3179 = vshll.u32 %v2849, 16
        %v3181 = vrot.slane %v3179, 5
        %v3182 = vsel %vm1188, %v3177, %v3181
        %v3183 = vshrl.u32 %v2849, 16
        %v3185 = vrot.slane %v3183, 4
        %v3186 = vor.u32 %v3185, %v3181
        %v3187 = vrot.slane %v3186, 4
        %v3189 = vshll.u32 %v2850, 16
        %v3191 = vrot.slane %v3189, 5
        %v3192 = vsel %vm1188, %v3187, %v3191
        %v3194 = vshrl.u32 %v2851, 16
        %v3196 = vrot.slane %v3194, 4
        %v3197 = vshll.u32 %v2851, 16
        %v3199 = vrot.slane %v3197, 5
        %v3200 = vor.u32 %v3196, %v3199
        %v3201 = vrot.slane %v3200, 4
        %v3203 = vshll.u32 %v2852, 16
        %v3205 = vrot.slane %v3203, 5
        %v3206 = vsel %vm1188, %v3201, %v3205
        %v3207 = vshrl.u32 %v2852, 16
        %v3209 = vrot.slane %v3207, 4
        %v3210 = vor.u32 %v3209, %v3205
        %v3211 = vrot.slane %v3210, 4
        %v3213 = vshll.u32 %v2853, 16
        %v3215 = vrot.slane %v3213, 5
        %v3216 = vsel %vm1188, %v3211, %v3215
        %v3218 = vshrl.u32 %v2854, 16
        %v3220 = vrot.slane %v3218, 4
        %v3221 = vshll.u32 %v2854, 16
        %v3223 = vrot.slane %v3221, 5
        %v3224 = vor.u32 %v3220, %v3223
        %v3225 = vrot.slane %v3224, 4
        %v3227 = vshll.u32 %v2855, 16
        %v3229 = vrot.slane %v3227, 5
        %v3230 = vsel %vm1188, %v3225, %v3229
        %v3231 = vshrl.u32 %v2855, 16
        %v3233 = vrot.slane %v3231, 4
        %v3234 = vor.u32 %v3233, %v3229
        %v3235 = vrot.slane %v3234, 4
        %v3237 = vshll.u32 %v2856, 16
        %v3239 = vrot.slane %v3237, 5
        %v3240 = vsel %vm1188, %v3235, %v3239
        %3273 = vst [vmem:[#allocation3 + $0x1c] sm:$0xf] %v2870
        %3274 = vst [vmem:[#allocation3 + $0x40] sm:$0xf] %v2880
        %3275 = vst [vmem:[#allocation3 + $0x64] sm:$0xf] %v2894
        %3276 = vst [vmem:[#allocation3 + $0x88] sm:$0xf] %v2904
        %3277 = vst [vmem:[#allocation3 + $0xac] sm:$0xf] %v2918
        %3278 = vst [vmem:[#allocation3 + $0xd0] sm:$0xf] %v2928
        %3279 = vst [vmem:[#allocation3 + $0xf4] sm:$0xf] %v2942
        %3280 = vst [vmem:[#allocation3 + $0x118] sm:$0xf] %v2952
        %3281 = vst [vmem:[#allocation3 + $0x13c] sm:$0xf] %v2966
        %3282 = vst [vmem:[#allocation3 + $0x160] sm:$0xf] %v2976
        %3283 = vst [vmem:[#allocation3 + $0x184] sm:$0xf] %v2990
        %3284 = vst [vmem:[#allocation3 + $0x1a8] sm:$0xf] %v3000
        %3285 = vst [vmem:[#allocation3 + $0x1cc] sm:$0xf] %v3014
        %3286 = vst [vmem:[#allocation3 + $0x1f0] sm:$0xf] %v3024
        %3287 = vst [vmem:[#allocation3 + $0x214] sm:$0xf] %v3038
        %3288 = vst [vmem:[#allocation3 + $0x238] sm:$0xf] %v3048
        %3289 = vst [vmem:[#allocation3 + $0x25c] sm:$0xf] %v3062
        %3290 = vst [vmem:[#allocation3 + $0x280] sm:$0xf] %v3072
        %3291 = vst [vmem:[#allocation3 + $0x2a4] sm:$0xf] %v3086
        %3292 = vst [vmem:[#allocation3 + $0x2c8] sm:$0xf] %v3096
        %3293 = vst [vmem:[#allocation3 + $0x2ec] sm:$0xf] %v3110
        %3294 = vst [vmem:[#allocation3 + $0x310] sm:$0xf] %v3120
        %3295 = vst [vmem:[#allocation3 + $0x334] sm:$0xf] %v3134
        %3296 = vst [vmem:[#allocation3 + $0x358] sm:$0xf] %v3144
        %3297 = vst [vmem:[#allocation3 + $0x37c] sm:$0xf] %v3158
        %3298 = vst [vmem:[#allocation3 + $0x3a0] sm:$0xf] %v3168
        %3299 = vst [vmem:[#allocation3 + $0x3c4] sm:$0xf] %v3182
        %3300 = vst [vmem:[#allocation3 + $0x3e8] sm:$0xf] %v3192
        %3301 = vst [vmem:[#allocation3 + $0x40c] sm:$0xf] %v3206
        %3302 = vst [vmem:[#allocation3 + $0x430] sm:$0xf] %v3216
        %3303 = vst [vmem:[#allocation3 + $0x454] sm:$0xf] %v3230
        %3304 = vst [vmem:[#allocation3 + $0x478] sm:$0xf] %v3240
        %v3305 = vld [vmem:[%s2744] sm:$0xe]
        %v3306 = vld [vmem:[%s2744 + $0x4] sm:$0xf]
        %v3307 = vld [vmem:[%s2744 + $0x8] sm:$0x1]
        %v3308 = vld [vmem:[%s2744 + $0xc] sm:$0xe]
        %v3309 = vld [vmem:[%s2744 + $0x10] sm:$0xf]
        %v3310 = vld [vmem:[%s2744 + $0x14] sm:$0x1]
        %v3311 = vld [vmem:[%s2744 + $0x18] sm:$0xe]
        %v3312 = vld [vmem:[%s2744 + $0x1c] sm:$0xf]
        %v3313 = vld [vmem:[%s2744 + $0x20] sm:$0x1]
        %v3314 = vld [vmem:[%s2744 + $0x24] sm:$0xe]
        %v3315 = vld [vmem:[%s2744 + $0x28] sm:$0xf]
        %v3316 = vld [vmem:[%s2744 + $0x2c] sm:$0x1]
        %v3317 = vld [vmem:[%s2744 + $0x30] sm:$0xe]
        %v3318 = vld [vmem:[%s2744 + $0x34] sm:$0xf]
        %v3319 = vld [vmem:[%s2744 + $0x38] sm:$0x1]
        %v3320 = vld [vmem:[%s2744 + $0x3c] sm:$0xe]
        %v3321 = vld [vmem:[%s2744 + $0x40] sm:$0xf]
        %v3322 = vld [vmem:[%s2744 + $0x44] sm:$0x1]
        %v3323 = vld [vmem:[%s2744 + $0x48] sm:$0xe]
        %v3324 = vld [vmem:[%s2744 + $0x4c] sm:$0xf]
        %v3325 = vld [vmem:[%s2744 + $0x50] sm:$0x1]
        %v3326 = vld [vmem:[%s2744 + $0x54] sm:$0xe]
        %v3327 = vld [vmem:[%s2744 + $0x58] sm:$0xf]
        %v3328 = vld [vmem:[%s2744 + $0x5c] sm:$0x1]
        %v3329 = vld [vmem:[%s2744 + $0x60] sm:$0xe]
        %v3330 = vld [vmem:[%s2744 + $0x64] sm:$0xf]
        %v3331 = vld [vmem:[%s2744 + $0x68] sm:$0x1]
        %v3332 = vld [vmem:[%s2744 + $0x6c] sm:$0xe]
        %v3333 = vld [vmem:[%s2744 + $0x70] sm:$0xf]
        %v3334 = vld [vmem:[%s2744 + $0x74] sm:$0x1]
        %v3335 = vld [vmem:[%s2744 + $0x78] sm:$0xe]
        %v3336 = vld [vmem:[%s2744 + $0x7c] sm:$0xf]
        %v3337 = vld [vmem:[%s2744 + $0x80] sm:$0x1]
        %v3338 = vld [vmem:[%s2744 + $0x84] sm:$0xe]
        %v3339 = vld [vmem:[%s2744 + $0x88] sm:$0xf]
        %v3340 = vld [vmem:[%s2744 + $0x8c] sm:$0x1]
        %v3341 = vld [vmem:[%s2744 + $0x90] sm:$0xe]
        %v3342 = vld [vmem:[%s2744 + $0x94] sm:$0xf]
        %v3343 = vld [vmem:[%s2744 + $0x98] sm:$0x1]
        %v3344 = vld [vmem:[%s2744 + $0x9c] sm:$0xe]
        %v3345 = vld [vmem:[%s2744 + $0xa0] sm:$0xf]
        %v3346 = vld [vmem:[%s2744 + $0xa4] sm:$0x1]
        %v3347 = vld [vmem:[%s2744 + $0xa8] sm:$0xe]
        %v3348 = vld [vmem:[%s2744 + $0xac] sm:$0xf]
        %v3349 = vld [vmem:[%s2744 + $0xb0] sm:$0x1]
        %v3350 = vld [vmem:[%s2744 + $0xb4] sm:$0xe]
        %v3351 = vld [vmem:[%s2744 + $0xb8] sm:$0xf]
        %v3352 = vld [vmem:[%s2744 + $0xbc] sm:$0x1]
        %v3401 = vrot.slane %v3305, 5
        %v3402 = vrot.slane %v3401, 4
        %v3403 = vrot.slane %v3306, 5
        %v3404 = vsel %vm1735, %v3402, %v3403
        %v3405 = vrot.slane %v3403, 4
        %v3406 = vrot.slane %v3307, 5
        %v3407 = vsel %vm1735, %v3405, %v3406
        %v3408 = vrot.slane %v3308, 5
        %v3409 = vrot.slane %v3408, 4
        %v3410 = vrot.slane %v3309, 5
        %v3411 = vsel %vm1735, %v3409, %v3410
        %v3412 = vrot.slane %v3410, 4
        %v3413 = vrot.slane %v3310, 5
        %v3414 = vsel %vm1735, %v3412, %v3413
        %v3415 = vrot.slane %v3311, 5
        %v3416 = vrot.slane %v3415, 4
        %v3417 = vrot.slane %v3312, 5
        %v3418 = vsel %vm1735, %v3416, %v3417
        %v3419 = vrot.slane %v3417, 4
        %v3420 = vrot.slane %v3313, 5
        %v3421 = vsel %vm1735, %v3419, %v3420
        %v3422 = vrot.slane %v3314, 5
        %v3423 = vrot.slane %v3422, 4
        %v3424 = vrot.slane %v3315, 5
        %v3425 = vsel %vm1735, %v3423, %v3424
        %v3426 = vrot.slane %v3424, 4
        %v3427 = vrot.slane %v3316, 5
        %v3428 = vsel %vm1735, %v3426, %v3427
        %v3429 = vrot.slane %v3317, 5
        %v3430 = vrot.slane %v3429, 4
        %v3431 = vrot.slane %v3318, 5
        %v3432 = vsel %vm1735, %v3430, %v3431
        %v3433 = vrot.slane %v3431, 4
        %v3434 = vrot.slane %v3319, 5
        %v3435 = vsel %vm1735, %v3433, %v3434
        %v3436 = vrot.slane %v3320, 5
        %v3437 = vrot.slane %v3436, 4
        %v3438 = vrot.slane %v3321, 5
        %v3439 = vsel %vm1735, %v3437, %v3438
        %v3440 = vrot.slane %v3438, 4
        %v3441 = vrot.slane %v3322, 5
        %v3442 = vsel %vm1735, %v3440, %v3441
        %v3443 = vrot.slane %v3323, 5
        %v3444 = vrot.slane %v3443, 4
        %v3445 = vrot.slane %v3324, 5
        %v3446 = vsel %vm1735, %v3444, %v3445
        %v3447 = vrot.slane %v3445, 4
        %v3448 = vrot.slane %v3325, 5
        %v3449 = vsel %vm1735, %v3447, %v3448
        %v3450 = vrot.slane %v3326, 5
        %v3451 = vrot.slane %v3450, 4
        %v3452 = vrot.slane %v3327, 5
        %v3453 = vsel %vm1735, %v3451, %v3452
        %v3454 = vrot.slane %v3452, 4
        %v3455 = vrot.slane %v3328, 5
        %v3456 = vsel %vm1735, %v3454, %v3455
        %v3457 = vrot.slane %v3329, 5
        %v3458 = vrot.slane %v3457, 4
        %v3459 = vrot.slane %v3330, 5
        %v3460 = vsel %vm1735, %v3458, %v3459
        %v3461 = vrot.slane %v3459, 4
        %v3462 = vrot.slane %v3331, 5
        %v3463 = vsel %vm1735, %v3461, %v3462
        %v3464 = vrot.slane %v3332, 5
        %v3465 = vrot.slane %v3464, 4
        %v3466 = vrot.slane %v3333, 5
        %v3467 = vsel %vm1735, %v3465, %v3466
        %v3468 = vrot.slane %v3466, 4
        %v3469 = vrot.slane %v3334, 5
        %v3470 = vsel %vm1735, %v3468, %v3469
        %v3471 = vrot.slane %v3335, 5
        %v3472 = vrot.slane %v3471, 4
        %v3473 = vrot.slane %v3336, 5
        %v3474 = vsel %vm1735, %v3472, %v3473
        %v3475 = vrot.slane %v3473, 4
        %v3476 = vrot.slane %v3337, 5
        %v3477 = vsel %vm1735, %v3475, %v3476
        %v3478 = vrot.slane %v3338, 5
        %v3479 = vrot.slane %v3478, 4
        %v3480 = vrot.slane %v3339, 5
        %v3481 = vsel %vm1735, %v3479, %v3480
        %v3482 = vrot.slane %v3480, 4
        %v3483 = vrot.slane %v3340, 5
        %v3484 = vsel %vm1735, %v3482, %v3483
        %v3485 = vrot.slane %v3341, 5
        %v3486 = vrot.slane %v3485, 4
        %v3487 = vrot.slane %v3342, 5
        %v3488 = vsel %vm1735, %v3486, %v3487
        %v3489 = vrot.slane %v3487, 4
        %v3490 = vrot.slane %v3343, 5
        %v3491 = vsel %vm1735, %v3489, %v3490
        %v3492 = vrot.slane %v3344, 5
        %v3493 = vrot.slane %v3492, 4
        %v3494 = vrot.slane %v3345, 5
        %v3495 = vsel %vm1735, %v3493, %v3494
        %v3496 = vrot.slane %v3494, 4
        %v3497 = vrot.slane %v3346, 5
        %v3498 = vsel %vm1735, %v3496, %v3497
        %v3499 = vrot.slane %v3347, 5
        %v3500 = vrot.slane %v3499, 4
        %v3501 = vrot.slane %v3348, 5
        %v3502 = vsel %vm1735, %v3500, %v3501
        %v3503 = vrot.slane %v3501, 4
        %v3504 = vrot.slane %v3349, 5
        %v3505 = vsel %vm1735, %v3503, %v3504
        %v3506 = vrot.slane %v3350, 5
        %v3507 = vrot.slane %v3506, 4
        %v3508 = vrot.slane %v3351, 5
        %v3509 = vsel %vm1735, %v3507, %v3508
        %v3510 = vrot.slane %v3508, 4
        %v3511 = vrot.slane %v3352, 5
        %v3512 = vsel %vm1735, %v3510, %v3511
        %3545 = vst [vmem:[#allocation3 + $0x20] sm:$0xf] %v3404
        %3546 = vst [vmem:[#allocation3 + $0x44] sm:$0xf] %v3407
        %3547 = vst [vmem:[#allocation3 + $0x68] sm:$0xf] %v3411
        %3548 = vst [vmem:[#allocation3 + $0x8c] sm:$0xf] %v3414
        %3549 = vst [vmem:[#allocation3 + $0xb0] sm:$0xf] %v3418
        %3550 = vst [vmem:[#allocation3 + $0xd4] sm:$0xf] %v3421
        %3551 = vst [vmem:[#allocation3 + $0xf8] sm:$0xf] %v3425
        %3552 = vst [vmem:[#allocation3 + $0x11c] sm:$0xf] %v3428
        %3553 = vst [vmem:[#allocation3 + $0x140] sm:$0xf] %v3432
        %3554 = vst [vmem:[#allocation3 + $0x164] sm:$0xf] %v3435
        %3555 = vst [vmem:[#allocation3 + $0x188] sm:$0xf] %v3439
        %3556 = vst [vmem:[#allocation3 + $0x1ac] sm:$0xf] %v3442
        %3557 = vst [vmem:[#allocation3 + $0x1d0] sm:$0xf] %v3446
        %3558 = vst [vmem:[#allocation3 + $0x1f4] sm:$0xf] %v3449
        %3559 = vst [vmem:[#allocation3 + $0x218] sm:$0xf] %v3453
        %3560 = vst [vmem:[#allocation3 + $0x23c] sm:$0xf] %v3456
        %3561 = vst [vmem:[#allocation3 + $0x260] sm:$0xf] %v3460
        %3562 = vst [vmem:[#allocation3 + $0x284] sm:$0xf] %v3463
        %3563 = vst [vmem:[#allocation3 + $0x2a8] sm:$0xf] %v3467
        %3564 = vst [vmem:[#allocation3 + $0x2cc] sm:$0xf] %v3470
        %3565 = vst [vmem:[#allocation3 + $0x2f0] sm:$0xf] %v3474
        %3566 = vst [vmem:[#allocation3 + $0x314] sm:$0xf] %v3477
        %3567 = vst [vmem:[#allocation3 + $0x338] sm:$0xf] %v3481
        %3568 = vst [vmem:[#allocation3 + $0x35c] sm:$0xf] %v3484
        %3569 = vst [vmem:[#allocation3 + $0x380] sm:$0xf] %v3488
        %3570 = vst [vmem:[#allocation3 + $0x3a4] sm:$0xf] %v3491
        %3571 = vst [vmem:[#allocation3 + $0x3c8] sm:$0xf] %v3495
        %3572 = vst [vmem:[#allocation3 + $0x3ec] sm:$0xf] %v3498
        %3573 = vst [vmem:[#allocation3 + $0x410] sm:$0xf] %v3502
        %3574 = vst [vmem:[#allocation3 + $0x434] sm:$0xf] %v3505
        %3575 = vst [vmem:[#allocation3 + $0x458] sm:$0xf] %v3509
        %3576 = vst [vmem:[#allocation3 + $0x47c] sm:$0xf] %v3512
        %v3577 = vld [vmem:[#allocation3] sm:$0xff]
        %v3578 = vld [vmem:[#allocation3 + $0x8] sm:$0xff]
        %v3579 = vld [vmem:[#allocation3 + $0x10] sm:$0xff]
        %v3580 = vld [vmem:[#allocation3 + $0x18] sm:$0xff]
        %v3581 = vld [vmem:[#allocation3 + $0x20] sm:$0xf]
        %v3582 = vld [vmem:[#allocation3 + $0x24] sm:$0xff]
        %v3583 = vld [vmem:[#allocation3 + $0x2c] sm:$0xff]
        %v3584 = vld [vmem:[#allocation3 + $0x34] sm:$0xff]
        %v3585 = vld [vmem:[#allocation3 + $0x3c] sm:$0xff]
        %v3586 = vld [vmem:[#allocation3 + $0x44] sm:$0xf]
        %v3587 = vld [vmem:[#allocation3 + $0x48] sm:$0xff]
        %v3588 = vld [vmem:[#allocation3 + $0x50] sm:$0xff]
        %v3589 = vld [vmem:[#allocation3 + $0x58] sm:$0xff]
        %v3590 = vld [vmem:[#allocation3 + $0x60] sm:$0xff]
        %v3591 = vld [vmem:[#allocation3 + $0x68] sm:$0xf]
        %v3592 = vld [vmem:[#allocation3 + $0x6c] sm:$0xff]
        %v3593 = vld [vmem:[#allocation3 + $0x74] sm:$0xff]
        %v3594 = vld [vmem:[#allocation3 + $0x7c] sm:$0xff]
        %v3595 = vld [vmem:[#allocation3 + $0x84] sm:$0xff]
        %v3596 = vld [vmem:[#allocation3 + $0x8c] sm:$0xf]
        %v3597 = vld [vmem:[#allocation3 + $0x90] sm:$0xff]
        %v3598 = vld [vmem:[#allocation3 + $0x98] sm:$0xff]
        %v3599 = vld [vmem:[#allocation3 + $0xa0] sm:$0xff]
        %v3600 = vld [vmem:[#allocation3 + $0xa8] sm:$0xff]
        %v3601 = vld [vmem:[#allocation3 + $0xb0] sm:$0xf]
        %v3602 = vld [vmem:[#allocation3 + $0xb4] sm:$0xff]
        %v3603 = vld [vmem:[#allocation3 + $0xbc] sm:$0xff]
        %v3604 = vld [vmem:[#allocation3 + $0xc4] sm:$0xff]
        %v3605 = vld [vmem:[#allocation3 + $0xcc] sm:$0xff]
        %v3606 = vld [vmem:[#allocation3 + $0xd4] sm:$0xf]
        %v3607 = vld [vmem:[#allocation3 + $0xd8] sm:$0xff]
        %v3608 = vld [vmem:[#allocation3 + $0xe0] sm:$0xff]
        %v3609 = vld [vmem:[#allocation3 + $0xe8] sm:$0xff]
        %v3610 = vld [vmem:[#allocation3 + $0xf0] sm:$0xff]
        %v3611 = vld [vmem:[#allocation3 + $0xf8] sm:$0xf]
        %v3612 = vld [vmem:[#allocation3 + $0xfc] sm:$0xff]
        %v3613 = vld [vmem:[#allocation3 + $0x104] sm:$0xff]
        %v3614 = vld [vmem:[#allocation3 + $0x10c] sm:$0xff]
        %v3615 = vld [vmem:[#allocation3 + $0x114] sm:$0xff]
        %v3616 = vld [vmem:[#allocation3 + $0x11c] sm:$0xf]
        %v3617 = vld [vmem:[#allocation3 + $0x120] sm:$0xff]
        %v3618 = vld [vmem:[#allocation3 + $0x128] sm:$0xff]
        %v3619 = vld [vmem:[#allocation3 + $0x130] sm:$0xff]
        %v3620 = vld [vmem:[#allocation3 + $0x138] sm:$0xff]
        %v3621 = vld [vmem:[#allocation3 + $0x140] sm:$0xf]
        %v3622 = vld [vmem:[#allocation3 + $0x144] sm:$0xff]
        %v3623 = vld [vmem:[#allocation3 + $0x14c] sm:$0xff]
        %v3624 = vld [vmem:[#allocation3 + $0x154] sm:$0xff]
        %v3625 = vld [vmem:[#allocation3 + $0x15c] sm:$0xff]
        %v3626 = vld [vmem:[#allocation3 + $0x164] sm:$0xf]
        %v3627 = vld [vmem:[#allocation3 + $0x168] sm:$0xff]
        %v3628 = vld [vmem:[#allocation3 + $0x170] sm:$0xff]
        %v3629 = vld [vmem:[#allocation3 + $0x178] sm:$0xff]
        %v3630 = vld [vmem:[#allocation3 + $0x180] sm:$0xff]
        %v3631 = vld [vmem:[#allocation3 + $0x188] sm:$0xf]
        %v3632 = vld [vmem:[#allocation3 + $0x18c] sm:$0xff]
        %v3633 = vld [vmem:[#allocation3 + $0x194] sm:$0xff]
        %v3634 = vld [vmem:[#allocation3 + $0x19c] sm:$0xff]
        %v3635 = vld [vmem:[#allocation3 + $0x1a4] sm:$0xff]
        %v3636 = vld [vmem:[#allocation3 + $0x1ac] sm:$0xf]
        %v3637 = vld [vmem:[#allocation3 + $0x1b0] sm:$0xff]
        %v3638 = vld [vmem:[#allocation3 + $0x1b8] sm:$0xff]
        %v3639 = vld [vmem:[#allocation3 + $0x1c0] sm:$0xff]
        %v3640 = vld [vmem:[#allocation3 + $0x1c8] sm:$0xff]
        %v3641 = vld [vmem:[#allocation3 + $0x1d0] sm:$0xf]
        %v3642 = vld [vmem:[#allocation3 + $0x1d4] sm:$0xff]
        %v3643 = vld [vmem:[#allocation3 + $0x1dc] sm:$0xff]
        %v3644 = vld [vmem:[#allocation3 + $0x1e4] sm:$0xff]
        %v3645 = vld [vmem:[#allocation3 + $0x1ec] sm:$0xff]
        %v3646 = vld [vmem:[#allocation3 + $0x1f4] sm:$0xf]
        %v3647 = vld [vmem:[#allocation3 + $0x1f8] sm:$0xff]
        %v3648 = vld [vmem:[#allocation3 + $0x200] sm:$0xff]
        %v3649 = vld [vmem:[#allocation3 + $0x208] sm:$0xff]
        %v3650 = vld [vmem:[#allocation3 + $0x210] sm:$0xff]
        %v3651 = vld [vmem:[#allocation3 + $0x218] sm:$0xf]
        %v3652 = vld [vmem:[#allocation3 + $0x21c] sm:$0xff]
        %v3653 = vld [vmem:[#allocation3 + $0x224] sm:$0xff]
        %v3654 = vld [vmem:[#allocation3 + $0x22c] sm:$0xff]
        %v3655 = vld [vmem:[#allocation3 + $0x234] sm:$0xff]
        %v3656 = vld [vmem:[#allocation3 + $0x23c] sm:$0xf]
        %v3657 = vld [vmem:[#allocation3 + $0x240] sm:$0xff]
        %v3658 = vld [vmem:[#allocation3 + $0x248] sm:$0xff]
        %v3659 = vld [vmem:[#allocation3 + $0x250] sm:$0xff]
        %v3660 = vld [vmem:[#allocation3 + $0x258] sm:$0xff]
        %v3661 = vld [vmem:[#allocation3 + $0x260] sm:$0xf]
        %v3662 = vld [vmem:[#allocation3 + $0x264] sm:$0xff]
        %v3663 = vld [vmem:[#allocation3 + $0x26c] sm:$0xff]
        %v3664 = vld [vmem:[#allocation3 + $0x274] sm:$0xff]
        %v3665 = vld [vmem:[#allocation3 + $0x27c] sm:$0xff]
        %v3666 = vld [vmem:[#allocation3 + $0x284] sm:$0xf]
        %v3667 = vld [vmem:[#allocation3 + $0x288] sm:$0xff]
        %v3668 = vld [vmem:[#allocation3 + $0x290] sm:$0xff]
        %v3669 = vld [vmem:[#allocation3 + $0x298] sm:$0xff]
        %v3670 = vld [vmem:[#allocation3 + $0x2a0] sm:$0xff]
        %v3671 = vld [vmem:[#allocation3 + $0x2a8] sm:$0xf]
        %v3672 = vld [vmem:[#allocation3 + $0x2ac] sm:$0xff]
        %v3673 = vld [vmem:[#allocation3 + $0x2b4] sm:$0xff]
        %v3674 = vld [vmem:[#allocation3 + $0x2bc] sm:$0xff]
        %v3675 = vld [vmem:[#allocation3 + $0x2c4] sm:$0xff]
        %v3676 = vld [vmem:[#allocation3 + $0x2cc] sm:$0xf]
        %v3677 = vld [vmem:[#allocation3 + $0x2d0] sm:$0xff]
        %v3678 = vld [vmem:[#allocation3 + $0x2d8] sm:$0xff]
        %v3679 = vld [vmem:[#allocation3 + $0x2e0] sm:$0xff]
        %v3680 = vld [vmem:[#allocation3 + $0x2e8] sm:$0xff]
        %v3681 = vld [vmem:[#allocation3 + $0x2f0] sm:$0xf]
        %v3682 = vld [vmem:[#allocation3 + $0x2f4] sm:$0xff]
        %v3683 = vld [vmem:[#allocation3 + $0x2fc] sm:$0xff]
        %v3684 = vld [vmem:[#allocation3 + $0x304] sm:$0xff]
        %v3685 = vld [vmem:[#allocation3 + $0x30c] sm:$0xff]
        %v3686 = vld [vmem:[#allocation3 + $0x314] sm:$0xf]
        %v3687 = vld [vmem:[#allocation3 + $0x318] sm:$0xff]
        %v3688 = vld [vmem:[#allocation3 + $0x320] sm:$0xff]
        %v3689 = vld [vmem:[#allocation3 + $0x328] sm:$0xff]
        %v3690 = vld [vmem:[#allocation3 + $0x330] sm:$0xff]
        %v3691 = vld [vmem:[#allocation3 + $0x338] sm:$0xf]
        %v3692 = vld [vmem:[#allocation3 + $0x33c] sm:$0xff]
        %v3693 = vld [vmem:[#allocation3 + $0x344] sm:$0xff]
        %v3694 = vld [vmem:[#allocation3 + $0x34c] sm:$0xff]
        %v3695 = vld [vmem:[#allocation3 + $0x354] sm:$0xff]
        %v3696 = vld [vmem:[#allocation3 + $0x35c] sm:$0xf]
        %v3697 = vld [vmem:[#allocation3 + $0x360] sm:$0xff]
        %v3698 = vld [vmem:[#allocation3 + $0x368] sm:$0xff]
        %v3699 = vld [vmem:[#allocation3 + $0x370] sm:$0xff]
        %v3700 = vld [vmem:[#allocation3 + $0x378] sm:$0xff]
        %v3701 = vld [vmem:[#allocation3 + $0x380] sm:$0xf]
        %v3702 = vld [vmem:[#allocation3 + $0x384] sm:$0xff]
        %v3703 = vld [vmem:[#allocation3 + $0x38c] sm:$0xff]
        %v3704 = vld [vmem:[#allocation3 + $0x394] sm:$0xff]
        %v3705 = vld [vmem:[#allocation3 + $0x39c] sm:$0xff]
        %v3706 = vld [vmem:[#allocation3 + $0x3a4] sm:$0xf]
        %v3707 = vld [vmem:[#allocation3 + $0x3a8] sm:$0xff]
        %v3708 = vld [vmem:[#allocation3 + $0x3b0] sm:$0xff]
        %v3709 = vld [vmem:[#allocation3 + $0x3b8] sm:$0xff]
        %v3710 = vld [vmem:[#allocation3 + $0x3c0] sm:$0xff]
        %v3711 = vld [vmem:[#allocation3 + $0x3c8] sm:$0xf]
        %v3712 = vld [vmem:[#allocation3 + $0x3cc] sm:$0xff]
        %v3713 = vld [vmem:[#allocation3 + $0x3d4] sm:$0xff]
        %v3714 = vld [vmem:[#allocation3 + $0x3dc] sm:$0xff]
        %v3715 = vld [vmem:[#allocation3 + $0x3e4] sm:$0xff]
        %v3716 = vld [vmem:[#allocation3 + $0x3ec] sm:$0xf]
        %v3717 = vld [vmem:[#allocation3 + $0x3f0] sm:$0xff]
        %v3718 = vld [vmem:[#allocation3 + $0x3f8] sm:$0xff]
        %v3719 = vld [vmem:[#allocation3 + $0x400] sm:$0xff]
        %v3720 = vld [vmem:[#allocation3 + $0x408] sm:$0xff]
        %v3721 = vld [vmem:[#allocation3 + $0x410] sm:$0xf]
        %v3722 = vld [vmem:[#allocation3 + $0x414] sm:$0xff]
        %v3723 = vld [vmem:[#allocation3 + $0x41c] sm:$0xff]
        %v3724 = vld [vmem:[#allocation3 + $0x424] sm:$0xff]
        %v3725 = vld [vmem:[#allocation3 + $0x42c] sm:$0xff]
        %v3726 = vld [vmem:[#allocation3 + $0x434] sm:$0xf]
        %v3727 = vld [vmem:[#allocation3 + $0x438] sm:$0xff]
        %v3728 = vld [vmem:[#allocation3 + $0x440] sm:$0xff]
        %v3729 = vld [vmem:[#allocation3 + $0x448] sm:$0xff]
        %v3730 = vld [vmem:[#allocation3 + $0x450] sm:$0xff]
        %v3731 = vld [vmem:[#allocation3 + $0x458] sm:$0xf]
        %v3732 = vld [vmem:[#allocation3 + $0x45c] sm:$0xff]
        %v3733 = vld [vmem:[#allocation3 + $0x464] sm:$0xff]
        %v3734 = vld [vmem:[#allocation3 + $0x46c] sm:$0xff]
        %v3735 = vld [vmem:[#allocation3 + $0x474] sm:$0xff]
        %v3736 = vld [vmem:[#allocation3 + $0x47c] sm:$0xf]
        %v3737 = vld [vmem:[#allocation7] sm:$0xf]
        %v3738 = vld [vmem:[#allocation7 + $0x4] sm:$0xf]
        %v3739 = vld [vmem:[#allocation7 + $0x8] sm:$0xf]
        %v3740 = vld [vmem:[#allocation7 + $0xc] sm:$0xf]
        %v3741 = vld [vmem:[#allocation7 + $0x10] sm:$0xf]
        %v3742 = vld [vmem:[#allocation7 + $0x14] sm:$0xf]
        %v3743 = vld [vmem:[#allocation7 + $0x18] sm:$0xf]
        %v3744 = vld [vmem:[#allocation7 + $0x1c] sm:$0xf]
        %v3745 = vld [vmem:[#allocation7 + $0x20] sm:$0xf]
        %v3746 = vld [vmem:[#allocation7 + $0x24] sm:$0xf]
        %v3747 = vld [vmem:[#allocation7 + $0x28] sm:$0xf]
        %v3748 = vld [vmem:[#allocation7 + $0x2c] sm:$0xf]
        %v3749 = vld [vmem:[#allocation7 + $0x30] sm:$0xf]
        %v3750 = vld [vmem:[#allocation7 + $0x34] sm:$0xf]
        %v3751 = vld [vmem:[#allocation7 + $0x38] sm:$0xf]
        %v3752 = vld [vmem:[#allocation7 + $0x3c] sm:$0xf]
        %v3753 = vld [vmem:[#allocation7 + $0x40] sm:$0xf]
        %v3754 = vld [vmem:[#allocation7 + $0x44] sm:$0xf]
        %v3755 = vld [vmem:[#allocation7 + $0x48] sm:$0xf]
        %v3756 = vld [vmem:[#allocation7 + $0x4c] sm:$0xf]
        %v3757 = vld [vmem:[#allocation7 + $0x50] sm:$0xf]
        %v3758 = vld [vmem:[#allocation7 + $0x54] sm:$0xf]
        %v3759 = vld [vmem:[#allocation7 + $0x58] sm:$0xf]
        %v3760 = vld [vmem:[#allocation7 + $0x5c] sm:$0xf]
        %v3761 = vld [vmem:[#allocation7 + $0x60] sm:$0xf]
        %v3762 = vld [vmem:[#allocation7 + $0x64] sm:$0xf]
        %v3763 = vld [vmem:[#allocation7 + $0x68] sm:$0xf]
        %v3764 = vld [vmem:[#allocation7 + $0x6c] sm:$0xf]
        %v3765 = vld [vmem:[#allocation7 + $0x70] sm:$0xf]
        %v3766 = vld [vmem:[#allocation7 + $0x74] sm:$0xf]
        %v3767 = vld [vmem:[#allocation7 + $0x78] sm:$0xf]
        %v3768 = vld [vmem:[#allocation7 + $0x7c] sm:$0xf]
        %v3769 = vld [vmem:[#allocation7 + $0x80] sm:$0xf]
        %v3770 = vld [vmem:[#allocation7 + $0x84] sm:$0xf]
        %v3771 = vld [vmem:[#allocation7 + $0x88] sm:$0xf]
        %v3772 = vld [vmem:[#allocation7 + $0x8c] sm:$0xf]
        %v3773 = vld [vmem:[#allocation7 + $0x90] sm:$0xf]
        %v3774 = vld [vmem:[#allocation7 + $0x94] sm:$0xf]
        %v3775 = vld [vmem:[#allocation7 + $0x98] sm:$0xf]
        %v3776 = vld [vmem:[#allocation7 + $0x9c] sm:$0xf]
        %v3777 = vld [vmem:[#allocation7 + $0xa0] sm:$0xf]
        %v3778 = vld [vmem:[#allocation7 + $0xa4] sm:$0xf]
        %v3779 = vld [vmem:[#allocation7 + $0xa8] sm:$0xf]
        %v3780 = vld [vmem:[#allocation7 + $0xac] sm:$0xf]
        %v3781 = vld [vmem:[#allocation7 + $0xb0] sm:$0xf]
        %v3782 = vld [vmem:[#allocation7 + $0xb4] sm:$0xf]
        %v3783 = vld [vmem:[#allocation7 + $0xb8] sm:$0xf]
        %v3784 = vld [vmem:[#allocation7 + $0xbc] sm:$0xf]
        %v3785 = vld [vmem:[#allocation7 + $0xc0] sm:$0xf]
        %v3786 = vld [vmem:[#allocation7 + $0xc4] sm:$0xf]
        %v3787 = vld [vmem:[#allocation7 + $0xc8] sm:$0xf]
        %v3788 = vld [vmem:[#allocation7 + $0xcc] sm:$0xf]
        %v3789 = vld [vmem:[#allocation7 + $0xd0] sm:$0xf]
        %v3790 = vld [vmem:[#allocation7 + $0xd4] sm:$0xf]
        %v3791 = vld [vmem:[#allocation7 + $0xd8] sm:$0xf]
        %v3792 = vld [vmem:[#allocation7 + $0xdc] sm:$0xf]
        %v3793 = vld [vmem:[#allocation7 + $0xe0] sm:$0xf]
        %v3794 = vld [vmem:[#allocation7 + $0xe4] sm:$0xf]
        %v3795 = vld [vmem:[#allocation7 + $0xe8] sm:$0xf]
        %v3796 = vld [vmem:[#allocation7 + $0xec] sm:$0xf]
        %v3797 = vld [vmem:[#allocation7 + $0xf0] sm:$0xf]
        %v3798 = vld [vmem:[#allocation7 + $0xf4] sm:$0xf]
        %v3799 = vld [vmem:[#allocation7 + $0xf8] sm:$0xf]
        %v3800 = vld [vmem:[#allocation7 + $0xfc] sm:$0xf]
        %v3801 = vld [vmem:[#allocation7 + $0x100] sm:$0xf]
        %v3802 = vld [vmem:[#allocation7 + $0x104] sm:$0xf]
        %v3803 = vld [vmem:[#allocation7 + $0x108] sm:$0xf]
        %v3804 = vld [vmem:[#allocation7 + $0x10c] sm:$0xf]
        %v3805 = vld [vmem:[#allocation7 + $0x110] sm:$0xf]
        %v3806 = vld [vmem:[#allocation7 + $0x114] sm:$0xf]
        %v3807 = vld [vmem:[#allocation7 + $0x118] sm:$0xf]
        %v3808 = vld [vmem:[#allocation7 + $0x11c] sm:$0xf]
        %v3809 = vld [vmem:[#allocation7 + $0x120] sm:$0xf]
        %v3810 = vld [vmem:[#allocation7 + $0x124] sm:$0xf]
        %v3811 = vld [vmem:[#allocation7 + $0x128] sm:$0xf]
        %v3812 = vld [vmem:[#allocation7 + $0x12c] sm:$0xf]
        %v3813 = vld [vmem:[#allocation7 + $0x130] sm:$0xf]
        %v3814 = vld [vmem:[#allocation7 + $0x134] sm:$0xf]
        %v3815 = vld [vmem:[#allocation7 + $0x138] sm:$0xf]
        %v3816 = vld [vmem:[#allocation7 + $0x13c] sm:$0xf]
        %v3817 = vld [vmem:[#allocation7 + $0x140] sm:$0xf]
        %v3818 = vld [vmem:[#allocation7 + $0x144] sm:$0xf]
        %v3819 = vld [vmem:[#allocation7 + $0x148] sm:$0xf]
        %v3820 = vld [vmem:[#allocation7 + $0x14c] sm:$0xf]
        %v3821 = vld [vmem:[#allocation7 + $0x150] sm:$0xf]
        %v3822 = vld [vmem:[#allocation7 + $0x154] sm:$0xf]
        %v3823 = vld [vmem:[#allocation7 + $0x158] sm:$0xf]
        %v3824 = vld [vmem:[#allocation7 + $0x15c] sm:$0xf]
        %v3825 = vld [vmem:[#allocation7 + $0x160] sm:$0xf]
        %v3826 = vld [vmem:[#allocation7 + $0x164] sm:$0xf]
        %v3827 = vld [vmem:[#allocation7 + $0x168] sm:$0xf]
        %v3828 = vld [vmem:[#allocation7 + $0x16c] sm:$0xf]
        %v3829 = vld [vmem:[#allocation7 + $0x170] sm:$0xf]
        %v3830 = vld [vmem:[#allocation7 + $0x174] sm:$0xf]
        %v3831 = vld [vmem:[#allocation7 + $0x178] sm:$0xf]
        %v3832 = vld [vmem:[#allocation7 + $0x17c] sm:$0xf]
        %v3833 = vld [vmem:[#allocation7 + $0x180] sm:$0xf]
        %v3834 = vld [vmem:[#allocation7 + $0x184] sm:$0xf]
        %v3835 = vld [vmem:[#allocation7 + $0x188] sm:$0xf]
        %v3836 = vld [vmem:[#allocation7 + $0x18c] sm:$0xf]
        %v3837 = vld [vmem:[#allocation7 + $0x190] sm:$0xf]
        %v3838 = vld [vmem:[#allocation7 + $0x194] sm:$0xf]
        %v3839 = vld [vmem:[#allocation7 + $0x198] sm:$0xf]
        %v3840 = vld [vmem:[#allocation7 + $0x19c] sm:$0xf]
        %v3841 = vld [vmem:[#allocation7 + $0x1a0] sm:$0xf]
        %v3842 = vld [vmem:[#allocation7 + $0x1a4] sm:$0xf]
        %v3843 = vld [vmem:[#allocation7 + $0x1a8] sm:$0xf]
        %v3844 = vld [vmem:[#allocation7 + $0x1ac] sm:$0xf]
        %v3845 = vld [vmem:[#allocation7 + $0x1b0] sm:$0xf]
        %v3846 = vld [vmem:[#allocation7 + $0x1b4] sm:$0xf]
        %v3847 = vld [vmem:[#allocation7 + $0x1b8] sm:$0xf]
        %v3848 = vld [vmem:[#allocation7 + $0x1bc] sm:$0xf]
        %v3849 = vld [vmem:[#allocation7 + $0x1c0] sm:$0xf]
        %v3850 = vld [vmem:[#allocation7 + $0x1c4] sm:$0xf]
        %v3851 = vld [vmem:[#allocation7 + $0x1c8] sm:$0xf]
        %v3852 = vld [vmem:[#allocation7 + $0x1cc] sm:$0xf]
        %v3853 = vld [vmem:[#allocation7 + $0x1d0] sm:$0xf]
        %v3854 = vld [vmem:[#allocation7 + $0x1d4] sm:$0xf]
        %v3855 = vld [vmem:[#allocation7 + $0x1d8] sm:$0xf]
        %v3856 = vld [vmem:[#allocation7 + $0x1dc] sm:$0xf]
        %v3857 = vld [vmem:[#allocation7 + $0x1e0] sm:$0xf]
        %v3858 = vld [vmem:[#allocation7 + $0x1e4] sm:$0xf]
        %v3859 = vld [vmem:[#allocation7 + $0x1e8] sm:$0xf]
        %v3860 = vld [vmem:[#allocation7 + $0x1ec] sm:$0xf]
        %v3861 = vld [vmem:[#allocation7 + $0x1f0] sm:$0xf]
        %v3862 = vld [vmem:[#allocation7 + $0x1f4] sm:$0xf]
        %v3863 = vld [vmem:[#allocation7 + $0x1f8] sm:$0xf]
        %v3864 = vld [vmem:[#allocation7 + $0x1fc] sm:$0xf]
        %v3865 = vld [vmem:[#allocation7 + $0x200] sm:$0xf]
        %v3866 = vld [vmem:[#allocation7 + $0x204] sm:$0xf]
        %v3867 = vld [vmem:[#allocation7 + $0x208] sm:$0xf]
        %v3868 = vld [vmem:[#allocation7 + $0x20c] sm:$0xf]
        %v3869 = vld [vmem:[#allocation7 + $0x210] sm:$0xf]
        %v3870 = vld [vmem:[#allocation7 + $0x214] sm:$0xf]
        %v3871 = vld [vmem:[#allocation7 + $0x218] sm:$0xf]
        %v3872 = vld [vmem:[#allocation7 + $0x21c] sm:$0xf]
        %v3873 = vld [vmem:[#allocation7 + $0x220] sm:$0xf]
        %v3874 = vld [vmem:[#allocation7 + $0x224] sm:$0xf]
        %v3875 = vld [vmem:[#allocation7 + $0x228] sm:$0xf]
        %v3876 = vld [vmem:[#allocation7 + $0x22c] sm:$0xf]
        %v3877 = vld [vmem:[#allocation7 + $0x230] sm:$0xf]
        %v3878 = vld [vmem:[#allocation7 + $0x234] sm:$0xf]
        %v3879 = vld [vmem:[#allocation7 + $0x238] sm:$0xf]
        %v3880 = vld [vmem:[#allocation7 + $0x23c] sm:$0xf]
        %v4041 = vunpack.c.l.b16 %v3577
        %v4042 = vunpack.c.h.b16 %v3577
        %v4043 = vunpack.c.l.b16 %v3578
        %v4044 = vunpack.c.h.b16 %v3578
        %v4045 = vunpack.c.l.b16 %v3579
        %v4046 = vunpack.c.h.b16 %v3579
        %v4047 = vunpack.c.l.b16 %v3580
        %v4048 = vunpack.c.h.b16 %v3580
        %v4049 = vunpack.c.l.b16 %v3581
        %v4050 = vunpack.c.l.b16 %v3582
        %v4051 = vunpack.c.h.b16 %v3582
        %v4052 = vunpack.c.l.b16 %v3583
        %v4053 = vunpack.c.h.b16 %v3583
        %v4054 = vunpack.c.l.b16 %v3584
        %v4055 = vunpack.c.h.b16 %v3584
        %v4056 = vunpack.c.l.b16 %v3585
        %v4057 = vunpack.c.h.b16 %v3585
        %v4058 = vunpack.c.l.b16 %v3586
        %v4059 = vunpack.c.l.b16 %v3587
        %v4060 = vunpack.c.h.b16 %v3587
        %v4061 = vunpack.c.l.b16 %v3588
        %v4062 = vunpack.c.h.b16 %v3588
        %v4063 = vunpack.c.l.b16 %v3589
        %v4064 = vunpack.c.h.b16 %v3589
        %v4065 = vunpack.c.l.b16 %v3590
        %v4066 = vunpack.c.h.b16 %v3590
        %v4067 = vunpack.c.l.b16 %v3591
        %v4068 = vunpack.c.l.b16 %v3592
        %v4069 = vunpack.c.h.b16 %v3592
        %v4070 = vunpack.c.l.b16 %v3593
        %v4071 = vunpack.c.h.b16 %v3593
        %v4072 = vunpack.c.l.b16 %v3594
        %v4073 = vunpack.c.h.b16 %v3594
        %v4074 = vunpack.c.l.b16 %v3595
        %v4075 = vunpack.c.h.b16 %v3595
        %v4076 = vunpack.c.l.b16 %v3596
        %v4077 = vunpack.c.l.b16 %v3597
        %v4078 = vunpack.c.h.b16 %v3597
        %v4079 = vunpack.c.l.b16 %v3598
        %v4080 = vunpack.c.h.b16 %v3598
        %v4081 = vunpack.c.l.b16 %v3599
        %v4082 = vunpack.c.h.b16 %v3599
        %v4083 = vunpack.c.l.b16 %v3600
        %v4084 = vunpack.c.h.b16 %v3600
        %v4085 = vunpack.c.l.b16 %v3601
        %v4086 = vunpack.c.l.b16 %v3602
        %v4087 = vunpack.c.h.b16 %v3602
        %v4088 = vunpack.c.l.b16 %v3603
        %v4089 = vunpack.c.h.b16 %v3603
        %v4090 = vunpack.c.l.b16 %v3604
        %v4091 = vunpack.c.h.b16 %v3604
        %v4092 = vunpack.c.l.b16 %v3605
        %v4093 = vunpack.c.h.b16 %v3605
        %v4094 = vunpack.c.l.b16 %v3606
        %v4095 = vunpack.c.l.b16 %v3607
        %v4096 = vunpack.c.h.b16 %v3607
        %v4097 = vunpack.c.l.b16 %v3608
        %v4098 = vunpack.c.h.b16 %v3608
        %v4099 = vunpack.c.l.b16 %v3609
        %v4100 = vunpack.c.h.b16 %v3609
        %v4101 = vunpack.c.l.b16 %v3610
        %v4102 = vunpack.c.h.b16 %v3610
        %v4103 = vunpack.c.l.b16 %v3611
        %v4104 = vunpack.c.l.b16 %v3612
        %v4105 = vunpack.c.h.b16 %v3612
        %v4106 = vunpack.c.l.b16 %v3613
        %v4107 = vunpack.c.h.b16 %v3613
        %v4108 = vunpack.c.l.b16 %v3614
        %v4109 = vunpack.c.h.b16 %v3614
        %v4110 = vunpack.c.l.b16 %v3615
        %v4111 = vunpack.c.h.b16 %v3615
        %v4112 = vunpack.c.l.b16 %v3616
        %v4113 = vunpack.c.l.b16 %v3617
        %v4114 = vunpack.c.h.b16 %v3617
        %v4115 = vunpack.c.l.b16 %v3618
        %v4116 = vunpack.c.h.b16 %v3618
        %v4117 = vunpack.c.l.b16 %v3619
        %v4118 = vunpack.c.h.b16 %v3619
        %v4119 = vunpack.c.l.b16 %v3620
        %v4120 = vunpack.c.h.b16 %v3620
        %v4121 = vunpack.c.l.b16 %v3621
        %v4122 = vunpack.c.l.b16 %v3622
        %v4123 = vunpack.c.h.b16 %v3622
        %v4124 = vunpack.c.l.b16 %v3623
        %v4125 = vunpack.c.h.b16 %v3623
        %v4126 = vunpack.c.l.b16 %v3624
        %v4127 = vunpack.c.h.b16 %v3624
        %v4128 = vunpack.c.l.b16 %v3625
        %v4129 = vunpack.c.h.b16 %v3625
        %v4130 = vunpack.c.l.b16 %v3626
        %v4131 = vunpack.c.l.b16 %v3627
        %v4132 = vunpack.c.h.b16 %v3627
        %v4133 = vunpack.c.l.b16 %v3628
        %v4134 = vunpack.c.h.b16 %v3628
        %v4135 = vunpack.c.l.b16 %v3629
        %v4136 = vunpack.c.h.b16 %v3629
        %v4137 = vunpack.c.l.b16 %v3630
        %v4138 = vunpack.c.h.b16 %v3630
        %v4139 = vunpack.c.l.b16 %v3631
        %v4140 = vunpack.c.l.b16 %v3632
        %v4141 = vunpack.c.h.b16 %v3632
        %v4142 = vunpack.c.l.b16 %v3633
        %v4143 = vunpack.c.h.b16 %v3633
        %v4144 = vunpack.c.l.b16 %v3634
        %v4145 = vunpack.c.h.b16 %v3634
        %v4146 = vunpack.c.l.b16 %v3635
        %v4147 = vunpack.c.h.b16 %v3635
        %v4148 = vunpack.c.l.b16 %v3636
        %v4149 = vunpack.c.l.b16 %v3637
        %v4150 = vunpack.c.h.b16 %v3637
        %v4151 = vunpack.c.l.b16 %v3638
        %v4152 = vunpack.c.h.b16 %v3638
        %v4153 = vunpack.c.l.b16 %v3639
        %v4154 = vunpack.c.h.b16 %v3639
        %v4155 = vunpack.c.l.b16 %v3640
        %v4156 = vunpack.c.h.b16 %v3640
        %v4157 = vunpack.c.l.b16 %v3641
        %v4158 = vunpack.c.l.b16 %v3642
        %v4159 = vunpack.c.h.b16 %v3642
        %v4160 = vunpack.c.l.b16 %v3643
        %v4161 = vunpack.c.h.b16 %v3643
        %v4162 = vunpack.c.l.b16 %v3644
        %v4163 = vunpack.c.h.b16 %v3644
        %v4164 = vunpack.c.l.b16 %v3645
        %v4165 = vunpack.c.h.b16 %v3645
        %v4166 = vunpack.c.l.b16 %v3646
        %v4167 = vunpack.c.l.b16 %v3647
        %v4168 = vunpack.c.h.b16 %v3647
        %v4169 = vunpack.c.l.b16 %v3648
        %v4170 = vunpack.c.h.b16 %v3648
        %v4171 = vunpack.c.l.b16 %v3649
        %v4172 = vunpack.c.h.b16 %v3649
        %v4173 = vunpack.c.l.b16 %v3650
        %v4174 = vunpack.c.h.b16 %v3650
        %v4175 = vunpack.c.l.b16 %v3651
        %v4176 = vunpack.c.l.b16 %v3652
        %v4177 = vunpack.c.h.b16 %v3652
        %v4178 = vunpack.c.l.b16 %v3653
        %v4179 = vunpack.c.h.b16 %v3653
        %v4180 = vunpack.c.l.b16 %v3654
        %v4181 = vunpack.c.h.b16 %v3654
        %v4182 = vunpack.c.l.b16 %v3655
        %v4183 = vunpack.c.h.b16 %v3655
        %v4184 = vunpack.c.l.b16 %v3656
        %v4185 = vunpack.c.l.b16 %v3657
        %v4186 = vunpack.c.h.b16 %v3657
        %v4187 = vunpack.c.l.b16 %v3658
        %v4188 = vunpack.c.h.b16 %v3658
        %v4189 = vunpack.c.l.b16 %v3659
        %v4190 = vunpack.c.h.b16 %v3659
        %v4191 = vunpack.c.l.b16 %v3660
        %v4192 = vunpack.c.h.b16 %v3660
        %v4193 = vunpack.c.l.b16 %v3661
        %v4194 = vunpack.c.l.b16 %v3662
        %v4195 = vunpack.c.h.b16 %v3662
        %v4196 = vunpack.c.l.b16 %v3663
        %v4197 = vunpack.c.h.b16 %v3663
        %v4198 = vunpack.c.l.b16 %v3664
        %v4199 = vunpack.c.h.b16 %v3664
        %v4200 = vunpack.c.l.b16 %v3665
        %v4201 = vunpack.c.h.b16 %v3665
        %v4202 = vunpack.c.l.b16 %v3666
        %v4203 = vunpack.c.l.b16 %v3667
        %v4204 = vunpack.c.h.b16 %v3667
        %v4205 = vunpack.c.l.b16 %v3668
        %v4206 = vunpack.c.h.b16 %v3668
        %v4207 = vunpack.c.l.b16 %v3669
        %v4208 = vunpack.c.h.b16 %v3669
        %v4209 = vunpack.c.l.b16 %v3670
        %v4210 = vunpack.c.h.b16 %v3670
        %v4211 = vunpack.c.l.b16 %v3671
        %v4212 = vunpack.c.l.b16 %v3672
        %v4213 = vunpack.c.h.b16 %v3672
        %v4214 = vunpack.c.l.b16 %v3673
        %v4215 = vunpack.c.h.b16 %v3673
        %v4216 = vunpack.c.l.b16 %v3674
        %v4217 = vunpack.c.h.b16 %v3674
        %v4218 = vunpack.c.l.b16 %v3675
        %v4219 = vunpack.c.h.b16 %v3675
        %v4220 = vunpack.c.l.b16 %v3676
        %v4221 = vunpack.c.l.b16 %v3677
        %v4222 = vunpack.c.h.b16 %v3677
        %v4223 = vunpack.c.l.b16 %v3678
        %v4224 = vunpack.c.h.b16 %v3678
        %v4225 = vunpack.c.l.b16 %v3679
        %v4226 = vunpack.c.h.b16 %v3679
        %v4227 = vunpack.c.l.b16 %v3680
        %v4228 = vunpack.c.h.b16 %v3680
        %v4229 = vunpack.c.l.b16 %v3681
        %v4230 = vunpack.c.l.b16 %v3682
        %v4231 = vunpack.c.h.b16 %v3682
        %v4232 = vunpack.c.l.b16 %v3683
        %v4233 = vunpack.c.h.b16 %v3683
        %v4234 = vunpack.c.l.b16 %v3684
        %v4235 = vunpack.c.h.b16 %v3684
        %v4236 = vunpack.c.l.b16 %v3685
        %v4237 = vunpack.c.h.b16 %v3685
        %v4238 = vunpack.c.l.b16 %v3686
        %v4239 = vunpack.c.l.b16 %v3687
        %v4240 = vunpack.c.h.b16 %v3687
        %v4241 = vunpack.c.l.b16 %v3688
        %v4242 = vunpack.c.h.b16 %v3688
        %v4243 = vunpack.c.l.b16 %v3689
        %v4244 = vunpack.c.h.b16 %v3689
        %v4245 = vunpack.c.l.b16 %v3690
        %v4246 = vunpack.c.h.b16 %v3690
        %v4247 = vunpack.c.l.b16 %v3691
        %v4248 = vunpack.c.l.b16 %v3692
        %v4249 = vunpack.c.h.b16 %v3692
        %v4250 = vunpack.c.l.b16 %v3693
        %v4251 = vunpack.c.h.b16 %v3693
        %v4252 = vunpack.c.l.b16 %v3694
        %v4253 = vunpack.c.h.b16 %v3694
        %v4254 = vunpack.c.l.b16 %v3695
        %v4255 = vunpack.c.h.b16 %v3695
        %v4256 = vunpack.c.l.b16 %v3696
        %v4257 = vunpack.c.l.b16 %v3697
        %v4258 = vunpack.c.h.b16 %v3697
        %v4259 = vunpack.c.l.b16 %v3698
        %v4260 = vunpack.c.h.b16 %v3698
        %v4261 = vunpack.c.l.b16 %v3699
        %v4262 = vunpack.c.h.b16 %v3699
        %v4263 = vunpack.c.l.b16 %v3700
        %v4264 = vunpack.c.h.b16 %v3700
        %v4265 = vunpack.c.l.b16 %v3701
        %v4266 = vunpack.c.l.b16 %v3702
        %v4267 = vunpack.c.h.b16 %v3702
        %v4268 = vunpack.c.l.b16 %v3703
        %v4269 = vunpack.c.h.b16 %v3703
        %v4270 = vunpack.c.l.b16 %v3704
        %v4271 = vunpack.c.h.b16 %v3704
        %v4272 = vunpack.c.l.b16 %v3705
        %v4273 = vunpack.c.h.b16 %v3705
        %v4274 = vunpack.c.l.b16 %v3706
        %v4275 = vunpack.c.l.b16 %v3707
        %v4276 = vunpack.c.h.b16 %v3707
        %v4277 = vunpack.c.l.b16 %v3708
        %v4278 = vunpack.c.h.b16 %v3708
        %v4279 = vunpack.c.l.b16 %v3709
        %v4280 = vunpack.c.h.b16 %v3709
        %v4281 = vunpack.c.l.b16 %v3710
        %v4282 = vunpack.c.h.b16 %v3710
        %v4283 = vunpack.c.l.b16 %v3711
        %v4284 = vunpack.c.l.b16 %v3712
        %v4285 = vunpack.c.h.b16 %v3712
        %v4286 = vunpack.c.l.b16 %v3713
        %v4287 = vunpack.c.h.b16 %v3713
        %v4288 = vunpack.c.l.b16 %v3714
        %v4289 = vunpack.c.h.b16 %v3714
        %v4290 = vunpack.c.l.b16 %v3715
        %v4291 = vunpack.c.h.b16 %v3715
        %v4292 = vunpack.c.l.b16 %v3716
        %v4293 = vunpack.c.l.b16 %v3717
        %v4294 = vunpack.c.h.b16 %v3717
        %v4295 = vunpack.c.l.b16 %v3718
        %v4296 = vunpack.c.h.b16 %v3718
        %v4297 = vunpack.c.l.b16 %v3719
        %v4298 = vunpack.c.h.b16 %v3719
        %v4299 = vunpack.c.l.b16 %v3720
        %v4300 = vunpack.c.h.b16 %v3720
        %v4301 = vunpack.c.l.b16 %v3721
        %v4302 = vunpack.c.l.b16 %v3722
        %v4303 = vunpack.c.h.b16 %v3722
        %v4304 = vunpack.c.l.b16 %v3723
        %v4305 = vunpack.c.h.b16 %v3723
        %v4306 = vunpack.c.l.b16 %v3724
        %v4307 = vunpack.c.h.b16 %v3724
        %v4308 = vunpack.c.l.b16 %v3725
        %v4309 = vunpack.c.h.b16 %v3725
        %v4310 = vunpack.c.l.b16 %v3726
        %v4311 = vunpack.c.l.b16 %v3727
        %v4312 = vunpack.c.h.b16 %v3727
        %v4313 = vunpack.c.l.b16 %v3728
        %v4314 = vunpack.c.h.b16 %v3728
        %v4315 = vunpack.c.l.b16 %v3729
        %v4316 = vunpack.c.h.b16 %v3729
        %v4317 = vunpack.c.l.b16 %v3730
        %v4318 = vunpack.c.h.b16 %v3730
        %v4319 = vunpack.c.l.b16 %v3731
        %v4320 = vunpack.c.l.b16 %v3732
        %v4321 = vunpack.c.h.b16 %v3732
        %v4322 = vunpack.c.l.b16 %v3733
        %v4323 = vunpack.c.h.b16 %v3733
        %v4324 = vunpack.c.l.b16 %v3734
        %v4325 = vunpack.c.h.b16 %v3734
        %v4326 = vunpack.c.l.b16 %v3735
        %v4327 = vunpack.c.h.b16 %v3735
        %v4328 = vunpack.c.l.b16 %v3736
        %v4329 = vpack.c.b16 %v4050, %v4041
        %v4330 = vpack.c.b16 %v4051, %v4042
        %v4331 = vpack.c.b16 %v4052, %v4043
        %v4332 = vpack.c.b16 %v4053, %v4044
        %v4333 = vpack.c.b16 %v4054, %v4045
        %v4334 = vpack.c.b16 %v4055, %v4046
        %v4335 = vpack.c.b16 %v4056, %v4047
        %v4336 = vpack.c.b16 %v4057, %v4048
        %v4337 = vpack.c.b16 %v4058, %v4049
        %v4338 = vpack.c.b16 %v4068, %v4059
        %v4339 = vpack.c.b16 %v4069, %v4060
        %v4340 = vpack.c.b16 %v4070, %v4061
        %v4341 = vpack.c.b16 %v4071, %v4062
        %v4342 = vpack.c.b16 %v4072, %v4063
        %v4343 = vpack.c.b16 %v4073, %v4064
        %v4344 = vpack.c.b16 %v4074, %v4065
        %v4345 = vpack.c.b16 %v4075, %v4066
        %v4346 = vpack.c.b16 %v4076, %v4067
        %v4347 = vpack.c.b16 %v4086, %v4077
        %v4348 = vpack.c.b16 %v4087, %v4078
        %v4349 = vpack.c.b16 %v4088, %v4079
        %v4350 = vpack.c.b16 %v4089, %v4080
        %v4351 = vpack.c.b16 %v4090, %v4081
        %v4352 = vpack.c.b16 %v4091, %v4082
        %v4353 = vpack.c.b16 %v4092, %v4083
        %v4354 = vpack.c.b16 %v4093, %v4084
        %v4355 = vpack.c.b16 %v4094, %v4085
        %v4356 = vpack.c.b16 %v4104, %v4095
        %v4357 = vpack.c.b16 %v4105, %v4096
        %v4358 = vpack.c.b16 %v4106, %v4097
        %v4359 = vpack.c.b16 %v4107, %v4098
        %v4360 = vpack.c.b16 %v4108, %v4099
        %v4361 = vpack.c.b16 %v4109, %v4100
        %v4362 = vpack.c.b16 %v4110, %v4101
        %v4363 = vpack.c.b16 %v4111, %v4102
        %v4364 = vpack.c.b16 %v4112, %v4103
        %v4365 = vpack.c.b16 %v4122, %v4113
        %v4366 = vpack.c.b16 %v4123, %v4114
        %v4367 = vpack.c.b16 %v4124, %v4115
        %v4368 = vpack.c.b16 %v4125, %v4116
        %v4369 = vpack.c.b16 %v4126, %v4117
        %v4370 = vpack.c.b16 %v4127, %v4118
        %v4371 = vpack.c.b16 %v4128, %v4119
        %v4372 = vpack.c.b16 %v4129, %v4120
        %v4373 = vpack.c.b16 %v4130, %v4121
        %v4374 = vpack.c.b16 %v4140, %v4131
        %v4375 = vpack.c.b16 %v4141, %v4132
        %v4376 = vpack.c.b16 %v4142, %v4133
        %v4377 = vpack.c.b16 %v4143, %v4134
        %v4378 = vpack.c.b16 %v4144, %v4135
        %v4379 = vpack.c.b16 %v4145, %v4136
        %v4380 = vpack.c.b16 %v4146, %v4137
        %v4381 = vpack.c.b16 %v4147, %v4138
        %v4382 = vpack.c.b16 %v4148, %v4139
        %v4383 = vpack.c.b16 %v4158, %v4149
        %v4384 = vpack.c.b16 %v4159, %v4150
        %v4385 = vpack.c.b16 %v4160, %v4151
        %v4386 = vpack.c.b16 %v4161, %v4152
        %v4387 = vpack.c.b16 %v4162, %v4153
        %v4388 = vpack.c.b16 %v4163, %v4154
        %v4389 = vpack.c.b16 %v4164, %v4155
        %v4390 = vpack.c.b16 %v4165, %v4156
        %v4391 = vpack.c.b16 %v4166, %v4157
        %v4392 = vpack.c.b16 %v4176, %v4167
        %v4393 = vpack.c.b16 %v4177, %v4168
        %v4394 = vpack.c.b16 %v4178, %v4169
        %v4395 = vpack.c.b16 %v4179, %v4170
        %v4396 = vpack.c.b16 %v4180, %v4171
        %v4397 = vpack.c.b16 %v4181, %v4172
        %v4398 = vpack.c.b16 %v4182, %v4173
        %v4399 = vpack.c.b16 %v4183, %v4174
        %v4400 = vpack.c.b16 %v4184, %v4175
        %v4401 = vpack.c.b16 %v4194, %v4185
        %v4402 = vpack.c.b16 %v4195, %v4186
        %v4403 = vpack.c.b16 %v4196, %v4187
        %v4404 = vpack.c.b16 %v4197, %v4188
        %v4405 = vpack.c.b16 %v4198, %v4189
        %v4406 = vpack.c.b16 %v4199, %v4190
        %v4407 = vpack.c.b16 %v4200, %v4191
        %v4408 = vpack.c.b16 %v4201, %v4192
        %v4409 = vpack.c.b16 %v4202, %v4193
        %v4410 = vpack.c.b16 %v4212, %v4203
        %v4411 = vpack.c.b16 %v4213, %v4204
        %v4412 = vpack.c.b16 %v4214, %v4205
        %v4413 = vpack.c.b16 %v4215, %v4206
        %v4414 = vpack.c.b16 %v4216, %v4207
        %v4415 = vpack.c.b16 %v4217, %v4208
        %v4416 = vpack.c.b16 %v4218, %v4209
        %v4417 = vpack.c.b16 %v4219, %v4210
        %v4418 = vpack.c.b16 %v4220, %v4211
        %v4419 = vpack.c.b16 %v4230, %v4221
        %v4420 = vpack.c.b16 %v4231, %v4222
        %v4421 = vpack.c.b16 %v4232, %v4223
        %v4422 = vpack.c.b16 %v4233, %v4224
        %v4423 = vpack.c.b16 %v4234, %v4225
        %v4424 = vpack.c.b16 %v4235, %v4226
        %v4425 = vpack.c.b16 %v4236, %v4227
        %v4426 = vpack.c.b16 %v4237, %v4228
        %v4427 = vpack.c.b16 %v4238, %v4229
        %v4428 = vpack.c.b16 %v4248, %v4239
        %v4429 = vpack.c.b16 %v4249, %v4240
        %v4430 = vpack.c.b16 %v4250, %v4241
        %v4431 = vpack.c.b16 %v4251, %v4242
        %v4432 = vpack.c.b16 %v4252, %v4243
        %v4433 = vpack.c.b16 %v4253, %v4244
        %v4434 = vpack.c.b16 %v4254, %v4245
        %v4435 = vpack.c.b16 %v4255, %v4246
        %v4436 = vpack.c.b16 %v4256, %v4247
        %v4437 = vpack.c.b16 %v4266, %v4257
        %v4438 = vpack.c.b16 %v4267, %v4258
        %v4439 = vpack.c.b16 %v4268, %v4259
        %v4440 = vpack.c.b16 %v4269, %v4260
        %v4441 = vpack.c.b16 %v4270, %v4261
        %v4442 = vpack.c.b16 %v4271, %v4262
        %v4443 = vpack.c.b16 %v4272, %v4263
        %v4444 = vpack.c.b16 %v4273, %v4264
        %v4445 = vpack.c.b16 %v4274, %v4265
        %v4446 = vpack.c.b16 %v4284, %v4275
        %v4447 = vpack.c.b16 %v4285, %v4276
        %v4448 = vpack.c.b16 %v4286, %v4277
        %v4449 = vpack.c.b16 %v4287, %v4278
        %v4450 = vpack.c.b16 %v4288, %v4279
        %v4451 = vpack.c.b16 %v4289, %v4280
        %v4452 = vpack.c.b16 %v4290, %v4281
        %v4453 = vpack.c.b16 %v4291, %v4282
        %v4454 = vpack.c.b16 %v4292, %v4283
        %v4455 = vpack.c.b16 %v4302, %v4293
        %v4456 = vpack.c.b16 %v4303, %v4294
        %v4457 = vpack.c.b16 %v4304, %v4295
        %v4458 = vpack.c.b16 %v4305, %v4296
        %v4459 = vpack.c.b16 %v4306, %v4297
        %v4460 = vpack.c.b16 %v4307, %v4298
        %v4461 = vpack.c.b16 %v4308, %v4299
        %v4462 = vpack.c.b16 %v4309, %v4300
        %v4463 = vpack.c.b16 %v4310, %v4301
        %v4464 = vpack.c.b16 %v4320, %v4311
        %v4465 = vpack.c.b16 %v4321, %v4312
        %v4466 = vpack.c.b16 %v4322, %v4313
        %v4467 = vpack.c.b16 %v4323, %v4314
        %v4468 = vpack.c.b16 %v4324, %v4315
        %v4469 = vpack.c.b16 %v4325, %v4316
        %v4470 = vpack.c.b16 %v4326, %v4317
        %v4471 = vpack.c.b16 %v4327, %v4318
        %v4472 = vpack.c.b16 %v4328, %v4319
        %v4761 = vunpack.c.l.b16 %v3737
        %v4762 = vunpack.c.l.b16 %v3738
        %v4763 = vunpack.c.l.b16 %v3739
        %v4764 = vunpack.c.l.b16 %v3740
        %v4765 = vunpack.c.l.b16 %v3741
        %v4766 = vunpack.c.l.b16 %v3742
        %v4767 = vunpack.c.l.b16 %v3743
        %v4768 = vunpack.c.l.b16 %v3744
        %v4769 = vunpack.c.l.b16 %v3745
        %v4770 = vunpack.c.l.b16 %v3746
        %v4771 = vunpack.c.l.b16 %v3747
        %v4772 = vunpack.c.l.b16 %v3748
        %v4773 = vunpack.c.l.b16 %v3749
        %v4774 = vunpack.c.l.b16 %v3750
        %v4775 = vunpack.c.l.b16 %v3751
        %v4776 = vunpack.c.l.b16 %v3752
        %v4777 = vunpack.c.l.b16 %v3753
        %v4778 = vunpack.c.l.b16 %v3754
        %v4779 = vunpack.c.l.b16 %v3755
        %v4780 = vunpack.c.l.b16 %v3756
        %v4781 = vunpack.c.l.b16 %v3757
        %v4782 = vunpack.c.l.b16 %v3758
        %v4783 = vunpack.c.l.b16 %v3759
        %v4784 = vunpack.c.l.b16 %v3760
        %v4785 = vunpack.c.l.b16 %v3761
        %v4786 = vunpack.c.l.b16 %v3762
        %v4787 = vunpack.c.l.b16 %v3763
        %v4788 = vunpack.c.l.b16 %v3764
        %v4789 = vunpack.c.l.b16 %v3765
        %v4790 = vunpack.c.l.b16 %v3766
        %v4791 = vunpack.c.l.b16 %v3767
        %v4792 = vunpack.c.l.b16 %v3768
        %v4793 = vunpack.c.l.b16 %v3769
        %v4794 = vunpack.c.l.b16 %v3770
        %v4795 = vunpack.c.l.b16 %v3771
        %v4796 = vunpack.c.l.b16 %v3772
        %v4797 = vunpack.c.l.b16 %v3773
        %v4798 = vunpack.c.l.b16 %v3774
        %v4799 = vunpack.c.l.b16 %v3775
        %v4800 = vunpack.c.l.b16 %v3776
        %v4801 = vunpack.c.l.b16 %v3777
        %v4802 = vunpack.c.l.b16 %v3778
        %v4803 = vunpack.c.l.b16 %v3779
        %v4804 = vunpack.c.l.b16 %v3780
        %v4805 = vunpack.c.l.b16 %v3781
        %v4806 = vunpack.c.l.b16 %v3782
        %v4807 = vunpack.c.l.b16 %v3783
        %v4808 = vunpack.c.l.b16 %v3784
        %v4809 = vunpack.c.l.b16 %v3785
        %v4810 = vunpack.c.l.b16 %v3786
        %v4811 = vunpack.c.l.b16 %v3787
        %v4812 = vunpack.c.l.b16 %v3788
        %v4813 = vunpack.c.l.b16 %v3789
        %v4814 = vunpack.c.l.b16 %v3790
        %v4815 = vunpack.c.l.b16 %v3791
        %v4816 = vunpack.c.l.b16 %v3792
        %v4817 = vunpack.c.l.b16 %v3793
        %v4818 = vunpack.c.l.b16 %v3794
        %v4819 = vunpack.c.l.b16 %v3795
        %v4820 = vunpack.c.l.b16 %v3796
        %v4821 = vunpack.c.l.b16 %v3797
        %v4822 = vunpack.c.l.b16 %v3798
        %v4823 = vunpack.c.l.b16 %v3799
        %v4824 = vunpack.c.l.b16 %v3800
        %v4825 = vunpack.c.l.b16 %v3801
        %v4826 = vunpack.c.l.b16 %v3802
        %v4827 = vunpack.c.l.b16 %v3803
        %v4828 = vunpack.c.l.b16 %v3804
        %v4829 = vunpack.c.l.b16 %v3805
        %v4830 = vunpack.c.l.b16 %v3806
        %v4831 = vunpack.c.l.b16 %v3807
        %v4832 = vunpack.c.l.b16 %v3808
        %v4833 = vunpack.c.l.b16 %v3809
        %v4834 = vunpack.c.l.b16 %v3810
        %v4835 = vunpack.c.l.b16 %v3811
        %v4836 = vunpack.c.l.b16 %v3812
        %v4837 = vunpack.c.l.b16 %v3813
        %v4838 = vunpack.c.l.b16 %v3814
        %v4839 = vunpack.c.l.b16 %v3815
        %v4840 = vunpack.c.l.b16 %v3816
        %v4841 = vunpack.c.l.b16 %v3817
        %v4842 = vunpack.c.l.b16 %v3818
        %v4843 = vunpack.c.l.b16 %v3819
        %v4844 = vunpack.c.l.b16 %v3820
        %v4845 = vunpack.c.l.b16 %v3821
        %v4846 = vunpack.c.l.b16 %v3822
        %v4847 = vunpack.c.l.b16 %v3823
        %v4848 = vunpack.c.l.b16 %v3824
        %v4849 = vunpack.c.l.b16 %v3825
        %v4850 = vunpack.c.l.b16 %v3826
        %v4851 = vunpack.c.l.b16 %v3827
        %v4852 = vunpack.c.l.b16 %v3828
        %v4853 = vunpack.c.l.b16 %v3829
        %v4854 = vunpack.c.l.b16 %v3830
        %v4855 = vunpack.c.l.b16 %v3831
        %v4856 = vunpack.c.l.b16 %v3832
        %v4857 = vunpack.c.l.b16 %v3833
        %v4858 = vunpack.c.l.b16 %v3834
        %v4859 = vunpack.c.l.b16 %v3835
        %v4860 = vunpack.c.l.b16 %v3836
        %v4861 = vunpack.c.l.b16 %v3837
        %v4862 = vunpack.c.l.b16 %v3838
        %v4863 = vunpack.c.l.b16 %v3839
        %v4864 = vunpack.c.l.b16 %v3840
        %v4865 = vunpack.c.l.b16 %v3841
        %v4866 = vunpack.c.l.b16 %v3842
        %v4867 = vunpack.c.l.b16 %v3843
        %v4868 = vunpack.c.l.b16 %v3844
        %v4869 = vunpack.c.l.b16 %v3845
        %v4870 = vunpack.c.l.b16 %v3846
        %v4871 = vunpack.c.l.b16 %v3847
        %v4872 = vunpack.c.l.b16 %v3848
        %v4873 = vunpack.c.l.b16 %v3849
        %v4874 = vunpack.c.l.b16 %v3850
        %v4875 = vunpack.c.l.b16 %v3851
        %v4876 = vunpack.c.l.b16 %v3852
        %v4877 = vunpack.c.l.b16 %v3853
        %v4878 = vunpack.c.l.b16 %v3854
        %v4879 = vunpack.c.l.b16 %v3855
        %v4880 = vunpack.c.l.b16 %v3856
        %v4881 = vunpack.c.l.b16 %v3857
        %v4882 = vunpack.c.l.b16 %v3858
        %v4883 = vunpack.c.l.b16 %v3859
        %v4884 = vunpack.c.l.b16 %v3860
        %v4885 = vunpack.c.l.b16 %v3861
        %v4886 = vunpack.c.l.b16 %v3862
        %v4887 = vunpack.c.l.b16 %v3863
        %v4888 = vunpack.c.l.b16 %v3864
        %v4889 = vunpack.c.l.b16 %v3865
        %v4890 = vunpack.c.l.b16 %v3866
        %v4891 = vunpack.c.l.b16 %v3867
        %v4892 = vunpack.c.l.b16 %v3868
        %v4893 = vunpack.c.l.b16 %v3869
        %v4894 = vunpack.c.l.b16 %v3870
        %v4895 = vunpack.c.l.b16 %v3871
        %v4896 = vunpack.c.l.b16 %v3872
        %v4897 = vunpack.c.l.b16 %v3873
        %v4898 = vunpack.c.l.b16 %v3874
        %v4899 = vunpack.c.l.b16 %v3875
        %v4900 = vunpack.c.l.b16 %v3876
        %v4901 = vunpack.c.l.b16 %v3877
        %v4902 = vunpack.c.l.b16 %v3878
        %v4903 = vunpack.c.l.b16 %v3879
        %v4904 = vunpack.c.l.b16 %v3880
        %v4905 = vpack.c.b16 %v4762, %v4761
        %v4906 = vpack.c.b16 %v4764, %v4763
        %v4907 = vpack.c.b16 %v4766, %v4765
        %v4908 = vpack.c.b16 %v4768, %v4767
        %v4909 = vpack.c.b16 %v4770, %v4769
        %v4910 = vpack.c.b16 %v4772, %v4771
        %v4911 = vpack.c.b16 %v4774, %v4773
        %v4912 = vpack.c.b16 %v4776, %v4775
        %v4913 = vpack.c.b16 %v4778, %v4777
        %v4914 = vpack.c.b16 %v4780, %v4779
        %v4915 = vpack.c.b16 %v4782, %v4781
        %v4916 = vpack.c.b16 %v4784, %v4783
        %v4917 = vpack.c.b16 %v4786, %v4785
        %v4918 = vpack.c.b16 %v4788, %v4787
        %v4919 = vpack.c.b16 %v4790, %v4789
        %v4920 = vpack.c.b16 %v4792, %v4791
        %v4921 = vpack.c.b16 %v4794, %v4793
        %v4922 = vpack.c.b16 %v4796, %v4795
        %v4923 = vpack.c.b16 %v4798, %v4797
        %v4924 = vpack.c.b16 %v4800, %v4799
        %v4925 = vpack.c.b16 %v4802, %v4801
        %v4926 = vpack.c.b16 %v4804, %v4803
        %v4927 = vpack.c.b16 %v4806, %v4805
        %v4928 = vpack.c.b16 %v4808, %v4807
        %v4929 = vpack.c.b16 %v4810, %v4809
        %v4930 = vpack.c.b16 %v4812, %v4811
        %v4931 = vpack.c.b16 %v4814, %v4813
        %v4932 = vpack.c.b16 %v4816, %v4815
        %v4933 = vpack.c.b16 %v4818, %v4817
        %v4934 = vpack.c.b16 %v4820, %v4819
        %v4935 = vpack.c.b16 %v4822, %v4821
        %v4936 = vpack.c.b16 %v4824, %v4823
        %v4937 = vpack.c.b16 %v4826, %v4825
        %v4938 = vpack.c.b16 %v4828, %v4827
        %v4939 = vpack.c.b16 %v4830, %v4829
        %v4940 = vpack.c.b16 %v4832, %v4831
        %v4941 = vpack.c.b16 %v4834, %v4833
        %v4942 = vpack.c.b16 %v4836, %v4835
        %v4943 = vpack.c.b16 %v4838, %v4837
        %v4944 = vpack.c.b16 %v4840, %v4839
        %v4945 = vpack.c.b16 %v4842, %v4841
        %v4946 = vpack.c.b16 %v4844, %v4843
        %v4947 = vpack.c.b16 %v4846, %v4845
        %v4948 = vpack.c.b16 %v4848, %v4847
        %v4949 = vpack.c.b16 %v4850, %v4849
        %v4950 = vpack.c.b16 %v4852, %v4851
        %v4951 = vpack.c.b16 %v4854, %v4853
        %v4952 = vpack.c.b16 %v4856, %v4855
        %v4953 = vpack.c.b16 %v4858, %v4857
        %v4954 = vpack.c.b16 %v4860, %v4859
        %v4955 = vpack.c.b16 %v4862, %v4861
        %v4956 = vpack.c.b16 %v4864, %v4863
        %v4957 = vpack.c.b16 %v4866, %v4865
        %v4958 = vpack.c.b16 %v4868, %v4867
        %v4959 = vpack.c.b16 %v4870, %v4869
        %v4960 = vpack.c.b16 %v4872, %v4871
        %v4961 = vpack.c.b16 %v4874, %v4873
        %v4962 = vpack.c.b16 %v4876, %v4875
        %v4963 = vpack.c.b16 %v4878, %v4877
        %v4964 = vpack.c.b16 %v4880, %v4879
        %v4965 = vpack.c.b16 %v4882, %v4881
        %v4966 = vpack.c.b16 %v4884, %v4883
        %v4967 = vpack.c.b16 %v4886, %v4885
        %v4968 = vpack.c.b16 %v4888, %v4887
        %v4969 = vpack.c.b16 %v4890, %v4889
        %v4970 = vpack.c.b16 %v4892, %v4891
        %v4971 = vpack.c.b16 %v4894, %v4893
        %v4972 = vpack.c.b16 %v4896, %v4895
        %v4973 = vpack.c.b16 %v4898, %v4897
        %v4974 = vpack.c.b16 %v4900, %v4899
        %v4975 = vpack.c.b16 %v4902, %v4901
        %v4976 = vpack.c.b16 %v4904, %v4903
        %5049 = vmatpush.bf16.msra.mxu0 %v4912
        %5050 = vmatpush.bf16.msra.mxu0 %v4911
        %5051 = vmatpush.bf16.msra.mxu0 %v4910
        %5052 = vmatpush.bf16.msra.mxu0 %v4909
        %5053 = vmatpush.bf16.msra.mxu0 %v4908
        %5054 = vmatpush.bf16.msra.mxu0 %v4907
        %5055 = vmatpush.bf16.msra.mxu0 %v4906
        %5056 = vmatpush.bf16.msra.mxu0 %v4905
        %5057 = vmatmul.bf16.gmra.mxu0 %v4329
        %v5058 = vpop.f32.mrf.mxu0
        %v5059 = vadd.f32 0.0, %v5058
        %v5060 = vpop.f32.mrf.mxu0
        %v5061 = vadd.f32 0.0, %v5060
        %5062 = vmatmul.bf16.gmra.mxu0 %v4338
        %v5063 = vpop.f32.mrf.mxu0
        %v5064 = vadd.f32 0.0, %v5063
        %v5065 = vpop.f32.mrf.mxu0
        %v5066 = vadd.f32 0.0, %v5065
        %5067 = vmatmul.bf16.gmra.mxu0 %v4347
        %v5068 = vpop.f32.mrf.mxu0
        %v5069 = vadd.f32 0.0, %v5068
        %v5070 = vpop.f32.mrf.mxu0
        %v5071 = vadd.f32 0.0, %v5070
        %5072 = vmatmul.bf16.gmra.mxu0 %v4356
        %v5073 = vpop.f32.mrf.mxu0
        %v5074 = vadd.f32 0.0, %v5073
        %v5075 = vpop.f32.mrf.mxu0
        %v5076 = vadd.f32 0.0, %v5075
        %5077 = vmatmul.bf16.gmra.mxu0 %v4365
        %v5078 = vpop.f32.mrf.mxu0
        %v5079 = vadd.f32 0.0, %v5078
        %v5080 = vpop.f32.mrf.mxu0
        %v5081 = vadd.f32 0.0, %v5080
        %5082 = vmatmul.bf16.gmra.mxu0 %v4374
        %v5083 = vpop.f32.mrf.mxu0
        %v5084 = vadd.f32 0.0, %v5083
        %v5085 = vpop.f32.mrf.mxu0
        %v5086 = vadd.f32 0.0, %v5085
        %5087 = vmatmul.bf16.gmra.mxu0 %v4383
        %v5088 = vpop.f32.mrf.mxu0
        %v5089 = vadd.f32 0.0, %v5088
        %v5090 = vpop.f32.mrf.mxu0
        %v5091 = vadd.f32 0.0, %v5090
        %5092 = vmatmul.bf16.gmra.mxu0 %v4392
        %v5093 = vpop.f32.mrf.mxu0
        %v5094 = vadd.f32 0.0, %v5093
        %v5095 = vpop.f32.mrf.mxu0
        %v5096 = vadd.f32 0.0, %v5095
        %5097 = vmatmul.bf16.gmra.mxu0 %v4401
        %v5098 = vpop.f32.mrf.mxu0
        %v5099 = vadd.f32 0.0, %v5098
        %v5100 = vpop.f32.mrf.mxu0
        %v5101 = vadd.f32 0.0, %v5100
        %5102 = vmatmul.bf16.gmra.mxu0 %v4410
        %v5103 = vpop.f32.mrf.mxu0
        %v5104 = vadd.f32 0.0, %v5103
        %v5105 = vpop.f32.mrf.mxu0
        %v5106 = vadd.f32 0.0, %v5105
        %5107 = vmatmul.bf16.gmra.mxu0 %v4419
        %v5108 = vpop.f32.mrf.mxu0
        %v5109 = vadd.f32 0.0, %v5108
        %v5110 = vpop.f32.mrf.mxu0
        %v5111 = vadd.f32 0.0, %v5110
        %5112 = vmatmul.bf16.gmra.mxu0 %v4428
        %v5113 = vpop.f32.mrf.mxu0
        %v5114 = vadd.f32 0.0, %v5113
        %v5115 = vpop.f32.mrf.mxu0
        %v5116 = vadd.f32 0.0, %v5115
        %5117 = vmatmul.bf16.gmra.mxu0 %v4437
        %v5118 = vpop.f32.mrf.mxu0
        %v5119 = vadd.f32 0.0, %v5118
        %v5120 = vpop.f32.mrf.mxu0
        %v5121 = vadd.f32 0.0, %v5120
        %5122 = vmatmul.bf16.gmra.mxu0 %v4446
        %v5123 = vpop.f32.mrf.mxu0
        %v5124 = vadd.f32 0.0, %v5123
        %v5125 = vpop.f32.mrf.mxu0
        %v5126 = vadd.f32 0.0, %v5125
        %5127 = vmatmul.bf16.gmra.mxu0 %v4455
        %v5128 = vpop.f32.mrf.mxu0
        %v5129 = vadd.f32 0.0, %v5128
        %v5130 = vpop.f32.mrf.mxu0
        %v5131 = vadd.f32 0.0, %v5130
        %5132 = vmatmul.bf16.gmra.mxu0 %v4464
        %v5133 = vpop.f32.mrf.mxu0
        %v5134 = vadd.f32 0.0, %v5133
        %v5135 = vpop.f32.mrf.mxu0
        %v5136 = vadd.f32 0.0, %v5135
        %5137 = vdwg.mxu0
        %5138 = vmatpush.bf16.msra.mxu0 %v4920
        %5139 = vmatpush.bf16.msra.mxu0 %v4919
        %5140 = vmatpush.bf16.msra.mxu0 %v4918
        %5141 = vmatpush.bf16.msra.mxu0 %v4917
        %5142 = vmatpush.bf16.msra.mxu0 %v4916
        %5143 = vmatpush.bf16.msra.mxu0 %v4915
        %5144 = vmatpush.bf16.msra.mxu0 %v4914
        %5145 = vmatpush.bf16.msra.mxu0 %v4913
        %5146 = vmatmul.bf16.gmra.mxu0 %v4330
        %v5147 = vpop.f32.mrf.mxu0
        %v5148 = vadd.f32 %v5059, %v5147
        %v5149 = vpop.f32.mrf.mxu0
        %v5150 = vadd.f32 %v5061, %v5149
        %5151 = vmatmul.bf16.gmra.mxu0 %v4339
        %v5152 = vpop.f32.mrf.mxu0
        %v5153 = vadd.f32 %v5064, %v5152
        %v5154 = vpop.f32.mrf.mxu0
        %v5155 = vadd.f32 %v5066, %v5154
        %5156 = vmatmul.bf16.gmra.mxu0 %v4348
        %v5157 = vpop.f32.mrf.mxu0
        %v5158 = vadd.f32 %v5069, %v5157
        %v5159 = vpop.f32.mrf.mxu0
        %v5160 = vadd.f32 %v5071, %v5159
        %5161 = vmatmul.bf16.gmra.mxu0 %v4357
        %v5162 = vpop.f32.mrf.mxu0
        %v5163 = vadd.f32 %v5074, %v5162
        %v5164 = vpop.f32.mrf.mxu0
        %v5165 = vadd.f32 %v5076, %v5164
        %5166 = vmatmul.bf16.gmra.mxu0 %v4366
        %v5167 = vpop.f32.mrf.mxu0
        %v5168 = vadd.f32 %v5079, %v5167
        %v5169 = vpop.f32.mrf.mxu0
        %v5170 = vadd.f32 %v5081, %v5169
        %5171 = vmatmul.bf16.gmra.mxu0 %v4375
        %v5172 = vpop.f32.mrf.mxu0
        %v5173 = vadd.f32 %v5084, %v5172
        %v5174 = vpop.f32.mrf.mxu0
        %v5175 = vadd.f32 %v5086, %v5174
        %5176 = vmatmul.bf16.gmra.mxu0 %v4384
        %v5177 = vpop.f32.mrf.mxu0
        %v5178 = vadd.f32 %v5089, %v5177
        %v5179 = vpop.f32.mrf.mxu0
        %v5180 = vadd.f32 %v5091, %v5179
        %5181 = vmatmul.bf16.gmra.mxu0 %v4393
        %v5182 = vpop.f32.mrf.mxu0
        %v5183 = vadd.f32 %v5094, %v5182
        %v5184 = vpop.f32.mrf.mxu0
        %v5185 = vadd.f32 %v5096, %v5184
        %5186 = vmatmul.bf16.gmra.mxu0 %v4402
        %v5187 = vpop.f32.mrf.mxu0
        %v5188 = vadd.f32 %v5099, %v5187
        %v5189 = vpop.f32.mrf.mxu0
        %v5190 = vadd.f32 %v5101, %v5189
        %5191 = vmatmul.bf16.gmra.mxu0 %v4411
        %v5192 = vpop.f32.mrf.mxu0
        %v5193 = vadd.f32 %v5104, %v5192
        %v5194 = vpop.f32.mrf.mxu0
        %v5195 = vadd.f32 %v5106, %v5194
        %5196 = vmatmul.bf16.gmra.mxu0 %v4420
        %v5197 = vpop.f32.mrf.mxu0
        %v5198 = vadd.f32 %v5109, %v5197
        %v5199 = vpop.f32.mrf.mxu0
        %v5200 = vadd.f32 %v5111, %v5199
        %5201 = vmatmul.bf16.gmra.mxu0 %v4429
        %v5202 = vpop.f32.mrf.mxu0
        %v5203 = vadd.f32 %v5114, %v5202
        %v5204 = vpop.f32.mrf.mxu0
        %v5205 = vadd.f32 %v5116, %v5204
        %5206 = vmatmul.bf16.gmra.mxu0 %v4438
        %v5207 = vpop.f32.mrf.mxu0
        %v5208 = vadd.f32 %v5119, %v5207
        %v5209 = vpop.f32.mrf.mxu0
        %v5210 = vadd.f32 %v5121, %v5209
        %5211 = vmatmul.bf16.gmra.mxu0 %v4447
        %v5212 = vpop.f32.mrf.mxu0
        %v5213 = vadd.f32 %v5124, %v5212
        %v5214 = vpop.f32.mrf.mxu0
        %v5215 = vadd.f32 %v5126, %v5214
        %5216 = vmatmul.bf16.gmra.mxu0 %v4456
        %v5217 = vpop.f32.mrf.mxu0
        %v5218 = vadd.f32 %v5129, %v5217
        %v5219 = vpop.f32.mrf.mxu0
        %v5220 = vadd.f32 %v5131, %v5219
        %5221 = vmatmul.bf16.gmra.mxu0 %v4465
        %v5222 = vpop.f32.mrf.mxu0
        %v5223 = vadd.f32 %v5134, %v5222
        %v5224 = vpop.f32.mrf.mxu0
        %v5225 = vadd.f32 %v5136, %v5224
        %5226 = vdwg.mxu0
        %5227 = vmatpush.bf16.msra.mxu0 %v4928
        %5228 = vmatpush.bf16.msra.mxu0 %v4927
        %5229 = vmatpush.bf16.msra.mxu0 %v4926
        %5230 = vmatpush.bf16.msra.mxu0 %v4925
        %5231 = vmatpush.bf16.msra.mxu0 %v4924
        %5232 = vmatpush.bf16.msra.mxu0 %v4923
        %5233 = vmatpush.bf16.msra.mxu0 %v4922
        %5234 = vmatpush.bf16.msra.mxu0 %v4921
        %5235 = vmatmul.bf16.gmra.mxu0 %v4331
        %v5236 = vpop.f32.mrf.mxu0
        %v5237 = vadd.f32 %v5148, %v5236
        %v5238 = vpop.f32.mrf.mxu0
        %v5239 = vadd.f32 %v5150, %v5238
        %5240 = vmatmul.bf16.gmra.mxu0 %v4340
        %v5241 = vpop.f32.mrf.mxu0
        %v5242 = vadd.f32 %v5153, %v5241
        %v5243 = vpop.f32.mrf.mxu0
        %v5244 = vadd.f32 %v5155, %v5243
        %5245 = vmatmul.bf16.gmra.mxu0 %v4349
        %v5246 = vpop.f32.mrf.mxu0
        %v5247 = vadd.f32 %v5158, %v5246
        %v5248 = vpop.f32.mrf.mxu0
        %v5249 = vadd.f32 %v5160, %v5248
        %5250 = vmatmul.bf16.gmra.mxu0 %v4358
        %v5251 = vpop.f32.mrf.mxu0
        %v5252 = vadd.f32 %v5163, %v5251
        %v5253 = vpop.f32.mrf.mxu0
        %v5254 = vadd.f32 %v5165, %v5253
        %5255 = vmatmul.bf16.gmra.mxu0 %v4367
        %v5256 = vpop.f32.mrf.mxu0
        %v5257 = vadd.f32 %v5168, %v5256
        %v5258 = vpop.f32.mrf.mxu0
        %v5259 = vadd.f32 %v5170, %v5258
        %5260 = vmatmul.bf16.gmra.mxu0 %v4376
        %v5261 = vpop.f32.mrf.mxu0
        %v5262 = vadd.f32 %v5173, %v5261
        %v5263 = vpop.f32.mrf.mxu0
        %v5264 = vadd.f32 %v5175, %v5263
        %5265 = vmatmul.bf16.gmra.mxu0 %v4385
        %v5266 = vpop.f32.mrf.mxu0
        %v5267 = vadd.f32 %v5178, %v5266
        %v5268 = vpop.f32.mrf.mxu0
        %v5269 = vadd.f32 %v5180, %v5268
        %5270 = vmatmul.bf16.gmra.mxu0 %v4394
        %v5271 = vpop.f32.mrf.mxu0
        %v5272 = vadd.f32 %v5183, %v5271
        %v5273 = vpop.f32.mrf.mxu0
        %v5274 = vadd.f32 %v5185, %v5273
        %5275 = vmatmul.bf16.gmra.mxu0 %v4403
        %v5276 = vpop.f32.mrf.mxu0
        %v5277 = vadd.f32 %v5188, %v5276
        %v5278 = vpop.f32.mrf.mxu0
        %v5279 = vadd.f32 %v5190, %v5278
        %5280 = vmatmul.bf16.gmra.mxu0 %v4412
        %v5281 = vpop.f32.mrf.mxu0
        %v5282 = vadd.f32 %v5193, %v5281
        %v5283 = vpop.f32.mrf.mxu0
        %v5284 = vadd.f32 %v5195, %v5283
        %5285 = vmatmul.bf16.gmra.mxu0 %v4421
        %v5286 = vpop.f32.mrf.mxu0
        %v5287 = vadd.f32 %v5198, %v5286
        %v5288 = vpop.f32.mrf.mxu0
        %v5289 = vadd.f32 %v5200, %v5288
        %5290 = vmatmul.bf16.gmra.mxu0 %v4430
        %v5291 = vpop.f32.mrf.mxu0
        %v5292 = vadd.f32 %v5203, %v5291
        %v5293 = vpop.f32.mrf.mxu0
        %v5294 = vadd.f32 %v5205, %v5293
        %5295 = vmatmul.bf16.gmra.mxu0 %v4439
        %v5296 = vpop.f32.mrf.mxu0
        %v5297 = vadd.f32 %v5208, %v5296
        %v5298 = vpop.f32.mrf.mxu0
        %v5299 = vadd.f32 %v5210, %v5298
        %5300 = vmatmul.bf16.gmra.mxu0 %v4448
        %v5301 = vpop.f32.mrf.mxu0
        %v5302 = vadd.f32 %v5213, %v5301
        %v5303 = vpop.f32.mrf.mxu0
        %v5304 = vadd.f32 %v5215, %v5303
        %5305 = vmatmul.bf16.gmra.mxu0 %v4457
        %v5306 = vpop.f32.mrf.mxu0
        %v5307 = vadd.f32 %v5218, %v5306
        %v5308 = vpop.f32.mrf.mxu0
        %v5309 = vadd.f32 %v5220, %v5308
        %5310 = vmatmul.bf16.gmra.mxu0 %v4466
        %v5311 = vpop.f32.mrf.mxu0
        %v5312 = vadd.f32 %v5223, %v5311
        %v5313 = vpop.f32.mrf.mxu0
        %v5314 = vadd.f32 %v5225, %v5313
        %5315 = vdwg.mxu0
        %5316 = vmatpush.bf16.msra.mxu0 %v4936
        %5317 = vmatpush.bf16.msra.mxu0 %v4935
        %5318 = vmatpush.bf16.msra.mxu0 %v4934
        %5319 = vmatpush.bf16.msra.mxu0 %v4933
        %5320 = vmatpush.bf16.msra.mxu0 %v4932
        %5321 = vmatpush.bf16.msra.mxu0 %v4931
        %5322 = vmatpush.bf16.msra.mxu0 %v4930
        %5323 = vmatpush.bf16.msra.mxu0 %v4929
        %5324 = vmatmul.bf16.gmra.mxu0 %v4332
        %v5325 = vpop.f32.mrf.mxu0
        %v5326 = vadd.f32 %v5237, %v5325
        %v5327 = vpop.f32.mrf.mxu0
        %v5328 = vadd.f32 %v5239, %v5327
        %5329 = vmatmul.bf16.gmra.mxu0 %v4341
        %v5330 = vpop.f32.mrf.mxu0
        %v5331 = vadd.f32 %v5242, %v5330
        %v5332 = vpop.f32.mrf.mxu0
        %v5333 = vadd.f32 %v5244, %v5332
        %5334 = vmatmul.bf16.gmra.mxu0 %v4350
        %v5335 = vpop.f32.mrf.mxu0
        %v5336 = vadd.f32 %v5247, %v5335
        %v5337 = vpop.f32.mrf.mxu0
        %v5338 = vadd.f32 %v5249, %v5337
        %5339 = vmatmul.bf16.gmra.mxu0 %v4359
        %v5340 = vpop.f32.mrf.mxu0
        %v5341 = vadd.f32 %v5252, %v5340
        %v5342 = vpop.f32.mrf.mxu0
        %v5343 = vadd.f32 %v5254, %v5342
        %5344 = vmatmul.bf16.gmra.mxu0 %v4368
        %v5345 = vpop.f32.mrf.mxu0
        %v5346 = vadd.f32 %v5257, %v5345
        %v5347 = vpop.f32.mrf.mxu0
        %v5348 = vadd.f32 %v5259, %v5347
        %5349 = vmatmul.bf16.gmra.mxu0 %v4377
        %v5350 = vpop.f32.mrf.mxu0
        %v5351 = vadd.f32 %v5262, %v5350
        %v5352 = vpop.f32.mrf.mxu0
        %v5353 = vadd.f32 %v5264, %v5352
        %5354 = vmatmul.bf16.gmra.mxu0 %v4386
        %v5355 = vpop.f32.mrf.mxu0
        %v5356 = vadd.f32 %v5267, %v5355
        %v5357 = vpop.f32.mrf.mxu0
        %v5358 = vadd.f32 %v5269, %v5357
        %5359 = vmatmul.bf16.gmra.mxu0 %v4395
        %v5360 = vpop.f32.mrf.mxu0
        %v5361 = vadd.f32 %v5272, %v5360
        %v5362 = vpop.f32.mrf.mxu0
        %v5363 = vadd.f32 %v5274, %v5362
        %5364 = vmatmul.bf16.gmra.mxu0 %v4404
        %v5365 = vpop.f32.mrf.mxu0
        %v5366 = vadd.f32 %v5277, %v5365
        %v5367 = vpop.f32.mrf.mxu0
        %v5368 = vadd.f32 %v5279, %v5367
        %5369 = vmatmul.bf16.gmra.mxu0 %v4413
        %v5370 = vpop.f32.mrf.mxu0
        %v5371 = vadd.f32 %v5282, %v5370
        %v5372 = vpop.f32.mrf.mxu0
        %v5373 = vadd.f32 %v5284, %v5372
        %5374 = vmatmul.bf16.gmra.mxu0 %v4422
        %v5375 = vpop.f32.mrf.mxu0
        %v5376 = vadd.f32 %v5287, %v5375
        %v5377 = vpop.f32.mrf.mxu0
        %v5378 = vadd.f32 %v5289, %v5377
        %5379 = vmatmul.bf16.gmra.mxu0 %v4431
        %v5380 = vpop.f32.mrf.mxu0
        %v5381 = vadd.f32 %v5292, %v5380
        %v5382 = vpop.f32.mrf.mxu0
        %v5383 = vadd.f32 %v5294, %v5382
        %5384 = vmatmul.bf16.gmra.mxu0 %v4440
        %v5385 = vpop.f32.mrf.mxu0
        %v5386 = vadd.f32 %v5297, %v5385
        %v5387 = vpop.f32.mrf.mxu0
        %v5388 = vadd.f32 %v5299, %v5387
        %5389 = vmatmul.bf16.gmra.mxu0 %v4449
        %v5390 = vpop.f32.mrf.mxu0
        %v5391 = vadd.f32 %v5302, %v5390
        %v5392 = vpop.f32.mrf.mxu0
        %v5393 = vadd.f32 %v5304, %v5392
        %5394 = vmatmul.bf16.gmra.mxu0 %v4458
        %v5395 = vpop.f32.mrf.mxu0
        %v5396 = vadd.f32 %v5307, %v5395
        %v5397 = vpop.f32.mrf.mxu0
        %v5398 = vadd.f32 %v5309, %v5397
        %5399 = vmatmul.bf16.gmra.mxu0 %v4467
        %v5400 = vpop.f32.mrf.mxu0
        %v5401 = vadd.f32 %v5312, %v5400
        %v5402 = vpop.f32.mrf.mxu0
        %v5403 = vadd.f32 %v5314, %v5402
        %5404 = vdwg.mxu0
        %5405 = vmatpush.bf16.msra.mxu0 %v4944
        %5406 = vmatpush.bf16.msra.mxu0 %v4943
        %5407 = vmatpush.bf16.msra.mxu0 %v4942
        %5408 = vmatpush.bf16.msra.mxu0 %v4941
        %5409 = vmatpush.bf16.msra.mxu0 %v4940
        %5410 = vmatpush.bf16.msra.mxu0 %v4939
        %5411 = vmatpush.bf16.msra.mxu0 %v4938
        %5412 = vmatpush.bf16.msra.mxu0 %v4937
        %5413 = vmatmul.bf16.gmra.mxu0 %v4333
        %v5414 = vpop.f32.mrf.mxu0
        %v5415 = vadd.f32 %v5326, %v5414
        %v5416 = vpop.f32.mrf.mxu0
        %v5417 = vadd.f32 %v5328, %v5416
        %5418 = vmatmul.bf16.gmra.mxu0 %v4342
        %v5419 = vpop.f32.mrf.mxu0
        %v5420 = vadd.f32 %v5331, %v5419
        %v5421 = vpop.f32.mrf.mxu0
        %v5422 = vadd.f32 %v5333, %v5421
        %5423 = vmatmul.bf16.gmra.mxu0 %v4351
        %v5424 = vpop.f32.mrf.mxu0
        %v5425 = vadd.f32 %v5336, %v5424
        %v5426 = vpop.f32.mrf.mxu0
        %v5427 = vadd.f32 %v5338, %v5426
        %5428 = vmatmul.bf16.gmra.mxu0 %v4360
        %v5429 = vpop.f32.mrf.mxu0
        %v5430 = vadd.f32 %v5341, %v5429
        %v5431 = vpop.f32.mrf.mxu0
        %v5432 = vadd.f32 %v5343, %v5431
        %5433 = vmatmul.bf16.gmra.mxu0 %v4369
        %v5434 = vpop.f32.mrf.mxu0
        %v5435 = vadd.f32 %v5346, %v5434
        %v5436 = vpop.f32.mrf.mxu0
        %v5437 = vadd.f32 %v5348, %v5436
        %5438 = vmatmul.bf16.gmra.mxu0 %v4378
        %v5439 = vpop.f32.mrf.mxu0
        %v5440 = vadd.f32 %v5351, %v5439
        %v5441 = vpop.f32.mrf.mxu0
        %v5442 = vadd.f32 %v5353, %v5441
        %5443 = vmatmul.bf16.gmra.mxu0 %v4387
        %v5444 = vpop.f32.mrf.mxu0
        %v5445 = vadd.f32 %v5356, %v5444
        %v5446 = vpop.f32.mrf.mxu0
        %v5447 = vadd.f32 %v5358, %v5446
        %5448 = vmatmul.bf16.gmra.mxu0 %v4396
        %v5449 = vpop.f32.mrf.mxu0
        %v5450 = vadd.f32 %v5361, %v5449
        %v5451 = vpop.f32.mrf.mxu0
        %v5452 = vadd.f32 %v5363, %v5451
        %5453 = vmatmul.bf16.gmra.mxu0 %v4405
        %v5454 = vpop.f32.mrf.mxu0
        %v5455 = vadd.f32 %v5366, %v5454
        %v5456 = vpop.f32.mrf.mxu0
        %v5457 = vadd.f32 %v5368, %v5456
        %5458 = vmatmul.bf16.gmra.mxu0 %v4414
        %v5459 = vpop.f32.mrf.mxu0
        %v5460 = vadd.f32 %v5371, %v5459
        %v5461 = vpop.f32.mrf.mxu0
        %v5462 = vadd.f32 %v5373, %v5461
        %5463 = vmatmul.bf16.gmra.mxu0 %v4423
        %v5464 = vpop.f32.mrf.mxu0
        %v5465 = vadd.f32 %v5376, %v5464
        %v5466 = vpop.f32.mrf.mxu0
        %v5467 = vadd.f32 %v5378, %v5466
        %5468 = vmatmul.bf16.gmra.mxu0 %v4432
        %v5469 = vpop.f32.mrf.mxu0
        %v5470 = vadd.f32 %v5381, %v5469
        %v5471 = vpop.f32.mrf.mxu0
        %v5472 = vadd.f32 %v5383, %v5471
        %5473 = vmatmul.bf16.gmra.mxu0 %v4441
        %v5474 = vpop.f32.mrf.mxu0
        %v5475 = vadd.f32 %v5386, %v5474
        %v5476 = vpop.f32.mrf.mxu0
        %v5477 = vadd.f32 %v5388, %v5476
        %5478 = vmatmul.bf16.gmra.mxu0 %v4450
        %v5479 = vpop.f32.mrf.mxu0
        %v5480 = vadd.f32 %v5391, %v5479
        %v5481 = vpop.f32.mrf.mxu0
        %v5482 = vadd.f32 %v5393, %v5481
        %5483 = vmatmul.bf16.gmra.mxu0 %v4459
        %v5484 = vpop.f32.mrf.mxu0
        %v5485 = vadd.f32 %v5396, %v5484
        %v5486 = vpop.f32.mrf.mxu0
        %v5487 = vadd.f32 %v5398, %v5486
        %5488 = vmatmul.bf16.gmra.mxu0 %v4468
        %v5489 = vpop.f32.mrf.mxu0
        %v5490 = vadd.f32 %v5401, %v5489
        %v5491 = vpop.f32.mrf.mxu0
        %v5492 = vadd.f32 %v5403, %v5491
        %5493 = vdwg.mxu0
        %5494 = vmatpush.bf16.msra.mxu0 %v4952
        %5495 = vmatpush.bf16.msra.mxu0 %v4951
        %5496 = vmatpush.bf16.msra.mxu0 %v4950
        %5497 = vmatpush.bf16.msra.mxu0 %v4949
        %5498 = vmatpush.bf16.msra.mxu0 %v4948
        %5499 = vmatpush.bf16.msra.mxu0 %v4947
        %5500 = vmatpush.bf16.msra.mxu0 %v4946
        %5501 = vmatpush.bf16.msra.mxu0 %v4945
        %5502 = vmatmul.bf16.gmra.mxu0 %v4334
        %v5503 = vpop.f32.mrf.mxu0
        %v5504 = vadd.f32 %v5415, %v5503
        %v5505 = vpop.f32.mrf.mxu0
        %v5506 = vadd.f32 %v5417, %v5505
        %5507 = vmatmul.bf16.gmra.mxu0 %v4343
        %v5508 = vpop.f32.mrf.mxu0
        %v5509 = vadd.f32 %v5420, %v5508
        %v5510 = vpop.f32.mrf.mxu0
        %v5511 = vadd.f32 %v5422, %v5510
        %5512 = vmatmul.bf16.gmra.mxu0 %v4352
        %v5513 = vpop.f32.mrf.mxu0
        %v5514 = vadd.f32 %v5425, %v5513
        %v5515 = vpop.f32.mrf.mxu0
        %v5516 = vadd.f32 %v5427, %v5515
        %5517 = vmatmul.bf16.gmra.mxu0 %v4361
        %v5518 = vpop.f32.mrf.mxu0
        %v5519 = vadd.f32 %v5430, %v5518
        %v5520 = vpop.f32.mrf.mxu0
        %v5521 = vadd.f32 %v5432, %v5520
        %5522 = vmatmul.bf16.gmra.mxu0 %v4370
        %v5523 = vpop.f32.mrf.mxu0
        %v5524 = vadd.f32 %v5435, %v5523
        %v5525 = vpop.f32.mrf.mxu0
        %v5526 = vadd.f32 %v5437, %v5525
        %5527 = vmatmul.bf16.gmra.mxu0 %v4379
        %v5528 = vpop.f32.mrf.mxu0
        %v5529 = vadd.f32 %v5440, %v5528
        %v5530 = vpop.f32.mrf.mxu0
        %v5531 = vadd.f32 %v5442, %v5530
        %5532 = vmatmul.bf16.gmra.mxu0 %v4388
        %v5533 = vpop.f32.mrf.mxu0
        %v5534 = vadd.f32 %v5445, %v5533
        %v5535 = vpop.f32.mrf.mxu0
        %v5536 = vadd.f32 %v5447, %v5535
        %5537 = vmatmul.bf16.gmra.mxu0 %v4397
        %v5538 = vpop.f32.mrf.mxu0
        %v5539 = vadd.f32 %v5450, %v5538
        %v5540 = vpop.f32.mrf.mxu0
        %v5541 = vadd.f32 %v5452, %v5540
        %5542 = vmatmul.bf16.gmra.mxu0 %v4406
        %v5543 = vpop.f32.mrf.mxu0
        %v5544 = vadd.f32 %v5455, %v5543
        %v5545 = vpop.f32.mrf.mxu0
        %v5546 = vadd.f32 %v5457, %v5545
        %5547 = vmatmul.bf16.gmra.mxu0 %v4415
        %v5548 = vpop.f32.mrf.mxu0
        %v5549 = vadd.f32 %v5460, %v5548
        %v5550 = vpop.f32.mrf.mxu0
        %v5551 = vadd.f32 %v5462, %v5550
        %5552 = vmatmul.bf16.gmra.mxu0 %v4424
        %v5553 = vpop.f32.mrf.mxu0
        %v5554 = vadd.f32 %v5465, %v5553
        %v5555 = vpop.f32.mrf.mxu0
        %v5556 = vadd.f32 %v5467, %v5555
        %5557 = vmatmul.bf16.gmra.mxu0 %v4433
        %v5558 = vpop.f32.mrf.mxu0
        %v5559 = vadd.f32 %v5470, %v5558
        %v5560 = vpop.f32.mrf.mxu0
        %v5561 = vadd.f32 %v5472, %v5560
        %5562 = vmatmul.bf16.gmra.mxu0 %v4442
        %v5563 = vpop.f32.mrf.mxu0
        %v5564 = vadd.f32 %v5475, %v5563
        %v5565 = vpop.f32.mrf.mxu0
        %v5566 = vadd.f32 %v5477, %v5565
        %5567 = vmatmul.bf16.gmra.mxu0 %v4451
        %v5568 = vpop.f32.mrf.mxu0
        %v5569 = vadd.f32 %v5480, %v5568
        %v5570 = vpop.f32.mrf.mxu0
        %v5571 = vadd.f32 %v5482, %v5570
        %5572 = vmatmul.bf16.gmra.mxu0 %v4460
        %v5573 = vpop.f32.mrf.mxu0
        %v5574 = vadd.f32 %v5485, %v5573
        %v5575 = vpop.f32.mrf.mxu0
        %v5576 = vadd.f32 %v5487, %v5575
        %5577 = vmatmul.bf16.gmra.mxu0 %v4469
        %v5578 = vpop.f32.mrf.mxu0
        %v5579 = vadd.f32 %v5490, %v5578
        %v5580 = vpop.f32.mrf.mxu0
        %v5581 = vadd.f32 %v5492, %v5580
        %5582 = vdwg.mxu0
        %5583 = vmatpush.bf16.msra.mxu0 %v4960
        %5584 = vmatpush.bf16.msra.mxu0 %v4959
        %5585 = vmatpush.bf16.msra.mxu0 %v4958
        %5586 = vmatpush.bf16.msra.mxu0 %v4957
        %5587 = vmatpush.bf16.msra.mxu0 %v4956
        %5588 = vmatpush.bf16.msra.mxu0 %v4955
        %5589 = vmatpush.bf16.msra.mxu0 %v4954
        %5590 = vmatpush.bf16.msra.mxu0 %v4953
        %5591 = vmatmul.bf16.gmra.mxu0 %v4335
        %v5592 = vpop.f32.mrf.mxu0
        %v5593 = vadd.f32 %v5504, %v5592
        %v5594 = vpop.f32.mrf.mxu0
        %v5595 = vadd.f32 %v5506, %v5594
        %5596 = vmatmul.bf16.gmra.mxu0 %v4344
        %v5597 = vpop.f32.mrf.mxu0
        %v5598 = vadd.f32 %v5509, %v5597
        %v5599 = vpop.f32.mrf.mxu0
        %v5600 = vadd.f32 %v5511, %v5599
        %5601 = vmatmul.bf16.gmra.mxu0 %v4353
        %v5602 = vpop.f32.mrf.mxu0
        %v5603 = vadd.f32 %v5514, %v5602
        %v5604 = vpop.f32.mrf.mxu0
        %v5605 = vadd.f32 %v5516, %v5604
        %5606 = vmatmul.bf16.gmra.mxu0 %v4362
        %v5607 = vpop.f32.mrf.mxu0
        %v5608 = vadd.f32 %v5519, %v5607
        %v5609 = vpop.f32.mrf.mxu0
        %v5610 = vadd.f32 %v5521, %v5609
        %5611 = vmatmul.bf16.gmra.mxu0 %v4371
        %v5612 = vpop.f32.mrf.mxu0
        %v5613 = vadd.f32 %v5524, %v5612
        %v5614 = vpop.f32.mrf.mxu0
        %v5615 = vadd.f32 %v5526, %v5614
        %5616 = vmatmul.bf16.gmra.mxu0 %v4380
        %v5617 = vpop.f32.mrf.mxu0
        %v5618 = vadd.f32 %v5529, %v5617
        %v5619 = vpop.f32.mrf.mxu0
        %v5620 = vadd.f32 %v5531, %v5619
        %5621 = vmatmul.bf16.gmra.mxu0 %v4389
        %v5622 = vpop.f32.mrf.mxu0
        %v5623 = vadd.f32 %v5534, %v5622
        %v5624 = vpop.f32.mrf.mxu0
        %v5625 = vadd.f32 %v5536, %v5624
        %5626 = vmatmul.bf16.gmra.mxu0 %v4398
        %v5627 = vpop.f32.mrf.mxu0
        %v5628 = vadd.f32 %v5539, %v5627
        %v5629 = vpop.f32.mrf.mxu0
        %v5630 = vadd.f32 %v5541, %v5629
        %5631 = vmatmul.bf16.gmra.mxu0 %v4407
        %v5632 = vpop.f32.mrf.mxu0
        %v5633 = vadd.f32 %v5544, %v5632
        %v5634 = vpop.f32.mrf.mxu0
        %v5635 = vadd.f32 %v5546, %v5634
        %5636 = vmatmul.bf16.gmra.mxu0 %v4416
        %v5637 = vpop.f32.mrf.mxu0
        %v5638 = vadd.f32 %v5549, %v5637
        %v5639 = vpop.f32.mrf.mxu0
        %v5640 = vadd.f32 %v5551, %v5639
        %5641 = vmatmul.bf16.gmra.mxu0 %v4425
        %v5642 = vpop.f32.mrf.mxu0
        %v5643 = vadd.f32 %v5554, %v5642
        %v5644 = vpop.f32.mrf.mxu0
        %v5645 = vadd.f32 %v5556, %v5644
        %5646 = vmatmul.bf16.gmra.mxu0 %v4434
        %v5647 = vpop.f32.mrf.mxu0
        %v5648 = vadd.f32 %v5559, %v5647
        %v5649 = vpop.f32.mrf.mxu0
        %v5650 = vadd.f32 %v5561, %v5649
        %5651 = vmatmul.bf16.gmra.mxu0 %v4443
        %v5652 = vpop.f32.mrf.mxu0
        %v5653 = vadd.f32 %v5564, %v5652
        %v5654 = vpop.f32.mrf.mxu0
        %v5655 = vadd.f32 %v5566, %v5654
        %5656 = vmatmul.bf16.gmra.mxu0 %v4452
        %v5657 = vpop.f32.mrf.mxu0
        %v5658 = vadd.f32 %v5569, %v5657
        %v5659 = vpop.f32.mrf.mxu0
        %v5660 = vadd.f32 %v5571, %v5659
        %5661 = vmatmul.bf16.gmra.mxu0 %v4461
        %v5662 = vpop.f32.mrf.mxu0
        %v5663 = vadd.f32 %v5574, %v5662
        %v5664 = vpop.f32.mrf.mxu0
        %v5665 = vadd.f32 %v5576, %v5664
        %5666 = vmatmul.bf16.gmra.mxu0 %v4470
        %v5667 = vpop.f32.mrf.mxu0
        %v5668 = vadd.f32 %v5579, %v5667
        %v5669 = vpop.f32.mrf.mxu0
        %v5670 = vadd.f32 %v5581, %v5669
        %5671 = vdwg.mxu0
        %5672 = vmatpush.bf16.msra.mxu0 %v4968
        %5673 = vmatpush.bf16.msra.mxu0 %v4967
        %5674 = vmatpush.bf16.msra.mxu0 %v4966
        %5675 = vmatpush.bf16.msra.mxu0 %v4965
        %5676 = vmatpush.bf16.msra.mxu0 %v4964
        %5677 = vmatpush.bf16.msra.mxu0 %v4963
        %5678 = vmatpush.bf16.msra.mxu0 %v4962
        %5679 = vmatpush.bf16.msra.mxu0 %v4961
        %5680 = vmatmul.bf16.gmra.mxu0 %v4336
        %v5681 = vpop.f32.mrf.mxu0
        %v5682 = vadd.f32 %v5593, %v5681
        %v5683 = vpop.f32.mrf.mxu0
        %v5684 = vadd.f32 %v5595, %v5683
        %5685 = vmatmul.bf16.gmra.mxu0 %v4345
        %v5686 = vpop.f32.mrf.mxu0
        %v5687 = vadd.f32 %v5598, %v5686
        %v5688 = vpop.f32.mrf.mxu0
        %v5689 = vadd.f32 %v5600, %v5688
        %5690 = vmatmul.bf16.gmra.mxu0 %v4354
        %v5691 = vpop.f32.mrf.mxu0
        %v5692 = vadd.f32 %v5603, %v5691
        %v5693 = vpop.f32.mrf.mxu0
        %v5694 = vadd.f32 %v5605, %v5693
        %5695 = vmatmul.bf16.gmra.mxu0 %v4363
        %v5696 = vpop.f32.mrf.mxu0
        %v5697 = vadd.f32 %v5608, %v5696
        %v5698 = vpop.f32.mrf.mxu0
        %v5699 = vadd.f32 %v5610, %v5698
        %5700 = vmatmul.bf16.gmra.mxu0 %v4372
        %v5701 = vpop.f32.mrf.mxu0
        %v5702 = vadd.f32 %v5613, %v5701
        %v5703 = vpop.f32.mrf.mxu0
        %v5704 = vadd.f32 %v5615, %v5703
        %5705 = vmatmul.bf16.gmra.mxu0 %v4381
        %v5706 = vpop.f32.mrf.mxu0
        %v5707 = vadd.f32 %v5618, %v5706
        %v5708 = vpop.f32.mrf.mxu0
        %v5709 = vadd.f32 %v5620, %v5708
        %5710 = vmatmul.bf16.gmra.mxu0 %v4390
        %v5711 = vpop.f32.mrf.mxu0
        %v5712 = vadd.f32 %v5623, %v5711
        %v5713 = vpop.f32.mrf.mxu0
        %v5714 = vadd.f32 %v5625, %v5713
        %5715 = vmatmul.bf16.gmra.mxu0 %v4399
        %v5716 = vpop.f32.mrf.mxu0
        %v5717 = vadd.f32 %v5628, %v5716
        %v5718 = vpop.f32.mrf.mxu0
        %v5719 = vadd.f32 %v5630, %v5718
        %5720 = vmatmul.bf16.gmra.mxu0 %v4408
        %v5721 = vpop.f32.mrf.mxu0
        %v5722 = vadd.f32 %v5633, %v5721
        %v5723 = vpop.f32.mrf.mxu0
        %v5724 = vadd.f32 %v5635, %v5723
        %5725 = vmatmul.bf16.gmra.mxu0 %v4417
        %v5726 = vpop.f32.mrf.mxu0
        %v5727 = vadd.f32 %v5638, %v5726
        %v5728 = vpop.f32.mrf.mxu0
        %v5729 = vadd.f32 %v5640, %v5728
        %5730 = vmatmul.bf16.gmra.mxu0 %v4426
        %v5731 = vpop.f32.mrf.mxu0
        %v5732 = vadd.f32 %v5643, %v5731
        %v5733 = vpop.f32.mrf.mxu0
        %v5734 = vadd.f32 %v5645, %v5733
        %5735 = vmatmul.bf16.gmra.mxu0 %v4435
        %v5736 = vpop.f32.mrf.mxu0
        %v5737 = vadd.f32 %v5648, %v5736
        %v5738 = vpop.f32.mrf.mxu0
        %v5739 = vadd.f32 %v5650, %v5738
        %5740 = vmatmul.bf16.gmra.mxu0 %v4444
        %v5741 = vpop.f32.mrf.mxu0
        %v5742 = vadd.f32 %v5653, %v5741
        %v5743 = vpop.f32.mrf.mxu0
        %v5744 = vadd.f32 %v5655, %v5743
        %5745 = vmatmul.bf16.gmra.mxu0 %v4453
        %v5746 = vpop.f32.mrf.mxu0
        %v5747 = vadd.f32 %v5658, %v5746
        %v5748 = vpop.f32.mrf.mxu0
        %v5749 = vadd.f32 %v5660, %v5748
        %5750 = vmatmul.bf16.gmra.mxu0 %v4462
        %v5751 = vpop.f32.mrf.mxu0
        %v5752 = vadd.f32 %v5663, %v5751
        %v5753 = vpop.f32.mrf.mxu0
        %v5754 = vadd.f32 %v5665, %v5753
        %5755 = vmatmul.bf16.gmra.mxu0 %v4471
        %v5756 = vpop.f32.mrf.mxu0
        %v5757 = vadd.f32 %v5668, %v5756
        %v5758 = vpop.f32.mrf.mxu0
        %v5759 = vadd.f32 %v5670, %v5758
        %5760 = vdwg.mxu0
        %5761 = vmatpush.bf16.msra.mxu0 %v4976
        %5762 = vmatpush.bf16.msra.mxu0 %v4975
        %5763 = vmatpush.bf16.msra.mxu0 %v4974
        %5764 = vmatpush.bf16.msra.mxu0 %v4973
        %5765 = vmatpush.bf16.msra.mxu0 %v4972
        %5766 = vmatpush.bf16.msra.mxu0 %v4971
        %5767 = vmatpush.bf16.msra.mxu0 %v4970
        %5768 = vmatpush.bf16.msra.mxu0 %v4969
        %5769 = vmatmul.bf16.gmra.mxu0 %v4337
        %v5770 = vpop.f32.mrf.mxu0
        %v5771 = vadd.f32 %v5682, %v5770
        %v5772 = vpop.f32.mrf.mxu0
        %v5773 = vadd.f32 %v5684, %v5772
        %5774 = vmatmul.bf16.gmra.mxu0 %v4346
        %v5775 = vpop.f32.mrf.mxu0
        %v5776 = vadd.f32 %v5687, %v5775
        %v5777 = vpop.f32.mrf.mxu0
        %v5778 = vadd.f32 %v5689, %v5777
        %5779 = vmatmul.bf16.gmra.mxu0 %v4355
        %v5780 = vpop.f32.mrf.mxu0
        %v5781 = vadd.f32 %v5692, %v5780
        %v5782 = vpop.f32.mrf.mxu0
        %v5783 = vadd.f32 %v5694, %v5782
        %5784 = vmatmul.bf16.gmra.mxu0 %v4364
        %v5785 = vpop.f32.mrf.mxu0
        %v5786 = vadd.f32 %v5697, %v5785
        %v5787 = vpop.f32.mrf.mxu0
        %v5788 = vadd.f32 %v5699, %v5787
        %5789 = vmatmul.bf16.gmra.mxu0 %v4373
        %v5790 = vpop.f32.mrf.mxu0
        %v5791 = vadd.f32 %v5702, %v5790
        %v5792 = vpop.f32.mrf.mxu0
        %v5793 = vadd.f32 %v5704, %v5792
        %5794 = vmatmul.bf16.gmra.mxu0 %v4382
        %v5795 = vpop.f32.mrf.mxu0
        %v5796 = vadd.f32 %v5707, %v5795
        %v5797 = vpop.f32.mrf.mxu0
        %v5798 = vadd.f32 %v5709, %v5797
        %5799 = vmatmul.bf16.gmra.mxu0 %v4391
        %v5800 = vpop.f32.mrf.mxu0
        %v5801 = vadd.f32 %v5712, %v5800
        %v5802 = vpop.f32.mrf.mxu0
        %v5803 = vadd.f32 %v5714, %v5802
        %5804 = vmatmul.bf16.gmra.mxu0 %v4400
        %v5805 = vpop.f32.mrf.mxu0
        %v5806 = vadd.f32 %v5717, %v5805
        %v5807 = vpop.f32.mrf.mxu0
        %v5808 = vadd.f32 %v5719, %v5807
        %5809 = vmatmul.bf16.gmra.mxu0 %v4409
        %v5810 = vpop.f32.mrf.mxu0
        %v5811 = vadd.f32 %v5722, %v5810
        %v5812 = vpop.f32.mrf.mxu0
        %v5813 = vadd.f32 %v5724, %v5812
        %5814 = vmatmul.bf16.gmra.mxu0 %v4418
        %v5815 = vpop.f32.mrf.mxu0
        %v5816 = vadd.f32 %v5727, %v5815
        %v5817 = vpop.f32.mrf.mxu0
        %v5818 = vadd.f32 %v5729, %v5817
        %5819 = vmatmul.bf16.gmra.mxu0 %v4427
        %v5820 = vpop.f32.mrf.mxu0
        %v5821 = vadd.f32 %v5732, %v5820
        %v5822 = vpop.f32.mrf.mxu0
        %v5823 = vadd.f32 %v5734, %v5822
        %5824 = vmatmul.bf16.gmra.mxu0 %v4436
        %v5825 = vpop.f32.mrf.mxu0
        %v5826 = vadd.f32 %v5737, %v5825
        %v5827 = vpop.f32.mrf.mxu0
        %v5828 = vadd.f32 %v5739, %v5827
        %5829 = vmatmul.bf16.gmra.mxu0 %v4445
        %v5830 = vpop.f32.mrf.mxu0
        %v5831 = vadd.f32 %v5742, %v5830
        %v5832 = vpop.f32.mrf.mxu0
        %v5833 = vadd.f32 %v5744, %v5832
        %5834 = vmatmul.bf16.gmra.mxu0 %v4454
        %v5835 = vpop.f32.mrf.mxu0
        %v5836 = vadd.f32 %v5747, %v5835
        %v5837 = vpop.f32.mrf.mxu0
        %v5838 = vadd.f32 %v5749, %v5837
        %5839 = vmatmul.bf16.gmra.mxu0 %v4463
        %v5840 = vpop.f32.mrf.mxu0
        %v5841 = vadd.f32 %v5752, %v5840
        %v5842 = vpop.f32.mrf.mxu0
        %v5843 = vadd.f32 %v5754, %v5842
        %5844 = vmatmul.bf16.gmra.mxu0 %v4472
        %v5845 = vpop.f32.mrf.mxu0
        %v5846 = vadd.f32 %v5757, %v5845
        %v5847 = vpop.f32.mrf.mxu0
        %v5848 = vadd.f32 %v5759, %v5847
        %5849 = vdwg.mxu0
        %v5850 = vld [vmem:[%s3] sm:$0x1]
        %v5852 = vperm.slane %v5850, 0
        %v5854 = vmul.f32 %v5771, %v5852
        %v5855 = vmul.f32 %v5773, %v5852
        %v5856 = vmul.f32 %v5776, %v5852
        %v5857 = vmul.f32 %v5778, %v5852
        %v5858 = vmul.f32 %v5781, %v5852
        %v5859 = vmul.f32 %v5783, %v5852
        %v5860 = vmul.f32 %v5786, %v5852
        %v5861 = vmul.f32 %v5788, %v5852
        %v5862 = vmul.f32 %v5791, %v5852
        %v5863 = vmul.f32 %v5793, %v5852
        %v5864 = vmul.f32 %v5796, %v5852
        %v5865 = vmul.f32 %v5798, %v5852
        %v5866 = vmul.f32 %v5801, %v5852
        %v5867 = vmul.f32 %v5803, %v5852
        %v5868 = vmul.f32 %v5806, %v5852
        %v5869 = vmul.f32 %v5808, %v5852
        %v5870 = vmul.f32 %v5811, %v5852
        %v5871 = vmul.f32 %v5813, %v5852
        %v5872 = vmul.f32 %v5816, %v5852
        %v5873 = vmul.f32 %v5818, %v5852
        %v5874 = vmul.f32 %v5821, %v5852
        %v5875 = vmul.f32 %v5823, %v5852
        %v5876 = vmul.f32 %v5826, %v5852
        %v5877 = vmul.f32 %v5828, %v5852
        %v5878 = vmul.f32 %v5831, %v5852
        %v5879 = vmul.f32 %v5833, %v5852
        %v5880 = vmul.f32 %v5836, %v5852
        %v5881 = vmul.f32 %v5838, %v5852
        %v5882 = vmul.f32 %v5841, %v5852
        %v5883 = vmul.f32 %v5843, %v5852
        %v5884 = vmul.f32 %v5846, %v5852
        %v5885 = vmul.f32 %v5848, %v5852
        %v5886 = vld [vmem:[%s4] sm:$0x1]
        %v5888 = vperm.slane %v5886, 0
        %v5890 = vadd.f32 %v5854, %v5888
        %v5891 = vadd.f32 %v5855, %v5888
        %v5892 = vadd.f32 %v5856, %v5888
        %v5893 = vadd.f32 %v5857, %v5888
        %v5894 = vadd.f32 %v5858, %v5888
        %v5895 = vadd.f32 %v5859, %v5888
        %v5896 = vadd.f32 %v5860, %v5888
        %v5897 = vadd.f32 %v5861, %v5888
        %v5898 = vadd.f32 %v5862, %v5888
        %v5899 = vadd.f32 %v5863, %v5888
        %v5900 = vadd.f32 %v5864, %v5888
        %v5901 = vadd.f32 %v5865, %v5888
        %v5902 = vadd.f32 %v5866, %v5888
        %v5903 = vadd.f32 %v5867, %v5888
        %v5904 = vadd.f32 %v5868, %v5888
        %v5905 = vadd.f32 %v5869, %v5888
        %v5906 = vadd.f32 %v5870, %v5888
        %v5907 = vadd.f32 %v5871, %v5888
        %v5908 = vadd.f32 %v5872, %v5888
        %v5909 = vadd.f32 %v5873, %v5888
        %v5910 = vadd.f32 %v5874, %v5888
        %v5911 = vadd.f32 %v5875, %v5888
        %v5912 = vadd.f32 %v5876, %v5888
        %v5913 = vadd.f32 %v5877, %v5888
        %v5914 = vadd.f32 %v5878, %v5888
        %v5915 = vadd.f32 %v5879, %v5888
        %v5916 = vadd.f32 %v5880, %v5888
        %v5917 = vadd.f32 %v5881, %v5888
        %v5918 = vadd.f32 %v5882, %v5888
        %v5919 = vadd.f32 %v5883, %v5888
        %v5920 = vadd.f32 %v5884, %v5888
        %v5921 = vadd.f32 %v5885, %v5888
        %v5922 = vmax.f32 %v5890, 0.0
        %v5923 = vmax.f32 %v5891, 0.0
        %v5924 = vmax.f32 %v5892, 0.0
        %v5925 = vmax.f32 %v5893, 0.0
        %v5926 = vmax.f32 %v5894, 0.0
        %v5927 = vmax.f32 %v5895, 0.0
        %v5928 = vmax.f32 %v5896, 0.0
        %v5929 = vmax.f32 %v5897, 0.0
        %v5930 = vmax.f32 %v5898, 0.0
        %v5931 = vmax.f32 %v5899, 0.0
        %v5932 = vmax.f32 %v5900, 0.0
        %v5933 = vmax.f32 %v5901, 0.0
        %v5934 = vmax.f32 %v5902, 0.0
        %v5935 = vmax.f32 %v5903, 0.0
        %v5936 = vmax.f32 %v5904, 0.0
        %v5937 = vmax.f32 %v5905, 0.0
        %v5938 = vmax.f32 %v5906, 0.0
        %v5939 = vmax.f32 %v5907, 0.0
        %v5940 = vmax.f32 %v5908, 0.0
        %v5941 = vmax.f32 %v5909, 0.0
        %v5942 = vmax.f32 %v5910, 0.0
        %v5943 = vmax.f32 %v5911, 0.0
        %v5944 = vmax.f32 %v5912, 0.0
        %v5945 = vmax.f32 %v5913, 0.0
        %v5946 = vmax.f32 %v5914, 0.0
        %v5947 = vmax.f32 %v5915, 0.0
        %v5948 = vmax.f32 %v5916, 0.0
        %v5949 = vmax.f32 %v5917, 0.0
        %v5950 = vmax.f32 %v5918, 0.0
        %v5951 = vmax.f32 %v5919, 0.0
        %v5952 = vmax.f32 %v5920, 0.0
        %v5953 = vmax.f32 %v5921, 0.0
        %v5954 = vpack.c.bf16 %v5922, %v5922
        %v5955 = vpack.c.bf16 %v5923, %v5923
        %v5956 = vpack.c.bf16 %v5924, %v5924
        %v5957 = vpack.c.bf16 %v5925, %v5925
        %v5958 = vpack.c.bf16 %v5926, %v5926
        %v5959 = vpack.c.bf16 %v5927, %v5927
        %v5960 = vpack.c.bf16 %v5928, %v5928
        %v5961 = vpack.c.bf16 %v5929, %v5929
        %v5962 = vpack.c.bf16 %v5930, %v5930
        %v5963 = vpack.c.bf16 %v5931, %v5931
        %v5964 = vpack.c.bf16 %v5932, %v5932
        %v5965 = vpack.c.bf16 %v5933, %v5933
        %v5966 = vpack.c.bf16 %v5934, %v5934
        %v5967 = vpack.c.bf16 %v5935, %v5935
        %v5968 = vpack.c.bf16 %v5936, %v5936
        %v5969 = vpack.c.bf16 %v5937, %v5937
        %v5970 = vpack.c.bf16 %v5938, %v5938
        %v5971 = vpack.c.bf16 %v5939, %v5939
        %v5972 = vpack.c.bf16 %v5940, %v5940
        %v5973 = vpack.c.bf16 %v5941, %v5941
        %v5974 = vpack.c.bf16 %v5942, %v5942
        %v5975 = vpack.c.bf16 %v5943, %v5943
        %v5976 = vpack.c.bf16 %v5944, %v5944
        %v5977 = vpack.c.bf16 %v5945, %v5945
        %v5978 = vpack.c.bf16 %v5946, %v5946
        %v5979 = vpack.c.bf16 %v5947, %v5947
        %v5980 = vpack.c.bf16 %v5948, %v5948
        %v5981 = vpack.c.bf16 %v5949, %v5949
        %v5982 = vpack.c.bf16 %v5950, %v5950
        %v5983 = vpack.c.bf16 %v5951, %v5951
        %v5984 = vpack.c.bf16 %v5952, %v5952
        %v5985 = vpack.c.bf16 %v5953, %v5953
        %v5987 = vshrl.u32 %v5954, 16
        %v5989 = vrot.slane %v5987, 7
        %v5990 = vshll.u32 %v5954, 16
        %v5992 = vor.u32 %v5989, %v5990
        %v5993 = vrot.slane %v5989, 4
        %v5995 = vshrl.u32 %v5955, 16
        %v5997 = vrot.slane %v5995, 7
        %v5998 = vshll.u32 %v5955, 16
        %v6000 = vor.u32 %v5997, %v5998
        %v6001 = vsel %vm636, %v5993, %v6000
        %v6002 = vrot.slane %v5997, 4
        %v6004 = vshrl.u32 %v5956, 16
        %v6006 = vrot.slane %v6004, 7
        %v6007 = vshll.u32 %v5956, 16
        %v6009 = vor.u32 %v6006, %v6007
        %v6010 = vrot.slane %v6006, 4
        %v6012 = vshrl.u32 %v5957, 16
        %v6014 = vrot.slane %v6012, 7
        %v6015 = vshll.u32 %v5957, 16
        %v6017 = vor.u32 %v6014, %v6015
        %v6018 = vsel %vm636, %v6010, %v6017
        %v6019 = vrot.slane %v6014, 4
        %v6021 = vshrl.u32 %v5958, 16
        %v6023 = vrot.slane %v6021, 7
        %v6024 = vshll.u32 %v5958, 16
        %v6026 = vor.u32 %v6023, %v6024
        %v6027 = vrot.slane %v6023, 4
        %v6029 = vshrl.u32 %v5959, 16
        %v6031 = vrot.slane %v6029, 7
        %v6032 = vshll.u32 %v5959, 16
        %v6034 = vor.u32 %v6031, %v6032
        %v6035 = vsel %vm636, %v6027, %v6034
        %v6036 = vrot.slane %v6031, 4
        %v6038 = vshrl.u32 %v5960, 16
        %v6040 = vrot.slane %v6038, 7
        %v6041 = vshll.u32 %v5960, 16
        %v6043 = vor.u32 %v6040, %v6041
        %v6044 = vrot.slane %v6040, 4
        %v6046 = vshrl.u32 %v5961, 16
        %v6048 = vrot.slane %v6046, 7
        %v6049 = vshll.u32 %v5961, 16
        %v6051 = vor.u32 %v6048, %v6049
        %v6052 = vsel %vm636, %v6044, %v6051
        %v6053 = vrot.slane %v6048, 4
        %v6055 = vshrl.u32 %v5962, 16
        %v6057 = vrot.slane %v6055, 7
        %v6058 = vshll.u32 %v5962, 16
        %v6060 = vor.u32 %v6057, %v6058
        %v6061 = vrot.slane %v6057, 4
        %v6063 = vshrl.u32 %v5963, 16
        %v6065 = vrot.slane %v6063, 7
        %v6066 = vshll.u32 %v5963, 16
        %v6068 = vor.u32 %v6065, %v6066
        %v6069 = vsel %vm636, %v6061, %v6068
        %v6070 = vrot.slane %v6065, 4
        %v6072 = vshrl.u32 %v5964, 16
        %v6074 = vrot.slane %v6072, 7
        %v6075 = vshll.u32 %v5964, 16
        %v6077 = vor.u32 %v6074, %v6075
        %v6078 = vrot.slane %v6074, 4
        %v6080 = vshrl.u32 %v5965, 16
        %v6082 = vrot.slane %v6080, 7
        %v6083 = vshll.u32 %v5965, 16
        %v6085 = vor.u32 %v6082, %v6083
        %v6086 = vsel %vm636, %v6078, %v6085
        %v6087 = vrot.slane %v6082, 4
        %v6089 = vshrl.u32 %v5966, 16
        %v6091 = vrot.slane %v6089, 7
        %v6092 = vshll.u32 %v5966, 16
        %v6094 = vor.u32 %v6091, %v6092
        %v6095 = vrot.slane %v6091, 4
        %v6097 = vshrl.u32 %v5967, 16
        %v6099 = vrot.slane %v6097, 7
        %v6100 = vshll.u32 %v5967, 16
        %v6102 = vor.u32 %v6099, %v6100
        %v6103 = vsel %vm636, %v6095, %v6102
        %v6104 = vrot.slane %v6099, 4
        %v6106 = vshrl.u32 %v5968, 16
        %v6108 = vrot.slane %v6106, 7
        %v6109 = vshll.u32 %v5968, 16
        %v6111 = vor.u32 %v6108, %v6109
        %v6112 = vrot.slane %v6108, 4
        %v6114 = vshrl.u32 %v5969, 16
        %v6116 = vrot.slane %v6114, 7
        %v6117 = vshll.u32 %v5969, 16
        %v6119 = vor.u32 %v6116, %v6117
        %v6120 = vsel %vm636, %v6112, %v6119
        %v6121 = vrot.slane %v6116, 4
        %v6123 = vshrl.u32 %v5970, 16
        %v6125 = vrot.slane %v6123, 7
        %v6126 = vshll.u32 %v5970, 16
        %v6128 = vor.u32 %v6125, %v6126
        %v6129 = vrot.slane %v6125, 4
        %v6131 = vshrl.u32 %v5971, 16
        %v6133 = vrot.slane %v6131, 7
        %v6134 = vshll.u32 %v5971, 16
        %v6136 = vor.u32 %v6133, %v6134
        %v6137 = vsel %vm636, %v6129, %v6136
        %v6138 = vrot.slane %v6133, 4
        %v6140 = vshrl.u32 %v5972, 16
        %v6142 = vrot.slane %v6140, 7
        %v6143 = vshll.u32 %v5972, 16
        %v6145 = vor.u32 %v6142, %v6143
        %v6146 = vrot.slane %v6142, 4
        %v6148 = vshrl.u32 %v5973, 16
        %v6150 = vrot.slane %v6148, 7
        %v6151 = vshll.u32 %v5973, 16
        %v6153 = vor.u32 %v6150, %v6151
        %v6154 = vsel %vm636, %v6146, %v6153
        %v6155 = vrot.slane %v6150, 4
        %v6157 = vshrl.u32 %v5974, 16
        %v6159 = vrot.slane %v6157, 7
        %v6160 = vshll.u32 %v5974, 16
        %v6162 = vor.u32 %v6159, %v6160
        %v6163 = vrot.slane %v6159, 4
        %v6165 = vshrl.u32 %v5975, 16
        %v6167 = vrot.slane %v6165, 7
        %v6168 = vshll.u32 %v5975, 16
        %v6170 = vor.u32 %v6167, %v6168
        %v6171 = vsel %vm636, %v6163, %v6170
        %v6172 = vrot.slane %v6167, 4
        %v6174 = vshrl.u32 %v5976, 16
        %v6176 = vrot.slane %v6174, 7
        %v6177 = vshll.u32 %v5976, 16
        %v6179 = vor.u32 %v6176, %v6177
        %v6180 = vrot.slane %v6176, 4
        %v6182 = vshrl.u32 %v5977, 16
        %v6184 = vrot.slane %v6182, 7
        %v6185 = vshll.u32 %v5977, 16
        %v6187 = vor.u32 %v6184, %v6185
        %v6188 = vsel %vm636, %v6180, %v6187
        %v6189 = vrot.slane %v6184, 4
        %v6191 = vshrl.u32 %v5978, 16
        %v6193 = vrot.slane %v6191, 7
        %v6194 = vshll.u32 %v5978, 16
        %v6196 = vor.u32 %v6193, %v6194
        %v6197 = vrot.slane %v6193, 4
        %v6199 = vshrl.u32 %v5979, 16
        %v6201 = vrot.slane %v6199, 7
        %v6202 = vshll.u32 %v5979, 16
        %v6204 = vor.u32 %v6201, %v6202
        %v6205 = vsel %vm636, %v6197, %v6204
        %v6206 = vrot.slane %v6201, 4
        %v6208 = vshrl.u32 %v5980, 16
        %v6210 = vrot.slane %v6208, 7
        %v6211 = vshll.u32 %v5980, 16
        %v6213 = vor.u32 %v6210, %v6211
        %v6214 = vrot.slane %v6210, 4
        %v6216 = vshrl.u32 %v5981, 16
        %v6218 = vrot.slane %v6216, 7
        %v6219 = vshll.u32 %v5981, 16
        %v6221 = vor.u32 %v6218, %v6219
        %v6222 = vsel %vm636, %v6214, %v6221
        %v6223 = vrot.slane %v6218, 4
        %v6225 = vshrl.u32 %v5982, 16
        %v6227 = vrot.slane %v6225, 7
        %v6228 = vshll.u32 %v5982, 16
        %v6230 = vor.u32 %v6227, %v6228
        %v6231 = vrot.slane %v6227, 4
        %v6233 = vshrl.u32 %v5983, 16
        %v6235 = vrot.slane %v6233, 7
        %v6236 = vshll.u32 %v5983, 16
        %v6238 = vor.u32 %v6235, %v6236
        %v6239 = vsel %vm636, %v6231, %v6238
        %v6240 = vrot.slane %v6235, 4
        %v6242 = vshrl.u32 %v5984, 16
        %v6244 = vrot.slane %v6242, 7
        %v6245 = vshll.u32 %v5984, 16
        %v6247 = vor.u32 %v6244, %v6245
        %v6248 = vrot.slane %v6244, 4
        %v6250 = vshrl.u32 %v5985, 16
        %v6252 = vrot.slane %v6250, 7
        %v6253 = vshll.u32 %v5985, 16
        %v6255 = vor.u32 %v6252, %v6253
        %v6256 = vsel %vm636, %v6248, %v6255
        %v6257 = vrot.slane %v6252, 4
        %vm6306 = vcmask 1043456
        %vm6307 = vmand %vm6306, %vm397
        %v6308 = vld [vmem:[%s485] sm:$0xf]
        %v6309 = vsel %vm6307, %v5992, %v6308
        %6310 = vst [vmem:[%s485] sm:$0xf] %v6309
        %6311 = vst [vmem:[%s485 + $0x4] sm:$0xf] %v6001
        %v6312 = vld [vmem:[%s485 + $0x8] sm:$0x1]
        %v6313 = vsel %vm342, %v6002, %v6312
        %6314 = vst [vmem:[%s485 + $0x8] sm:$0x1] %v6313
        %v6315 = vld [vmem:[%s485 + $0xc] sm:$0xf]
        %v6316 = vsel %vm6307, %v6009, %v6315
        %6317 = vst [vmem:[%s485 + $0xc] sm:$0xf] %v6316
        %6318 = vst [vmem:[%s485 + $0x10] sm:$0xf] %v6018
        %v6319 = vld [vmem:[%s485 + $0x14] sm:$0x1]
        %v6320 = vsel %vm342, %v6019, %v6319
        %6321 = vst [vmem:[%s485 + $0x14] sm:$0x1] %v6320
        %v6322 = vld [vmem:[%s485 + $0x18] sm:$0xf]
        %v6323 = vsel %vm6307, %v6026, %v6322
        %6324 = vst [vmem:[%s485 + $0x18] sm:$0xf] %v6323
        %6325 = vst [vmem:[%s485 + $0x1c] sm:$0xf] %v6035
        %v6326 = vld [vmem:[%s485 + $0x20] sm:$0x1]
        %v6327 = vsel %vm342, %v6036, %v6326
        %6328 = vst [vmem:[%s485 + $0x20] sm:$0x1] %v6327
        %v6329 = vld [vmem:[%s485 + $0x24] sm:$0xf]
        %v6330 = vsel %vm6307, %v6043, %v6329
        %6331 = vst [vmem:[%s485 + $0x24] sm:$0xf] %v6330
        %6332 = vst [vmem:[%s485 + $0x28] sm:$0xf] %v6052
        %v6333 = vld [vmem:[%s485 + $0x2c] sm:$0x1]
        %v6334 = vsel %vm342, %v6053, %v6333
        %6335 = vst [vmem:[%s485 + $0x2c] sm:$0x1] %v6334
        %v6336 = vld [vmem:[%s485 + $0x30] sm:$0xf]
        %v6337 = vsel %vm6307, %v6060, %v6336
        %6338 = vst [vmem:[%s485 + $0x30] sm:$0xf] %v6337
        %6339 = vst [vmem:[%s485 + $0x34] sm:$0xf] %v6069
        %v6340 = vld [vmem:[%s485 + $0x38] sm:$0x1]
        %v6341 = vsel %vm342, %v6070, %v6340
        %6342 = vst [vmem:[%s485 + $0x38] sm:$0x1] %v6341
        %v6343 = vld [vmem:[%s485 + $0x3c] sm:$0xf]
        %v6344 = vsel %vm6307, %v6077, %v6343
        %6345 = vst [vmem:[%s485 + $0x3c] sm:$0xf] %v6344
        %6346 = vst [vmem:[%s485 + $0x40] sm:$0xf] %v6086
        %v6347 = vld [vmem:[%s485 + $0x44] sm:$0x1]
        %v6348 = vsel %vm342, %v6087, %v6347
        %6349 = vst [vmem:[%s485 + $0x44] sm:$0x1] %v6348
        %v6350 = vld [vmem:[%s485 + $0x48] sm:$0xf]
        %v6351 = vsel %vm6307, %v6094, %v6350
        %6352 = vst [vmem:[%s485 + $0x48] sm:$0xf] %v6351
        %6353 = vst [vmem:[%s485 + $0x4c] sm:$0xf] %v6103
        %v6354 = vld [vmem:[%s485 + $0x50] sm:$0x1]
        %v6355 = vsel %vm342, %v6104, %v6354
        %6356 = vst [vmem:[%s485 + $0x50] sm:$0x1] %v6355
        %v6357 = vld [vmem:[%s485 + $0x54] sm:$0xf]
        %v6358 = vsel %vm6307, %v6111, %v6357
        %6359 = vst [vmem:[%s485 + $0x54] sm:$0xf] %v6358
        %6360 = vst [vmem:[%s485 + $0x58] sm:$0xf] %v6120
        %v6361 = vld [vmem:[%s485 + $0x5c] sm:$0x1]
        %v6362 = vsel %vm342, %v6121, %v6361
        %6363 = vst [vmem:[%s485 + $0x5c] sm:$0x1] %v6362
        %v6364 = vld [vmem:[%s485 + $0x60] sm:$0xf]
        %v6365 = vsel %vm6307, %v6128, %v6364
        %6366 = vst [vmem:[%s485 + $0x60] sm:$0xf] %v6365
        %6367 = vst [vmem:[%s485 + $0x64] sm:$0xf] %v6137
        %v6368 = vld [vmem:[%s485 + $0x68] sm:$0x1]
        %v6369 = vsel %vm342, %v6138, %v6368
        %6370 = vst [vmem:[%s485 + $0x68] sm:$0x1] %v6369
        %v6371 = vld [vmem:[%s485 + $0x6c] sm:$0xf]
        %v6372 = vsel %vm6307, %v6145, %v6371
        %6373 = vst [vmem:[%s485 + $0x6c] sm:$0xf] %v6372
        %6374 = vst [vmem:[%s485 + $0x70] sm:$0xf] %v6154
        %v6375 = vld [vmem:[%s485 + $0x74] sm:$0x1]
        %v6376 = vsel %vm342, %v6155, %v6375
        %6377 = vst [vmem:[%s485 + $0x74] sm:$0x1] %v6376
        %v6378 = vld [vmem:[%s485 + $0x78] sm:$0xf]
        %v6379 = vsel %vm6307, %v6162, %v6378
        %6380 = vst [vmem:[%s485 + $0x78] sm:$0xf] %v6379
        %6381 = vst [vmem:[%s485 + $0x7c] sm:$0xf] %v6171
        %v6382 = vld [vmem:[%s485 + $0x80] sm:$0x1]
        %v6383 = vsel %vm342, %v6172, %v6382
        %6384 = vst [vmem:[%s485 + $0x80] sm:$0x1] %v6383
        %v6385 = vld [vmem:[%s485 + $0x84] sm:$0xf]
        %v6386 = vsel %vm6307, %v6179, %v6385
        %6387 = vst [vmem:[%s485 + $0x84] sm:$0xf] %v6386
        %6388 = vst [vmem:[%s485 + $0x88] sm:$0xf] %v6188
        %v6389 = vld [vmem:[%s485 + $0x8c] sm:$0x1]
        %v6390 = vsel %vm342, %v6189, %v6389
        %6391 = vst [vmem:[%s485 + $0x8c] sm:$0x1] %v6390
        %v6392 = vld [vmem:[%s485 + $0x90] sm:$0xf]
        %v6393 = vsel %vm6307, %v6196, %v6392
        %6394 = vst [vmem:[%s485 + $0x90] sm:$0xf] %v6393
        %6395 = vst [vmem:[%s485 + $0x94] sm:$0xf] %v6205
        %v6396 = vld [vmem:[%s485 + $0x98] sm:$0x1]
        %v6397 = vsel %vm342, %v6206, %v6396
        %6398 = vst [vmem:[%s485 + $0x98] sm:$0x1] %v6397
        %v6399 = vld [vmem:[%s485 + $0x9c] sm:$0xf]
        %v6400 = vsel %vm6307, %v6213, %v6399
        %6401 = vst [vmem:[%s485 + $0x9c] sm:$0xf] %v6400
        %6402 = vst [vmem:[%s485 + $0xa0] sm:$0xf] %v6222
        %v6403 = vld [vmem:[%s485 + $0xa4] sm:$0x1]
        %v6404 = vsel %vm342, %v6223, %v6403
        %6405 = vst [vmem:[%s485 + $0xa4] sm:$0x1] %v6404
        %v6406 = vld [vmem:[%s485 + $0xa8] sm:$0xf]
        %v6407 = vsel %vm6307, %v6230, %v6406
        %6408 = vst [vmem:[%s485 + $0xa8] sm:$0xf] %v6407
        %6409 = vst [vmem:[%s485 + $0xac] sm:$0xf] %v6239
        %v6410 = vld [vmem:[%s485 + $0xb0] sm:$0x1]
        %v6411 = vsel %vm342, %v6240, %v6410
        %6412 = vst [vmem:[%s485 + $0xb0] sm:$0x1] %v6411
        %v6413 = vld [vmem:[%s485 + $0xb4] sm:$0xf]
        %v6414 = vsel %vm6307, %v6247, %v6413
        %6415 = vst [vmem:[%s485 + $0xb4] sm:$0xf] %v6414
        %6416 = vst [vmem:[%s485 + $0xb8] sm:$0xf] %v6256
        %v6417 = vld [vmem:[%s485 + $0xbc] sm:$0x1]
        %v6418 = vsel %vm342, %v6257, %v6417
        %6419 = vst [vmem:[%s485 + $0xbc] sm:$0x1] %v6418
        %v6420 = vld [vmem:[#allocation2] sm:$0xf]
        %v6421 = vld [vmem:[#allocation2 + $0x4] sm:$0xf]
        %v6422 = vld [vmem:[#allocation2 + $0xc] sm:$0xf]
        %v6423 = vld [vmem:[#allocation2 + $0x10] sm:$0xf]
        %v6424 = vld [vmem:[#allocation2 + $0x18] sm:$0xf]
        %v6425 = vld [vmem:[#allocation2 + $0x1c] sm:$0xf]
        %v6426 = vld [vmem:[#allocation2 + $0x24] sm:$0xf]
        %v6427 = vld [vmem:[#allocation2 + $0x28] sm:$0xf]
        %v6428 = vld [vmem:[#allocation2 + $0x30] sm:$0xf]
        %v6429 = vld [vmem:[#allocation2 + $0x34] sm:$0xf]
        %v6430 = vld [vmem:[#allocation2 + $0x3c] sm:$0xf]
        %v6431 = vld [vmem:[#allocation2 + $0x40] sm:$0xf]
        %v6432 = vld [vmem:[#allocation2 + $0x48] sm:$0xf]
        %v6433 = vld [vmem:[#allocation2 + $0x4c] sm:$0xf]
        %v6434 = vld [vmem:[#allocation2 + $0x54] sm:$0xf]
        %v6435 = vld [vmem:[#allocation2 + $0x58] sm:$0xf]
        %v6436 = vld [vmem:[#allocation2 + $0x60] sm:$0xf]
        %v6437 = vld [vmem:[#allocation2 + $0x64] sm:$0xf]
        %v6438 = vld [vmem:[#allocation2 + $0x6c] sm:$0xf]
        %v6439 = vld [vmem:[#allocation2 + $0x70] sm:$0xf]
        %v6440 = vld [vmem:[#allocation2 + $0x78] sm:$0xf]
        %v6441 = vld [vmem:[#allocation2 + $0x7c] sm:$0xf]
        %v6442 = vld [vmem:[#allocation2 + $0x84] sm:$0xf]
        %v6443 = vld [vmem:[#allocation2 + $0x88] sm:$0xf]
        %v6444 = vld [vmem:[#allocation2 + $0x90] sm:$0xf]
        %v6445 = vld [vmem:[#allocation2 + $0x94] sm:$0xf]
        %v6446 = vld [vmem:[#allocation2 + $0x9c] sm:$0xf]
        %v6447 = vld [vmem:[#allocation2 + $0xa0] sm:$0xf]
        %v6448 = vld [vmem:[#allocation2 + $0xa8] sm:$0xf]
        %v6449 = vld [vmem:[#allocation2 + $0xac] sm:$0xf]
        %v6450 = vld [vmem:[#allocation2 + $0xb4] sm:$0xf]
        %v6451 = vld [vmem:[#allocation2 + $0xb8] sm:$0xf]
        %6452 = vst [vmem:[#allocation3] sm:$0xf] %v6420
        %6453 = vst [vmem:[#allocation3 + $0x24] sm:$0xf] %v6421
        %6454 = vst [vmem:[#allocation3 + $0x48] sm:$0xf] %v6422
        %6455 = vst [vmem:[#allocation3 + $0x6c] sm:$0xf] %v6423
        %6456 = vst [vmem:[#allocation3 + $0x90] sm:$0xf] %v6424
        %6457 = vst [vmem:[#allocation3 + $0xb4] sm:$0xf] %v6425
        %6458 = vst [vmem:[#allocation3 + $0xd8] sm:$0xf] %v6426
        %6459 = vst [vmem:[#allocation3 + $0xfc] sm:$0xf] %v6427
        %6460 = vst [vmem:[#allocation3 + $0x120] sm:$0xf] %v6428
        %6461 = vst [vmem:[#allocation3 + $0x144] sm:$0xf] %v6429
        %6462 = vst [vmem:[#allocation3 + $0x168] sm:$0xf] %v6430
        %6463 = vst [vmem:[#allocation3 + $0x18c] sm:$0xf] %v6431
        %6464 = vst [vmem:[#allocation3 + $0x1b0] sm:$0xf] %v6432
        %6465 = vst [vmem:[#allocation3 + $0x1d4] sm:$0xf] %v6433
        %6466 = vst [vmem:[#allocation3 + $0x1f8] sm:$0xf] %v6434
        %6467 = vst [vmem:[#allocation3 + $0x21c] sm:$0xf] %v6435
        %6468 = vst [vmem:[#allocation3 + $0x240] sm:$0xf] %v6436
        %6469 = vst [vmem:[#allocation3 + $0x264] sm:$0xf] %v6437
        %6470 = vst [vmem:[#allocation3 + $0x288] sm:$0xf] %v6438
        %6471 = vst [vmem:[#allocation3 + $0x2ac] sm:$0xf] %v6439
        %6472 = vst [vmem:[#allocation3 + $0x2d0] sm:$0xf] %v6440
        %6473 = vst [vmem:[#allocation3 + $0x2f4] sm:$0xf] %v6441
        %6474 = vst [vmem:[#allocation3 + $0x318] sm:$0xf] %v6442
        %6475 = vst [vmem:[#allocation3 + $0x33c] sm:$0xf] %v6443
        %6476 = vst [vmem:[#allocation3 + $0x360] sm:$0xf] %v6444
        %6477 = vst [vmem:[#allocation3 + $0x384] sm:$0xf] %v6445
        %6478 = vst [vmem:[#allocation3 + $0x3a8] sm:$0xf] %v6446
        %6479 = vst [vmem:[#allocation3 + $0x3cc] sm:$0xf] %v6447
        %6480 = vst [vmem:[#allocation3 + $0x3f0] sm:$0xf] %v6448
        %6481 = vst [vmem:[#allocation3 + $0x414] sm:$0xf] %v6449
        %6482 = vst [vmem:[#allocation3 + $0x438] sm:$0xf] %v6450
        %6483 = vst [vmem:[#allocation3 + $0x45c] sm:$0xf] %v6451
        %v6484 = vld [vmem:[#allocation2] sm:$0xf]
        %v6485 = vld [vmem:[#allocation2 + $0x4] sm:$0xf]
        %v6486 = vld [vmem:[#allocation2 + $0x8] sm:$0x1]
        %v6487 = vld [vmem:[#allocation2 + $0xc] sm:$0xf]
        %v6488 = vld [vmem:[#allocation2 + $0x10] sm:$0xf]
        %v6489 = vld [vmem:[#allocation2 + $0x14] sm:$0x1]
        %v6490 = vld [vmem:[#allocation2 + $0x18] sm:$0xf]
        %v6491 = vld [vmem:[#allocation2 + $0x1c] sm:$0xf]
        %v6492 = vld [vmem:[#allocation2 + $0x20] sm:$0x1]
        %v6493 = vld [vmem:[#allocation2 + $0x24] sm:$0xf]
        %v6494 = vld [vmem:[#allocation2 + $0x28] sm:$0xf]
        %v6495 = vld [vmem:[#allocation2 + $0x2c] sm:$0x1]
        %v6496 = vld [vmem:[#allocation2 + $0x30] sm:$0xf]
        %v6497 = vld [vmem:[#allocation2 + $0x34] sm:$0xf]
        %v6498 = vld [vmem:[#allocation2 + $0x38] sm:$0x1]
        %v6499 = vld [vmem:[#allocation2 + $0x3c] sm:$0xf]
        %v6500 = vld [vmem:[#allocation2 + $0x40] sm:$0xf]
        %v6501 = vld [vmem:[#allocation2 + $0x44] sm:$0x1]
        %v6502 = vld [vmem:[#allocation2 + $0x48] sm:$0xf]
        %v6503 = vld [vmem:[#allocation2 + $0x4c] sm:$0xf]
        %v6504 = vld [vmem:[#allocation2 + $0x50] sm:$0x1]
        %v6505 = vld [vmem:[#allocation2 + $0x54] sm:$0xf]
        %v6506 = vld [vmem:[#allocation2 + $0x58] sm:$0xf]
        %v6507 = vld [vmem:[#allocation2 + $0x5c] sm:$0x1]
        %v6508 = vld [vmem:[#allocation2 + $0x60] sm:$0xf]
        %v6509 = vld [vmem:[#allocation2 + $0x64] sm:$0xf]
        %v6510 = vld [vmem:[#allocation2 + $0x68] sm:$0x1]
        %v6511 = vld [vmem:[#allocation2 + $0x6c] sm:$0xf]
        %v6512 = vld [vmem:[#allocation2 + $0x70] sm:$0xf]
        %v6513 = vld [vmem:[#allocation2 + $0x74] sm:$0x1]
        %v6514 = vld [vmem:[#allocation2 + $0x78] sm:$0xf]
        %v6515 = vld [vmem:[#allocation2 + $0x7c] sm:$0xf]
        %v6516 = vld [vmem:[#allocation2 + $0x80] sm:$0x1]
        %v6517 = vld [vmem:[#allocation2 + $0x84] sm:$0xf]
        %v6518 = vld [vmem:[#allocation2 + $0x88] sm:$0xf]
        %v6519 = vld [vmem:[#allocation2 + $0x8c] sm:$0x1]
        %v6520 = vld [vmem:[#allocation2 + $0x90] sm:$0xf]
        %v6521 = vld [vmem:[#allocation2 + $0x94] sm:$0xf]
        %v6522 = vld [vmem:[#allocation2 + $0x98] sm:$0x1]
        %v6523 = vld [vmem:[#allocation2 + $0x9c] sm:$0xf]
        %v6524 = vld [vmem:[#allocation2 + $0xa0] sm:$0xf]
        %v6525 = vld [vmem:[#allocation2 + $0xa4] sm:$0x1]
        %v6526 = vld [vmem:[#allocation2 + $0xa8] sm:$0xf]
        %v6527 = vld [vmem:[#allocation2 + $0xac] sm:$0xf]
        %v6528 = vld [vmem:[#allocation2 + $0xb0] sm:$0x1]
        %v6529 = vld [vmem:[#allocation2 + $0xb4] sm:$0xf]
        %v6530 = vld [vmem:[#allocation2 + $0xb8] sm:$0xf]
        %v6531 = vld [vmem:[#allocation2 + $0xbc] sm:$0x1]
        %v6533 = vshrl.u32 %v6484, 16
        %v6535 = vrot.slane %v6533, 4
        %v6536 = vshll.u32 %v6484, 16
        %v6538 = vrot.slane %v6536, 5
        %v6539 = vor.u32 %v6535, %v6538
        %v6540 = vrot.slane %v6539, 4
        %v6542 = vshll.u32 %v6485, 16
        %v6544 = vrot.slane %v6542, 5
        %v6545 = vsel %vm1188, %v6540, %v6544
        %v6546 = vshrl.u32 %v6485, 16
        %v6548 = vrot.slane %v6546, 4
        %v6549 = vor.u32 %v6548, %v6544
        %v6550 = vrot.slane %v6549, 4
        %v6552 = vshll.u32 %v6486, 16
        %v6554 = vrot.slane %v6552, 5
        %v6555 = vsel %vm1188, %v6550, %v6554
        %v6557 = vshrl.u32 %v6487, 16
        %v6559 = vrot.slane %v6557, 4
        %v6560 = vshll.u32 %v6487, 16
        %v6562 = vrot.slane %v6560, 5
        %v6563 = vor.u32 %v6559, %v6562
        %v6564 = vrot.slane %v6563, 4
        %v6566 = vshll.u32 %v6488, 16
        %v6568 = vrot.slane %v6566, 5
        %v6569 = vsel %vm1188, %v6564, %v6568
        %v6570 = vshrl.u32 %v6488, 16
        %v6572 = vrot.slane %v6570, 4
        %v6573 = vor.u32 %v6572, %v6568
        %v6574 = vrot.slane %v6573, 4
        %v6576 = vshll.u32 %v6489, 16
        %v6578 = vrot.slane %v6576, 5
        %v6579 = vsel %vm1188, %v6574, %v6578
        %v6581 = vshrl.u32 %v6490, 16
        %v6583 = vrot.slane %v6581, 4
        %v6584 = vshll.u32 %v6490, 16
        %v6586 = vrot.slane %v6584, 5
        %v6587 = vor.u32 %v6583, %v6586
        %v6588 = vrot.slane %v6587, 4
        %v6590 = vshll.u32 %v6491, 16
        %v6592 = vrot.slane %v6590, 5
        %v6593 = vsel %vm1188, %v6588, %v6592
        %v6594 = vshrl.u32 %v6491, 16
        %v6596 = vrot.slane %v6594, 4
        %v6597 = vor.u32 %v6596, %v6592
        %v6598 = vrot.slane %v6597, 4
        %v6600 = vshll.u32 %v6492, 16
        %v6602 = vrot.slane %v6600, 5
        %v6603 = vsel %vm1188, %v6598, %v6602
        %v6605 = vshrl.u32 %v6493, 16
        %v6607 = vrot.slane %v6605, 4
        %v6608 = vshll.u32 %v6493, 16
        %v6610 = vrot.slane %v6608, 5
        %v6611 = vor.u32 %v6607, %v6610
        %v6612 = vrot.slane %v6611, 4
        %v6614 = vshll.u32 %v6494, 16
        %v6616 = vrot.slane %v6614, 5
        %v6617 = vsel %vm1188, %v6612, %v6616
        %v6618 = vshrl.u32 %v6494, 16
        %v6620 = vrot.slane %v6618, 4
        %v6621 = vor.u32 %v6620, %v6616
        %v6622 = vrot.slane %v6621, 4
        %v6624 = vshll.u32 %v6495, 16
        %v6626 = vrot.slane %v6624, 5
        %v6627 = vsel %vm1188, %v6622, %v6626
        %v6629 = vshrl.u32 %v6496, 16
        %v6631 = vrot.slane %v6629, 4
        %v6632 = vshll.u32 %v6496, 16
        %v6634 = vrot.slane %v6632, 5
        %v6635 = vor.u32 %v6631, %v6634
        %v6636 = vrot.slane %v6635, 4
        %v6638 = vshll.u32 %v6497, 16
        %v6640 = vrot.slane %v6638, 5
        %v6641 = vsel %vm1188, %v6636, %v6640
        %v6642 = vshrl.u32 %v6497, 16
        %v6644 = vrot.slane %v6642, 4
        %v6645 = vor.u32 %v6644, %v6640
        %v6646 = vrot.slane %v6645, 4
        %v6648 = vshll.u32 %v6498, 16
        %v6650 = vrot.slane %v6648, 5
        %v6651 = vsel %vm1188, %v6646, %v6650
        %v6653 = vshrl.u32 %v6499, 16
        %v6655 = vrot.slane %v6653, 4
        %v6656 = vshll.u32 %v6499, 16
        %v6658 = vrot.slane %v6656, 5
        %v6659 = vor.u32 %v6655, %v6658
        %v6660 = vrot.slane %v6659, 4
        %v6662 = vshll.u32 %v6500, 16
        %v6664 = vrot.slane %v6662, 5
        %v6665 = vsel %vm1188, %v6660, %v6664
        %v6666 = vshrl.u32 %v6500, 16
        %v6668 = vrot.slane %v6666, 4
        %v6669 = vor.u32 %v6668, %v6664
        %v6670 = vrot.slane %v6669, 4
        %v6672 = vshll.u32 %v6501, 16
        %v6674 = vrot.slane %v6672, 5
        %v6675 = vsel %vm1188, %v6670, %v6674
        %v6677 = vshrl.u32 %v6502, 16
        %v6679 = vrot.slane %v6677, 4
        %v6680 = vshll.u32 %v6502, 16
        %v6682 = vrot.slane %v6680, 5
        %v6683 = vor.u32 %v6679, %v6682
        %v6684 = vrot.slane %v6683, 4
        %v6686 = vshll.u32 %v6503, 16
        %v6688 = vrot.slane %v6686, 5
        %v6689 = vsel %vm1188, %v6684, %v6688
        %v6690 = vshrl.u32 %v6503, 16
        %v6692 = vrot.slane %v6690, 4
        %v6693 = vor.u32 %v6692, %v6688
        %v6694 = vrot.slane %v6693, 4
        %v6696 = vshll.u32 %v6504, 16
        %v6698 = vrot.slane %v6696, 5
        %v6699 = vsel %vm1188, %v6694, %v6698
        %v6701 = vshrl.u32 %v6505, 16
        %v6703 = vrot.slane %v6701, 4
        %v6704 = vshll.u32 %v6505, 16
        %v6706 = vrot.slane %v6704, 5
        %v6707 = vor.u32 %v6703, %v6706
        %v6708 = vrot.slane %v6707, 4
        %v6710 = vshll.u32 %v6506, 16
        %v6712 = vrot.slane %v6710, 5
        %v6713 = vsel %vm1188, %v6708, %v6712
        %v6714 = vshrl.u32 %v6506, 16
        %v6716 = vrot.slane %v6714, 4
        %v6717 = vor.u32 %v6716, %v6712
        %v6718 = vrot.slane %v6717, 4
        %v6720 = vshll.u32 %v6507, 16
        %v6722 = vrot.slane %v6720, 5
        %v6723 = vsel %vm1188, %v6718, %v6722
        %v6725 = vshrl.u32 %v6508, 16
        %v6727 = vrot.slane %v6725, 4
        %v6728 = vshll.u32 %v6508, 16
        %v6730 = vrot.slane %v6728, 5
        %v6731 = vor.u32 %v6727, %v6730
        %v6732 = vrot.slane %v6731, 4
        %v6734 = vshll.u32 %v6509, 16
        %v6736 = vrot.slane %v6734, 5
        %v6737 = vsel %vm1188, %v6732, %v6736
        %v6738 = vshrl.u32 %v6509, 16
        %v6740 = vrot.slane %v6738, 4
        %v6741 = vor.u32 %v6740, %v6736
        %v6742 = vrot.slane %v6741, 4
        %v6744 = vshll.u32 %v6510, 16
        %v6746 = vrot.slane %v6744, 5
        %v6747 = vsel %vm1188, %v6742, %v6746
        %v6749 = vshrl.u32 %v6511, 16
        %v6751 = vrot.slane %v6749, 4
        %v6752 = vshll.u32 %v6511, 16
        %v6754 = vrot.slane %v6752, 5
        %v6755 = vor.u32 %v6751, %v6754
        %v6756 = vrot.slane %v6755, 4
        %v6758 = vshll.u32 %v6512, 16
        %v6760 = vrot.slane %v6758, 5
        %v6761 = vsel %vm1188, %v6756, %v6760
        %v6762 = vshrl.u32 %v6512, 16
        %v6764 = vrot.slane %v6762, 4
        %v6765 = vor.u32 %v6764, %v6760
        %v6766 = vrot.slane %v6765, 4
        %v6768 = vshll.u32 %v6513, 16
        %v6770 = vrot.slane %v6768, 5
        %v6771 = vsel %vm1188, %v6766, %v6770
        %v6773 = vshrl.u32 %v6514, 16
        %v6775 = vrot.slane %v6773, 4
        %v6776 = vshll.u32 %v6514, 16
        %v6778 = vrot.slane %v6776, 5
        %v6779 = vor.u32 %v6775, %v6778
        %v6780 = vrot.slane %v6779, 4
        %v6782 = vshll.u32 %v6515, 16
        %v6784 = vrot.slane %v6782, 5
        %v6785 = vsel %vm1188, %v6780, %v6784
        %v6786 = vshrl.u32 %v6515, 16
        %v6788 = vrot.slane %v6786, 4
        %v6789 = vor.u32 %v6788, %v6784
        %v6790 = vrot.slane %v6789, 4
        %v6792 = vshll.u32 %v6516, 16
        %v6794 = vrot.slane %v6792, 5
        %v6795 = vsel %vm1188, %v6790, %v6794
        %v6797 = vshrl.u32 %v6517, 16
        %v6799 = vrot.slane %v6797, 4
        %v6800 = vshll.u32 %v6517, 16
        %v6802 = vrot.slane %v6800, 5
        %v6803 = vor.u32 %v6799, %v6802
        %v6804 = vrot.slane %v6803, 4
        %v6806 = vshll.u32 %v6518, 16
        %v6808 = vrot.slane %v6806, 5
        %v6809 = vsel %vm1188, %v6804, %v6808
        %v6810 = vshrl.u32 %v6518, 16
        %v6812 = vrot.slane %v6810, 4
        %v6813 = vor.u32 %v6812, %v6808
        %v6814 = vrot.slane %v6813, 4
        %v6816 = vshll.u32 %v6519, 16
        %v6818 = vrot.slane %v6816, 5
        %v6819 = vsel %vm1188, %v6814, %v6818
        %v6821 = vshrl.u32 %v6520, 16
        %v6823 = vrot.slane %v6821, 4
        %v6824 = vshll.u32 %v6520, 16
        %v6826 = vrot.slane %v6824, 5
        %v6827 = vor.u32 %v6823, %v6826
        %v6828 = vrot.slane %v6827, 4
        %v6830 = vshll.u32 %v6521, 16
        %v6832 = vrot.slane %v6830, 5
        %v6833 = vsel %vm1188, %v6828, %v6832
        %v6834 = vshrl.u32 %v6521, 16
        %v6836 = vrot.slane %v6834, 4
        %v6837 = vor.u32 %v6836, %v6832
        %v6838 = vrot.slane %v6837, 4
        %v6840 = vshll.u32 %v6522, 16
        %v6842 = vrot.slane %v6840, 5
        %v6843 = vsel %vm1188, %v6838, %v6842
        %v6845 = vshrl.u32 %v6523, 16
        %v6847 = vrot.slane %v6845, 4
        %v6848 = vshll.u32 %v6523, 16
        %v6850 = vrot.slane %v6848, 5
        %v6851 = vor.u32 %v6847, %v6850
        %v6852 = vrot.slane %v6851, 4
        %v6854 = vshll.u32 %v6524, 16
        %v6856 = vrot.slane %v6854, 5
        %v6857 = vsel %vm1188, %v6852, %v6856
        %v6858 = vshrl.u32 %v6524, 16
        %v6860 = vrot.slane %v6858, 4
        %v6861 = vor.u32 %v6860, %v6856
        %v6862 = vrot.slane %v6861, 4
        %v6864 = vshll.u32 %v6525, 16
        %v6866 = vrot.slane %v6864, 5
        %v6867 = vsel %vm1188, %v6862, %v6866
        %v6869 = vshrl.u32 %v6526, 16
        %v6871 = vrot.slane %v6869, 4
        %v6872 = vshll.u32 %v6526, 16
        %v6874 = vrot.slane %v6872, 5
        %v6875 = vor.u32 %v6871, %v6874
        %v6876 = vrot.slane %v6875, 4
        %v6878 = vshll.u32 %v6527, 16
        %v6880 = vrot.slane %v6878, 5
        %v6881 = vsel %vm1188, %v6876, %v6880
        %v6882 = vshrl.u32 %v6527, 16
        %v6884 = vrot.slane %v6882, 4
        %v6885 = vor.u32 %v6884, %v6880
        %v6886 = vrot.slane %v6885, 4
        %v6888 = vshll.u32 %v6528, 16
        %v6890 = vrot.slane %v6888, 5
        %v6891 = vsel %vm1188, %v6886, %v6890
        %v6893 = vshrl.u32 %v6529, 16
        %v6895 = vrot.slane %v6893, 4
        %v6896 = vshll.u32 %v6529, 16
        %v6898 = vrot.slane %v6896, 5
        %v6899 = vor.u32 %v6895, %v6898
        %v6900 = vrot.slane %v6899, 4
        %v6902 = vshll.u32 %v6530, 16
        %v6904 = vrot.slane %v6902, 5
        %v6905 = vsel %vm1188, %v6900, %v6904
        %v6906 = vshrl.u32 %v6530, 16
        %v6908 = vrot.slane %v6906, 4
        %v6909 = vor.u32 %v6908, %v6904
        %v6910 = vrot.slane %v6909, 4
        %v6912 = vshll.u32 %v6531, 16
        %v6914 = vrot.slane %v6912, 5
        %v6915 = vsel %vm1188, %v6910, %v6914
        %6948 = vst [vmem:[#allocation3 + $0x4] sm:$0xf] %v6545
        %6949 = vst [vmem:[#allocation3 + $0x28] sm:$0xf] %v6555
        %6950 = vst [vmem:[#allocation3 + $0x4c] sm:$0xf] %v6569
        %6951 = vst [vmem:[#allocation3 + $0x70] sm:$0xf] %v6579
        %6952 = vst [vmem:[#allocation3 + $0x94] sm:$0xf] %v6593
        %6953 = vst [vmem:[#allocation3 + $0xb8] sm:$0xf] %v6603
        %6954 = vst [vmem:[#allocation3 + $0xdc] sm:$0xf] %v6617
        %6955 = vst [vmem:[#allocation3 + $0x100] sm:$0xf] %v6627
        %6956 = vst [vmem:[#allocation3 + $0x124] sm:$0xf] %v6641
        %6957 = vst [vmem:[#allocation3 + $0x148] sm:$0xf] %v6651
        %6958 = vst [vmem:[#allocation3 + $0x16c] sm:$0xf] %v6665
        %6959 = vst [vmem:[#allocation3 + $0x190] sm:$0xf] %v6675
        %6960 = vst [vmem:[#allocation3 + $0x1b4] sm:$0xf] %v6689
        %6961 = vst [vmem:[#allocation3 + $0x1d8] sm:$0xf] %v6699
        %6962 = vst [vmem:[#allocation3 + $0x1fc] sm:$0xf] %v6713
        %6963 = vst [vmem:[#allocation3 + $0x220] sm:$0xf] %v6723
        %6964 = vst [vmem:[#allocation3 + $0x244] sm:$0xf] %v6737
        %6965 = vst [vmem:[#allocation3 + $0x268] sm:$0xf] %v6747
        %6966 = vst [vmem:[#allocation3 + $0x28c] sm:$0xf] %v6761
        %6967 = vst [vmem:[#allocation3 + $0x2b0] sm:$0xf] %v6771
        %6968 = vst [vmem:[#allocation3 + $0x2d4] sm:$0xf] %v6785
        %6969 = vst [vmem:[#allocation3 + $0x2f8] sm:$0xf] %v6795
        %6970 = vst [vmem:[#allocation3 + $0x31c] sm:$0xf] %v6809
        %6971 = vst [vmem:[#allocation3 + $0x340] sm:$0xf] %v6819
        %6972 = vst [vmem:[#allocation3 + $0x364] sm:$0xf] %v6833
        %6973 = vst [vmem:[#allocation3 + $0x388] sm:$0xf] %v6843
        %6974 = vst [vmem:[#allocation3 + $0x3ac] sm:$0xf] %v6857
        %6975 = vst [vmem:[#allocation3 + $0x3d0] sm:$0xf] %v6867
        %6976 = vst [vmem:[#allocation3 + $0x3f4] sm:$0xf] %v6881
        %6977 = vst [vmem:[#allocation3 + $0x418] sm:$0xf] %v6891
        %6978 = vst [vmem:[#allocation3 + $0x43c] sm:$0xf] %v6905
        %6979 = vst [vmem:[#allocation3 + $0x460] sm:$0xf] %v6915
        %v6980 = vld [vmem:[#allocation2] sm:$0xe]
        %v6981 = vld [vmem:[#allocation2 + $0x4] sm:$0xf]
        %v6982 = vld [vmem:[#allocation2 + $0x8] sm:$0x1]
        %v6983 = vld [vmem:[#allocation2 + $0xc] sm:$0xe]
        %v6984 = vld [vmem:[#allocation2 + $0x10] sm:$0xf]
        %v6985 = vld [vmem:[#allocation2 + $0x14] sm:$0x1]
        %v6986 = vld [vmem:[#allocation2 + $0x18] sm:$0xe]
        %v6987 = vld [vmem:[#allocation2 + $0x1c] sm:$0xf]
        %v6988 = vld [vmem:[#allocation2 + $0x20] sm:$0x1]
        %v6989 = vld [vmem:[#allocation2 + $0x24] sm:$0xe]
        %v6990 = vld [vmem:[#allocation2 + $0x28] sm:$0xf]
        %v6991 = vld [vmem:[#allocation2 + $0x2c] sm:$0x1]
        %v6992 = vld [vmem:[#allocation2 + $0x30] sm:$0xe]
        %v6993 = vld [vmem:[#allocation2 + $0x34] sm:$0xf]
        %v6994 = vld [vmem:[#allocation2 + $0x38] sm:$0x1]
        %v6995 = vld [vmem:[#allocation2 + $0x3c] sm:$0xe]
        %v6996 = vld [vmem:[#allocation2 + $0x40] sm:$0xf]
        %v6997 = vld [vmem:[#allocation2 + $0x44] sm:$0x1]
        %v6998 = vld [vmem:[#allocation2 + $0x48] sm:$0xe]
        %v6999 = vld [vmem:[#allocation2 + $0x4c] sm:$0xf]
        %v7000 = vld [vmem:[#allocation2 + $0x50] sm:$0x1]
        %v7001 = vld [vmem:[#allocation2 + $0x54] sm:$0xe]
        %v7002 = vld [vmem:[#allocation2 + $0x58] sm:$0xf]
        %v7003 = vld [vmem:[#allocation2 + $0x5c] sm:$0x1]
        %v7004 = vld [vmem:[#allocation2 + $0x60] sm:$0xe]
        %v7005 = vld [vmem:[#allocation2 + $0x64] sm:$0xf]
        %v7006 = vld [vmem:[#allocation2 + $0x68] sm:$0x1]
        %v7007 = vld [vmem:[#allocation2 + $0x6c] sm:$0xe]
        %v7008 = vld [vmem:[#allocation2 + $0x70] sm:$0xf]
        %v7009 = vld [vmem:[#allocation2 + $0x74] sm:$0x1]
        %v7010 = vld [vmem:[#allocation2 + $0x78] sm:$0xe]
        %v7011 = vld [vmem:[#allocation2 + $0x7c] sm:$0xf]
        %v7012 = vld [vmem:[#allocation2 + $0x80] sm:$0x1]
        %v7013 = vld [vmem:[#allocation2 + $0x84] sm:$0xe]
        %v7014 = vld [vmem:[#allocation2 + $0x88] sm:$0xf]
        %v7015 = vld [vmem:[#allocation2 + $0x8c] sm:$0x1]
        %v7016 = vld [vmem:[#allocation2 + $0x90] sm:$0xe]
        %v7017 = vld [vmem:[#allocation2 + $0x94] sm:$0xf]
        %v7018 = vld [vmem:[#allocation2 + $0x98] sm:$0x1]
        %v7019 = vld [vmem:[#allocation2 + $0x9c] sm:$0xe]
        %v7020 = vld [vmem:[#allocation2 + $0xa0] sm:$0xf]
        %v7021 = vld [vmem:[#allocation2 + $0xa4] sm:$0x1]
        %v7022 = vld [vmem:[#allocation2 + $0xa8] sm:$0xe]
        %v7023 = vld [vmem:[#allocation2 + $0xac] sm:$0xf]
        %v7024 = vld [vmem:[#allocation2 + $0xb0] sm:$0x1]
        %v7025 = vld [vmem:[#allocation2 + $0xb4] sm:$0xe]
        %v7026 = vld [vmem:[#allocation2 + $0xb8] sm:$0xf]
        %v7027 = vld [vmem:[#allocation2 + $0xbc] sm:$0x1]
        %v7076 = vrot.slane %v6980, 5
        %v7077 = vrot.slane %v7076, 4
        %v7078 = vrot.slane %v6981, 5
        %v7079 = vsel %vm1735, %v7077, %v7078
        %v7080 = vrot.slane %v7078, 4
        %v7081 = vrot.slane %v6982, 5
        %v7082 = vsel %vm1735, %v7080, %v7081
        %v7083 = vrot.slane %v6983, 5
        %v7084 = vrot.slane %v7083, 4
        %v7085 = vrot.slane %v6984, 5
        %v7086 = vsel %vm1735, %v7084, %v7085
        %v7087 = vrot.slane %v7085, 4
        %v7088 = vrot.slane %v6985, 5
        %v7089 = vsel %vm1735, %v7087, %v7088
        %v7090 = vrot.slane %v6986, 5
        %v7091 = vrot.slane %v7090, 4
        %v7092 = vrot.slane %v6987, 5
        %v7093 = vsel %vm1735, %v7091, %v7092
        %v7094 = vrot.slane %v7092, 4
        %v7095 = vrot.slane %v6988, 5
        %v7096 = vsel %vm1735, %v7094, %v7095
        %v7097 = vrot.slane %v6989, 5
        %v7098 = vrot.slane %v7097, 4
        %v7099 = vrot.slane %v6990, 5
        %v7100 = vsel %vm1735, %v7098, %v7099
        %v7101 = vrot.slane %v7099, 4
        %v7102 = vrot.slane %v6991, 5
        %v7103 = vsel %vm1735, %v7101, %v7102
        %v7104 = vrot.slane %v6992, 5
        %v7105 = vrot.slane %v7104, 4
        %v7106 = vrot.slane %v6993, 5
        %v7107 = vsel %vm1735, %v7105, %v7106
        %v7108 = vrot.slane %v7106, 4
        %v7109 = vrot.slane %v6994, 5
        %v7110 = vsel %vm1735, %v7108, %v7109
        %v7111 = vrot.slane %v6995, 5
        %v7112 = vrot.slane %v7111, 4
        %v7113 = vrot.slane %v6996, 5
        %v7114 = vsel %vm1735, %v7112, %v7113
        %v7115 = vrot.slane %v7113, 4
        %v7116 = vrot.slane %v6997, 5
        %v7117 = vsel %vm1735, %v7115, %v7116
        %v7118 = vrot.slane %v6998, 5
        %v7119 = vrot.slane %v7118, 4
        %v7120 = vrot.slane %v6999, 5
        %v7121 = vsel %vm1735, %v7119, %v7120
        %v7122 = vrot.slane %v7120, 4
        %v7123 = vrot.slane %v7000, 5
        %v7124 = vsel %vm1735, %v7122, %v7123
        %v7125 = vrot.slane %v7001, 5
        %v7126 = vrot.slane %v7125, 4
        %v7127 = vrot.slane %v7002, 5
        %v7128 = vsel %vm1735, %v7126, %v7127
        %v7129 = vrot.slane %v7127, 4
        %v7130 = vrot.slane %v7003, 5
        %v7131 = vsel %vm1735, %v7129, %v7130
        %v7132 = vrot.slane %v7004, 5
        %v7133 = vrot.slane %v7132, 4
        %v7134 = vrot.slane %v7005, 5
        %v7135 = vsel %vm1735, %v7133, %v7134
        %v7136 = vrot.slane %v7134, 4
        %v7137 = vrot.slane %v7006, 5
        %v7138 = vsel %vm1735, %v7136, %v7137
        %v7139 = vrot.slane %v7007, 5
        %v7140 = vrot.slane %v7139, 4
        %v7141 = vrot.slane %v7008, 5
        %v7142 = vsel %vm1735, %v7140, %v7141
        %v7143 = vrot.slane %v7141, 4
        %v7144 = vrot.slane %v7009, 5
        %v7145 = vsel %vm1735, %v7143, %v7144
        %v7146 = vrot.slane %v7010, 5
        %v7147 = vrot.slane %v7146, 4
        %v7148 = vrot.slane %v7011, 5
        %v7149 = vsel %vm1735, %v7147, %v7148
        %v7150 = vrot.slane %v7148, 4
        %v7151 = vrot.slane %v7012, 5
        %v7152 = vsel %vm1735, %v7150, %v7151
        %v7153 = vrot.slane %v7013, 5
        %v7154 = vrot.slane %v7153, 4
        %v7155 = vrot.slane %v7014, 5
        %v7156 = vsel %vm1735, %v7154, %v7155
        %v7157 = vrot.slane %v7155, 4
        %v7158 = vrot.slane %v7015, 5
        %v7159 = vsel %vm1735, %v7157, %v7158
        %v7160 = vrot.slane %v7016, 5
        %v7161 = vrot.slane %v7160, 4
        %v7162 = vrot.slane %v7017, 5
        %v7163 = vsel %vm1735, %v7161, %v7162
        %v7164 = vrot.slane %v7162, 4
        %v7165 = vrot.slane %v7018, 5
        %v7166 = vsel %vm1735, %v7164, %v7165
        %v7167 = vrot.slane %v7019, 5
        %v7168 = vrot.slane %v7167, 4
        %v7169 = vrot.slane %v7020, 5
        %v7170 = vsel %vm1735, %v7168, %v7169
        %v7171 = vrot.slane %v7169, 4
        %v7172 = vrot.slane %v7021, 5
        %v7173 = vsel %vm1735, %v7171, %v7172
        %v7174 = vrot.slane %v7022, 5
        %v7175 = vrot.slane %v7174, 4
        %v7176 = vrot.slane %v7023, 5
        %v7177 = vsel %vm1735, %v7175, %v7176
        %v7178 = vrot.slane %v7176, 4
        %v7179 = vrot.slane %v7024, 5
        %v7180 = vsel %vm1735, %v7178, %v7179
        %v7181 = vrot.slane %v7025, 5
        %v7182 = vrot.slane %v7181, 4
        %v7183 = vrot.slane %v7026, 5
        %v7184 = vsel %vm1735, %v7182, %v7183
        %v7185 = vrot.slane %v7183, 4
        %v7186 = vrot.slane %v7027, 5
        %v7187 = vsel %vm1735, %v7185, %v7186
        %7220 = vst [vmem:[#allocation3 + $0x8] sm:$0xf] %v7079
        %7221 = vst [vmem:[#allocation3 + $0x2c] sm:$0xf] %v7082
        %7222 = vst [vmem:[#allocation3 + $0x50] sm:$0xf] %v7086
        %7223 = vst [vmem:[#allocation3 + $0x74] sm:$0xf] %v7089
        %7224 = vst [vmem:[#allocation3 + $0x98] sm:$0xf] %v7093
        %7225 = vst [vmem:[#allocation3 + $0xbc] sm:$0xf] %v7096
        %7226 = vst [vmem:[#allocation3 + $0xe0] sm:$0xf] %v7100
        %7227 = vst [vmem:[#allocation3 + $0x104] sm:$0xf] %v7103
        %7228 = vst [vmem:[#allocation3 + $0x128] sm:$0xf] %v7107
        %7229 = vst [vmem:[#allocation3 + $0x14c] sm:$0xf] %v7110
        %7230 = vst [vmem:[#allocation3 + $0x170] sm:$0xf] %v7114
        %7231 = vst [vmem:[#allocation3 + $0x194] sm:$0xf] %v7117
        %7232 = vst [vmem:[#allocation3 + $0x1b8] sm:$0xf] %v7121
        %7233 = vst [vmem:[#allocation3 + $0x1dc] sm:$0xf] %v7124
        %7234 = vst [vmem:[#allocation3 + $0x200] sm:$0xf] %v7128
        %7235 = vst [vmem:[#allocation3 + $0x224] sm:$0xf] %v7131
        %7236 = vst [vmem:[#allocation3 + $0x248] sm:$0xf] %v7135
        %7237 = vst [vmem:[#allocation3 + $0x26c] sm:$0xf] %v7138
        %7238 = vst [vmem:[#allocation3 + $0x290] sm:$0xf] %v7142
        %7239 = vst [vmem:[#allocation3 + $0x2b4] sm:$0xf] %v7145
        %7240 = vst [vmem:[#allocation3 + $0x2d8] sm:$0xf] %v7149
        %7241 = vst [vmem:[#allocation3 + $0x2fc] sm:$0xf] %v7152
        %7242 = vst [vmem:[#allocation3 + $0x320] sm:$0xf] %v7156
        %7243 = vst [vmem:[#allocation3 + $0x344] sm:$0xf] %v7159
        %7244 = vst [vmem:[#allocation3 + $0x368] sm:$0xf] %v7163
        %7245 = vst [vmem:[#allocation3 + $0x38c] sm:$0xf] %v7166
        %7246 = vst [vmem:[#allocation3 + $0x3b0] sm:$0xf] %v7170
        %7247 = vst [vmem:[#allocation3 + $0x3d4] sm:$0xf] %v7173
        %7248 = vst [vmem:[#allocation3 + $0x3f8] sm:$0xf] %v7177
        %7249 = vst [vmem:[#allocation3 + $0x41c] sm:$0xf] %v7180
        %7250 = vst [vmem:[#allocation3 + $0x440] sm:$0xf] %v7184
        %7251 = vst [vmem:[#allocation3 + $0x464] sm:$0xf] %v7187
        %v7252 = vld [vmem:[%s485] sm:$0xf]
        %v7253 = vld [vmem:[%s485 + $0x4] sm:$0xf]
        %v7254 = vld [vmem:[%s485 + $0xc] sm:$0xf]
        %v7255 = vld [vmem:[%s485 + $0x10] sm:$0xf]
        %v7256 = vld [vmem:[%s485 + $0x18] sm:$0xf]
        %v7257 = vld [vmem:[%s485 + $0x1c] sm:$0xf]
        %v7258 = vld [vmem:[%s485 + $0x24] sm:$0xf]
        %v7259 = vld [vmem:[%s485 + $0x28] sm:$0xf]
        %v7260 = vld [vmem:[%s485 + $0x30] sm:$0xf]
        %v7261 = vld [vmem:[%s485 + $0x34] sm:$0xf]
        %v7262 = vld [vmem:[%s485 + $0x3c] sm:$0xf]
        %v7263 = vld [vmem:[%s485 + $0x40] sm:$0xf]
        %v7264 = vld [vmem:[%s485 + $0x48] sm:$0xf]
        %v7265 = vld [vmem:[%s485 + $0x4c] sm:$0xf]
        %v7266 = vld [vmem:[%s485 + $0x54] sm:$0xf]
        %v7267 = vld [vmem:[%s485 + $0x58] sm:$0xf]
        %v7268 = vld [vmem:[%s485 + $0x60] sm:$0xf]
        %v7269 = vld [vmem:[%s485 + $0x64] sm:$0xf]
        %v7270 = vld [vmem:[%s485 + $0x6c] sm:$0xf]
        %v7271 = vld [vmem:[%s485 + $0x70] sm:$0xf]
        %v7272 = vld [vmem:[%s485 + $0x78] sm:$0xf]
        %v7273 = vld [vmem:[%s485 + $0x7c] sm:$0xf]
        %v7274 = vld [vmem:[%s485 + $0x84] sm:$0xf]
        %v7275 = vld [vmem:[%s485 + $0x88] sm:$0xf]
        %v7276 = vld [vmem:[%s485 + $0x90] sm:$0xf]
        %v7277 = vld [vmem:[%s485 + $0x94] sm:$0xf]
        %v7278 = vld [vmem:[%s485 + $0x9c] sm:$0xf]
        %v7279 = vld [vmem:[%s485 + $0xa0] sm:$0xf]
        %v7280 = vld [vmem:[%s485 + $0xa8] sm:$0xf]
        %v7281 = vld [vmem:[%s485 + $0xac] sm:$0xf]
        %v7282 = vld [vmem:[%s485 + $0xb4] sm:$0xf]
        %v7283 = vld [vmem:[%s485 + $0xb8] sm:$0xf]
        %7284 = vst [vmem:[#allocation3 + $0xc] sm:$0xf] %v7252
        %7285 = vst [vmem:[#allocation3 + $0x30] sm:$0xf] %v7253
        %7286 = vst [vmem:[#allocation3 + $0x54] sm:$0xf] %v7254
        %7287 = vst [vmem:[#allocation3 + $0x78] sm:$0xf] %v7255
        %7288 = vst [vmem:[#allocation3 + $0x9c] sm:$0xf] %v7256
        %7289 = vst [vmem:[#allocation3 + $0xc0] sm:$0xf] %v7257
        %7290 = vst [vmem:[#allocation3 + $0xe4] sm:$0xf] %v7258
        %7291 = vst [vmem:[#allocation3 + $0x108] sm:$0xf] %v7259
        %7292 = vst [vmem:[#allocation3 + $0x12c] sm:$0xf] %v7260
        %7293 = vst [vmem:[#allocation3 + $0x150] sm:$0xf] %v7261
        %7294 = vst [vmem:[#allocation3 + $0x174] sm:$0xf] %v7262
        %7295 = vst [vmem:[#allocation3 + $0x198] sm:$0xf] %v7263
        %7296 = vst [vmem:[#allocation3 + $0x1bc] sm:$0xf] %v7264
        %7297 = vst [vmem:[#allocation3 + $0x1e0] sm:$0xf] %v7265
        %7298 = vst [vmem:[#allocation3 + $0x204] sm:$0xf] %v7266
        %7299 = vst [vmem:[#allocation3 + $0x228] sm:$0xf] %v7267
        %7300 = vst [vmem:[#allocation3 + $0x24c] sm:$0xf] %v7268
        %7301 = vst [vmem:[#allocation3 + $0x270] sm:$0xf] %v7269
        %7302 = vst [vmem:[#allocation3 + $0x294] sm:$0xf] %v7270
        %7303 = vst [vmem:[#allocation3 + $0x2b8] sm:$0xf] %v7271
        %7304 = vst [vmem:[#allocation3 + $0x2dc] sm:$0xf] %v7272
        %7305 = vst [vmem:[#allocation3 + $0x300] sm:$0xf] %v7273
        %7306 = vst [vmem:[#allocation3 + $0x324] sm:$0xf] %v7274
        %7307 = vst [vmem:[#allocation3 + $0x348] sm:$0xf] %v7275
        %7308 = vst [vmem:[#allocation3 + $0x36c] sm:$0xf] %v7276
        %7309 = vst [vmem:[#allocation3 + $0x390] sm:$0xf] %v7277
        %7310 = vst [vmem:[#allocation3 + $0x3b4] sm:$0xf] %v7278
        %7311 = vst [vmem:[#allocation3 + $0x3d8] sm:$0xf] %v7279
        %7312 = vst [vmem:[#allocation3 + $0x3fc] sm:$0xf] %v7280
        %7313 = vst [vmem:[#allocation3 + $0x420] sm:$0xf] %v7281
        %7314 = vst [vmem:[#allocation3 + $0x444] sm:$0xf] %v7282
        %7315 = vst [vmem:[#allocation3 + $0x468] sm:$0xf] %v7283
        %v7316 = vld [vmem:[%s485] sm:$0xf]
        %v7317 = vld [vmem:[%s485 + $0x4] sm:$0xf]
        %v7318 = vld [vmem:[%s485 + $0x8] sm:$0x1]
        %v7319 = vld [vmem:[%s485 + $0xc] sm:$0xf]
        %v7320 = vld [vmem:[%s485 + $0x10] sm:$0xf]
        %v7321 = vld [vmem:[%s485 + $0x14] sm:$0x1]
        %v7322 = vld [vmem:[%s485 + $0x18] sm:$0xf]
        %v7323 = vld [vmem:[%s485 + $0x1c] sm:$0xf]
        %v7324 = vld [vmem:[%s485 + $0x20] sm:$0x1]
        %v7325 = vld [vmem:[%s485 + $0x24] sm:$0xf]
        %v7326 = vld [vmem:[%s485 + $0x28] sm:$0xf]
        %v7327 = vld [vmem:[%s485 + $0x2c] sm:$0x1]
        %v7328 = vld [vmem:[%s485 + $0x30] sm:$0xf]
        %v7329 = vld [vmem:[%s485 + $0x34] sm:$0xf]
        %v7330 = vld [vmem:[%s485 + $0x38] sm:$0x1]
        %v7331 = vld [vmem:[%s485 + $0x3c] sm:$0xf]
        %v7332 = vld [vmem:[%s485 + $0x40] sm:$0xf]
        %v7333 = vld [vmem:[%s485 + $0x44] sm:$0x1]
        %v7334 = vld [vmem:[%s485 + $0x48] sm:$0xf]
        %v7335 = vld [vmem:[%s485 + $0x4c] sm:$0xf]
        %v7336 = vld [vmem:[%s485 + $0x50] sm:$0x1]
        %v7337 = vld [vmem:[%s485 + $0x54] sm:$0xf]
        %v7338 = vld [vmem:[%s485 + $0x58] sm:$0xf]
        %v7339 = vld [vmem:[%s485 + $0x5c] sm:$0x1]
        %v7340 = vld [vmem:[%s485 + $0x60] sm:$0xf]
        %v7341 = vld [vmem:[%s485 + $0x64] sm:$0xf]
        %v7342 = vld [vmem:[%s485 + $0x68] sm:$0x1]
        %v7343 = vld [vmem:[%s485 + $0x6c] sm:$0xf]
        %v7344 = vld [vmem:[%s485 + $0x70] sm:$0xf]
        %v7345 = vld [vmem:[%s485 + $0x74] sm:$0x1]
        %v7346 = vld [vmem:[%s485 + $0x78] sm:$0xf]
        %v7347 = vld [vmem:[%s485 + $0x7c] sm:$0xf]
        %v7348 = vld [vmem:[%s485 + $0x80] sm:$0x1]
        %v7349 = vld [vmem:[%s485 + $0x84] sm:$0xf]
        %v7350 = vld [vmem:[%s485 + $0x88] sm:$0xf]
        %v7351 = vld [vmem:[%s485 + $0x8c] sm:$0x1]
        %v7352 = vld [vmem:[%s485 + $0x90] sm:$0xf]
        %v7353 = vld [vmem:[%s485 + $0x94] sm:$0xf]
        %v7354 = vld [vmem:[%s485 + $0x98] sm:$0x1]
        %v7355 = vld [vmem:[%s485 + $0x9c] sm:$0xf]
        %v7356 = vld [vmem:[%s485 + $0xa0] sm:$0xf]
        %v7357 = vld [vmem:[%s485 + $0xa4] sm:$0x1]
        %v7358 = vld [vmem:[%s485 + $0xa8] sm:$0xf]
        %v7359 = vld [vmem:[%s485 + $0xac] sm:$0xf]
        %v7360 = vld [vmem:[%s485 + $0xb0] sm:$0x1]
        %v7361 = vld [vmem:[%s485 + $0xb4] sm:$0xf]
        %v7362 = vld [vmem:[%s485 + $0xb8] sm:$0xf]
        %v7363 = vld [vmem:[%s485 + $0xbc] sm:$0x1]
        %v7365 = vshrl.u32 %v7316, 16
        %v7367 = vrot.slane %v7365, 4
        %v7368 = vshll.u32 %v7316, 16
        %v7370 = vrot.slane %v7368, 5
        %v7371 = vor.u32 %v7367, %v7370
        %v7372 = vrot.slane %v7371, 4
        %v7374 = vshll.u32 %v7317, 16
        %v7376 = vrot.slane %v7374, 5
        %v7377 = vsel %vm1188, %v7372, %v7376
        %v7378 = vshrl.u32 %v7317, 16
        %v7380 = vrot.slane %v7378, 4
        %v7381 = vor.u32 %v7380, %v7376
        %v7382 = vrot.slane %v7381, 4
        %v7384 = vshll.u32 %v7318, 16
        %v7386 = vrot.slane %v7384, 5
        %v7387 = vsel %vm1188, %v7382, %v7386
        %v7389 = vshrl.u32 %v7319, 16
        %v7391 = vrot.slane %v7389, 4
        %v7392 = vshll.u32 %v7319, 16
        %v7394 = vrot.slane %v7392, 5
        %v7395 = vor.u32 %v7391, %v7394
        %v7396 = vrot.slane %v7395, 4
        %v7398 = vshll.u32 %v7320, 16
        %v7400 = vrot.slane %v7398, 5
        %v7401 = vsel %vm1188, %v7396, %v7400
        %v7402 = vshrl.u32 %v7320, 16
        %v7404 = vrot.slane %v7402, 4
        %v7405 = vor.u32 %v7404, %v7400
        %v7406 = vrot.slane %v7405, 4
        %v7408 = vshll.u32 %v7321, 16
        %v7410 = vrot.slane %v7408, 5
        %v7411 = vsel %vm1188, %v7406, %v7410
        %v7413 = vshrl.u32 %v7322, 16
        %v7415 = vrot.slane %v7413, 4
        %v7416 = vshll.u32 %v7322, 16
        %v7418 = vrot.slane %v7416, 5
        %v7419 = vor.u32 %v7415, %v7418
        %v7420 = vrot.slane %v7419, 4
        %v7422 = vshll.u32 %v7323, 16
        %v7424 = vrot.slane %v7422, 5
        %v7425 = vsel %vm1188, %v7420, %v7424
        %v7426 = vshrl.u32 %v7323, 16
        %v7428 = vrot.slane %v7426, 4
        %v7429 = vor.u32 %v7428, %v7424
        %v7430 = vrot.slane %v7429, 4
        %v7432 = vshll.u32 %v7324, 16
        %v7434 = vrot.slane %v7432, 5
        %v7435 = vsel %vm1188, %v7430, %v7434
        %v7437 = vshrl.u32 %v7325, 16
        %v7439 = vrot.slane %v7437, 4
        %v7440 = vshll.u32 %v7325, 16
        %v7442 = vrot.slane %v7440, 5
        %v7443 = vor.u32 %v7439, %v7442
        %v7444 = vrot.slane %v7443, 4
        %v7446 = vshll.u32 %v7326, 16
        %v7448 = vrot.slane %v7446, 5
        %v7449 = vsel %vm1188, %v7444, %v7448
        %v7450 = vshrl.u32 %v7326, 16
        %v7452 = vrot.slane %v7450, 4
        %v7453 = vor.u32 %v7452, %v7448
        %v7454 = vrot.slane %v7453, 4
        %v7456 = vshll.u32 %v7327, 16
        %v7458 = vrot.slane %v7456, 5
        %v7459 = vsel %vm1188, %v7454, %v7458
        %v7461 = vshrl.u32 %v7328, 16
        %v7463 = vrot.slane %v7461, 4
        %v7464 = vshll.u32 %v7328, 16
        %v7466 = vrot.slane %v7464, 5
        %v7467 = vor.u32 %v7463, %v7466
        %v7468 = vrot.slane %v7467, 4
        %v7470 = vshll.u32 %v7329, 16
        %v7472 = vrot.slane %v7470, 5
        %v7473 = vsel %vm1188, %v7468, %v7472
        %v7474 = vshrl.u32 %v7329, 16
        %v7476 = vrot.slane %v7474, 4
        %v7477 = vor.u32 %v7476, %v7472
        %v7478 = vrot.slane %v7477, 4
        %v7480 = vshll.u32 %v7330, 16
        %v7482 = vrot.slane %v7480, 5
        %v7483 = vsel %vm1188, %v7478, %v7482
        %v7485 = vshrl.u32 %v7331, 16
        %v7487 = vrot.slane %v7485, 4
        %v7488 = vshll.u32 %v7331, 16
        %v7490 = vrot.slane %v7488, 5
        %v7491 = vor.u32 %v7487, %v7490
        %v7492 = vrot.slane %v7491, 4
        %v7494 = vshll.u32 %v7332, 16
        %v7496 = vrot.slane %v7494, 5
        %v7497 = vsel %vm1188, %v7492, %v7496
        %v7498 = vshrl.u32 %v7332, 16
        %v7500 = vrot.slane %v7498, 4
        %v7501 = vor.u32 %v7500, %v7496
        %v7502 = vrot.slane %v7501, 4
        %v7504 = vshll.u32 %v7333, 16
        %v7506 = vrot.slane %v7504, 5
        %v7507 = vsel %vm1188, %v7502, %v7506
        %v7509 = vshrl.u32 %v7334, 16
        %v7511 = vrot.slane %v7509, 4
        %v7512 = vshll.u32 %v7334, 16
        %v7514 = vrot.slane %v7512, 5
        %v7515 = vor.u32 %v7511, %v7514
        %v7516 = vrot.slane %v7515, 4
        %v7518 = vshll.u32 %v7335, 16
        %v7520 = vrot.slane %v7518, 5
        %v7521 = vsel %vm1188, %v7516, %v7520
        %v7522 = vshrl.u32 %v7335, 16
        %v7524 = vrot.slane %v7522, 4
        %v7525 = vor.u32 %v7524, %v7520
        %v7526 = vrot.slane %v7525, 4
        %v7528 = vshll.u32 %v7336, 16
        %v7530 = vrot.slane %v7528, 5
        %v7531 = vsel %vm1188, %v7526, %v7530
        %v7533 = vshrl.u32 %v7337, 16
        %v7535 = vrot.slane %v7533, 4
        %v7536 = vshll.u32 %v7337, 16
        %v7538 = vrot.slane %v7536, 5
        %v7539 = vor.u32 %v7535, %v7538
        %v7540 = vrot.slane %v7539, 4
        %v7542 = vshll.u32 %v7338, 16
        %v7544 = vrot.slane %v7542, 5
        %v7545 = vsel %vm1188, %v7540, %v7544
        %v7546 = vshrl.u32 %v7338, 16
        %v7548 = vrot.slane %v7546, 4
        %v7549 = vor.u32 %v7548, %v7544
        %v7550 = vrot.slane %v7549, 4
        %v7552 = vshll.u32 %v7339, 16
        %v7554 = vrot.slane %v7552, 5
        %v7555 = vsel %vm1188, %v7550, %v7554
        %v7557 = vshrl.u32 %v7340, 16
        %v7559 = vrot.slane %v7557, 4
        %v7560 = vshll.u32 %v7340, 16
        %v7562 = vrot.slane %v7560, 5
        %v7563 = vor.u32 %v7559, %v7562
        %v7564 = vrot.slane %v7563, 4
        %v7566 = vshll.u32 %v7341, 16
        %v7568 = vrot.slane %v7566, 5
        %v7569 = vsel %vm1188, %v7564, %v7568
        %v7570 = vshrl.u32 %v7341, 16
        %v7572 = vrot.slane %v7570, 4
        %v7573 = vor.u32 %v7572, %v7568
        %v7574 = vrot.slane %v7573, 4
        %v7576 = vshll.u32 %v7342, 16
        %v7578 = vrot.slane %v7576, 5
        %v7579 = vsel %vm1188, %v7574, %v7578
        %v7581 = vshrl.u32 %v7343, 16
        %v7583 = vrot.slane %v7581, 4
        %v7584 = vshll.u32 %v7343, 16
        %v7586 = vrot.slane %v7584, 5
        %v7587 = vor.u32 %v7583, %v7586
        %v7588 = vrot.slane %v7587, 4
        %v7590 = vshll.u32 %v7344, 16
        %v7592 = vrot.slane %v7590, 5
        %v7593 = vsel %vm1188, %v7588, %v7592
        %v7594 = vshrl.u32 %v7344, 16
        %v7596 = vrot.slane %v7594, 4
        %v7597 = vor.u32 %v7596, %v7592
        %v7598 = vrot.slane %v7597, 4
        %v7600 = vshll.u32 %v7345, 16
        %v7602 = vrot.slane %v7600, 5
        %v7603 = vsel %vm1188, %v7598, %v7602
        %v7605 = vshrl.u32 %v7346, 16
        %v7607 = vrot.slane %v7605, 4
        %v7608 = vshll.u32 %v7346, 16
        %v7610 = vrot.slane %v7608, 5
        %v7611 = vor.u32 %v7607, %v7610
        %v7612 = vrot.slane %v7611, 4
        %v7614 = vshll.u32 %v7347, 16
        %v7616 = vrot.slane %v7614, 5
        %v7617 = vsel %vm1188, %v7612, %v7616
        %v7618 = vshrl.u32 %v7347, 16
        %v7620 = vrot.slane %v7618, 4
        %v7621 = vor.u32 %v7620, %v7616
        %v7622 = vrot.slane %v7621, 4
        %v7624 = vshll.u32 %v7348, 16
        %v7626 = vrot.slane %v7624, 5
        %v7627 = vsel %vm1188, %v7622, %v7626
        %v7629 = vshrl.u32 %v7349, 16
        %v7631 = vrot.slane %v7629, 4
        %v7632 = vshll.u32 %v7349, 16
        %v7634 = vrot.slane %v7632, 5
        %v7635 = vor.u32 %v7631, %v7634
        %v7636 = vrot.slane %v7635, 4
        %v7638 = vshll.u32 %v7350, 16
        %v7640 = vrot.slane %v7638, 5
        %v7641 = vsel %vm1188, %v7636, %v7640
        %v7642 = vshrl.u32 %v7350, 16
        %v7644 = vrot.slane %v7642, 4
        %v7645 = vor.u32 %v7644, %v7640
        %v7646 = vrot.slane %v7645, 4
        %v7648 = vshll.u32 %v7351, 16
        %v7650 = vrot.slane %v7648, 5
        %v7651 = vsel %vm1188, %v7646, %v7650
        %v7653 = vshrl.u32 %v7352, 16
        %v7655 = vrot.slane %v7653, 4
        %v7656 = vshll.u32 %v7352, 16
        %v7658 = vrot.slane %v7656, 5
        %v7659 = vor.u32 %v7655, %v7658
        %v7660 = vrot.slane %v7659, 4
        %v7662 = vshll.u32 %v7353, 16
        %v7664 = vrot.slane %v7662, 5
        %v7665 = vsel %vm1188, %v7660, %v7664
        %v7666 = vshrl.u32 %v7353, 16
        %v7668 = vrot.slane %v7666, 4
        %v7669 = vor.u32 %v7668, %v7664
        %v7670 = vrot.slane %v7669, 4
        %v7672 = vshll.u32 %v7354, 16
        %v7674 = vrot.slane %v7672, 5
        %v7675 = vsel %vm1188, %v7670, %v7674
        %v7677 = vshrl.u32 %v7355, 16
        %v7679 = vrot.slane %v7677, 4
        %v7680 = vshll.u32 %v7355, 16
        %v7682 = vrot.slane %v7680, 5
        %v7683 = vor.u32 %v7679, %v7682
        %v7684 = vrot.slane %v7683, 4
        %v7686 = vshll.u32 %v7356, 16
        %v7688 = vrot.slane %v7686, 5
        %v7689 = vsel %vm1188, %v7684, %v7688
        %v7690 = vshrl.u32 %v7356, 16
        %v7692 = vrot.slane %v7690, 4
        %v7693 = vor.u32 %v7692, %v7688
        %v7694 = vrot.slane %v7693, 4
        %v7696 = vshll.u32 %v7357, 16
        %v7698 = vrot.slane %v7696, 5
        %v7699 = vsel %vm1188, %v7694, %v7698
        %v7701 = vshrl.u32 %v7358, 16
        %v7703 = vrot.slane %v7701, 4
        %v7704 = vshll.u32 %v7358, 16
        %v7706 = vrot.slane %v7704, 5
        %v7707 = vor.u32 %v7703, %v7706
        %v7708 = vrot.slane %v7707, 4
        %v7710 = vshll.u32 %v7359, 16
        %v7712 = vrot.slane %v7710, 5
        %v7713 = vsel %vm1188, %v7708, %v7712
        %v7714 = vshrl.u32 %v7359, 16
        %v7716 = vrot.slane %v7714, 4
        %v7717 = vor.u32 %v7716, %v7712
        %v7718 = vrot.slane %v7717, 4
        %v7720 = vshll.u32 %v7360, 16
        %v7722 = vrot.slane %v7720, 5
        %v7723 = vsel %vm1188, %v7718, %v7722
        %v7725 = vshrl.u32 %v7361, 16
        %v7727 = vrot.slane %v7725, 4
        %v7728 = vshll.u32 %v7361, 16
        %v7730 = vrot.slane %v7728, 5
        %v7731 = vor.u32 %v7727, %v7730
        %v7732 = vrot.slane %v7731, 4
        %v7734 = vshll.u32 %v7362, 16
        %v7736 = vrot.slane %v7734, 5
        %v7737 = vsel %vm1188, %v7732, %v7736
        %v7738 = vshrl.u32 %v7362, 16
        %v7740 = vrot.slane %v7738, 4
        %v7741 = vor.u32 %v7740, %v7736
        %v7742 = vrot.slane %v7741, 4
        %v7744 = vshll.u32 %v7363, 16
        %v7746 = vrot.slane %v7744, 5
        %v7747 = vsel %vm1188, %v7742, %v7746
        %7780 = vst [vmem:[#allocation3 + $0x10] sm:$0xf] %v7377
        %7781 = vst [vmem:[#allocation3 + $0x34] sm:$0xf] %v7387
        %7782 = vst [vmem:[#allocation3 + $0x58] sm:$0xf] %v7401
        %7783 = vst [vmem:[#allocation3 + $0x7c] sm:$0xf] %v7411
        %7784 = vst [vmem:[#allocation3 + $0xa0] sm:$0xf] %v7425
        %7785 = vst [vmem:[#allocation3 + $0xc4] sm:$0xf] %v7435
        %7786 = vst [vmem:[#allocation3 + $0xe8] sm:$0xf] %v7449
        %7787 = vst [vmem:[#allocation3 + $0x10c] sm:$0xf] %v7459
        %7788 = vst [vmem:[#allocation3 + $0x130] sm:$0xf] %v7473
        %7789 = vst [vmem:[#allocation3 + $0x154] sm:$0xf] %v7483
        %7790 = vst [vmem:[#allocation3 + $0x178] sm:$0xf] %v7497
        %7791 = vst [vmem:[#allocation3 + $0x19c] sm:$0xf] %v7507
        %7792 = vst [vmem:[#allocation3 + $0x1c0] sm:$0xf] %v7521
        %7793 = vst [vmem:[#allocation3 + $0x1e4] sm:$0xf] %v7531
        %7794 = vst [vmem:[#allocation3 + $0x208] sm:$0xf] %v7545
        %7795 = vst [vmem:[#allocation3 + $0x22c] sm:$0xf] %v7555
        %7796 = vst [vmem:[#allocation3 + $0x250] sm:$0xf] %v7569
        %7797 = vst [vmem:[#allocation3 + $0x274] sm:$0xf] %v7579
        %7798 = vst [vmem:[#allocation3 + $0x298] sm:$0xf] %v7593
        %7799 = vst [vmem:[#allocation3 + $0x2bc] sm:$0xf] %v7603
        %7800 = vst [vmem:[#allocation3 + $0x2e0] sm:$0xf] %v7617
        %7801 = vst [vmem:[#allocation3 + $0x304] sm:$0xf] %v7627
        %7802 = vst [vmem:[#allocation3 + $0x328] sm:$0xf] %v7641
        %7803 = vst [vmem:[#allocation3 + $0x34c] sm:$0xf] %v7651
        %7804 = vst [vmem:[#allocation3 + $0x370] sm:$0xf] %v7665
        %7805 = vst [vmem:[#allocation3 + $0x394] sm:$0xf] %v7675
        %7806 = vst [vmem:[#allocation3 + $0x3b8] sm:$0xf] %v7689
        %7807 = vst [vmem:[#allocation3 + $0x3dc] sm:$0xf] %v7699
        %7808 = vst [vmem:[#allocation3 + $0x400] sm:$0xf] %v7713
        %7809 = vst [vmem:[#allocation3 + $0x424] sm:$0xf] %v7723
        %7810 = vst [vmem:[#allocation3 + $0x448] sm:$0xf] %v7737
        %7811 = vst [vmem:[#allocation3 + $0x46c] sm:$0xf] %v7747
        %v7812 = vld [vmem:[%s485] sm:$0xe]
        %v7813 = vld [vmem:[%s485 + $0x4] sm:$0xf]
        %v7814 = vld [vmem:[%s485 + $0x8] sm:$0x1]
        %v7815 = vld [vmem:[%s485 + $0xc] sm:$0xe]
        %v7816 = vld [vmem:[%s485 + $0x10] sm:$0xf]
        %v7817 = vld [vmem:[%s485 + $0x14] sm:$0x1]
        %v7818 = vld [vmem:[%s485 + $0x18] sm:$0xe]
        %v7819 = vld [vmem:[%s485 + $0x1c] sm:$0xf]
        %v7820 = vld [vmem:[%s485 + $0x20] sm:$0x1]
        %v7821 = vld [vmem:[%s485 + $0x24] sm:$0xe]
        %v7822 = vld [vmem:[%s485 + $0x28] sm:$0xf]
        %v7823 = vld [vmem:[%s485 + $0x2c] sm:$0x1]
        %v7824 = vld [vmem:[%s485 + $0x30] sm:$0xe]
        %v7825 = vld [vmem:[%s485 + $0x34] sm:$0xf]
        %v7826 = vld [vmem:[%s485 + $0x38] sm:$0x1]
        %v7827 = vld [vmem:[%s485 + $0x3c] sm:$0xe]
        %v7828 = vld [vmem:[%s485 + $0x40] sm:$0xf]
        %v7829 = vld [vmem:[%s485 + $0x44] sm:$0x1]
        %v7830 = vld [vmem:[%s485 + $0x48] sm:$0xe]
        %v7831 = vld [vmem:[%s485 + $0x4c] sm:$0xf]
        %v7832 = vld [vmem:[%s485 + $0x50] sm:$0x1]
        %v7833 = vld [vmem:[%s485 + $0x54] sm:$0xe]
        %v7834 = vld [vmem:[%s485 + $0x58] sm:$0xf]
        %v7835 = vld [vmem:[%s485 + $0x5c] sm:$0x1]
        %v7836 = vld [vmem:[%s485 + $0x60] sm:$0xe]
        %v7837 = vld [vmem:[%s485 + $0x64] sm:$0xf]
        %v7838 = vld [vmem:[%s485 + $0x68] sm:$0x1]
        %v7839 = vld [vmem:[%s485 + $0x6c] sm:$0xe]
        %v7840 = vld [vmem:[%s485 + $0x70] sm:$0xf]
        %v7841 = vld [vmem:[%s485 + $0x74] sm:$0x1]
        %v7842 = vld [vmem:[%s485 + $0x78] sm:$0xe]
        %v7843 = vld [vmem:[%s485 + $0x7c] sm:$0xf]
        %v7844 = vld [vmem:[%s485 + $0x80] sm:$0x1]
        %v7845 = vld [vmem:[%s485 + $0x84] sm:$0xe]
        %v7846 = vld [vmem:[%s485 + $0x88] sm:$0xf]
        %v7847 = vld [vmem:[%s485 + $0x8c] sm:$0x1]
        %v7848 = vld [vmem:[%s485 + $0x90] sm:$0xe]
        %v7849 = vld [vmem:[%s485 + $0x94] sm:$0xf]
        %v7850 = vld [vmem:[%s485 + $0x98] sm:$0x1]
        %v7851 = vld [vmem:[%s485 + $0x9c] sm:$0xe]
        %v7852 = vld [vmem:[%s485 + $0xa0] sm:$0xf]
        %v7853 = vld [vmem:[%s485 + $0xa4] sm:$0x1]
        %v7854 = vld [vmem:[%s485 + $0xa8] sm:$0xe]
        %v7855 = vld [vmem:[%s485 + $0xac] sm:$0xf]
        %v7856 = vld [vmem:[%s485 + $0xb0] sm:$0x1]
        %v7857 = vld [vmem:[%s485 + $0xb4] sm:$0xe]
        %v7858 = vld [vmem:[%s485 + $0xb8] sm:$0xf]
        %v7859 = vld [vmem:[%s485 + $0xbc] sm:$0x1]
        %v7908 = vrot.slane %v7812, 5
        %v7909 = vrot.slane %v7908, 4
        %v7910 = vrot.slane %v7813, 5
        %v7911 = vsel %vm1735, %v7909, %v7910
        %v7912 = vrot.slane %v7910, 4
        %v7913 = vrot.slane %v7814, 5
        %v7914 = vsel %vm1735, %v7912, %v7913
        %v7915 = vrot.slane %v7815, 5
        %v7916 = vrot.slane %v7915, 4
        %v7917 = vrot.slane %v7816, 5
        %v7918 = vsel %vm1735, %v7916, %v7917
        %v7919 = vrot.slane %v7917, 4
        %v7920 = vrot.slane %v7817, 5
        %v7921 = vsel %vm1735, %v7919, %v7920
        %v7922 = vrot.slane %v7818, 5
        %v7923 = vrot.slane %v7922, 4
        %v7924 = vrot.slane %v7819, 5
        %v7925 = vsel %vm1735, %v7923, %v7924
        %v7926 = vrot.slane %v7924, 4
        %v7927 = vrot.slane %v7820, 5
        %v7928 = vsel %vm1735, %v7926, %v7927
        %v7929 = vrot.slane %v7821, 5
        %v7930 = vrot.slane %v7929, 4
        %v7931 = vrot.slane %v7822, 5
        %v7932 = vsel %vm1735, %v7930, %v7931
        %v7933 = vrot.slane %v7931, 4
        %v7934 = vrot.slane %v7823, 5
        %v7935 = vsel %vm1735, %v7933, %v7934
        %v7936 = vrot.slane %v7824, 5
        %v7937 = vrot.slane %v7936, 4
        %v7938 = vrot.slane %v7825, 5
        %v7939 = vsel %vm1735, %v7937, %v7938
        %v7940 = vrot.slane %v7938, 4
        %v7941 = vrot.slane %v7826, 5
        %v7942 = vsel %vm1735, %v7940, %v7941
        %v7943 = vrot.slane %v7827, 5
        %v7944 = vrot.slane %v7943, 4
        %v7945 = vrot.slane %v7828, 5
        %v7946 = vsel %vm1735, %v7944, %v7945
        %v7947 = vrot.slane %v7945, 4
        %v7948 = vrot.slane %v7829, 5
        %v7949 = vsel %vm1735, %v7947, %v7948
        %v7950 = vrot.slane %v7830, 5
        %v7951 = vrot.slane %v7950, 4
        %v7952 = vrot.slane %v7831, 5
        %v7953 = vsel %vm1735, %v7951, %v7952
        %v7954 = vrot.slane %v7952, 4
        %v7955 = vrot.slane %v7832, 5
        %v7956 = vsel %vm1735, %v7954, %v7955
        %v7957 = vrot.slane %v7833, 5
        %v7958 = vrot.slane %v7957, 4
        %v7959 = vrot.slane %v7834, 5
        %v7960 = vsel %vm1735, %v7958, %v7959
        %v7961 = vrot.slane %v7959, 4
        %v7962 = vrot.slane %v7835, 5
        %v7963 = vsel %vm1735, %v7961, %v7962
        %v7964 = vrot.slane %v7836, 5
        %v7965 = vrot.slane %v7964, 4
        %v7966 = vrot.slane %v7837, 5
        %v7967 = vsel %vm1735, %v7965, %v7966
        %v7968 = vrot.slane %v7966, 4
        %v7969 = vrot.slane %v7838, 5
        %v7970 = vsel %vm1735, %v7968, %v7969
        %v7971 = vrot.slane %v7839, 5
        %v7972 = vrot.slane %v7971, 4
        %v7973 = vrot.slane %v7840, 5
        %v7974 = vsel %vm1735, %v7972, %v7973
        %v7975 = vrot.slane %v7973, 4
        %v7976 = vrot.slane %v7841, 5
        %v7977 = vsel %vm1735, %v7975, %v7976
        %v7978 = vrot.slane %v7842, 5
        %v7979 = vrot.slane %v7978, 4
        %v7980 = vrot.slane %v7843, 5
        %v7981 = vsel %vm1735, %v7979, %v7980
        %v7982 = vrot.slane %v7980, 4
        %v7983 = vrot.slane %v7844, 5
        %v7984 = vsel %vm1735, %v7982, %v7983
        %v7985 = vrot.slane %v7845, 5
        %v7986 = vrot.slane %v7985, 4
        %v7987 = vrot.slane %v7846, 5
        %v7988 = vsel %vm1735, %v7986, %v7987
        %v7989 = vrot.slane %v7987, 4
        %v7990 = vrot.slane %v7847, 5
        %v7991 = vsel %vm1735, %v7989, %v7990
        %v7992 = vrot.slane %v7848, 5
        %v7993 = vrot.slane %v7992, 4
        %v7994 = vrot.slane %v7849, 5
        %v7995 = vsel %vm1735, %v7993, %v7994
        %v7996 = vrot.slane %v7994, 4
        %v7997 = vrot.slane %v7850, 5
        %v7998 = vsel %vm1735, %v7996, %v7997
        %v7999 = vrot.slane %v7851, 5
        %v8000 = vrot.slane %v7999, 4
        %v8001 = vrot.slane %v7852, 5
        %v8002 = vsel %vm1735, %v8000, %v8001
        %v8003 = vrot.slane %v8001, 4
        %v8004 = vrot.slane %v7853, 5
        %v8005 = vsel %vm1735, %v8003, %v8004
        %v8006 = vrot.slane %v7854, 5
        %v8007 = vrot.slane %v8006, 4
        %v8008 = vrot.slane %v7855, 5
        %v8009 = vsel %vm1735, %v8007, %v8008
        %v8010 = vrot.slane %v8008, 4
        %v8011 = vrot.slane %v7856, 5
        %v8012 = vsel %vm1735, %v8010, %v8011
        %v8013 = vrot.slane %v7857, 5
        %v8014 = vrot.slane %v8013, 4
        %v8015 = vrot.slane %v7858, 5
        %v8016 = vsel %vm1735, %v8014, %v8015
        %v8017 = vrot.slane %v8015, 4
        %v8018 = vrot.slane %v7859, 5
        %v8019 = vsel %vm1735, %v8017, %v8018
        %8052 = vst [vmem:[#allocation3 + $0x14] sm:$0xf] %v7911
        %8053 = vst [vmem:[#allocation3 + $0x38] sm:$0xf] %v7914
        %8054 = vst [vmem:[#allocation3 + $0x5c] sm:$0xf] %v7918
        %8055 = vst [vmem:[#allocation3 + $0x80] sm:$0xf] %v7921
        %8056 = vst [vmem:[#allocation3 + $0xa4] sm:$0xf] %v7925
        %8057 = vst [vmem:[#allocation3 + $0xc8] sm:$0xf] %v7928
        %8058 = vst [vmem:[#allocation3 + $0xec] sm:$0xf] %v7932
        %8059 = vst [vmem:[#allocation3 + $0x110] sm:$0xf] %v7935
        %8060 = vst [vmem:[#allocation3 + $0x134] sm:$0xf] %v7939
        %8061 = vst [vmem:[#allocation3 + $0x158] sm:$0xf] %v7942
        %8062 = vst [vmem:[#allocation3 + $0x17c] sm:$0xf] %v7946
        %8063 = vst [vmem:[#allocation3 + $0x1a0] sm:$0xf] %v7949
        %8064 = vst [vmem:[#allocation3 + $0x1c4] sm:$0xf] %v7953
        %8065 = vst [vmem:[#allocation3 + $0x1e8] sm:$0xf] %v7956
        %8066 = vst [vmem:[#allocation3 + $0x20c] sm:$0xf] %v7960
        %8067 = vst [vmem:[#allocation3 + $0x230] sm:$0xf] %v7963
        %8068 = vst [vmem:[#allocation3 + $0x254] sm:$0xf] %v7967
        %8069 = vst [vmem:[#allocation3 + $0x278] sm:$0xf] %v7970
        %8070 = vst [vmem:[#allocation3 + $0x29c] sm:$0xf] %v7974
        %8071 = vst [vmem:[#allocation3 + $0x2c0] sm:$0xf] %v7977
        %8072 = vst [vmem:[#allocation3 + $0x2e4] sm:$0xf] %v7981
        %8073 = vst [vmem:[#allocation3 + $0x308] sm:$0xf] %v7984
        %8074 = vst [vmem:[#allocation3 + $0x32c] sm:$0xf] %v7988
        %8075 = vst [vmem:[#allocation3 + $0x350] sm:$0xf] %v7991
        %8076 = vst [vmem:[#allocation3 + $0x374] sm:$0xf] %v7995
        %8077 = vst [vmem:[#allocation3 + $0x398] sm:$0xf] %v7998
        %8078 = vst [vmem:[#allocation3 + $0x3bc] sm:$0xf] %v8002
        %8079 = vst [vmem:[#allocation3 + $0x3e0] sm:$0xf] %v8005
        %8080 = vst [vmem:[#allocation3 + $0x404] sm:$0xf] %v8009
        %8081 = vst [vmem:[#allocation3 + $0x428] sm:$0xf] %v8012
        %8082 = vst [vmem:[#allocation3 + $0x44c] sm:$0xf] %v8016
        %8083 = vst [vmem:[#allocation3 + $0x470] sm:$0xf] %v8019
        %v8084 = vld [vmem:[%s2744] sm:$0xf]
        %v8085 = vld [vmem:[%s2744 + $0x4] sm:$0xf]
        %v8086 = vld [vmem:[%s2744 + $0xc] sm:$0xf]
        %v8087 = vld [vmem:[%s2744 + $0x10] sm:$0xf]
        %v8088 = vld [vmem:[%s2744 + $0x18] sm:$0xf]
        %v8089 = vld [vmem:[%s2744 + $0x1c] sm:$0xf]
        %v8090 = vld [vmem:[%s2744 + $0x24] sm:$0xf]
        %v8091 = vld [vmem:[%s2744 + $0x28] sm:$0xf]
        %v8092 = vld [vmem:[%s2744 + $0x30] sm:$0xf]
        %v8093 = vld [vmem:[%s2744 + $0x34] sm:$0xf]
        %v8094 = vld [vmem:[%s2744 + $0x3c] sm:$0xf]
        %v8095 = vld [vmem:[%s2744 + $0x40] sm:$0xf]
        %v8096 = vld [vmem:[%s2744 + $0x48] sm:$0xf]
        %v8097 = vld [vmem:[%s2744 + $0x4c] sm:$0xf]
        %v8098 = vld [vmem:[%s2744 + $0x54] sm:$0xf]
        %v8099 = vld [vmem:[%s2744 + $0x58] sm:$0xf]
        %v8100 = vld [vmem:[%s2744 + $0x60] sm:$0xf]
        %v8101 = vld [vmem:[%s2744 + $0x64] sm:$0xf]
        %v8102 = vld [vmem:[%s2744 + $0x6c] sm:$0xf]
        %v8103 = vld [vmem:[%s2744 + $0x70] sm:$0xf]
        %v8104 = vld [vmem:[%s2744 + $0x78] sm:$0xf]
        %v8105 = vld [vmem:[%s2744 + $0x7c] sm:$0xf]
        %v8106 = vld [vmem:[%s2744 + $0x84] sm:$0xf]
        %v8107 = vld [vmem:[%s2744 + $0x88] sm:$0xf]
        %v8108 = vld [vmem:[%s2744 + $0x90] sm:$0xf]
        %v8109 = vld [vmem:[%s2744 + $0x94] sm:$0xf]
        %v8110 = vld [vmem:[%s2744 + $0x9c] sm:$0xf]
        %v8111 = vld [vmem:[%s2744 + $0xa0] sm:$0xf]
        %v8112 = vld [vmem:[%s2744 + $0xa8] sm:$0xf]
        %v8113 = vld [vmem:[%s2744 + $0xac] sm:$0xf]
        %v8114 = vld [vmem:[%s2744 + $0xb4] sm:$0xf]
        %v8115 = vld [vmem:[%s2744 + $0xb8] sm:$0xf]
        %8116 = vst [vmem:[#allocation3 + $0x18] sm:$0xf] %v8084
        %8117 = vst [vmem:[#allocation3 + $0x3c] sm:$0xf] %v8085
        %8118 = vst [vmem:[#allocation3 + $0x60] sm:$0xf] %v8086
        %8119 = vst [vmem:[#allocation3 + $0x84] sm:$0xf] %v8087
        %8120 = vst [vmem:[#allocation3 + $0xa8] sm:$0xf] %v8088
        %8121 = vst [vmem:[#allocation3 + $0xcc] sm:$0xf] %v8089
        %8122 = vst [vmem:[#allocation3 + $0xf0] sm:$0xf] %v8090
        %8123 = vst [vmem:[#allocation3 + $0x114] sm:$0xf] %v8091
        %8124 = vst [vmem:[#allocation3 + $0x138] sm:$0xf] %v8092
        %8125 = vst [vmem:[#allocation3 + $0x15c] sm:$0xf] %v8093
        %8126 = vst [vmem:[#allocation3 + $0x180] sm:$0xf] %v8094
        %8127 = vst [vmem:[#allocation3 + $0x1a4] sm:$0xf] %v8095
        %8128 = vst [vmem:[#allocation3 + $0x1c8] sm:$0xf] %v8096
        %8129 = vst [vmem:[#allocation3 + $0x1ec] sm:$0xf] %v8097
        %8130 = vst [vmem:[#allocation3 + $0x210] sm:$0xf] %v8098
        %8131 = vst [vmem:[#allocation3 + $0x234] sm:$0xf] %v8099
        %8132 = vst [vmem:[#allocation3 + $0x258] sm:$0xf] %v8100
        %8133 = vst [vmem:[#allocation3 + $0x27c] sm:$0xf] %v8101
        %8134 = vst [vmem:[#allocation3 + $0x2a0] sm:$0xf] %v8102
        %8135 = vst [vmem:[#allocation3 + $0x2c4] sm:$0xf] %v8103
        %8136 = vst [vmem:[#allocation3 + $0x2e8] sm:$0xf] %v8104
        %8137 = vst [vmem:[#allocation3 + $0x30c] sm:$0xf] %v8105
        %8138 = vst [vmem:[#allocation3 + $0x330] sm:$0xf] %v8106
        %8139 = vst [vmem:[#allocation3 + $0x354] sm:$0xf] %v8107
        %8140 = vst [vmem:[#allocation3 + $0x378] sm:$0xf] %v8108
        %8141 = vst [vmem:[#allocation3 + $0x39c] sm:$0xf] %v8109
        %8142 = vst [vmem:[#allocation3 + $0x3c0] sm:$0xf] %v8110
        %8143 = vst [vmem:[#allocation3 + $0x3e4] sm:$0xf] %v8111
        %8144 = vst [vmem:[#allocation3 + $0x408] sm:$0xf] %v8112
        %8145 = vst [vmem:[#allocation3 + $0x42c] sm:$0xf] %v8113
        %8146 = vst [vmem:[#allocation3 + $0x450] sm:$0xf] %v8114
        %8147 = vst [vmem:[#allocation3 + $0x474] sm:$0xf] %v8115
        %v8148 = vld [vmem:[%s2744] sm:$0xf]
        %v8149 = vld [vmem:[%s2744 + $0x4] sm:$0xf]
        %v8150 = vld [vmem:[%s2744 + $0x8] sm:$0x1]
        %v8151 = vld [vmem:[%s2744 + $0xc] sm:$0xf]
        %v8152 = vld [vmem:[%s2744 + $0x10] sm:$0xf]
        %v8153 = vld [vmem:[%s2744 + $0x14] sm:$0x1]
        %v8154 = vld [vmem:[%s2744 + $0x18] sm:$0xf]
        %v8155 = vld [vmem:[%s2744 + $0x1c] sm:$0xf]
        %v8156 = vld [vmem:[%s2744 + $0x20] sm:$0x1]
        %v8157 = vld [vmem:[%s2744 + $0x24] sm:$0xf]
        %v8158 = vld [vmem:[%s2744 + $0x28] sm:$0xf]
        %v8159 = vld [vmem:[%s2744 + $0x2c] sm:$0x1]
        %v8160 = vld [vmem:[%s2744 + $0x30] sm:$0xf]
        %v8161 = vld [vmem:[%s2744 + $0x34] sm:$0xf]
        %v8162 = vld [vmem:[%s2744 + $0x38] sm:$0x1]
        %v8163 = vld [vmem:[%s2744 + $0x3c] sm:$0xf]
        %v8164 = vld [vmem:[%s2744 + $0x40] sm:$0xf]
        %v8165 = vld [vmem:[%s2744 + $0x44] sm:$0x1]
        %v8166 = vld [vmem:[%s2744 + $0x48] sm:$0xf]
        %v8167 = vld [vmem:[%s2744 + $0x4c] sm:$0xf]
        %v8168 = vld [vmem:[%s2744 + $0x50] sm:$0x1]
        %v8169 = vld [vmem:[%s2744 + $0x54] sm:$0xf]
        %v8170 = vld [vmem:[%s2744 + $0x58] sm:$0xf]
        %v8171 = vld [vmem:[%s2744 + $0x5c] sm:$0x1]
        %v8172 = vld [vmem:[%s2744 + $0x60] sm:$0xf]
        %v8173 = vld [vmem:[%s2744 + $0x64] sm:$0xf]
        %v8174 = vld [vmem:[%s2744 + $0x68] sm:$0x1]
        %v8175 = vld [vmem:[%s2744 + $0x6c] sm:$0xf]
        %v8176 = vld [vmem:[%s2744 + $0x70] sm:$0xf]
        %v8177 = vld [vmem:[%s2744 + $0x74] sm:$0x1]
        %v8178 = vld [vmem:[%s2744 + $0x78] sm:$0xf]
        %v8179 = vld [vmem:[%s2744 + $0x7c] sm:$0xf]
        %v8180 = vld [vmem:[%s2744 + $0x80] sm:$0x1]
        %v8181 = vld [vmem:[%s2744 + $0x84] sm:$0xf]
        %v8182 = vld [vmem:[%s2744 + $0x88] sm:$0xf]
        %v8183 = vld [vmem:[%s2744 + $0x8c] sm:$0x1]
        %v8184 = vld [vmem:[%s2744 + $0x90] sm:$0xf]
        %v8185 = vld [vmem:[%s2744 + $0x94] sm:$0xf]
        %v8186 = vld [vmem:[%s2744 + $0x98] sm:$0x1]
        %v8187 = vld [vmem:[%s2744 + $0x9c] sm:$0xf]
        %v8188 = vld [vmem:[%s2744 + $0xa0] sm:$0xf]
        %v8189 = vld [vmem:[%s2744 + $0xa4] sm:$0x1]
        %v8190 = vld [vmem:[%s2744 + $0xa8] sm:$0xf]
        %v8191 = vld [vmem:[%s2744 + $0xac] sm:$0xf]
        %v8192 = vld [vmem:[%s2744 + $0xb0] sm:$0x1]
        %v8193 = vld [vmem:[%s2744 + $0xb4] sm:$0xf]
        %v8194 = vld [vmem:[%s2744 + $0xb8] sm:$0xf]
        %v8195 = vld [vmem:[%s2744 + $0xbc] sm:$0x1]
        %v8197 = vshrl.u32 %v8148, 16
        %v8199 = vrot.slane %v8197, 4
        %v8200 = vshll.u32 %v8148, 16
        %v8202 = vrot.slane %v8200, 5
        %v8203 = vor.u32 %v8199, %v8202
        %v8204 = vrot.slane %v8203, 4
        %v8206 = vshll.u32 %v8149, 16
        %v8208 = vrot.slane %v8206, 5
        %v8209 = vsel %vm1188, %v8204, %v8208
        %v8210 = vshrl.u32 %v8149, 16
        %v8212 = vrot.slane %v8210, 4
        %v8213 = vor.u32 %v8212, %v8208
        %v8214 = vrot.slane %v8213, 4
        %v8216 = vshll.u32 %v8150, 16
        %v8218 = vrot.slane %v8216, 5
        %v8219 = vsel %vm1188, %v8214, %v8218
        %v8221 = vshrl.u32 %v8151, 16
        %v8223 = vrot.slane %v8221, 4
        %v8224 = vshll.u32 %v8151, 16
        %v8226 = vrot.slane %v8224, 5
        %v8227 = vor.u32 %v8223, %v8226
        %v8228 = vrot.slane %v8227, 4
        %v8230 = vshll.u32 %v8152, 16
        %v8232 = vrot.slane %v8230, 5
        %v8233 = vsel %vm1188, %v8228, %v8232
        %v8234 = vshrl.u32 %v8152, 16
        %v8236 = vrot.slane %v8234, 4
        %v8237 = vor.u32 %v8236, %v8232
        %v8238 = vrot.slane %v8237, 4
        %v8240 = vshll.u32 %v8153, 16
        %v8242 = vrot.slane %v8240, 5
        %v8243 = vsel %vm1188, %v8238, %v8242
        %v8245 = vshrl.u32 %v8154, 16
        %v8247 = vrot.slane %v8245, 4
        %v8248 = vshll.u32 %v8154, 16
        %v8250 = vrot.slane %v8248, 5
        %v8251 = vor.u32 %v8247, %v8250
        %v8252 = vrot.slane %v8251, 4
        %v8254 = vshll.u32 %v8155, 16
        %v8256 = vrot.slane %v8254, 5
        %v8257 = vsel %vm1188, %v8252, %v8256
        %v8258 = vshrl.u32 %v8155, 16
        %v8260 = vrot.slane %v8258, 4
        %v8261 = vor.u32 %v8260, %v8256
        %v8262 = vrot.slane %v8261, 4
        %v8264 = vshll.u32 %v8156, 16
        %v8266 = vrot.slane %v8264, 5
        %v8267 = vsel %vm1188, %v8262, %v8266
        %v8269 = vshrl.u32 %v8157, 16
        %v8271 = vrot.slane %v8269, 4
        %v8272 = vshll.u32 %v8157, 16
        %v8274 = vrot.slane %v8272, 5
        %v8275 = vor.u32 %v8271, %v8274
        %v8276 = vrot.slane %v8275, 4
        %v8278 = vshll.u32 %v8158, 16
        %v8280 = vrot.slane %v8278, 5
        %v8281 = vsel %vm1188, %v8276, %v8280
        %v8282 = vshrl.u32 %v8158, 16
        %v8284 = vrot.slane %v8282, 4
        %v8285 = vor.u32 %v8284, %v8280
        %v8286 = vrot.slane %v8285, 4
        %v8288 = vshll.u32 %v8159, 16
        %v8290 = vrot.slane %v8288, 5
        %v8291 = vsel %vm1188, %v8286, %v8290
        %v8293 = vshrl.u32 %v8160, 16
        %v8295 = vrot.slane %v8293, 4
        %v8296 = vshll.u32 %v8160, 16
        %v8298 = vrot.slane %v8296, 5
        %v8299 = vor.u32 %v8295, %v8298
        %v8300 = vrot.slane %v8299, 4
        %v8302 = vshll.u32 %v8161, 16
        %v8304 = vrot.slane %v8302, 5
        %v8305 = vsel %vm1188, %v8300, %v8304
        %v8306 = vshrl.u32 %v8161, 16
        %v8308 = vrot.slane %v8306, 4
        %v8309 = vor.u32 %v8308, %v8304
        %v8310 = vrot.slane %v8309, 4
        %v8312 = vshll.u32 %v8162, 16
        %v8314 = vrot.slane %v8312, 5
        %v8315 = vsel %vm1188, %v8310, %v8314
        %v8317 = vshrl.u32 %v8163, 16
        %v8319 = vrot.slane %v8317, 4
        %v8320 = vshll.u32 %v8163, 16
        %v8322 = vrot.slane %v8320, 5
        %v8323 = vor.u32 %v8319, %v8322
        %v8324 = vrot.slane %v8323, 4
        %v8326 = vshll.u32 %v8164, 16
        %v8328 = vrot.slane %v8326, 5
        %v8329 = vsel %vm1188, %v8324, %v8328
        %v8330 = vshrl.u32 %v8164, 16
        %v8332 = vrot.slane %v8330, 4
        %v8333 = vor.u32 %v8332, %v8328
        %v8334 = vrot.slane %v8333, 4
        %v8336 = vshll.u32 %v8165, 16
        %v8338 = vrot.slane %v8336, 5
        %v8339 = vsel %vm1188, %v8334, %v8338
        %v8341 = vshrl.u32 %v8166, 16
        %v8343 = vrot.slane %v8341, 4
        %v8344 = vshll.u32 %v8166, 16
        %v8346 = vrot.slane %v8344, 5
        %v8347 = vor.u32 %v8343, %v8346
        %v8348 = vrot.slane %v8347, 4
        %v8350 = vshll.u32 %v8167, 16
        %v8352 = vrot.slane %v8350, 5
        %v8353 = vsel %vm1188, %v8348, %v8352
        %v8354 = vshrl.u32 %v8167, 16
        %v8356 = vrot.slane %v8354, 4
        %v8357 = vor.u32 %v8356, %v8352
        %v8358 = vrot.slane %v8357, 4
        %v8360 = vshll.u32 %v8168, 16
        %v8362 = vrot.slane %v8360, 5
        %v8363 = vsel %vm1188, %v8358, %v8362
        %v8365 = vshrl.u32 %v8169, 16
        %v8367 = vrot.slane %v8365, 4
        %v8368 = vshll.u32 %v8169, 16
        %v8370 = vrot.slane %v8368, 5
        %v8371 = vor.u32 %v8367, %v8370
        %v8372 = vrot.slane %v8371, 4
        %v8374 = vshll.u32 %v8170, 16
        %v8376 = vrot.slane %v8374, 5
        %v8377 = vsel %vm1188, %v8372, %v8376
        %v8378 = vshrl.u32 %v8170, 16
        %v8380 = vrot.slane %v8378, 4
        %v8381 = vor.u32 %v8380, %v8376
        %v8382 = vrot.slane %v8381, 4
        %v8384 = vshll.u32 %v8171, 16
        %v8386 = vrot.slane %v8384, 5
        %v8387 = vsel %vm1188, %v8382, %v8386
        %v8389 = vshrl.u32 %v8172, 16
        %v8391 = vrot.slane %v8389, 4
        %v8392 = vshll.u32 %v8172, 16
        %v8394 = vrot.slane %v8392, 5
        %v8395 = vor.u32 %v8391, %v8394
        %v8396 = vrot.slane %v8395, 4
        %v8398 = vshll.u32 %v8173, 16
        %v8400 = vrot.slane %v8398, 5
        %v8401 = vsel %vm1188, %v8396, %v8400
        %v8402 = vshrl.u32 %v8173, 16
        %v8404 = vrot.slane %v8402, 4
        %v8405 = vor.u32 %v8404, %v8400
        %v8406 = vrot.slane %v8405, 4
        %v8408 = vshll.u32 %v8174, 16
        %v8410 = vrot.slane %v8408, 5
        %v8411 = vsel %vm1188, %v8406, %v8410
        %v8413 = vshrl.u32 %v8175, 16
        %v8415 = vrot.slane %v8413, 4
        %v8416 = vshll.u32 %v8175, 16
        %v8418 = vrot.slane %v8416, 5
        %v8419 = vor.u32 %v8415, %v8418
        %v8420 = vrot.slane %v8419, 4
        %v8422 = vshll.u32 %v8176, 16
        %v8424 = vrot.slane %v8422, 5
        %v8425 = vsel %vm1188, %v8420, %v8424
        %v8426 = vshrl.u32 %v8176, 16
        %v8428 = vrot.slane %v8426, 4
        %v8429 = vor.u32 %v8428, %v8424
        %v8430 = vrot.slane %v8429, 4
        %v8432 = vshll.u32 %v8177, 16
        %v8434 = vrot.slane %v8432, 5
        %v8435 = vsel %vm1188, %v8430, %v8434
        %v8437 = vshrl.u32 %v8178, 16
        %v8439 = vrot.slane %v8437, 4
        %v8440 = vshll.u32 %v8178, 16
        %v8442 = vrot.slane %v8440, 5
        %v8443 = vor.u32 %v8439, %v8442
        %v8444 = vrot.slane %v8443, 4
        %v8446 = vshll.u32 %v8179, 16
        %v8448 = vrot.slane %v8446, 5
        %v8449 = vsel %vm1188, %v8444, %v8448
        %v8450 = vshrl.u32 %v8179, 16
        %v8452 = vrot.slane %v8450, 4
        %v8453 = vor.u32 %v8452, %v8448
        %v8454 = vrot.slane %v8453, 4
        %v8456 = vshll.u32 %v8180, 16
        %v8458 = vrot.slane %v8456, 5
        %v8459 = vsel %vm1188, %v8454, %v8458
        %v8461 = vshrl.u32 %v8181, 16
        %v8463 = vrot.slane %v8461, 4
        %v8464 = vshll.u32 %v8181, 16
        %v8466 = vrot.slane %v8464, 5
        %v8467 = vor.u32 %v8463, %v8466
        %v8468 = vrot.slane %v8467, 4
        %v8470 = vshll.u32 %v8182, 16
        %v8472 = vrot.slane %v8470, 5
        %v8473 = vsel %vm1188, %v8468, %v8472
        %v8474 = vshrl.u32 %v8182, 16
        %v8476 = vrot.slane %v8474, 4
        %v8477 = vor.u32 %v8476, %v8472
        %v8478 = vrot.slane %v8477, 4
        %v8480 = vshll.u32 %v8183, 16
        %v8482 = vrot.slane %v8480, 5
        %v8483 = vsel %vm1188, %v8478, %v8482
        %v8485 = vshrl.u32 %v8184, 16
        %v8487 = vrot.slane %v8485, 4
        %v8488 = vshll.u32 %v8184, 16
        %v8490 = vrot.slane %v8488, 5
        %v8491 = vor.u32 %v8487, %v8490
        %v8492 = vrot.slane %v8491, 4
        %v8494 = vshll.u32 %v8185, 16
        %v8496 = vrot.slane %v8494, 5
        %v8497 = vsel %vm1188, %v8492, %v8496
        %v8498 = vshrl.u32 %v8185, 16
        %v8500 = vrot.slane %v8498, 4
        %v8501 = vor.u32 %v8500, %v8496
        %v8502 = vrot.slane %v8501, 4
        %v8504 = vshll.u32 %v8186, 16
        %v8506 = vrot.slane %v8504, 5
        %v8507 = vsel %vm1188, %v8502, %v8506
        %v8509 = vshrl.u32 %v8187, 16
        %v8511 = vrot.slane %v8509, 4
        %v8512 = vshll.u32 %v8187, 16
        %v8514 = vrot.slane %v8512, 5
        %v8515 = vor.u32 %v8511, %v8514
        %v8516 = vrot.slane %v8515, 4
        %v8518 = vshll.u32 %v8188, 16
        %v8520 = vrot.slane %v8518, 5
        %v8521 = vsel %vm1188, %v8516, %v8520
        %v8522 = vshrl.u32 %v8188, 16
        %v8524 = vrot.slane %v8522, 4
        %v8525 = vor.u32 %v8524, %v8520
        %v8526 = vrot.slane %v8525, 4
        %v8528 = vshll.u32 %v8189, 16
        %v8530 = vrot.slane %v8528, 5
        %v8531 = vsel %vm1188, %v8526, %v8530
        %v8533 = vshrl.u32 %v8190, 16
        %v8535 = vrot.slane %v8533, 4
        %v8536 = vshll.u32 %v8190, 16
        %v8538 = vrot.slane %v8536, 5
        %v8539 = vor.u32 %v8535, %v8538
        %v8540 = vrot.slane %v8539, 4
        %v8542 = vshll.u32 %v8191, 16
        %v8544 = vrot.slane %v8542, 5
        %v8545 = vsel %vm1188, %v8540, %v8544
        %v8546 = vshrl.u32 %v8191, 16
        %v8548 = vrot.slane %v8546, 4
        %v8549 = vor.u32 %v8548, %v8544
        %v8550 = vrot.slane %v8549, 4
        %v8552 = vshll.u32 %v8192, 16
        %v8554 = vrot.slane %v8552, 5
        %v8555 = vsel %vm1188, %v8550, %v8554
        %v8557 = vshrl.u32 %v8193, 16
        %v8559 = vrot.slane %v8557, 4
        %v8560 = vshll.u32 %v8193, 16
        %v8562 = vrot.slane %v8560, 5
        %v8563 = vor.u32 %v8559, %v8562
        %v8564 = vrot.slane %v8563, 4
        %v8566 = vshll.u32 %v8194, 16
        %v8568 = vrot.slane %v8566, 5
        %v8569 = vsel %vm1188, %v8564, %v8568
        %v8570 = vshrl.u32 %v8194, 16
        %v8572 = vrot.slane %v8570, 4
        %v8573 = vor.u32 %v8572, %v8568
        %v8574 = vrot.slane %v8573, 4
        %v8576 = vshll.u32 %v8195, 16
        %v8578 = vrot.slane %v8576, 5
        %v8579 = vsel %vm1188, %v8574, %v8578
        %8612 = vst [vmem:[#allocation3 + $0x1c] sm:$0xf] %v8209
        %8613 = vst [vmem:[#allocation3 + $0x40] sm:$0xf] %v8219
        %8614 = vst [vmem:[#allocation3 + $0x64] sm:$0xf] %v8233
        %8615 = vst [vmem:[#allocation3 + $0x88] sm:$0xf] %v8243
        %8616 = vst [vmem:[#allocation3 + $0xac] sm:$0xf] %v8257
        %8617 = vst [vmem:[#allocation3 + $0xd0] sm:$0xf] %v8267
        %8618 = vst [vmem:[#allocation3 + $0xf4] sm:$0xf] %v8281
        %8619 = vst [vmem:[#allocation3 + $0x118] sm:$0xf] %v8291
        %8620 = vst [vmem:[#allocation3 + $0x13c] sm:$0xf] %v8305
        %8621 = vst [vmem:[#allocation3 + $0x160] sm:$0xf] %v8315
        %8622 = vst [vmem:[#allocation3 + $0x184] sm:$0xf] %v8329
        %8623 = vst [vmem:[#allocation3 + $0x1a8] sm:$0xf] %v8339
        %8624 = vst [vmem:[#allocation3 + $0x1cc] sm:$0xf] %v8353
        %8625 = vst [vmem:[#allocation3 + $0x1f0] sm:$0xf] %v8363
        %8626 = vst [vmem:[#allocation3 + $0x214] sm:$0xf] %v8377
        %8627 = vst [vmem:[#allocation3 + $0x238] sm:$0xf] %v8387
        %8628 = vst [vmem:[#allocation3 + $0x25c] sm:$0xf] %v8401
        %8629 = vst [vmem:[#allocation3 + $0x280] sm:$0xf] %v8411
        %8630 = vst [vmem:[#allocation3 + $0x2a4] sm:$0xf] %v8425
        %8631 = vst [vmem:[#allocation3 + $0x2c8] sm:$0xf] %v8435
        %8632 = vst [vmem:[#allocation3 + $0x2ec] sm:$0xf] %v8449
        %8633 = vst [vmem:[#allocation3 + $0x310] sm:$0xf] %v8459
        %8634 = vst [vmem:[#allocation3 + $0x334] sm:$0xf] %v8473
        %8635 = vst [vmem:[#allocation3 + $0x358] sm:$0xf] %v8483
        %8636 = vst [vmem:[#allocation3 + $0x37c] sm:$0xf] %v8497
        %8637 = vst [vmem:[#allocation3 + $0x3a0] sm:$0xf] %v8507
        %8638 = vst [vmem:[#allocation3 + $0x3c4] sm:$0xf] %v8521
        %8639 = vst [vmem:[#allocation3 + $0x3e8] sm:$0xf] %v8531
        %8640 = vst [vmem:[#allocation3 + $0x40c] sm:$0xf] %v8545
        %8641 = vst [vmem:[#allocation3 + $0x430] sm:$0xf] %v8555
        %8642 = vst [vmem:[#allocation3 + $0x454] sm:$0xf] %v8569
        %8643 = vst [vmem:[#allocation3 + $0x478] sm:$0xf] %v8579
        %v8644 = vld [vmem:[%s2744] sm:$0xe]
        %v8645 = vld [vmem:[%s2744 + $0x4] sm:$0xf]
        %v8646 = vld [vmem:[%s2744 + $0x8] sm:$0x1]
        %v8647 = vld [vmem:[%s2744 + $0xc] sm:$0xe]
        %v8648 = vld [vmem:[%s2744 + $0x10] sm:$0xf]
        %v8649 = vld [vmem:[%s2744 + $0x14] sm:$0x1]
        %v8650 = vld [vmem:[%s2744 + $0x18] sm:$0xe]
        %v8651 = vld [vmem:[%s2744 + $0x1c] sm:$0xf]
        %v8652 = vld [vmem:[%s2744 + $0x20] sm:$0x1]
        %v8653 = vld [vmem:[%s2744 + $0x24] sm:$0xe]
        %v8654 = vld [vmem:[%s2744 + $0x28] sm:$0xf]
        %v8655 = vld [vmem:[%s2744 + $0x2c] sm:$0x1]
        %v8656 = vld [vmem:[%s2744 + $0x30] sm:$0xe]
        %v8657 = vld [vmem:[%s2744 + $0x34] sm:$0xf]
        %v8658 = vld [vmem:[%s2744 + $0x38] sm:$0x1]
        %v8659 = vld [vmem:[%s2744 + $0x3c] sm:$0xe]
        %v8660 = vld [vmem:[%s2744 + $0x40] sm:$0xf]
        %v8661 = vld [vmem:[%s2744 + $0x44] sm:$0x1]
        %v8662 = vld [vmem:[%s2744 + $0x48] sm:$0xe]
        %v8663 = vld [vmem:[%s2744 + $0x4c] sm:$0xf]
        %v8664 = vld [vmem:[%s2744 + $0x50] sm:$0x1]
        %v8665 = vld [vmem:[%s2744 + $0x54] sm:$0xe]
        %v8666 = vld [vmem:[%s2744 + $0x58] sm:$0xf]
        %v8667 = vld [vmem:[%s2744 + $0x5c] sm:$0x1]
        %v8668 = vld [vmem:[%s2744 + $0x60] sm:$0xe]
        %v8669 = vld [vmem:[%s2744 + $0x64] sm:$0xf]
        %v8670 = vld [vmem:[%s2744 + $0x68] sm:$0x1]
        %v8671 = vld [vmem:[%s2744 + $0x6c] sm:$0xe]
        %v8672 = vld [vmem:[%s2744 + $0x70] sm:$0xf]
        %v8673 = vld [vmem:[%s2744 + $0x74] sm:$0x1]
        %v8674 = vld [vmem:[%s2744 + $0x78] sm:$0xe]
        %v8675 = vld [vmem:[%s2744 + $0x7c] sm:$0xf]
        %v8676 = vld [vmem:[%s2744 + $0x80] sm:$0x1]
        %v8677 = vld [vmem:[%s2744 + $0x84] sm:$0xe]
        %v8678 = vld [vmem:[%s2744 + $0x88] sm:$0xf]
        %v8679 = vld [vmem:[%s2744 + $0x8c] sm:$0x1]
        %v8680 = vld [vmem:[%s2744 + $0x90] sm:$0xe]
        %v8681 = vld [vmem:[%s2744 + $0x94] sm:$0xf]
        %v8682 = vld [vmem:[%s2744 + $0x98] sm:$0x1]
        %v8683 = vld [vmem:[%s2744 + $0x9c] sm:$0xe]
        %v8684 = vld [vmem:[%s2744 + $0xa0] sm:$0xf]
        %v8685 = vld [vmem:[%s2744 + $0xa4] sm:$0x1]
        %v8686 = vld [vmem:[%s2744 + $0xa8] sm:$0xe]
        %v8687 = vld [vmem:[%s2744 + $0xac] sm:$0xf]
        %v8688 = vld [vmem:[%s2744 + $0xb0] sm:$0x1]
        %v8689 = vld [vmem:[%s2744 + $0xb4] sm:$0xe]
        %v8690 = vld [vmem:[%s2744 + $0xb8] sm:$0xf]
        %v8691 = vld [vmem:[%s2744 + $0xbc] sm:$0x1]
        %v8740 = vrot.slane %v8644, 5
        %v8741 = vrot.slane %v8740, 4
        %v8742 = vrot.slane %v8645, 5
        %v8743 = vsel %vm1735, %v8741, %v8742
        %v8744 = vrot.slane %v8742, 4
        %v8745 = vrot.slane %v8646, 5
        %v8746 = vsel %vm1735, %v8744, %v8745
        %v8747 = vrot.slane %v8647, 5
        %v8748 = vrot.slane %v8747, 4
        %v8749 = vrot.slane %v8648, 5
        %v8750 = vsel %vm1735, %v8748, %v8749
        %v8751 = vrot.slane %v8749, 4
        %v8752 = vrot.slane %v8649, 5
        %v8753 = vsel %vm1735, %v8751, %v8752
        %v8754 = vrot.slane %v8650, 5
        %v8755 = vrot.slane %v8754, 4
        %v8756 = vrot.slane %v8651, 5
        %v8757 = vsel %vm1735, %v8755, %v8756
        %v8758 = vrot.slane %v8756, 4
        %v8759 = vrot.slane %v8652, 5
        %v8760 = vsel %vm1735, %v8758, %v8759
        %v8761 = vrot.slane %v8653, 5
        %v8762 = vrot.slane %v8761, 4
        %v8763 = vrot.slane %v8654, 5
        %v8764 = vsel %vm1735, %v8762, %v8763
        %v8765 = vrot.slane %v8763, 4
        %v8766 = vrot.slane %v8655, 5
        %v8767 = vsel %vm1735, %v8765, %v8766
        %v8768 = vrot.slane %v8656, 5
        %v8769 = vrot.slane %v8768, 4
        %v8770 = vrot.slane %v8657, 5
        %v8771 = vsel %vm1735, %v8769, %v8770
        %v8772 = vrot.slane %v8770, 4
        %v8773 = vrot.slane %v8658, 5
        %v8774 = vsel %vm1735, %v8772, %v8773
        %v8775 = vrot.slane %v8659, 5
        %v8776 = vrot.slane %v8775, 4
        %v8777 = vrot.slane %v8660, 5
        %v8778 = vsel %vm1735, %v8776, %v8777
        %v8779 = vrot.slane %v8777, 4
        %v8780 = vrot.slane %v8661, 5
        %v8781 = vsel %vm1735, %v8779, %v8780
        %v8782 = vrot.slane %v8662, 5
        %v8783 = vrot.slane %v8782, 4
        %v8784 = vrot.slane %v8663, 5
        %v8785 = vsel %vm1735, %v8783, %v8784
        %v8786 = vrot.slane %v8784, 4
        %v8787 = vrot.slane %v8664, 5
        %v8788 = vsel %vm1735, %v8786, %v8787
        %v8789 = vrot.slane %v8665, 5
        %v8790 = vrot.slane %v8789, 4
        %v8791 = vrot.slane %v8666, 5
        %v8792 = vsel %vm1735, %v8790, %v8791
        %v8793 = vrot.slane %v8791, 4
        %v8794 = vrot.slane %v8667, 5
        %v8795 = vsel %vm1735, %v8793, %v8794
        %v8796 = vrot.slane %v8668, 5
        %v8797 = vrot.slane %v8796, 4
        %v8798 = vrot.slane %v8669, 5
        %v8799 = vsel %vm1735, %v8797, %v8798
        %v8800 = vrot.slane %v8798, 4
        %v8801 = vrot.slane %v8670, 5
        %v8802 = vsel %vm1735, %v8800, %v8801
        %v8803 = vrot.slane %v8671, 5
        %v8804 = vrot.slane %v8803, 4
        %v8805 = vrot.slane %v8672, 5
        %v8806 = vsel %vm1735, %v8804, %v8805
        %v8807 = vrot.slane %v8805, 4
        %v8808 = vrot.slane %v8673, 5
        %v8809 = vsel %vm1735, %v8807, %v8808
        %v8810 = vrot.slane %v8674, 5
        %v8811 = vrot.slane %v8810, 4
        %v8812 = vrot.slane %v8675, 5
        %v8813 = vsel %vm1735, %v8811, %v8812
        %v8814 = vrot.slane %v8812, 4
        %v8815 = vrot.slane %v8676, 5
        %v8816 = vsel %vm1735, %v8814, %v8815
        %v8817 = vrot.slane %v8677, 5
        %v8818 = vrot.slane %v8817, 4
        %v8819 = vrot.slane %v8678, 5
        %v8820 = vsel %vm1735, %v8818, %v8819
        %v8821 = vrot.slane %v8819, 4
        %v8822 = vrot.slane %v8679, 5
        %v8823 = vsel %vm1735, %v8821, %v8822
        %v8824 = vrot.slane %v8680, 5
        %v8825 = vrot.slane %v8824, 4
        %v8826 = vrot.slane %v8681, 5
        %v8827 = vsel %vm1735, %v8825, %v8826
        %v8828 = vrot.slane %v8826, 4
        %v8829 = vrot.slane %v8682, 5
        %v8830 = vsel %vm1735, %v8828, %v8829
        %v8831 = vrot.slane %v8683, 5
        %v8832 = vrot.slane %v8831, 4
        %v8833 = vrot.slane %v8684, 5
        %v8834 = vsel %vm1735, %v8832, %v8833
        %v8835 = vrot.slane %v8833, 4
        %v8836 = vrot.slane %v8685, 5
        %v8837 = vsel %vm1735, %v8835, %v8836
        %v8838 = vrot.slane %v8686, 5
        %v8839 = vrot.slane %v8838, 4
        %v8840 = vrot.slane %v8687, 5
        %v8841 = vsel %vm1735, %v8839, %v8840
        %v8842 = vrot.slane %v8840, 4
        %v8843 = vrot.slane %v8688, 5
        %v8844 = vsel %vm1735, %v8842, %v8843
        %v8845 = vrot.slane %v8689, 5
        %v8846 = vrot.slane %v8845, 4
        %v8847 = vrot.slane %v8690, 5
        %v8848 = vsel %vm1735, %v8846, %v8847
        %v8849 = vrot.slane %v8847, 4
        %v8850 = vrot.slane %v8691, 5
        %v8851 = vsel %vm1735, %v8849, %v8850
        %8884 = vst [vmem:[#allocation3 + $0x20] sm:$0xf] %v8743
        %8885 = vst [vmem:[#allocation3 + $0x44] sm:$0xf] %v8746
        %8886 = vst [vmem:[#allocation3 + $0x68] sm:$0xf] %v8750
        %8887 = vst [vmem:[#allocation3 + $0x8c] sm:$0xf] %v8753
        %8888 = vst [vmem:[#allocation3 + $0xb0] sm:$0xf] %v8757
        %8889 = vst [vmem:[#allocation3 + $0xd4] sm:$0xf] %v8760
        %8890 = vst [vmem:[#allocation3 + $0xf8] sm:$0xf] %v8764
        %8891 = vst [vmem:[#allocation3 + $0x11c] sm:$0xf] %v8767
        %8892 = vst [vmem:[#allocation3 + $0x140] sm:$0xf] %v8771
        %8893 = vst [vmem:[#allocation3 + $0x164] sm:$0xf] %v8774
        %8894 = vst [vmem:[#allocation3 + $0x188] sm:$0xf] %v8778
        %8895 = vst [vmem:[#allocation3 + $0x1ac] sm:$0xf] %v8781
        %8896 = vst [vmem:[#allocation3 + $0x1d0] sm:$0xf] %v8785
        %8897 = vst [vmem:[#allocation3 + $0x1f4] sm:$0xf] %v8788
        %8898 = vst [vmem:[#allocation3 + $0x218] sm:$0xf] %v8792
        %8899 = vst [vmem:[#allocation3 + $0x23c] sm:$0xf] %v8795
        %8900 = vst [vmem:[#allocation3 + $0x260] sm:$0xf] %v8799
        %8901 = vst [vmem:[#allocation3 + $0x284] sm:$0xf] %v8802
        %8902 = vst [vmem:[#allocation3 + $0x2a8] sm:$0xf] %v8806
        %8903 = vst [vmem:[#allocation3 + $0x2cc] sm:$0xf] %v8809
        %8904 = vst [vmem:[#allocation3 + $0x2f0] sm:$0xf] %v8813
        %8905 = vst [vmem:[#allocation3 + $0x314] sm:$0xf] %v8816
        %8906 = vst [vmem:[#allocation3 + $0x338] sm:$0xf] %v8820
        %8907 = vst [vmem:[#allocation3 + $0x35c] sm:$0xf] %v8823
        %8908 = vst [vmem:[#allocation3 + $0x380] sm:$0xf] %v8827
        %8909 = vst [vmem:[#allocation3 + $0x3a4] sm:$0xf] %v8830
        %8910 = vst [vmem:[#allocation3 + $0x3c8] sm:$0xf] %v8834
        %8911 = vst [vmem:[#allocation3 + $0x3ec] sm:$0xf] %v8837
        %8912 = vst [vmem:[#allocation3 + $0x410] sm:$0xf] %v8841
        %8913 = vst [vmem:[#allocation3 + $0x434] sm:$0xf] %v8844
        %8914 = vst [vmem:[#allocation3 + $0x458] sm:$0xf] %v8848
        %8915 = vst [vmem:[#allocation3 + $0x47c] sm:$0xf] %v8851
        %v8916 = vld [vmem:[#allocation3] sm:$0xff]
        %v8917 = vld [vmem:[#allocation3 + $0x8] sm:$0xff]
        %v8918 = vld [vmem:[#allocation3 + $0x10] sm:$0xff]
        %v8919 = vld [vmem:[#allocation3 + $0x18] sm:$0xff]
        %v8920 = vld [vmem:[#allocation3 + $0x20] sm:$0xf]
        %v8921 = vld [vmem:[#allocation3 + $0x24] sm:$0xff]
        %v8922 = vld [vmem:[#allocation3 + $0x2c] sm:$0xff]
        %v8923 = vld [vmem:[#allocation3 + $0x34] sm:$0xff]
        %v8924 = vld [vmem:[#allocation3 + $0x3c] sm:$0xff]
        %v8925 = vld [vmem:[#allocation3 + $0x44] sm:$0xf]
        %v8926 = vld [vmem:[#allocation3 + $0x48] sm:$0xff]
        %v8927 = vld [vmem:[#allocation3 + $0x50] sm:$0xff]
        %v8928 = vld [vmem:[#allocation3 + $0x58] sm:$0xff]
        %v8929 = vld [vmem:[#allocation3 + $0x60] sm:$0xff]
        %v8930 = vld [vmem:[#allocation3 + $0x68] sm:$0xf]
        %v8931 = vld [vmem:[#allocation3 + $0x6c] sm:$0xff]
        %v8932 = vld [vmem:[#allocation3 + $0x74] sm:$0xff]
        %v8933 = vld [vmem:[#allocation3 + $0x7c] sm:$0xff]
        %v8934 = vld [vmem:[#allocation3 + $0x84] sm:$0xff]
        %v8935 = vld [vmem:[#allocation3 + $0x8c] sm:$0xf]
        %v8936 = vld [vmem:[#allocation3 + $0x90] sm:$0xff]
        %v8937 = vld [vmem:[#allocation3 + $0x98] sm:$0xff]
        %v8938 = vld [vmem:[#allocation3 + $0xa0] sm:$0xff]
        %v8939 = vld [vmem:[#allocation3 + $0xa8] sm:$0xff]
        %v8940 = vld [vmem:[#allocation3 + $0xb0] sm:$0xf]
        %v8941 = vld [vmem:[#allocation3 + $0xb4] sm:$0xff]
        %v8942 = vld [vmem:[#allocation3 + $0xbc] sm:$0xff]
        %v8943 = vld [vmem:[#allocation3 + $0xc4] sm:$0xff]
        %v8944 = vld [vmem:[#allocation3 + $0xcc] sm:$0xff]
        %v8945 = vld [vmem:[#allocation3 + $0xd4] sm:$0xf]
        %v8946 = vld [vmem:[#allocation3 + $0xd8] sm:$0xff]
        %v8947 = vld [vmem:[#allocation3 + $0xe0] sm:$0xff]
        %v8948 = vld [vmem:[#allocation3 + $0xe8] sm:$0xff]
        %v8949 = vld [vmem:[#allocation3 + $0xf0] sm:$0xff]
        %v8950 = vld [vmem:[#allocation3 + $0xf8] sm:$0xf]
        %v8951 = vld [vmem:[#allocation3 + $0xfc] sm:$0xff]
        %v8952 = vld [vmem:[#allocation3 + $0x104] sm:$0xff]
        %v8953 = vld [vmem:[#allocation3 + $0x10c] sm:$0xff]
        %v8954 = vld [vmem:[#allocation3 + $0x114] sm:$0xff]
        %v8955 = vld [vmem:[#allocation3 + $0x11c] sm:$0xf]
        %v8956 = vld [vmem:[#allocation3 + $0x120] sm:$0xff]
        %v8957 = vld [vmem:[#allocation3 + $0x128] sm:$0xff]
        %v8958 = vld [vmem:[#allocation3 + $0x130] sm:$0xff]
        %v8959 = vld [vmem:[#allocation3 + $0x138] sm:$0xff]
        %v8960 = vld [vmem:[#allocation3 + $0x140] sm:$0xf]
        %v8961 = vld [vmem:[#allocation3 + $0x144] sm:$0xff]
        %v8962 = vld [vmem:[#allocation3 + $0x14c] sm:$0xff]
        %v8963 = vld [vmem:[#allocation3 + $0x154] sm:$0xff]
        %v8964 = vld [vmem:[#allocation3 + $0x15c] sm:$0xff]
        %v8965 = vld [vmem:[#allocation3 + $0x164] sm:$0xf]
        %v8966 = vld [vmem:[#allocation3 + $0x168] sm:$0xff]
        %v8967 = vld [vmem:[#allocation3 + $0x170] sm:$0xff]
        %v8968 = vld [vmem:[#allocation3 + $0x178] sm:$0xff]
        %v8969 = vld [vmem:[#allocation3 + $0x180] sm:$0xff]
        %v8970 = vld [vmem:[#allocation3 + $0x188] sm:$0xf]
        %v8971 = vld [vmem:[#allocation3 + $0x18c] sm:$0xff]
        %v8972 = vld [vmem:[#allocation3 + $0x194] sm:$0xff]
        %v8973 = vld [vmem:[#allocation3 + $0x19c] sm:$0xff]
        %v8974 = vld [vmem:[#allocation3 + $0x1a4] sm:$0xff]
        %v8975 = vld [vmem:[#allocation3 + $0x1ac] sm:$0xf]
        %v8976 = vld [vmem:[#allocation3 + $0x1b0] sm:$0xff]
        %v8977 = vld [vmem:[#allocation3 + $0x1b8] sm:$0xff]
        %v8978 = vld [vmem:[#allocation3 + $0x1c0] sm:$0xff]
        %v8979 = vld [vmem:[#allocation3 + $0x1c8] sm:$0xff]
        %v8980 = vld [vmem:[#allocation3 + $0x1d0] sm:$0xf]
        %v8981 = vld [vmem:[#allocation3 + $0x1d4] sm:$0xff]
        %v8982 = vld [vmem:[#allocation3 + $0x1dc] sm:$0xff]
        %v8983 = vld [vmem:[#allocation3 + $0x1e4] sm:$0xff]
        %v8984 = vld [vmem:[#allocation3 + $0x1ec] sm:$0xff]
        %v8985 = vld [vmem:[#allocation3 + $0x1f4] sm:$0xf]
        %v8986 = vld [vmem:[#allocation3 + $0x1f8] sm:$0xff]
        %v8987 = vld [vmem:[#allocation3 + $0x200] sm:$0xff]
        %v8988 = vld [vmem:[#allocation3 + $0x208] sm:$0xff]
        %v8989 = vld [vmem:[#allocation3 + $0x210] sm:$0xff]
        %v8990 = vld [vmem:[#allocation3 + $0x218] sm:$0xf]
        %v8991 = vld [vmem:[#allocation3 + $0x21c] sm:$0xff]
        %v8992 = vld [vmem:[#allocation3 + $0x224] sm:$0xff]
        %v8993 = vld [vmem:[#allocation3 + $0x22c] sm:$0xff]
        %v8994 = vld [vmem:[#allocation3 + $0x234] sm:$0xff]
        %v8995 = vld [vmem:[#allocation3 + $0x23c] sm:$0xf]
        %v8996 = vld [vmem:[#allocation3 + $0x240] sm:$0xff]
        %v8997 = vld [vmem:[#allocation3 + $0x248] sm:$0xff]
        %v8998 = vld [vmem:[#allocation3 + $0x250] sm:$0xff]
        %v8999 = vld [vmem:[#allocation3 + $0x258] sm:$0xff]
        %v9000 = vld [vmem:[#allocation3 + $0x260] sm:$0xf]
        %v9001 = vld [vmem:[#allocation3 + $0x264] sm:$0xff]
        %v9002 = vld [vmem:[#allocation3 + $0x26c] sm:$0xff]
        %v9003 = vld [vmem:[#allocation3 + $0x274] sm:$0xff]
        %v9004 = vld [vmem:[#allocation3 + $0x27c] sm:$0xff]
        %v9005 = vld [vmem:[#allocation3 + $0x284] sm:$0xf]
        %v9006 = vld [vmem:[#allocation3 + $0x288] sm:$0xff]
        %v9007 = vld [vmem:[#allocation3 + $0x290] sm:$0xff]
        %v9008 = vld [vmem:[#allocation3 + $0x298] sm:$0xff]
        %v9009 = vld [vmem:[#allocation3 + $0x2a0] sm:$0xff]
        %v9010 = vld [vmem:[#allocation3 + $0x2a8] sm:$0xf]
        %v9011 = vld [vmem:[#allocation3 + $0x2ac] sm:$0xff]
        %v9012 = vld [vmem:[#allocation3 + $0x2b4] sm:$0xff]
        %v9013 = vld [vmem:[#allocation3 + $0x2bc] sm:$0xff]
        %v9014 = vld [vmem:[#allocation3 + $0x2c4] sm:$0xff]
        %v9015 = vld [vmem:[#allocation3 + $0x2cc] sm:$0xf]
        %v9016 = vld [vmem:[#allocation3 + $0x2d0] sm:$0xff]
        %v9017 = vld [vmem:[#allocation3 + $0x2d8] sm:$0xff]
        %v9018 = vld [vmem:[#allocation3 + $0x2e0] sm:$0xff]
        %v9019 = vld [vmem:[#allocation3 + $0x2e8] sm:$0xff]
        %v9020 = vld [vmem:[#allocation3 + $0x2f0] sm:$0xf]
        %v9021 = vld [vmem:[#allocation3 + $0x2f4] sm:$0xff]
        %v9022 = vld [vmem:[#allocation3 + $0x2fc] sm:$0xff]
        %v9023 = vld [vmem:[#allocation3 + $0x304] sm:$0xff]
        %v9024 = vld [vmem:[#allocation3 + $0x30c] sm:$0xff]
        %v9025 = vld [vmem:[#allocation3 + $0x314] sm:$0xf]
        %v9026 = vld [vmem:[#allocation3 + $0x318] sm:$0xff]
        %v9027 = vld [vmem:[#allocation3 + $0x320] sm:$0xff]
        %v9028 = vld [vmem:[#allocation3 + $0x328] sm:$0xff]
        %v9029 = vld [vmem:[#allocation3 + $0x330] sm:$0xff]
        %v9030 = vld [vmem:[#allocation3 + $0x338] sm:$0xf]
        %v9031 = vld [vmem:[#allocation3 + $0x33c] sm:$0xff]
        %v9032 = vld [vmem:[#allocation3 + $0x344] sm:$0xff]
        %v9033 = vld [vmem:[#allocation3 + $0x34c] sm:$0xff]
        %v9034 = vld [vmem:[#allocation3 + $0x354] sm:$0xff]
        %v9035 = vld [vmem:[#allocation3 + $0x35c] sm:$0xf]
        %v9036 = vld [vmem:[#allocation3 + $0x360] sm:$0xff]
        %v9037 = vld [vmem:[#allocation3 + $0x368] sm:$0xff]
        %v9038 = vld [vmem:[#allocation3 + $0x370] sm:$0xff]
        %v9039 = vld [vmem:[#allocation3 + $0x378] sm:$0xff]
        %v9040 = vld [vmem:[#allocation3 + $0x380] sm:$0xf]
        %v9041 = vld [vmem:[#allocation3 + $0x384] sm:$0xff]
        %v9042 = vld [vmem:[#allocation3 + $0x38c] sm:$0xff]
        %v9043 = vld [vmem:[#allocation3 + $0x394] sm:$0xff]
        %v9044 = vld [vmem:[#allocation3 + $0x39c] sm:$0xff]
        %v9045 = vld [vmem:[#allocation3 + $0x3a4] sm:$0xf]
        %v9046 = vld [vmem:[#allocation3 + $0x3a8] sm:$0xff]
        %v9047 = vld [vmem:[#allocation3 + $0x3b0] sm:$0xff]
        %v9048 = vld [vmem:[#allocation3 + $0x3b8] sm:$0xff]
        %v9049 = vld [vmem:[#allocation3 + $0x3c0] sm:$0xff]
        %v9050 = vld [vmem:[#allocation3 + $0x3c8] sm:$0xf]
        %v9051 = vld [vmem:[#allocation3 + $0x3cc] sm:$0xff]
        %v9052 = vld [vmem:[#allocation3 + $0x3d4] sm:$0xff]
        %v9053 = vld [vmem:[#allocation3 + $0x3dc] sm:$0xff]
        %v9054 = vld [vmem:[#allocation3 + $0x3e4] sm:$0xff]
        %v9055 = vld [vmem:[#allocation3 + $0x3ec] sm:$0xf]
        %v9056 = vld [vmem:[#allocation3 + $0x3f0] sm:$0xff]
        %v9057 = vld [vmem:[#allocation3 + $0x3f8] sm:$0xff]
        %v9058 = vld [vmem:[#allocation3 + $0x400] sm:$0xff]
        %v9059 = vld [vmem:[#allocation3 + $0x408] sm:$0xff]
        %v9060 = vld [vmem:[#allocation3 + $0x410] sm:$0xf]
        %v9061 = vld [vmem:[#allocation3 + $0x414] sm:$0xff]
        %v9062 = vld [vmem:[#allocation3 + $0x41c] sm:$0xff]
        %v9063 = vld [vmem:[#allocation3 + $0x424] sm:$0xff]
        %v9064 = vld [vmem:[#allocation3 + $0x42c] sm:$0xff]
        %v9065 = vld [vmem:[#allocation3 + $0x434] sm:$0xf]
        %v9066 = vld [vmem:[#allocation3 + $0x438] sm:$0xff]
        %v9067 = vld [vmem:[#allocation3 + $0x440] sm:$0xff]
        %v9068 = vld [vmem:[#allocation3 + $0x448] sm:$0xff]
        %v9069 = vld [vmem:[#allocation3 + $0x450] sm:$0xff]
        %v9070 = vld [vmem:[#allocation3 + $0x458] sm:$0xf]
        %v9071 = vld [vmem:[#allocation3 + $0x45c] sm:$0xff]
        %v9072 = vld [vmem:[#allocation3 + $0x464] sm:$0xff]
        %v9073 = vld [vmem:[#allocation3 + $0x46c] sm:$0xff]
        %v9074 = vld [vmem:[#allocation3 + $0x474] sm:$0xff]
        %v9075 = vld [vmem:[#allocation3 + $0x47c] sm:$0xf]
        %v9076 = vld [vmem:[#allocation9] sm:$0xf]
        %v9077 = vld [vmem:[#allocation9 + $0x4] sm:$0xf]
        %v9078 = vld [vmem:[#allocation9 + $0x8] sm:$0xf]
        %v9079 = vld [vmem:[#allocation9 + $0xc] sm:$0xf]
        %v9080 = vld [vmem:[#allocation9 + $0x10] sm:$0xf]
        %v9081 = vld [vmem:[#allocation9 + $0x14] sm:$0xf]
        %v9082 = vld [vmem:[#allocation9 + $0x18] sm:$0xf]
        %v9083 = vld [vmem:[#allocation9 + $0x1c] sm:$0xf]
        %v9084 = vld [vmem:[#allocation9 + $0x20] sm:$0xf]
        %v9085 = vld [vmem:[#allocation9 + $0x24] sm:$0xf]
        %v9086 = vld [vmem:[#allocation9 + $0x28] sm:$0xf]
        %v9087 = vld [vmem:[#allocation9 + $0x2c] sm:$0xf]
        %v9088 = vld [vmem:[#allocation9 + $0x30] sm:$0xf]
        %v9089 = vld [vmem:[#allocation9 + $0x34] sm:$0xf]
        %v9090 = vld [vmem:[#allocation9 + $0x38] sm:$0xf]
        %v9091 = vld [vmem:[#allocation9 + $0x3c] sm:$0xf]
        %v9092 = vld [vmem:[#allocation9 + $0x40] sm:$0xf]
        %v9093 = vld [vmem:[#allocation9 + $0x44] sm:$0xf]
        %v9094 = vld [vmem:[#allocation9 + $0x48] sm:$0xf]
        %v9095 = vld [vmem:[#allocation9 + $0x4c] sm:$0xf]
        %v9096 = vld [vmem:[#allocation9 + $0x50] sm:$0xf]
        %v9097 = vld [vmem:[#allocation9 + $0x54] sm:$0xf]
        %v9098 = vld [vmem:[#allocation9 + $0x58] sm:$0xf]
        %v9099 = vld [vmem:[#allocation9 + $0x5c] sm:$0xf]
        %v9100 = vld [vmem:[#allocation9 + $0x60] sm:$0xf]
        %v9101 = vld [vmem:[#allocation9 + $0x64] sm:$0xf]
        %v9102 = vld [vmem:[#allocation9 + $0x68] sm:$0xf]
        %v9103 = vld [vmem:[#allocation9 + $0x6c] sm:$0xf]
        %v9104 = vld [vmem:[#allocation9 + $0x70] sm:$0xf]
        %v9105 = vld [vmem:[#allocation9 + $0x74] sm:$0xf]
        %v9106 = vld [vmem:[#allocation9 + $0x78] sm:$0xf]
        %v9107 = vld [vmem:[#allocation9 + $0x7c] sm:$0xf]
        %v9108 = vld [vmem:[#allocation9 + $0x80] sm:$0xf]
        %v9109 = vld [vmem:[#allocation9 + $0x84] sm:$0xf]
        %v9110 = vld [vmem:[#allocation9 + $0x88] sm:$0xf]
        %v9111 = vld [vmem:[#allocation9 + $0x8c] sm:$0xf]
        %v9112 = vld [vmem:[#allocation9 + $0x90] sm:$0xf]
        %v9113 = vld [vmem:[#allocation9 + $0x94] sm:$0xf]
        %v9114 = vld [vmem:[#allocation9 + $0x98] sm:$0xf]
        %v9115 = vld [vmem:[#allocation9 + $0x9c] sm:$0xf]
        %v9116 = vld [vmem:[#allocation9 + $0xa0] sm:$0xf]
        %v9117 = vld [vmem:[#allocation9 + $0xa4] sm:$0xf]
        %v9118 = vld [vmem:[#allocation9 + $0xa8] sm:$0xf]
        %v9119 = vld [vmem:[#allocation9 + $0xac] sm:$0xf]
        %v9120 = vld [vmem:[#allocation9 + $0xb0] sm:$0xf]
        %v9121 = vld [vmem:[#allocation9 + $0xb4] sm:$0xf]
        %v9122 = vld [vmem:[#allocation9 + $0xb8] sm:$0xf]
        %v9123 = vld [vmem:[#allocation9 + $0xbc] sm:$0xf]
        %v9124 = vld [vmem:[#allocation9 + $0xc0] sm:$0xf]
        %v9125 = vld [vmem:[#allocation9 + $0xc4] sm:$0xf]
        %v9126 = vld [vmem:[#allocation9 + $0xc8] sm:$0xf]
        %v9127 = vld [vmem:[#allocation9 + $0xcc] sm:$0xf]
        %v9128 = vld [vmem:[#allocation9 + $0xd0] sm:$0xf]
        %v9129 = vld [vmem:[#allocation9 + $0xd4] sm:$0xf]
        %v9130 = vld [vmem:[#allocation9 + $0xd8] sm:$0xf]
        %v9131 = vld [vmem:[#allocation9 + $0xdc] sm:$0xf]
        %v9132 = vld [vmem:[#allocation9 + $0xe0] sm:$0xf]
        %v9133 = vld [vmem:[#allocation9 + $0xe4] sm:$0xf]
        %v9134 = vld [vmem:[#allocation9 + $0xe8] sm:$0xf]
        %v9135 = vld [vmem:[#allocation9 + $0xec] sm:$0xf]
        %v9136 = vld [vmem:[#allocation9 + $0xf0] sm:$0xf]
        %v9137 = vld [vmem:[#allocation9 + $0xf4] sm:$0xf]
        %v9138 = vld [vmem:[#allocation9 + $0xf8] sm:$0xf]
        %v9139 = vld [vmem:[#allocation9 + $0xfc] sm:$0xf]
        %v9140 = vld [vmem:[#allocation9 + $0x100] sm:$0xf]
        %v9141 = vld [vmem:[#allocation9 + $0x104] sm:$0xf]
        %v9142 = vld [vmem:[#allocation9 + $0x108] sm:$0xf]
        %v9143 = vld [vmem:[#allocation9 + $0x10c] sm:$0xf]
        %v9144 = vld [vmem:[#allocation9 + $0x110] sm:$0xf]
        %v9145 = vld [vmem:[#allocation9 + $0x114] sm:$0xf]
        %v9146 = vld [vmem:[#allocation9 + $0x118] sm:$0xf]
        %v9147 = vld [vmem:[#allocation9 + $0x11c] sm:$0xf]
        %v9148 = vld [vmem:[#allocation9 + $0x120] sm:$0xf]
        %v9149 = vld [vmem:[#allocation9 + $0x124] sm:$0xf]
        %v9150 = vld [vmem:[#allocation9 + $0x128] sm:$0xf]
        %v9151 = vld [vmem:[#allocation9 + $0x12c] sm:$0xf]
        %v9152 = vld [vmem:[#allocation9 + $0x130] sm:$0xf]
        %v9153 = vld [vmem:[#allocation9 + $0x134] sm:$0xf]
        %v9154 = vld [vmem:[#allocation9 + $0x138] sm:$0xf]
        %v9155 = vld [vmem:[#allocation9 + $0x13c] sm:$0xf]
        %v9156 = vld [vmem:[#allocation9 + $0x140] sm:$0xf]
        %v9157 = vld [vmem:[#allocation9 + $0x144] sm:$0xf]
        %v9158 = vld [vmem:[#allocation9 + $0x148] sm:$0xf]
        %v9159 = vld [vmem:[#allocation9 + $0x14c] sm:$0xf]
        %v9160 = vld [vmem:[#allocation9 + $0x150] sm:$0xf]
        %v9161 = vld [vmem:[#allocation9 + $0x154] sm:$0xf]
        %v9162 = vld [vmem:[#allocation9 + $0x158] sm:$0xf]
        %v9163 = vld [vmem:[#allocation9 + $0x15c] sm:$0xf]
        %v9164 = vld [vmem:[#allocation9 + $0x160] sm:$0xf]
        %v9165 = vld [vmem:[#allocation9 + $0x164] sm:$0xf]
        %v9166 = vld [vmem:[#allocation9 + $0x168] sm:$0xf]
        %v9167 = vld [vmem:[#allocation9 + $0x16c] sm:$0xf]
        %v9168 = vld [vmem:[#allocation9 + $0x170] sm:$0xf]
        %v9169 = vld [vmem:[#allocation9 + $0x174] sm:$0xf]
        %v9170 = vld [vmem:[#allocation9 + $0x178] sm:$0xf]
        %v9171 = vld [vmem:[#allocation9 + $0x17c] sm:$0xf]
        %v9172 = vld [vmem:[#allocation9 + $0x180] sm:$0xf]
        %v9173 = vld [vmem:[#allocation9 + $0x184] sm:$0xf]
        %v9174 = vld [vmem:[#allocation9 + $0x188] sm:$0xf]
        %v9175 = vld [vmem:[#allocation9 + $0x18c] sm:$0xf]
        %v9176 = vld [vmem:[#allocation9 + $0x190] sm:$0xf]
        %v9177 = vld [vmem:[#allocation9 + $0x194] sm:$0xf]
        %v9178 = vld [vmem:[#allocation9 + $0x198] sm:$0xf]
        %v9179 = vld [vmem:[#allocation9 + $0x19c] sm:$0xf]
        %v9180 = vld [vmem:[#allocation9 + $0x1a0] sm:$0xf]
        %v9181 = vld [vmem:[#allocation9 + $0x1a4] sm:$0xf]
        %v9182 = vld [vmem:[#allocation9 + $0x1a8] sm:$0xf]
        %v9183 = vld [vmem:[#allocation9 + $0x1ac] sm:$0xf]
        %v9184 = vld [vmem:[#allocation9 + $0x1b0] sm:$0xf]
        %v9185 = vld [vmem:[#allocation9 + $0x1b4] sm:$0xf]
        %v9186 = vld [vmem:[#allocation9 + $0x1b8] sm:$0xf]
        %v9187 = vld [vmem:[#allocation9 + $0x1bc] sm:$0xf]
        %v9188 = vld [vmem:[#allocation9 + $0x1c0] sm:$0xf]
        %v9189 = vld [vmem:[#allocation9 + $0x1c4] sm:$0xf]
        %v9190 = vld [vmem:[#allocation9 + $0x1c8] sm:$0xf]
        %v9191 = vld [vmem:[#allocation9 + $0x1cc] sm:$0xf]
        %v9192 = vld [vmem:[#allocation9 + $0x1d0] sm:$0xf]
        %v9193 = vld [vmem:[#allocation9 + $0x1d4] sm:$0xf]
        %v9194 = vld [vmem:[#allocation9 + $0x1d8] sm:$0xf]
        %v9195 = vld [vmem:[#allocation9 + $0x1dc] sm:$0xf]
        %v9196 = vld [vmem:[#allocation9 + $0x1e0] sm:$0xf]
        %v9197 = vld [vmem:[#allocation9 + $0x1e4] sm:$0xf]
        %v9198 = vld [vmem:[#allocation9 + $0x1e8] sm:$0xf]
        %v9199 = vld [vmem:[#allocation9 + $0x1ec] sm:$0xf]
        %v9200 = vld [vmem:[#allocation9 + $0x1f0] sm:$0xf]
        %v9201 = vld [vmem:[#allocation9 + $0x1f4] sm:$0xf]
        %v9202 = vld [vmem:[#allocation9 + $0x1f8] sm:$0xf]
        %v9203 = vld [vmem:[#allocation9 + $0x1fc] sm:$0xf]
        %v9204 = vld [vmem:[#allocation9 + $0x200] sm:$0xf]
        %v9205 = vld [vmem:[#allocation9 + $0x204] sm:$0xf]
        %v9206 = vld [vmem:[#allocation9 + $0x208] sm:$0xf]
        %v9207 = vld [vmem:[#allocation9 + $0x20c] sm:$0xf]
        %v9208 = vld [vmem:[#allocation9 + $0x210] sm:$0xf]
        %v9209 = vld [vmem:[#allocation9 + $0x214] sm:$0xf]
        %v9210 = vld [vmem:[#allocation9 + $0x218] sm:$0xf]
        %v9211 = vld [vmem:[#allocation9 + $0x21c] sm:$0xf]
        %v9212 = vld [vmem:[#allocation9 + $0x220] sm:$0xf]
        %v9213 = vld [vmem:[#allocation9 + $0x224] sm:$0xf]
        %v9214 = vld [vmem:[#allocation9 + $0x228] sm:$0xf]
        %v9215 = vld [vmem:[#allocation9 + $0x22c] sm:$0xf]
        %v9216 = vld [vmem:[#allocation9 + $0x230] sm:$0xf]
        %v9217 = vld [vmem:[#allocation9 + $0x234] sm:$0xf]
        %v9218 = vld [vmem:[#allocation9 + $0x238] sm:$0xf]
        %v9219 = vld [vmem:[#allocation9 + $0x23c] sm:$0xf]
        %v9380 = vunpack.c.l.b16 %v8916
        %v9381 = vunpack.c.h.b16 %v8916
        %v9382 = vunpack.c.l.b16 %v8917
        %v9383 = vunpack.c.h.b16 %v8917
        %v9384 = vunpack.c.l.b16 %v8918
        %v9385 = vunpack.c.h.b16 %v8918
        %v9386 = vunpack.c.l.b16 %v8919
        %v9387 = vunpack.c.h.b16 %v8919
        %v9388 = vunpack.c.l.b16 %v8920
        %v9389 = vunpack.c.l.b16 %v8921
        %v9390 = vunpack.c.h.b16 %v8921
        %v9391 = vunpack.c.l.b16 %v8922
        %v9392 = vunpack.c.h.b16 %v8922
        %v9393 = vunpack.c.l.b16 %v8923
        %v9394 = vunpack.c.h.b16 %v8923
        %v9395 = vunpack.c.l.b16 %v8924
        %v9396 = vunpack.c.h.b16 %v8924
        %v9397 = vunpack.c.l.b16 %v8925
        %v9398 = vunpack.c.l.b16 %v8926
        %v9399 = vunpack.c.h.b16 %v8926
        %v9400 = vunpack.c.l.b16 %v8927
        %v9401 = vunpack.c.h.b16 %v8927
        %v9402 = vunpack.c.l.b16 %v8928
        %v9403 = vunpack.c.h.b16 %v8928
        %v9404 = vunpack.c.l.b16 %v8929
        %v9405 = vunpack.c.h.b16 %v8929
        %v9406 = vunpack.c.l.b16 %v8930
        %v9407 = vunpack.c.l.b16 %v8931
        %v9408 = vunpack.c.h.b16 %v8931
        %v9409 = vunpack.c.l.b16 %v8932
        %v9410 = vunpack.c.h.b16 %v8932
        %v9411 = vunpack.c.l.b16 %v8933
        %v9412 = vunpack.c.h.b16 %v8933
        %v9413 = vunpack.c.l.b16 %v8934
        %v9414 = vunpack.c.h.b16 %v8934
        %v9415 = vunpack.c.l.b16 %v8935
        %v9416 = vunpack.c.l.b16 %v8936
        %v9417 = vunpack.c.h.b16 %v8936
        %v9418 = vunpack.c.l.b16 %v8937
        %v9419 = vunpack.c.h.b16 %v8937
        %v9420 = vunpack.c.l.b16 %v8938
        %v9421 = vunpack.c.h.b16 %v8938
        %v9422 = vunpack.c.l.b16 %v8939
        %v9423 = vunpack.c.h.b16 %v8939
        %v9424 = vunpack.c.l.b16 %v8940
        %v9425 = vunpack.c.l.b16 %v8941
        %v9426 = vunpack.c.h.b16 %v8941
        %v9427 = vunpack.c.l.b16 %v8942
        %v9428 = vunpack.c.h.b16 %v8942
        %v9429 = vunpack.c.l.b16 %v8943
        %v9430 = vunpack.c.h.b16 %v8943
        %v9431 = vunpack.c.l.b16 %v8944
        %v9432 = vunpack.c.h.b16 %v8944
        %v9433 = vunpack.c.l.b16 %v8945
        %v9434 = vunpack.c.l.b16 %v8946
        %v9435 = vunpack.c.h.b16 %v8946
        %v9436 = vunpack.c.l.b16 %v8947
        %v9437 = vunpack.c.h.b16 %v8947
        %v9438 = vunpack.c.l.b16 %v8948
        %v9439 = vunpack.c.h.b16 %v8948
        %v9440 = vunpack.c.l.b16 %v8949
        %v9441 = vunpack.c.h.b16 %v8949
        %v9442 = vunpack.c.l.b16 %v8950
        %v9443 = vunpack.c.l.b16 %v8951
        %v9444 = vunpack.c.h.b16 %v8951
        %v9445 = vunpack.c.l.b16 %v8952
        %v9446 = vunpack.c.h.b16 %v8952
        %v9447 = vunpack.c.l.b16 %v8953
        %v9448 = vunpack.c.h.b16 %v8953
        %v9449 = vunpack.c.l.b16 %v8954
        %v9450 = vunpack.c.h.b16 %v8954
        %v9451 = vunpack.c.l.b16 %v8955
        %v9452 = vunpack.c.l.b16 %v8956
        %v9453 = vunpack.c.h.b16 %v8956
        %v9454 = vunpack.c.l.b16 %v8957
        %v9455 = vunpack.c.h.b16 %v8957
        %v9456 = vunpack.c.l.b16 %v8958
        %v9457 = vunpack.c.h.b16 %v8958
        %v9458 = vunpack.c.l.b16 %v8959
        %v9459 = vunpack.c.h.b16 %v8959
        %v9460 = vunpack.c.l.b16 %v8960
        %v9461 = vunpack.c.l.b16 %v8961
        %v9462 = vunpack.c.h.b16 %v8961
        %v9463 = vunpack.c.l.b16 %v8962
        %v9464 = vunpack.c.h.b16 %v8962
        %v9465 = vunpack.c.l.b16 %v8963
        %v9466 = vunpack.c.h.b16 %v8963
        %v9467 = vunpack.c.l.b16 %v8964
        %v9468 = vunpack.c.h.b16 %v8964
        %v9469 = vunpack.c.l.b16 %v8965
        %v9470 = vunpack.c.l.b16 %v8966
        %v9471 = vunpack.c.h.b16 %v8966
        %v9472 = vunpack.c.l.b16 %v8967
        %v9473 = vunpack.c.h.b16 %v8967
        %v9474 = vunpack.c.l.b16 %v8968
        %v9475 = vunpack.c.h.b16 %v8968
        %v9476 = vunpack.c.l.b16 %v8969
        %v9477 = vunpack.c.h.b16 %v8969
        %v9478 = vunpack.c.l.b16 %v8970
        %v9479 = vunpack.c.l.b16 %v8971
        %v9480 = vunpack.c.h.b16 %v8971
        %v9481 = vunpack.c.l.b16 %v8972
        %v9482 = vunpack.c.h.b16 %v8972
        %v9483 = vunpack.c.l.b16 %v8973
        %v9484 = vunpack.c.h.b16 %v8973
        %v9485 = vunpack.c.l.b16 %v8974
        %v9486 = vunpack.c.h.b16 %v8974
        %v9487 = vunpack.c.l.b16 %v8975
        %v9488 = vunpack.c.l.b16 %v8976
        %v9489 = vunpack.c.h.b16 %v8976
        %v9490 = vunpack.c.l.b16 %v8977
        %v9491 = vunpack.c.h.b16 %v8977
        %v9492 = vunpack.c.l.b16 %v8978
        %v9493 = vunpack.c.h.b16 %v8978
        %v9494 = vunpack.c.l.b16 %v8979
        %v9495 = vunpack.c.h.b16 %v8979
        %v9496 = vunpack.c.l.b16 %v8980
        %v9497 = vunpack.c.l.b16 %v8981
        %v9498 = vunpack.c.h.b16 %v8981
        %v9499 = vunpack.c.l.b16 %v8982
        %v9500 = vunpack.c.h.b16 %v8982
        %v9501 = vunpack.c.l.b16 %v8983
        %v9502 = vunpack.c.h.b16 %v8983
        %v9503 = vunpack.c.l.b16 %v8984
        %v9504 = vunpack.c.h.b16 %v8984
        %v9505 = vunpack.c.l.b16 %v8985
        %v9506 = vunpack.c.l.b16 %v8986
        %v9507 = vunpack.c.h.b16 %v8986
        %v9508 = vunpack.c.l.b16 %v8987
        %v9509 = vunpack.c.h.b16 %v8987
        %v9510 = vunpack.c.l.b16 %v8988
        %v9511 = vunpack.c.h.b16 %v8988
        %v9512 = vunpack.c.l.b16 %v8989
        %v9513 = vunpack.c.h.b16 %v8989
        %v9514 = vunpack.c.l.b16 %v8990
        %v9515 = vunpack.c.l.b16 %v8991
        %v9516 = vunpack.c.h.b16 %v8991
        %v9517 = vunpack.c.l.b16 %v8992
        %v9518 = vunpack.c.h.b16 %v8992
        %v9519 = vunpack.c.l.b16 %v8993
        %v9520 = vunpack.c.h.b16 %v8993
        %v9521 = vunpack.c.l.b16 %v8994
        %v9522 = vunpack.c.h.b16 %v8994
        %v9523 = vunpack.c.l.b16 %v8995
        %v9524 = vunpack.c.l.b16 %v8996
        %v9525 = vunpack.c.h.b16 %v8996
        %v9526 = vunpack.c.l.b16 %v8997
        %v9527 = vunpack.c.h.b16 %v8997
        %v9528 = vunpack.c.l.b16 %v8998
        %v9529 = vunpack.c.h.b16 %v8998
        %v9530 = vunpack.c.l.b16 %v8999
        %v9531 = vunpack.c.h.b16 %v8999
        %v9532 = vunpack.c.l.b16 %v9000
        %v9533 = vunpack.c.l.b16 %v9001
        %v9534 = vunpack.c.h.b16 %v9001
        %v9535 = vunpack.c.l.b16 %v9002
        %v9536 = vunpack.c.h.b16 %v9002
        %v9537 = vunpack.c.l.b16 %v9003
        %v9538 = vunpack.c.h.b16 %v9003
        %v9539 = vunpack.c.l.b16 %v9004
        %v9540 = vunpack.c.h.b16 %v9004
        %v9541 = vunpack.c.l.b16 %v9005
        %v9542 = vunpack.c.l.b16 %v9006
        %v9543 = vunpack.c.h.b16 %v9006
        %v9544 = vunpack.c.l.b16 %v9007
        %v9545 = vunpack.c.h.b16 %v9007
        %v9546 = vunpack.c.l.b16 %v9008
        %v9547 = vunpack.c.h.b16 %v9008
        %v9548 = vunpack.c.l.b16 %v9009
        %v9549 = vunpack.c.h.b16 %v9009
        %v9550 = vunpack.c.l.b16 %v9010
        %v9551 = vunpack.c.l.b16 %v9011
        %v9552 = vunpack.c.h.b16 %v9011
        %v9553 = vunpack.c.l.b16 %v9012
        %v9554 = vunpack.c.h.b16 %v9012
        %v9555 = vunpack.c.l.b16 %v9013
        %v9556 = vunpack.c.h.b16 %v9013
        %v9557 = vunpack.c.l.b16 %v9014
        %v9558 = vunpack.c.h.b16 %v9014
        %v9559 = vunpack.c.l.b16 %v9015
        %v9560 = vunpack.c.l.b16 %v9016
        %v9561 = vunpack.c.h.b16 %v9016
        %v9562 = vunpack.c.l.b16 %v9017
        %v9563 = vunpack.c.h.b16 %v9017
        %v9564 = vunpack.c.l.b16 %v9018
        %v9565 = vunpack.c.h.b16 %v9018
        %v9566 = vunpack.c.l.b16 %v9019
        %v9567 = vunpack.c.h.b16 %v9019
        %v9568 = vunpack.c.l.b16 %v9020
        %v9569 = vunpack.c.l.b16 %v9021
        %v9570 = vunpack.c.h.b16 %v9021
        %v9571 = vunpack.c.l.b16 %v9022
        %v9572 = vunpack.c.h.b16 %v9022
        %v9573 = vunpack.c.l.b16 %v9023
        %v9574 = vunpack.c.h.b16 %v9023
        %v9575 = vunpack.c.l.b16 %v9024
        %v9576 = vunpack.c.h.b16 %v9024
        %v9577 = vunpack.c.l.b16 %v9025
        %v9578 = vunpack.c.l.b16 %v9026
        %v9579 = vunpack.c.h.b16 %v9026
        %v9580 = vunpack.c.l.b16 %v9027
        %v9581 = vunpack.c.h.b16 %v9027
        %v9582 = vunpack.c.l.b16 %v9028
        %v9583 = vunpack.c.h.b16 %v9028
        %v9584 = vunpack.c.l.b16 %v9029
        %v9585 = vunpack.c.h.b16 %v9029
        %v9586 = vunpack.c.l.b16 %v9030
        %v9587 = vunpack.c.l.b16 %v9031
        %v9588 = vunpack.c.h.b16 %v9031
        %v9589 = vunpack.c.l.b16 %v9032
        %v9590 = vunpack.c.h.b16 %v9032
        %v9591 = vunpack.c.l.b16 %v9033
        %v9592 = vunpack.c.h.b16 %v9033
        %v9593 = vunpack.c.l.b16 %v9034
        %v9594 = vunpack.c.h.b16 %v9034
        %v9595 = vunpack.c.l.b16 %v9035
        %v9596 = vunpack.c.l.b16 %v9036
        %v9597 = vunpack.c.h.b16 %v9036
        %v9598 = vunpack.c.l.b16 %v9037
        %v9599 = vunpack.c.h.b16 %v9037
        %v9600 = vunpack.c.l.b16 %v9038
        %v9601 = vunpack.c.h.b16 %v9038
        %v9602 = vunpack.c.l.b16 %v9039
        %v9603 = vunpack.c.h.b16 %v9039
        %v9604 = vunpack.c.l.b16 %v9040
        %v9605 = vunpack.c.l.b16 %v9041
        %v9606 = vunpack.c.h.b16 %v9041
        %v9607 = vunpack.c.l.b16 %v9042
        %v9608 = vunpack.c.h.b16 %v9042
        %v9609 = vunpack.c.l.b16 %v9043
        %v9610 = vunpack.c.h.b16 %v9043
        %v9611 = vunpack.c.l.b16 %v9044
        %v9612 = vunpack.c.h.b16 %v9044
        %v9613 = vunpack.c.l.b16 %v9045
        %v9614 = vunpack.c.l.b16 %v9046
        %v9615 = vunpack.c.h.b16 %v9046
        %v9616 = vunpack.c.l.b16 %v9047
        %v9617 = vunpack.c.h.b16 %v9047
        %v9618 = vunpack.c.l.b16 %v9048
        %v9619 = vunpack.c.h.b16 %v9048
        %v9620 = vunpack.c.l.b16 %v9049
        %v9621 = vunpack.c.h.b16 %v9049
        %v9622 = vunpack.c.l.b16 %v9050
        %v9623 = vunpack.c.l.b16 %v9051
        %v9624 = vunpack.c.h.b16 %v9051
        %v9625 = vunpack.c.l.b16 %v9052
        %v9626 = vunpack.c.h.b16 %v9052
        %v9627 = vunpack.c.l.b16 %v9053
        %v9628 = vunpack.c.h.b16 %v9053
        %v9629 = vunpack.c.l.b16 %v9054
        %v9630 = vunpack.c.h.b16 %v9054
        %v9631 = vunpack.c.l.b16 %v9055
        %v9632 = vunpack.c.l.b16 %v9056
        %v9633 = vunpack.c.h.b16 %v9056
        %v9634 = vunpack.c.l.b16 %v9057
        %v9635 = vunpack.c.h.b16 %v9057
        %v9636 = vunpack.c.l.b16 %v9058
        %v9637 = vunpack.c.h.b16 %v9058
        %v9638 = vunpack.c.l.b16 %v9059
        %v9639 = vunpack.c.h.b16 %v9059
        %v9640 = vunpack.c.l.b16 %v9060
        %v9641 = vunpack.c.l.b16 %v9061
        %v9642 = vunpack.c.h.b16 %v9061
        %v9643 = vunpack.c.l.b16 %v9062
        %v9644 = vunpack.c.h.b16 %v9062
        %v9645 = vunpack.c.l.b16 %v9063
        %v9646 = vunpack.c.h.b16 %v9063
        %v9647 = vunpack.c.l.b16 %v9064
        %v9648 = vunpack.c.h.b16 %v9064
        %v9649 = vunpack.c.l.b16 %v9065
        %v9650 = vunpack.c.l.b16 %v9066
        %v9651 = vunpack.c.h.b16 %v9066
        %v9652 = vunpack.c.l.b16 %v9067
        %v9653 = vunpack.c.h.b16 %v9067
        %v9654 = vunpack.c.l.b16 %v9068
        %v9655 = vunpack.c.h.b16 %v9068
        %v9656 = vunpack.c.l.b16 %v9069
        %v9657 = vunpack.c.h.b16 %v9069
        %v9658 = vunpack.c.l.b16 %v9070
        %v9659 = vunpack.c.l.b16 %v9071
        %v9660 = vunpack.c.h.b16 %v9071
        %v9661 = vunpack.c.l.b16 %v9072
        %v9662 = vunpack.c.h.b16 %v9072
        %v9663 = vunpack.c.l.b16 %v9073
        %v9664 = vunpack.c.h.b16 %v9073
        %v9665 = vunpack.c.l.b16 %v9074
        %v9666 = vunpack.c.h.b16 %v9074
        %v9667 = vunpack.c.l.b16 %v9075
        %v9668 = vpack.c.b16 %v9389, %v9380
        %v9669 = vpack.c.b16 %v9390, %v9381
        %v9670 = vpack.c.b16 %v9391, %v9382
        %v9671 = vpack.c.b16 %v9392, %v9383
        %v9672 = vpack.c.b16 %v9393, %v9384
        %v9673 = vpack.c.b16 %v9394, %v9385
        %v9674 = vpack.c.b16 %v9395, %v9386
        %v9675 = vpack.c.b16 %v9396, %v9387
        %v9676 = vpack.c.b16 %v9397, %v9388
        %v9677 = vpack.c.b16 %v9407, %v9398
        %v9678 = vpack.c.b16 %v9408, %v9399
        %v9679 = vpack.c.b16 %v9409, %v9400
        %v9680 = vpack.c.b16 %v9410, %v9401
        %v9681 = vpack.c.b16 %v9411, %v9402
        %v9682 = vpack.c.b16 %v9412, %v9403
        %v9683 = vpack.c.b16 %v9413, %v9404
        %v9684 = vpack.c.b16 %v9414, %v9405
        %v9685 = vpack.c.b16 %v9415, %v9406
        %v9686 = vpack.c.b16 %v9425, %v9416
        %v9687 = vpack.c.b16 %v9426, %v9417
        %v9688 = vpack.c.b16 %v9427, %v9418
        %v9689 = vpack.c.b16 %v9428, %v9419
        %v9690 = vpack.c.b16 %v9429, %v9420
        %v9691 = vpack.c.b16 %v9430, %v9421
        %v9692 = vpack.c.b16 %v9431, %v9422
        %v9693 = vpack.c.b16 %v9432, %v9423
        %v9694 = vpack.c.b16 %v9433, %v9424
        %v9695 = vpack.c.b16 %v9443, %v9434
        %v9696 = vpack.c.b16 %v9444, %v9435
        %v9697 = vpack.c.b16 %v9445, %v9436
        %v9698 = vpack.c.b16 %v9446, %v9437
        %v9699 = vpack.c.b16 %v9447, %v9438
        %v9700 = vpack.c.b16 %v9448, %v9439
        %v9701 = vpack.c.b16 %v9449, %v9440
        %v9702 = vpack.c.b16 %v9450, %v9441
        %v9703 = vpack.c.b16 %v9451, %v9442
        %v9704 = vpack.c.b16 %v9461, %v9452
        %v9705 = vpack.c.b16 %v9462, %v9453
        %v9706 = vpack.c.b16 %v9463, %v9454
        %v9707 = vpack.c.b16 %v9464, %v9455
        %v9708 = vpack.c.b16 %v9465, %v9456
        %v9709 = vpack.c.b16 %v9466, %v9457
        %v9710 = vpack.c.b16 %v9467, %v9458
        %v9711 = vpack.c.b16 %v9468, %v9459
        %v9712 = vpack.c.b16 %v9469, %v9460
        %v9713 = vpack.c.b16 %v9479, %v9470
        %v9714 = vpack.c.b16 %v9480, %v9471
        %v9715 = vpack.c.b16 %v9481, %v9472
        %v9716 = vpack.c.b16 %v9482, %v9473
        %v9717 = vpack.c.b16 %v9483, %v9474
        %v9718 = vpack.c.b16 %v9484, %v9475
        %v9719 = vpack.c.b16 %v9485, %v9476
        %v9720 = vpack.c.b16 %v9486, %v9477
        %v9721 = vpack.c.b16 %v9487, %v9478
        %v9722 = vpack.c.b16 %v9497, %v9488
        %v9723 = vpack.c.b16 %v9498, %v9489
        %v9724 = vpack.c.b16 %v9499, %v9490
        %v9725 = vpack.c.b16 %v9500, %v9491
        %v9726 = vpack.c.b16 %v9501, %v9492
        %v9727 = vpack.c.b16 %v9502, %v9493
        %v9728 = vpack.c.b16 %v9503, %v9494
        %v9729 = vpack.c.b16 %v9504, %v9495
        %v9730 = vpack.c.b16 %v9505, %v9496
        %v9731 = vpack.c.b16 %v9515, %v9506
        %v9732 = vpack.c.b16 %v9516, %v9507
        %v9733 = vpack.c.b16 %v9517, %v9508
        %v9734 = vpack.c.b16 %v9518, %v9509
        %v9735 = vpack.c.b16 %v9519, %v9510
        %v9736 = vpack.c.b16 %v9520, %v9511
        %v9737 = vpack.c.b16 %v9521, %v9512
        %v9738 = vpack.c.b16 %v9522, %v9513
        %v9739 = vpack.c.b16 %v9523, %v9514
        %v9740 = vpack.c.b16 %v9533, %v9524
        %v9741 = vpack.c.b16 %v9534, %v9525
        %v9742 = vpack.c.b16 %v9535, %v9526
        %v9743 = vpack.c.b16 %v9536, %v9527
        %v9744 = vpack.c.b16 %v9537, %v9528
        %v9745 = vpack.c.b16 %v9538, %v9529
        %v9746 = vpack.c.b16 %v9539, %v9530
        %v9747 = vpack.c.b16 %v9540, %v9531
        %v9748 = vpack.c.b16 %v9541, %v9532
        %v9749 = vpack.c.b16 %v9551, %v9542
        %v9750 = vpack.c.b16 %v9552, %v9543
        %v9751 = vpack.c.b16 %v9553, %v9544
        %v9752 = vpack.c.b16 %v9554, %v9545
        %v9753 = vpack.c.b16 %v9555, %v9546
        %v9754 = vpack.c.b16 %v9556, %v9547
        %v9755 = vpack.c.b16 %v9557, %v9548
        %v9756 = vpack.c.b16 %v9558, %v9549
        %v9757 = vpack.c.b16 %v9559, %v9550
        %v9758 = vpack.c.b16 %v9569, %v9560
        %v9759 = vpack.c.b16 %v9570, %v9561
        %v9760 = vpack.c.b16 %v9571, %v9562
        %v9761 = vpack.c.b16 %v9572, %v9563
        %v9762 = vpack.c.b16 %v9573, %v9564
        %v9763 = vpack.c.b16 %v9574, %v9565
        %v9764 = vpack.c.b16 %v9575, %v9566
        %v9765 = vpack.c.b16 %v9576, %v9567
        %v9766 = vpack.c.b16 %v9577, %v9568
        %v9767 = vpack.c.b16 %v9587, %v9578
        %v9768 = vpack.c.b16 %v9588, %v9579
        %v9769 = vpack.c.b16 %v9589, %v9580
        %v9770 = vpack.c.b16 %v9590, %v9581
        %v9771 = vpack.c.b16 %v9591, %v9582
        %v9772 = vpack.c.b16 %v9592, %v9583
        %v9773 = vpack.c.b16 %v9593, %v9584
        %v9774 = vpack.c.b16 %v9594, %v9585
        %v9775 = vpack.c.b16 %v9595, %v9586
        %v9776 = vpack.c.b16 %v9605, %v9596
        %v9777 = vpack.c.b16 %v9606, %v9597
        %v9778 = vpack.c.b16 %v9607, %v9598
        %v9779 = vpack.c.b16 %v9608, %v9599
        %v9780 = vpack.c.b16 %v9609, %v9600
        %v9781 = vpack.c.b16 %v9610, %v9601
        %v9782 = vpack.c.b16 %v9611, %v9602
        %v9783 = vpack.c.b16 %v9612, %v9603
        %v9784 = vpack.c.b16 %v9613, %v9604
        %v9785 = vpack.c.b16 %v9623, %v9614
        %v9786 = vpack.c.b16 %v9624, %v9615
        %v9787 = vpack.c.b16 %v9625, %v9616
        %v9788 = vpack.c.b16 %v9626, %v9617
        %v9789 = vpack.c.b16 %v9627, %v9618
        %v9790 = vpack.c.b16 %v9628, %v9619
        %v9791 = vpack.c.b16 %v9629, %v9620
        %v9792 = vpack.c.b16 %v9630, %v9621
        %v9793 = vpack.c.b16 %v9631, %v9622
        %v9794 = vpack.c.b16 %v9641, %v9632
        %v9795 = vpack.c.b16 %v9642, %v9633
        %v9796 = vpack.c.b16 %v9643, %v9634
        %v9797 = vpack.c.b16 %v9644, %v9635
        %v9798 = vpack.c.b16 %v9645, %v9636
        %v9799 = vpack.c.b16 %v9646, %v9637
        %v9800 = vpack.c.b16 %v9647, %v9638
        %v9801 = vpack.c.b16 %v9648, %v9639
        %v9802 = vpack.c.b16 %v9649, %v9640
        %v9803 = vpack.c.b16 %v9659, %v9650
        %v9804 = vpack.c.b16 %v9660, %v9651
        %v9805 = vpack.c.b16 %v9661, %v9652
        %v9806 = vpack.c.b16 %v9662, %v9653
        %v9807 = vpack.c.b16 %v9663, %v9654
        %v9808 = vpack.c.b16 %v9664, %v9655
        %v9809 = vpack.c.b16 %v9665, %v9656
        %v9810 = vpack.c.b16 %v9666, %v9657
        %v9811 = vpack.c.b16 %v9667, %v9658
        %v10100 = vunpack.c.l.b16 %v9076
        %v10101 = vunpack.c.l.b16 %v9077
        %v10102 = vunpack.c.l.b16 %v9078
        %v10103 = vunpack.c.l.b16 %v9079
        %v10104 = vunpack.c.l.b16 %v9080
        %v10105 = vunpack.c.l.b16 %v9081
        %v10106 = vunpack.c.l.b16 %v9082
        %v10107 = vunpack.c.l.b16 %v9083
        %v10108 = vunpack.c.l.b16 %v9084
        %v10109 = vunpack.c.l.b16 %v9085
        %v10110 = vunpack.c.l.b16 %v9086
        %v10111 = vunpack.c.l.b16 %v9087
        %v10112 = vunpack.c.l.b16 %v9088
        %v10113 = vunpack.c.l.b16 %v9089
        %v10114 = vunpack.c.l.b16 %v9090
        %v10115 = vunpack.c.l.b16 %v9091
        %v10116 = vunpack.c.l.b16 %v9092
        %v10117 = vunpack.c.l.b16 %v9093
        %v10118 = vunpack.c.l.b16 %v9094
        %v10119 = vunpack.c.l.b16 %v9095
        %v10120 = vunpack.c.l.b16 %v9096
        %v10121 = vunpack.c.l.b16 %v9097
        %v10122 = vunpack.c.l.b16 %v9098
        %v10123 = vunpack.c.l.b16 %v9099
        %v10124 = vunpack.c.l.b16 %v9100
        %v10125 = vunpack.c.l.b16 %v9101
        %v10126 = vunpack.c.l.b16 %v9102
        %v10127 = vunpack.c.l.b16 %v9103
        %v10128 = vunpack.c.l.b16 %v9104
        %v10129 = vunpack.c.l.b16 %v9105
        %v10130 = vunpack.c.l.b16 %v9106
        %v10131 = vunpack.c.l.b16 %v9107
        %v10132 = vunpack.c.l.b16 %v9108
        %v10133 = vunpack.c.l.b16 %v9109
        %v10134 = vunpack.c.l.b16 %v9110
        %v10135 = vunpack.c.l.b16 %v9111
        %v10136 = vunpack.c.l.b16 %v9112
        %v10137 = vunpack.c.l.b16 %v9113
        %v10138 = vunpack.c.l.b16 %v9114
        %v10139 = vunpack.c.l.b16 %v9115
        %v10140 = vunpack.c.l.b16 %v9116
        %v10141 = vunpack.c.l.b16 %v9117
        %v10142 = vunpack.c.l.b16 %v9118
        %v10143 = vunpack.c.l.b16 %v9119
        %v10144 = vunpack.c.l.b16 %v9120
        %v10145 = vunpack.c.l.b16 %v9121
        %v10146 = vunpack.c.l.b16 %v9122
        %v10147 = vunpack.c.l.b16 %v9123
        %v10148 = vunpack.c.l.b16 %v9124
        %v10149 = vunpack.c.l.b16 %v9125
        %v10150 = vunpack.c.l.b16 %v9126
        %v10151 = vunpack.c.l.b16 %v9127
        %v10152 = vunpack.c.l.b16 %v9128
        %v10153 = vunpack.c.l.b16 %v9129
        %v10154 = vunpack.c.l.b16 %v9130
        %v10155 = vunpack.c.l.b16 %v9131
        %v10156 = vunpack.c.l.b16 %v9132
        %v10157 = vunpack.c.l.b16 %v9133
        %v10158 = vunpack.c.l.b16 %v9134
        %v10159 = vunpack.c.l.b16 %v9135
        %v10160 = vunpack.c.l.b16 %v9136
        %v10161 = vunpack.c.l.b16 %v9137
        %v10162 = vunpack.c.l.b16 %v9138
        %v10163 = vunpack.c.l.b16 %v9139
        %v10164 = vunpack.c.l.b16 %v9140
        %v10165 = vunpack.c.l.b16 %v9141
        %v10166 = vunpack.c.l.b16 %v9142
        %v10167 = vunpack.c.l.b16 %v9143
        %v10168 = vunpack.c.l.b16 %v9144
        %v10169 = vunpack.c.l.b16 %v9145
        %v10170 = vunpack.c.l.b16 %v9146
        %v10171 = vunpack.c.l.b16 %v9147
        %v10172 = vunpack.c.l.b16 %v9148
        %v10173 = vunpack.c.l.b16 %v9149
        %v10174 = vunpack.c.l.b16 %v9150
        %v10175 = vunpack.c.l.b16 %v9151
        %v10176 = vunpack.c.l.b16 %v9152
        %v10177 = vunpack.c.l.b16 %v9153
        %v10178 = vunpack.c.l.b16 %v9154
        %v10179 = vunpack.c.l.b16 %v9155
        %v10180 = vunpack.c.l.b16 %v9156
        %v10181 = vunpack.c.l.b16 %v9157
        %v10182 = vunpack.c.l.b16 %v9158
        %v10183 = vunpack.c.l.b16 %v9159
        %v10184 = vunpack.c.l.b16 %v9160
        %v10185 = vunpack.c.l.b16 %v9161
        %v10186 = vunpack.c.l.b16 %v9162
        %v10187 = vunpack.c.l.b16 %v9163
        %v10188 = vunpack.c.l.b16 %v9164
        %v10189 = vunpack.c.l.b16 %v9165
        %v10190 = vunpack.c.l.b16 %v9166
        %v10191 = vunpack.c.l.b16 %v9167
        %v10192 = vunpack.c.l.b16 %v9168
        %v10193 = vunpack.c.l.b16 %v9169
        %v10194 = vunpack.c.l.b16 %v9170
        %v10195 = vunpack.c.l.b16 %v9171
        %v10196 = vunpack.c.l.b16 %v9172
        %v10197 = vunpack.c.l.b16 %v9173
        %v10198 = vunpack.c.l.b16 %v9174
        %v10199 = vunpack.c.l.b16 %v9175
        %v10200 = vunpack.c.l.b16 %v9176
        %v10201 = vunpack.c.l.b16 %v9177
        %v10202 = vunpack.c.l.b16 %v9178
        %v10203 = vunpack.c.l.b16 %v9179
        %v10204 = vunpack.c.l.b16 %v9180
        %v10205 = vunpack.c.l.b16 %v9181
        %v10206 = vunpack.c.l.b16 %v9182
        %v10207 = vunpack.c.l.b16 %v9183
        %v10208 = vunpack.c.l.b16 %v9184
        %v10209 = vunpack.c.l.b16 %v9185
        %v10210 = vunpack.c.l.b16 %v9186
        %v10211 = vunpack.c.l.b16 %v9187
        %v10212 = vunpack.c.l.b16 %v9188
        %v10213 = vunpack.c.l.b16 %v9189
        %v10214 = vunpack.c.l.b16 %v9190
        %v10215 = vunpack.c.l.b16 %v9191
        %v10216 = vunpack.c.l.b16 %v9192
        %v10217 = vunpack.c.l.b16 %v9193
        %v10218 = vunpack.c.l.b16 %v9194
        %v10219 = vunpack.c.l.b16 %v9195
        %v10220 = vunpack.c.l.b16 %v9196
        %v10221 = vunpack.c.l.b16 %v9197
        %v10222 = vunpack.c.l.b16 %v9198
        %v10223 = vunpack.c.l.b16 %v9199
        %v10224 = vunpack.c.l.b16 %v9200
        %v10225 = vunpack.c.l.b16 %v9201
        %v10226 = vunpack.c.l.b16 %v9202
        %v10227 = vunpack.c.l.b16 %v9203
        %v10228 = vunpack.c.l.b16 %v9204
        %v10229 = vunpack.c.l.b16 %v9205
        %v10230 = vunpack.c.l.b16 %v9206
        %v10231 = vunpack.c.l.b16 %v9207
        %v10232 = vunpack.c.l.b16 %v9208
        %v10233 = vunpack.c.l.b16 %v9209
        %v10234 = vunpack.c.l.b16 %v9210
        %v10235 = vunpack.c.l.b16 %v9211
        %v10236 = vunpack.c.l.b16 %v9212
        %v10237 = vunpack.c.l.b16 %v9213
        %v10238 = vunpack.c.l.b16 %v9214
        %v10239 = vunpack.c.l.b16 %v9215
        %v10240 = vunpack.c.l.b16 %v9216
        %v10241 = vunpack.c.l.b16 %v9217
        %v10242 = vunpack.c.l.b16 %v9218
        %v10243 = vunpack.c.l.b16 %v9219
        %v10244 = vpack.c.b16 %v10101, %v10100
        %v10245 = vpack.c.b16 %v10103, %v10102
        %v10246 = vpack.c.b16 %v10105, %v10104
        %v10247 = vpack.c.b16 %v10107, %v10106
        %v10248 = vpack.c.b16 %v10109, %v10108
        %v10249 = vpack.c.b16 %v10111, %v10110
        %v10250 = vpack.c.b16 %v10113, %v10112
        %v10251 = vpack.c.b16 %v10115, %v10114
        %v10252 = vpack.c.b16 %v10117, %v10116
        %v10253 = vpack.c.b16 %v10119, %v10118
        %v10254 = vpack.c.b16 %v10121, %v10120
        %v10255 = vpack.c.b16 %v10123, %v10122
        %v10256 = vpack.c.b16 %v10125, %v10124
        %v10257 = vpack.c.b16 %v10127, %v10126
        %v10258 = vpack.c.b16 %v10129, %v10128
        %v10259 = vpack.c.b16 %v10131, %v10130
        %v10260 = vpack.c.b16 %v10133, %v10132
        %v10261 = vpack.c.b16 %v10135, %v10134
        %v10262 = vpack.c.b16 %v10137, %v10136
        %v10263 = vpack.c.b16 %v10139, %v10138
        %v10264 = vpack.c.b16 %v10141, %v10140
        %v10265 = vpack.c.b16 %v10143, %v10142
        %v10266 = vpack.c.b16 %v10145, %v10144
        %v10267 = vpack.c.b16 %v10147, %v10146
        %v10268 = vpack.c.b16 %v10149, %v10148
        %v10269 = vpack.c.b16 %v10151, %v10150
        %v10270 = vpack.c.b16 %v10153, %v10152
        %v10271 = vpack.c.b16 %v10155, %v10154
        %v10272 = vpack.c.b16 %v10157, %v10156
        %v10273 = vpack.c.b16 %v10159, %v10158
        %v10274 = vpack.c.b16 %v10161, %v10160
        %v10275 = vpack.c.b16 %v10163, %v10162
        %v10276 = vpack.c.b16 %v10165, %v10164
        %v10277 = vpack.c.b16 %v10167, %v10166
        %v10278 = vpack.c.b16 %v10169, %v10168
        %v10279 = vpack.c.b16 %v10171, %v10170
        %v10280 = vpack.c.b16 %v10173, %v10172
        %v10281 = vpack.c.b16 %v10175, %v10174
        %v10282 = vpack.c.b16 %v10177, %v10176
        %v10283 = vpack.c.b16 %v10179, %v10178
        %v10284 = vpack.c.b16 %v10181, %v10180
        %v10285 = vpack.c.b16 %v10183, %v10182
        %v10286 = vpack.c.b16 %v10185, %v10184
        %v10287 = vpack.c.b16 %v10187, %v10186
        %v10288 = vpack.c.b16 %v10189, %v10188
        %v10289 = vpack.c.b16 %v10191, %v10190
        %v10290 = vpack.c.b16 %v10193, %v10192
        %v10291 = vpack.c.b16 %v10195, %v10194
        %v10292 = vpack.c.b16 %v10197, %v10196
        %v10293 = vpack.c.b16 %v10199, %v10198
        %v10294 = vpack.c.b16 %v10201, %v10200
        %v10295 = vpack.c.b16 %v10203, %v10202
        %v10296 = vpack.c.b16 %v10205, %v10204
        %v10297 = vpack.c.b16 %v10207, %v10206
        %v10298 = vpack.c.b16 %v10209, %v10208
        %v10299 = vpack.c.b16 %v10211, %v10210
        %v10300 = vpack.c.b16 %v10213, %v10212
        %v10301 = vpack.c.b16 %v10215, %v10214
        %v10302 = vpack.c.b16 %v10217, %v10216
        %v10303 = vpack.c.b16 %v10219, %v10218
        %v10304 = vpack.c.b16 %v10221, %v10220
        %v10305 = vpack.c.b16 %v10223, %v10222
        %v10306 = vpack.c.b16 %v10225, %v10224
        %v10307 = vpack.c.b16 %v10227, %v10226
        %v10308 = vpack.c.b16 %v10229, %v10228
        %v10309 = vpack.c.b16 %v10231, %v10230
        %v10310 = vpack.c.b16 %v10233, %v10232
        %v10311 = vpack.c.b16 %v10235, %v10234
        %v10312 = vpack.c.b16 %v10237, %v10236
        %v10313 = vpack.c.b16 %v10239, %v10238
        %v10314 = vpack.c.b16 %v10241, %v10240
        %v10315 = vpack.c.b16 %v10243, %v10242
        %10388 = vmatpush.bf16.msra.mxu0 %v10251
        %10389 = vmatpush.bf16.msra.mxu0 %v10250
        %10390 = vmatpush.bf16.msra.mxu0 %v10249
        %10391 = vmatpush.bf16.msra.mxu0 %v10248
        %10392 = vmatpush.bf16.msra.mxu0 %v10247
        %10393 = vmatpush.bf16.msra.mxu0 %v10246
        %10394 = vmatpush.bf16.msra.mxu0 %v10245
        %10395 = vmatpush.bf16.msra.mxu0 %v10244
        %10396 = vmatmul.bf16.gmra.mxu0 %v9668
        %v10397 = vpop.f32.mrf.mxu0
        %v10398 = vadd.f32 0.0, %v10397
        %v10399 = vpop.f32.mrf.mxu0
        %v10400 = vadd.f32 0.0, %v10399
        %10401 = vmatmul.bf16.gmra.mxu0 %v9677
        %v10402 = vpop.f32.mrf.mxu0
        %v10403 = vadd.f32 0.0, %v10402
        %v10404 = vpop.f32.mrf.mxu0
        %v10405 = vadd.f32 0.0, %v10404
        %10406 = vmatmul.bf16.gmra.mxu0 %v9686
        %v10407 = vpop.f32.mrf.mxu0
        %v10408 = vadd.f32 0.0, %v10407
        %v10409 = vpop.f32.mrf.mxu0
        %v10410 = vadd.f32 0.0, %v10409
        %10411 = vmatmul.bf16.gmra.mxu0 %v9695
        %v10412 = vpop.f32.mrf.mxu0
        %v10413 = vadd.f32 0.0, %v10412
        %v10414 = vpop.f32.mrf.mxu0
        %v10415 = vadd.f32 0.0, %v10414
        %10416 = vmatmul.bf16.gmra.mxu0 %v9704
        %v10417 = vpop.f32.mrf.mxu0
        %v10418 = vadd.f32 0.0, %v10417
        %v10419 = vpop.f32.mrf.mxu0
        %v10420 = vadd.f32 0.0, %v10419
        %10421 = vmatmul.bf16.gmra.mxu0 %v9713
        %v10422 = vpop.f32.mrf.mxu0
        %v10423 = vadd.f32 0.0, %v10422
        %v10424 = vpop.f32.mrf.mxu0
        %v10425 = vadd.f32 0.0, %v10424
        %10426 = vmatmul.bf16.gmra.mxu0 %v9722
        %v10427 = vpop.f32.mrf.mxu0
        %v10428 = vadd.f32 0.0, %v10427
        %v10429 = vpop.f32.mrf.mxu0
        %v10430 = vadd.f32 0.0, %v10429
        %10431 = vmatmul.bf16.gmra.mxu0 %v9731
        %v10432 = vpop.f32.mrf.mxu0
        %v10433 = vadd.f32 0.0, %v10432
        %v10434 = vpop.f32.mrf.mxu0
        %v10435 = vadd.f32 0.0, %v10434
        %10436 = vmatmul.bf16.gmra.mxu0 %v9740
        %v10437 = vpop.f32.mrf.mxu0
        %v10438 = vadd.f32 0.0, %v10437
        %v10439 = vpop.f32.mrf.mxu0
        %v10440 = vadd.f32 0.0, %v10439
        %10441 = vmatmul.bf16.gmra.mxu0 %v9749
        %v10442 = vpop.f32.mrf.mxu0
        %v10443 = vadd.f32 0.0, %v10442
        %v10444 = vpop.f32.mrf.mxu0
        %v10445 = vadd.f32 0.0, %v10444
        %10446 = vmatmul.bf16.gmra.mxu0 %v9758
        %v10447 = vpop.f32.mrf.mxu0
        %v10448 = vadd.f32 0.0, %v10447
        %v10449 = vpop.f32.mrf.mxu0
        %v10450 = vadd.f32 0.0, %v10449
        %10451 = vmatmul.bf16.gmra.mxu0 %v9767
        %v10452 = vpop.f32.mrf.mxu0
        %v10453 = vadd.f32 0.0, %v10452
        %v10454 = vpop.f32.mrf.mxu0
        %v10455 = vadd.f32 0.0, %v10454
        %10456 = vmatmul.bf16.gmra.mxu0 %v9776
        %v10457 = vpop.f32.mrf.mxu0
        %v10458 = vadd.f32 0.0, %v10457
        %v10459 = vpop.f32.mrf.mxu0
        %v10460 = vadd.f32 0.0, %v10459
        %10461 = vmatmul.bf16.gmra.mxu0 %v9785
        %v10462 = vpop.f32.mrf.mxu0
        %v10463 = vadd.f32 0.0, %v10462
        %v10464 = vpop.f32.mrf.mxu0
        %v10465 = vadd.f32 0.0, %v10464
        %10466 = vmatmul.bf16.gmra.mxu0 %v9794
        %v10467 = vpop.f32.mrf.mxu0
        %v10468 = vadd.f32 0.0, %v10467
        %v10469 = vpop.f32.mrf.mxu0
        %v10470 = vadd.f32 0.0, %v10469
        %10471 = vmatmul.bf16.gmra.mxu0 %v9803
        %v10472 = vpop.f32.mrf.mxu0
        %v10473 = vadd.f32 0.0, %v10472
        %v10474 = vpop.f32.mrf.mxu0
        %v10475 = vadd.f32 0.0, %v10474
        %10476 = vdwg.mxu0
        %10477 = vmatpush.bf16.msra.mxu0 %v10259
        %10478 = vmatpush.bf16.msra.mxu0 %v10258
        %10479 = vmatpush.bf16.msra.mxu0 %v10257
        %10480 = vmatpush.bf16.msra.mxu0 %v10256
        %10481 = vmatpush.bf16.msra.mxu0 %v10255
        %10482 = vmatpush.bf16.msra.mxu0 %v10254
        %10483 = vmatpush.bf16.msra.mxu0 %v10253
        %10484 = vmatpush.bf16.msra.mxu0 %v10252
        %10485 = vmatmul.bf16.gmra.mxu0 %v9669
        %v10486 = vpop.f32.mrf.mxu0
        %v10487 = vadd.f32 %v10398, %v10486
        %v10488 = vpop.f32.mrf.mxu0
        %v10489 = vadd.f32 %v10400, %v10488
        %10490 = vmatmul.bf16.gmra.mxu0 %v9678
        %v10491 = vpop.f32.mrf.mxu0
        %v10492 = vadd.f32 %v10403, %v10491
        %v10493 = vpop.f32.mrf.mxu0
        %v10494 = vadd.f32 %v10405, %v10493
        %10495 = vmatmul.bf16.gmra.mxu0 %v9687
        %v10496 = vpop.f32.mrf.mxu0
        %v10497 = vadd.f32 %v10408, %v10496
        %v10498 = vpop.f32.mrf.mxu0
        %v10499 = vadd.f32 %v10410, %v10498
        %10500 = vmatmul.bf16.gmra.mxu0 %v9696
        %v10501 = vpop.f32.mrf.mxu0
        %v10502 = vadd.f32 %v10413, %v10501
        %v10503 = vpop.f32.mrf.mxu0
        %v10504 = vadd.f32 %v10415, %v10503
        %10505 = vmatmul.bf16.gmra.mxu0 %v9705
        %v10506 = vpop.f32.mrf.mxu0
        %v10507 = vadd.f32 %v10418, %v10506
        %v10508 = vpop.f32.mrf.mxu0
        %v10509 = vadd.f32 %v10420, %v10508
        %10510 = vmatmul.bf16.gmra.mxu0 %v9714
        %v10511 = vpop.f32.mrf.mxu0
        %v10512 = vadd.f32 %v10423, %v10511
        %v10513 = vpop.f32.mrf.mxu0
        %v10514 = vadd.f32 %v10425, %v10513
        %10515 = vmatmul.bf16.gmra.mxu0 %v9723
        %v10516 = vpop.f32.mrf.mxu0
        %v10517 = vadd.f32 %v10428, %v10516
        %v10518 = vpop.f32.mrf.mxu0
        %v10519 = vadd.f32 %v10430, %v10518
        %10520 = vmatmul.bf16.gmra.mxu0 %v9732
        %v10521 = vpop.f32.mrf.mxu0
        %v10522 = vadd.f32 %v10433, %v10521
        %v10523 = vpop.f32.mrf.mxu0
        %v10524 = vadd.f32 %v10435, %v10523
        %10525 = vmatmul.bf16.gmra.mxu0 %v9741
        %v10526 = vpop.f32.mrf.mxu0
        %v10527 = vadd.f32 %v10438, %v10526
        %v10528 = vpop.f32.mrf.mxu0
        %v10529 = vadd.f32 %v10440, %v10528
        %10530 = vmatmul.bf16.gmra.mxu0 %v9750
        %v10531 = vpop.f32.mrf.mxu0
        %v10532 = vadd.f32 %v10443, %v10531
        %v10533 = vpop.f32.mrf.mxu0
        %v10534 = vadd.f32 %v10445, %v10533
        %10535 = vmatmul.bf16.gmra.mxu0 %v9759
        %v10536 = vpop.f32.mrf.mxu0
        %v10537 = vadd.f32 %v10448, %v10536
        %v10538 = vpop.f32.mrf.mxu0
        %v10539 = vadd.f32 %v10450, %v10538
        %10540 = vmatmul.bf16.gmra.mxu0 %v9768
        %v10541 = vpop.f32.mrf.mxu0
        %v10542 = vadd.f32 %v10453, %v10541
        %v10543 = vpop.f32.mrf.mxu0
        %v10544 = vadd.f32 %v10455, %v10543
        %10545 = vmatmul.bf16.gmra.mxu0 %v9777
        %v10546 = vpop.f32.mrf.mxu0
        %v10547 = vadd.f32 %v10458, %v10546
        %v10548 = vpop.f32.mrf.mxu0
        %v10549 = vadd.f32 %v10460, %v10548
        %10550 = vmatmul.bf16.gmra.mxu0 %v9786
        %v10551 = vpop.f32.mrf.mxu0
        %v10552 = vadd.f32 %v10463, %v10551
        %v10553 = vpop.f32.mrf.mxu0
        %v10554 = vadd.f32 %v10465, %v10553
        %10555 = vmatmul.bf16.gmra.mxu0 %v9795
        %v10556 = vpop.f32.mrf.mxu0
        %v10557 = vadd.f32 %v10468, %v10556
        %v10558 = vpop.f32.mrf.mxu0
        %v10559 = vadd.f32 %v10470, %v10558
        %10560 = vmatmul.bf16.gmra.mxu0 %v9804
        %v10561 = vpop.f32.mrf.mxu0
        %v10562 = vadd.f32 %v10473, %v10561
        %v10563 = vpop.f32.mrf.mxu0
        %v10564 = vadd.f32 %v10475, %v10563
        %10565 = vdwg.mxu0
        %10566 = vmatpush.bf16.msra.mxu0 %v10267
        %10567 = vmatpush.bf16.msra.mxu0 %v10266
        %10568 = vmatpush.bf16.msra.mxu0 %v10265
        %10569 = vmatpush.bf16.msra.mxu0 %v10264
        %10570 = vmatpush.bf16.msra.mxu0 %v10263
        %10571 = vmatpush.bf16.msra.mxu0 %v10262
        %10572 = vmatpush.bf16.msra.mxu0 %v10261
        %10573 = vmatpush.bf16.msra.mxu0 %v10260
        %10574 = vmatmul.bf16.gmra.mxu0 %v9670
        %v10575 = vpop.f32.mrf.mxu0
        %v10576 = vadd.f32 %v10487, %v10575
        %v10577 = vpop.f32.mrf.mxu0
        %v10578 = vadd.f32 %v10489, %v10577
        %10579 = vmatmul.bf16.gmra.mxu0 %v9679
        %v10580 = vpop.f32.mrf.mxu0
        %v10581 = vadd.f32 %v10492, %v10580
        %v10582 = vpop.f32.mrf.mxu0
        %v10583 = vadd.f32 %v10494, %v10582
        %10584 = vmatmul.bf16.gmra.mxu0 %v9688
        %v10585 = vpop.f32.mrf.mxu0
        %v10586 = vadd.f32 %v10497, %v10585
        %v10587 = vpop.f32.mrf.mxu0
        %v10588 = vadd.f32 %v10499, %v10587
        %10589 = vmatmul.bf16.gmra.mxu0 %v9697
        %v10590 = vpop.f32.mrf.mxu0
        %v10591 = vadd.f32 %v10502, %v10590
        %v10592 = vpop.f32.mrf.mxu0
        %v10593 = vadd.f32 %v10504, %v10592
        %10594 = vmatmul.bf16.gmra.mxu0 %v9706
        %v10595 = vpop.f32.mrf.mxu0
        %v10596 = vadd.f32 %v10507, %v10595
        %v10597 = vpop.f32.mrf.mxu0
        %v10598 = vadd.f32 %v10509, %v10597
        %10599 = vmatmul.bf16.gmra.mxu0 %v9715
        %v10600 = vpop.f32.mrf.mxu0
        %v10601 = vadd.f32 %v10512, %v10600
        %v10602 = vpop.f32.mrf.mxu0
        %v10603 = vadd.f32 %v10514, %v10602
        %10604 = vmatmul.bf16.gmra.mxu0 %v9724
        %v10605 = vpop.f32.mrf.mxu0
        %v10606 = vadd.f32 %v10517, %v10605
        %v10607 = vpop.f32.mrf.mxu0
        %v10608 = vadd.f32 %v10519, %v10607
        %10609 = vmatmul.bf16.gmra.mxu0 %v9733
        %v10610 = vpop.f32.mrf.mxu0
        %v10611 = vadd.f32 %v10522, %v10610
        %v10612 = vpop.f32.mrf.mxu0
        %v10613 = vadd.f32 %v10524, %v10612
        %10614 = vmatmul.bf16.gmra.mxu0 %v9742
        %v10615 = vpop.f32.mrf.mxu0
        %v10616 = vadd.f32 %v10527, %v10615
        %v10617 = vpop.f32.mrf.mxu0
        %v10618 = vadd.f32 %v10529, %v10617
        %10619 = vmatmul.bf16.gmra.mxu0 %v9751
        %v10620 = vpop.f32.mrf.mxu0
        %v10621 = vadd.f32 %v10532, %v10620
        %v10622 = vpop.f32.mrf.mxu0
        %v10623 = vadd.f32 %v10534, %v10622
        %10624 = vmatmul.bf16.gmra.mxu0 %v9760
        %v10625 = vpop.f32.mrf.mxu0
        %v10626 = vadd.f32 %v10537, %v10625
        %v10627 = vpop.f32.mrf.mxu0
        %v10628 = vadd.f32 %v10539, %v10627
        %10629 = vmatmul.bf16.gmra.mxu0 %v9769
        %v10630 = vpop.f32.mrf.mxu0
        %v10631 = vadd.f32 %v10542, %v10630
        %v10632 = vpop.f32.mrf.mxu0
        %v10633 = vadd.f32 %v10544, %v10632
        %10634 = vmatmul.bf16.gmra.mxu0 %v9778
        %v10635 = vpop.f32.mrf.mxu0
        %v10636 = vadd.f32 %v10547, %v10635
        %v10637 = vpop.f32.mrf.mxu0
        %v10638 = vadd.f32 %v10549, %v10637
        %10639 = vmatmul.bf16.gmra.mxu0 %v9787
        %v10640 = vpop.f32.mrf.mxu0
        %v10641 = vadd.f32 %v10552, %v10640
        %v10642 = vpop.f32.mrf.mxu0
        %v10643 = vadd.f32 %v10554, %v10642
        %10644 = vmatmul.bf16.gmra.mxu0 %v9796
        %v10645 = vpop.f32.mrf.mxu0
        %v10646 = vadd.f32 %v10557, %v10645
        %v10647 = vpop.f32.mrf.mxu0
        %v10648 = vadd.f32 %v10559, %v10647
        %10649 = vmatmul.bf16.gmra.mxu0 %v9805
        %v10650 = vpop.f32.mrf.mxu0
        %v10651 = vadd.f32 %v10562, %v10650
        %v10652 = vpop.f32.mrf.mxu0
        %v10653 = vadd.f32 %v10564, %v10652
        %10654 = vdwg.mxu0
        %10655 = vmatpush.bf16.msra.mxu0 %v10275
        %10656 = vmatpush.bf16.msra.mxu0 %v10274
        %10657 = vmatpush.bf16.msra.mxu0 %v10273
        %10658 = vmatpush.bf16.msra.mxu0 %v10272
        %10659 = vmatpush.bf16.msra.mxu0 %v10271
        %10660 = vmatpush.bf16.msra.mxu0 %v10270
        %10661 = vmatpush.bf16.msra.mxu0 %v10269
        %10662 = vmatpush.bf16.msra.mxu0 %v10268
        %10663 = vmatmul.bf16.gmra.mxu0 %v9671
        %v10664 = vpop.f32.mrf.mxu0
        %v10665 = vadd.f32 %v10576, %v10664
        %v10666 = vpop.f32.mrf.mxu0
        %v10667 = vadd.f32 %v10578, %v10666
        %10668 = vmatmul.bf16.gmra.mxu0 %v9680
        %v10669 = vpop.f32.mrf.mxu0
        %v10670 = vadd.f32 %v10581, %v10669
        %v10671 = vpop.f32.mrf.mxu0
        %v10672 = vadd.f32 %v10583, %v10671
        %10673 = vmatmul.bf16.gmra.mxu0 %v9689
        %v10674 = vpop.f32.mrf.mxu0
        %v10675 = vadd.f32 %v10586, %v10674
        %v10676 = vpop.f32.mrf.mxu0
        %v10677 = vadd.f32 %v10588, %v10676
        %10678 = vmatmul.bf16.gmra.mxu0 %v9698
        %v10679 = vpop.f32.mrf.mxu0
        %v10680 = vadd.f32 %v10591, %v10679
        %v10681 = vpop.f32.mrf.mxu0
        %v10682 = vadd.f32 %v10593, %v10681
        %10683 = vmatmul.bf16.gmra.mxu0 %v9707
        %v10684 = vpop.f32.mrf.mxu0
        %v10685 = vadd.f32 %v10596, %v10684
        %v10686 = vpop.f32.mrf.mxu0
        %v10687 = vadd.f32 %v10598, %v10686
        %10688 = vmatmul.bf16.gmra.mxu0 %v9716
        %v10689 = vpop.f32.mrf.mxu0
        %v10690 = vadd.f32 %v10601, %v10689
        %v10691 = vpop.f32.mrf.mxu0
        %v10692 = vadd.f32 %v10603, %v10691
        %10693 = vmatmul.bf16.gmra.mxu0 %v9725
        %v10694 = vpop.f32.mrf.mxu0
        %v10695 = vadd.f32 %v10606, %v10694
        %v10696 = vpop.f32.mrf.mxu0
        %v10697 = vadd.f32 %v10608, %v10696
        %10698 = vmatmul.bf16.gmra.mxu0 %v9734
        %v10699 = vpop.f32.mrf.mxu0
        %v10700 = vadd.f32 %v10611, %v10699
        %v10701 = vpop.f32.mrf.mxu0
        %v10702 = vadd.f32 %v10613, %v10701
        %10703 = vmatmul.bf16.gmra.mxu0 %v9743
        %v10704 = vpop.f32.mrf.mxu0
        %v10705 = vadd.f32 %v10616, %v10704
        %v10706 = vpop.f32.mrf.mxu0
        %v10707 = vadd.f32 %v10618, %v10706
        %10708 = vmatmul.bf16.gmra.mxu0 %v9752
        %v10709 = vpop.f32.mrf.mxu0
        %v10710 = vadd.f32 %v10621, %v10709
        %v10711 = vpop.f32.mrf.mxu0
        %v10712 = vadd.f32 %v10623, %v10711
        %10713 = vmatmul.bf16.gmra.mxu0 %v9761
        %v10714 = vpop.f32.mrf.mxu0
        %v10715 = vadd.f32 %v10626, %v10714
        %v10716 = vpop.f32.mrf.mxu0
        %v10717 = vadd.f32 %v10628, %v10716
        %10718 = vmatmul.bf16.gmra.mxu0 %v9770
        %v10719 = vpop.f32.mrf.mxu0
        %v10720 = vadd.f32 %v10631, %v10719
        %v10721 = vpop.f32.mrf.mxu0
        %v10722 = vadd.f32 %v10633, %v10721
        %10723 = vmatmul.bf16.gmra.mxu0 %v9779
        %v10724 = vpop.f32.mrf.mxu0
        %v10725 = vadd.f32 %v10636, %v10724
        %v10726 = vpop.f32.mrf.mxu0
        %v10727 = vadd.f32 %v10638, %v10726
        %10728 = vmatmul.bf16.gmra.mxu0 %v9788
        %v10729 = vpop.f32.mrf.mxu0
        %v10730 = vadd.f32 %v10641, %v10729
        %v10731 = vpop.f32.mrf.mxu0
        %v10732 = vadd.f32 %v10643, %v10731
        %10733 = vmatmul.bf16.gmra.mxu0 %v9797
        %v10734 = vpop.f32.mrf.mxu0
        %v10735 = vadd.f32 %v10646, %v10734
        %v10736 = vpop.f32.mrf.mxu0
        %v10737 = vadd.f32 %v10648, %v10736
        %10738 = vmatmul.bf16.gmra.mxu0 %v9806
        %v10739 = vpop.f32.mrf.mxu0
        %v10740 = vadd.f32 %v10651, %v10739
        %v10741 = vpop.f32.mrf.mxu0
        %v10742 = vadd.f32 %v10653, %v10741
        %10743 = vdwg.mxu0
        %10744 = vmatpush.bf16.msra.mxu0 %v10283
        %10745 = vmatpush.bf16.msra.mxu0 %v10282
        %10746 = vmatpush.bf16.msra.mxu0 %v10281
        %10747 = vmatpush.bf16.msra.mxu0 %v10280
        %10748 = vmatpush.bf16.msra.mxu0 %v10279
        %10749 = vmatpush.bf16.msra.mxu0 %v10278
        %10750 = vmatpush.bf16.msra.mxu0 %v10277
        %10751 = vmatpush.bf16.msra.mxu0 %v10276
        %10752 = vmatmul.bf16.gmra.mxu0 %v9672
        %v10753 = vpop.f32.mrf.mxu0
        %v10754 = vadd.f32 %v10665, %v10753
        %v10755 = vpop.f32.mrf.mxu0
        %v10756 = vadd.f32 %v10667, %v10755
        %10757 = vmatmul.bf16.gmra.mxu0 %v9681
        %v10758 = vpop.f32.mrf.mxu0
        %v10759 = vadd.f32 %v10670, %v10758
        %v10760 = vpop.f32.mrf.mxu0
        %v10761 = vadd.f32 %v10672, %v10760
        %10762 = vmatmul.bf16.gmra.mxu0 %v9690
        %v10763 = vpop.f32.mrf.mxu0
        %v10764 = vadd.f32 %v10675, %v10763
        %v10765 = vpop.f32.mrf.mxu0
        %v10766 = vadd.f32 %v10677, %v10765
        %10767 = vmatmul.bf16.gmra.mxu0 %v9699
        %v10768 = vpop.f32.mrf.mxu0
        %v10769 = vadd.f32 %v10680, %v10768
        %v10770 = vpop.f32.mrf.mxu0
        %v10771 = vadd.f32 %v10682, %v10770
        %10772 = vmatmul.bf16.gmra.mxu0 %v9708
        %v10773 = vpop.f32.mrf.mxu0
        %v10774 = vadd.f32 %v10685, %v10773
        %v10775 = vpop.f32.mrf.mxu0
        %v10776 = vadd.f32 %v10687, %v10775
        %10777 = vmatmul.bf16.gmra.mxu0 %v9717
        %v10778 = vpop.f32.mrf.mxu0
        %v10779 = vadd.f32 %v10690, %v10778
        %v10780 = vpop.f32.mrf.mxu0
        %v10781 = vadd.f32 %v10692, %v10780
        %10782 = vmatmul.bf16.gmra.mxu0 %v9726
        %v10783 = vpop.f32.mrf.mxu0
        %v10784 = vadd.f32 %v10695, %v10783
        %v10785 = vpop.f32.mrf.mxu0
        %v10786 = vadd.f32 %v10697, %v10785
        %10787 = vmatmul.bf16.gmra.mxu0 %v9735
        %v10788 = vpop.f32.mrf.mxu0
        %v10789 = vadd.f32 %v10700, %v10788
        %v10790 = vpop.f32.mrf.mxu0
        %v10791 = vadd.f32 %v10702, %v10790
        %10792 = vmatmul.bf16.gmra.mxu0 %v9744
        %v10793 = vpop.f32.mrf.mxu0
        %v10794 = vadd.f32 %v10705, %v10793
        %v10795 = vpop.f32.mrf.mxu0
        %v10796 = vadd.f32 %v10707, %v10795
        %10797 = vmatmul.bf16.gmra.mxu0 %v9753
        %v10798 = vpop.f32.mrf.mxu0
        %v10799 = vadd.f32 %v10710, %v10798
        %v10800 = vpop.f32.mrf.mxu0
        %v10801 = vadd.f32 %v10712, %v10800
        %10802 = vmatmul.bf16.gmra.mxu0 %v9762
        %v10803 = vpop.f32.mrf.mxu0
        %v10804 = vadd.f32 %v10715, %v10803
        %v10805 = vpop.f32.mrf.mxu0
        %v10806 = vadd.f32 %v10717, %v10805
        %10807 = vmatmul.bf16.gmra.mxu0 %v9771
        %v10808 = vpop.f32.mrf.mxu0
        %v10809 = vadd.f32 %v10720, %v10808
        %v10810 = vpop.f32.mrf.mxu0
        %v10811 = vadd.f32 %v10722, %v10810
        %10812 = vmatmul.bf16.gmra.mxu0 %v9780
        %v10813 = vpop.f32.mrf.mxu0
        %v10814 = vadd.f32 %v10725, %v10813
        %v10815 = vpop.f32.mrf.mxu0
        %v10816 = vadd.f32 %v10727, %v10815
        %10817 = vmatmul.bf16.gmra.mxu0 %v9789
        %v10818 = vpop.f32.mrf.mxu0
        %v10819 = vadd.f32 %v10730, %v10818
        %v10820 = vpop.f32.mrf.mxu0
        %v10821 = vadd.f32 %v10732, %v10820
        %10822 = vmatmul.bf16.gmra.mxu0 %v9798
        %v10823 = vpop.f32.mrf.mxu0
        %v10824 = vadd.f32 %v10735, %v10823
        %v10825 = vpop.f32.mrf.mxu0
        %v10826 = vadd.f32 %v10737, %v10825
        %10827 = vmatmul.bf16.gmra.mxu0 %v9807
        %v10828 = vpop.f32.mrf.mxu0
        %v10829 = vadd.f32 %v10740, %v10828
        %v10830 = vpop.f32.mrf.mxu0
        %v10831 = vadd.f32 %v10742, %v10830
        %10832 = vdwg.mxu0
        %10833 = vmatpush.bf16.msra.mxu0 %v10291
        %10834 = vmatpush.bf16.msra.mxu0 %v10290
        %10835 = vmatpush.bf16.msra.mxu0 %v10289
        %10836 = vmatpush.bf16.msra.mxu0 %v10288
        %10837 = vmatpush.bf16.msra.mxu0 %v10287
        %10838 = vmatpush.bf16.msra.mxu0 %v10286
        %10839 = vmatpush.bf16.msra.mxu0 %v10285
        %10840 = vmatpush.bf16.msra.mxu0 %v10284
        %10841 = vmatmul.bf16.gmra.mxu0 %v9673
        %v10842 = vpop.f32.mrf.mxu0
        %v10843 = vadd.f32 %v10754, %v10842
        %v10844 = vpop.f32.mrf.mxu0
        %v10845 = vadd.f32 %v10756, %v10844
        %10846 = vmatmul.bf16.gmra.mxu0 %v9682
        %v10847 = vpop.f32.mrf.mxu0
        %v10848 = vadd.f32 %v10759, %v10847
        %v10849 = vpop.f32.mrf.mxu0
        %v10850 = vadd.f32 %v10761, %v10849
        %10851 = vmatmul.bf16.gmra.mxu0 %v9691
        %v10852 = vpop.f32.mrf.mxu0
        %v10853 = vadd.f32 %v10764, %v10852
        %v10854 = vpop.f32.mrf.mxu0
        %v10855 = vadd.f32 %v10766, %v10854
        %10856 = vmatmul.bf16.gmra.mxu0 %v9700
        %v10857 = vpop.f32.mrf.mxu0
        %v10858 = vadd.f32 %v10769, %v10857
        %v10859 = vpop.f32.mrf.mxu0
        %v10860 = vadd.f32 %v10771, %v10859
        %10861 = vmatmul.bf16.gmra.mxu0 %v9709
        %v10862 = vpop.f32.mrf.mxu0
        %v10863 = vadd.f32 %v10774, %v10862
        %v10864 = vpop.f32.mrf.mxu0
        %v10865 = vadd.f32 %v10776, %v10864
        %10866 = vmatmul.bf16.gmra.mxu0 %v9718
        %v10867 = vpop.f32.mrf.mxu0
        %v10868 = vadd.f32 %v10779, %v10867
        %v10869 = vpop.f32.mrf.mxu0
        %v10870 = vadd.f32 %v10781, %v10869
        %10871 = vmatmul.bf16.gmra.mxu0 %v9727
        %v10872 = vpop.f32.mrf.mxu0
        %v10873 = vadd.f32 %v10784, %v10872
        %v10874 = vpop.f32.mrf.mxu0
        %v10875 = vadd.f32 %v10786, %v10874
        %10876 = vmatmul.bf16.gmra.mxu0 %v9736
        %v10877 = vpop.f32.mrf.mxu0
        %v10878 = vadd.f32 %v10789, %v10877
        %v10879 = vpop.f32.mrf.mxu0
        %v10880 = vadd.f32 %v10791, %v10879
        %10881 = vmatmul.bf16.gmra.mxu0 %v9745
        %v10882 = vpop.f32.mrf.mxu0
        %v10883 = vadd.f32 %v10794, %v10882
        %v10884 = vpop.f32.mrf.mxu0
        %v10885 = vadd.f32 %v10796, %v10884
        %10886 = vmatmul.bf16.gmra.mxu0 %v9754
        %v10887 = vpop.f32.mrf.mxu0
        %v10888 = vadd.f32 %v10799, %v10887
        %v10889 = vpop.f32.mrf.mxu0
        %v10890 = vadd.f32 %v10801, %v10889
        %10891 = vmatmul.bf16.gmra.mxu0 %v9763
        %v10892 = vpop.f32.mrf.mxu0
        %v10893 = vadd.f32 %v10804, %v10892
        %v10894 = vpop.f32.mrf.mxu0
        %v10895 = vadd.f32 %v10806, %v10894
        %10896 = vmatmul.bf16.gmra.mxu0 %v9772
        %v10897 = vpop.f32.mrf.mxu0
        %v10898 = vadd.f32 %v10809, %v10897
        %v10899 = vpop.f32.mrf.mxu0
        %v10900 = vadd.f32 %v10811, %v10899
        %10901 = vmatmul.bf16.gmra.mxu0 %v9781
        %v10902 = vpop.f32.mrf.mxu0
        %v10903 = vadd.f32 %v10814, %v10902
        %v10904 = vpop.f32.mrf.mxu0
        %v10905 = vadd.f32 %v10816, %v10904
        %10906 = vmatmul.bf16.gmra.mxu0 %v9790
        %v10907 = vpop.f32.mrf.mxu0
        %v10908 = vadd.f32 %v10819, %v10907
        %v10909 = vpop.f32.mrf.mxu0
        %v10910 = vadd.f32 %v10821, %v10909
        %10911 = vmatmul.bf16.gmra.mxu0 %v9799
        %v10912 = vpop.f32.mrf.mxu0
        %v10913 = vadd.f32 %v10824, %v10912
        %v10914 = vpop.f32.mrf.mxu0
        %v10915 = vadd.f32 %v10826, %v10914
        %10916 = vmatmul.bf16.gmra.mxu0 %v9808
        %v10917 = vpop.f32.mrf.mxu0
        %v10918 = vadd.f32 %v10829, %v10917
        %v10919 = vpop.f32.mrf.mxu0
        %v10920 = vadd.f32 %v10831, %v10919
        %10921 = vdwg.mxu0
        %10922 = vmatpush.bf16.msra.mxu0 %v10299
        %10923 = vmatpush.bf16.msra.mxu0 %v10298
        %10924 = vmatpush.bf16.msra.mxu0 %v10297
        %10925 = vmatpush.bf16.msra.mxu0 %v10296
        %10926 = vmatpush.bf16.msra.mxu0 %v10295
        %10927 = vmatpush.bf16.msra.mxu0 %v10294
        %10928 = vmatpush.bf16.msra.mxu0 %v10293
        %10929 = vmatpush.bf16.msra.mxu0 %v10292
        %10930 = vmatmul.bf16.gmra.mxu0 %v9674
        %v10931 = vpop.f32.mrf.mxu0
        %v10932 = vadd.f32 %v10843, %v10931
        %v10933 = vpop.f32.mrf.mxu0
        %v10934 = vadd.f32 %v10845, %v10933
        %10935 = vmatmul.bf16.gmra.mxu0 %v9683
        %v10936 = vpop.f32.mrf.mxu0
        %v10937 = vadd.f32 %v10848, %v10936
        %v10938 = vpop.f32.mrf.mxu0
        %v10939 = vadd.f32 %v10850, %v10938
        %10940 = vmatmul.bf16.gmra.mxu0 %v9692
        %v10941 = vpop.f32.mrf.mxu0
        %v10942 = vadd.f32 %v10853, %v10941
        %v10943 = vpop.f32.mrf.mxu0
        %v10944 = vadd.f32 %v10855, %v10943
        %10945 = vmatmul.bf16.gmra.mxu0 %v9701
        %v10946 = vpop.f32.mrf.mxu0
        %v10947 = vadd.f32 %v10858, %v10946
        %v10948 = vpop.f32.mrf.mxu0
        %v10949 = vadd.f32 %v10860, %v10948
        %10950 = vmatmul.bf16.gmra.mxu0 %v9710
        %v10951 = vpop.f32.mrf.mxu0
        %v10952 = vadd.f32 %v10863, %v10951
        %v10953 = vpop.f32.mrf.mxu0
        %v10954 = vadd.f32 %v10865, %v10953
        %10955 = vmatmul.bf16.gmra.mxu0 %v9719
        %v10956 = vpop.f32.mrf.mxu0
        %v10957 = vadd.f32 %v10868, %v10956
        %v10958 = vpop.f32.mrf.mxu0
        %v10959 = vadd.f32 %v10870, %v10958
        %10960 = vmatmul.bf16.gmra.mxu0 %v9728
        %v10961 = vpop.f32.mrf.mxu0
        %v10962 = vadd.f32 %v10873, %v10961
        %v10963 = vpop.f32.mrf.mxu0
        %v10964 = vadd.f32 %v10875, %v10963
        %10965 = vmatmul.bf16.gmra.mxu0 %v9737
        %v10966 = vpop.f32.mrf.mxu0
        %v10967 = vadd.f32 %v10878, %v10966
        %v10968 = vpop.f32.mrf.mxu0
        %v10969 = vadd.f32 %v10880, %v10968
        %10970 = vmatmul.bf16.gmra.mxu0 %v9746
        %v10971 = vpop.f32.mrf.mxu0
        %v10972 = vadd.f32 %v10883, %v10971
        %v10973 = vpop.f32.mrf.mxu0
        %v10974 = vadd.f32 %v10885, %v10973
        %10975 = vmatmul.bf16.gmra.mxu0 %v9755
        %v10976 = vpop.f32.mrf.mxu0
        %v10977 = vadd.f32 %v10888, %v10976
        %v10978 = vpop.f32.mrf.mxu0
        %v10979 = vadd.f32 %v10890, %v10978
        %10980 = vmatmul.bf16.gmra.mxu0 %v9764
        %v10981 = vpop.f32.mrf.mxu0
        %v10982 = vadd.f32 %v10893, %v10981
        %v10983 = vpop.f32.mrf.mxu0
        %v10984 = vadd.f32 %v10895, %v10983
        %10985 = vmatmul.bf16.gmra.mxu0 %v9773
        %v10986 = vpop.f32.mrf.mxu0
        %v10987 = vadd.f32 %v10898, %v10986
        %v10988 = vpop.f32.mrf.mxu0
        %v10989 = vadd.f32 %v10900, %v10988
        %10990 = vmatmul.bf16.gmra.mxu0 %v9782
        %v10991 = vpop.f32.mrf.mxu0
        %v10992 = vadd.f32 %v10903, %v10991
        %v10993 = vpop.f32.mrf.mxu0
        %v10994 = vadd.f32 %v10905, %v10993
        %10995 = vmatmul.bf16.gmra.mxu0 %v9791
        %v10996 = vpop.f32.mrf.mxu0
        %v10997 = vadd.f32 %v10908, %v10996
        %v10998 = vpop.f32.mrf.mxu0
        %v10999 = vadd.f32 %v10910, %v10998
        %11000 = vmatmul.bf16.gmra.mxu0 %v9800
        %v11001 = vpop.f32.mrf.mxu0
        %v11002 = vadd.f32 %v10913, %v11001
        %v11003 = vpop.f32.mrf.mxu0
        %v11004 = vadd.f32 %v10915, %v11003
        %11005 = vmatmul.bf16.gmra.mxu0 %v9809
        %v11006 = vpop.f32.mrf.mxu0
        %v11007 = vadd.f32 %v10918, %v11006
        %v11008 = vpop.f32.mrf.mxu0
        %v11009 = vadd.f32 %v10920, %v11008
        %11010 = vdwg.mxu0
        %11011 = vmatpush.bf16.msra.mxu0 %v10307
        %11012 = vmatpush.bf16.msra.mxu0 %v10306
        %11013 = vmatpush.bf16.msra.mxu0 %v10305
        %11014 = vmatpush.bf16.msra.mxu0 %v10304
        %11015 = vmatpush.bf16.msra.mxu0 %v10303
        %11016 = vmatpush.bf16.msra.mxu0 %v10302
        %11017 = vmatpush.bf16.msra.mxu0 %v10301
        %11018 = vmatpush.bf16.msra.mxu0 %v10300
        %11019 = vmatmul.bf16.gmra.mxu0 %v9675
        %v11020 = vpop.f32.mrf.mxu0
        %v11021 = vadd.f32 %v10932, %v11020
        %v11022 = vpop.f32.mrf.mxu0
        %v11023 = vadd.f32 %v10934, %v11022
        %11024 = vmatmul.bf16.gmra.mxu0 %v9684
        %v11025 = vpop.f32.mrf.mxu0
        %v11026 = vadd.f32 %v10937, %v11025
        %v11027 = vpop.f32.mrf.mxu0
        %v11028 = vadd.f32 %v10939, %v11027
        %11029 = vmatmul.bf16.gmra.mxu0 %v9693
        %v11030 = vpop.f32.mrf.mxu0
        %v11031 = vadd.f32 %v10942, %v11030
        %v11032 = vpop.f32.mrf.mxu0
        %v11033 = vadd.f32 %v10944, %v11032
        %11034 = vmatmul.bf16.gmra.mxu0 %v9702
        %v11035 = vpop.f32.mrf.mxu0
        %v11036 = vadd.f32 %v10947, %v11035
        %v11037 = vpop.f32.mrf.mxu0
        %v11038 = vadd.f32 %v10949, %v11037
        %11039 = vmatmul.bf16.gmra.mxu0 %v9711
        %v11040 = vpop.f32.mrf.mxu0
        %v11041 = vadd.f32 %v10952, %v11040
        %v11042 = vpop.f32.mrf.mxu0
        %v11043 = vadd.f32 %v10954, %v11042
        %11044 = vmatmul.bf16.gmra.mxu0 %v9720
        %v11045 = vpop.f32.mrf.mxu0
        %v11046 = vadd.f32 %v10957, %v11045
        %v11047 = vpop.f32.mrf.mxu0
        %v11048 = vadd.f32 %v10959, %v11047
        %11049 = vmatmul.bf16.gmra.mxu0 %v9729
        %v11050 = vpop.f32.mrf.mxu0
        %v11051 = vadd.f32 %v10962, %v11050
        %v11052 = vpop.f32.mrf.mxu0
        %v11053 = vadd.f32 %v10964, %v11052
        %11054 = vmatmul.bf16.gmra.mxu0 %v9738
        %v11055 = vpop.f32.mrf.mxu0
        %v11056 = vadd.f32 %v10967, %v11055
        %v11057 = vpop.f32.mrf.mxu0
        %v11058 = vadd.f32 %v10969, %v11057
        %11059 = vmatmul.bf16.gmra.mxu0 %v9747
        %v11060 = vpop.f32.mrf.mxu0
        %v11061 = vadd.f32 %v10972, %v11060
        %v11062 = vpop.f32.mrf.mxu0
        %v11063 = vadd.f32 %v10974, %v11062
        %11064 = vmatmul.bf16.gmra.mxu0 %v9756
        %v11065 = vpop.f32.mrf.mxu0
        %v11066 = vadd.f32 %v10977, %v11065
        %v11067 = vpop.f32.mrf.mxu0
        %v11068 = vadd.f32 %v10979, %v11067
        %11069 = vmatmul.bf16.gmra.mxu0 %v9765
        %v11070 = vpop.f32.mrf.mxu0
        %v11071 = vadd.f32 %v10982, %v11070
        %v11072 = vpop.f32.mrf.mxu0
        %v11073 = vadd.f32 %v10984, %v11072
        %11074 = vmatmul.bf16.gmra.mxu0 %v9774
        %v11075 = vpop.f32.mrf.mxu0
        %v11076 = vadd.f32 %v10987, %v11075
        %v11077 = vpop.f32.mrf.mxu0
        %v11078 = vadd.f32 %v10989, %v11077
        %11079 = vmatmul.bf16.gmra.mxu0 %v9783
        %v11080 = vpop.f32.mrf.mxu0
        %v11081 = vadd.f32 %v10992, %v11080
        %v11082 = vpop.f32.mrf.mxu0
        %v11083 = vadd.f32 %v10994, %v11082
        %11084 = vmatmul.bf16.gmra.mxu0 %v9792
        %v11085 = vpop.f32.mrf.mxu0
        %v11086 = vadd.f32 %v10997, %v11085
        %v11087 = vpop.f32.mrf.mxu0
        %v11088 = vadd.f32 %v10999, %v11087
        %11089 = vmatmul.bf16.gmra.mxu0 %v9801
        %v11090 = vpop.f32.mrf.mxu0
        %v11091 = vadd.f32 %v11002, %v11090
        %v11092 = vpop.f32.mrf.mxu0
        %v11093 = vadd.f32 %v11004, %v11092
        %11094 = vmatmul.bf16.gmra.mxu0 %v9810
        %v11095 = vpop.f32.mrf.mxu0
        %v11096 = vadd.f32 %v11007, %v11095
        %v11097 = vpop.f32.mrf.mxu0
        %v11098 = vadd.f32 %v11009, %v11097
        %11099 = vdwg.mxu0
        %11100 = vmatpush.bf16.msra.mxu0 %v10315
        %11101 = vmatpush.bf16.msra.mxu0 %v10314
        %11102 = vmatpush.bf16.msra.mxu0 %v10313
        %11103 = vmatpush.bf16.msra.mxu0 %v10312
        %11104 = vmatpush.bf16.msra.mxu0 %v10311
        %11105 = vmatpush.bf16.msra.mxu0 %v10310
        %11106 = vmatpush.bf16.msra.mxu0 %v10309
        %11107 = vmatpush.bf16.msra.mxu0 %v10308
        %11108 = vmatmul.bf16.gmra.mxu0 %v9676
        %v11109 = vpop.f32.mrf.mxu0
        %v11110 = vadd.f32 %v11021, %v11109
        %v11111 = vpop.f32.mrf.mxu0
        %v11112 = vadd.f32 %v11023, %v11111
        %11113 = vmatmul.bf16.gmra.mxu0 %v9685
        %v11114 = vpop.f32.mrf.mxu0
        %v11115 = vadd.f32 %v11026, %v11114
        %v11116 = vpop.f32.mrf.mxu0
        %v11117 = vadd.f32 %v11028, %v11116
        %11118 = vmatmul.bf16.gmra.mxu0 %v9694
        %v11119 = vpop.f32.mrf.mxu0
        %v11120 = vadd.f32 %v11031, %v11119
        %v11121 = vpop.f32.mrf.mxu0
        %v11122 = vadd.f32 %v11033, %v11121
        %11123 = vmatmul.bf16.gmra.mxu0 %v9703
        %v11124 = vpop.f32.mrf.mxu0
        %v11125 = vadd.f32 %v11036, %v11124
        %v11126 = vpop.f32.mrf.mxu0
        %v11127 = vadd.f32 %v11038, %v11126
        %11128 = vmatmul.bf16.gmra.mxu0 %v9712
        %v11129 = vpop.f32.mrf.mxu0
        %v11130 = vadd.f32 %v11041, %v11129
        %v11131 = vpop.f32.mrf.mxu0
        %v11132 = vadd.f32 %v11043, %v11131
        %11133 = vmatmul.bf16.gmra.mxu0 %v9721
        %v11134 = vpop.f32.mrf.mxu0
        %v11135 = vadd.f32 %v11046, %v11134
        %v11136 = vpop.f32.mrf.mxu0
        %v11137 = vadd.f32 %v11048, %v11136
        %11138 = vmatmul.bf16.gmra.mxu0 %v9730
        %v11139 = vpop.f32.mrf.mxu0
        %v11140 = vadd.f32 %v11051, %v11139
        %v11141 = vpop.f32.mrf.mxu0
        %v11142 = vadd.f32 %v11053, %v11141
        %11143 = vmatmul.bf16.gmra.mxu0 %v9739
        %v11144 = vpop.f32.mrf.mxu0
        %v11145 = vadd.f32 %v11056, %v11144
        %v11146 = vpop.f32.mrf.mxu0
        %v11147 = vadd.f32 %v11058, %v11146
        %11148 = vmatmul.bf16.gmra.mxu0 %v9748
        %v11149 = vpop.f32.mrf.mxu0
        %v11150 = vadd.f32 %v11061, %v11149
        %v11151 = vpop.f32.mrf.mxu0
        %v11152 = vadd.f32 %v11063, %v11151
        %11153 = vmatmul.bf16.gmra.mxu0 %v9757
        %v11154 = vpop.f32.mrf.mxu0
        %v11155 = vadd.f32 %v11066, %v11154
        %v11156 = vpop.f32.mrf.mxu0
        %v11157 = vadd.f32 %v11068, %v11156
        %11158 = vmatmul.bf16.gmra.mxu0 %v9766
        %v11159 = vpop.f32.mrf.mxu0
        %v11160 = vadd.f32 %v11071, %v11159
        %v11161 = vpop.f32.mrf.mxu0
        %v11162 = vadd.f32 %v11073, %v11161
        %11163 = vmatmul.bf16.gmra.mxu0 %v9775
        %v11164 = vpop.f32.mrf.mxu0
        %v11165 = vadd.f32 %v11076, %v11164
        %v11166 = vpop.f32.mrf.mxu0
        %v11167 = vadd.f32 %v11078, %v11166
        %11168 = vmatmul.bf16.gmra.mxu0 %v9784
        %v11169 = vpop.f32.mrf.mxu0
        %v11170 = vadd.f32 %v11081, %v11169
        %v11171 = vpop.f32.mrf.mxu0
        %v11172 = vadd.f32 %v11083, %v11171
        %11173 = vmatmul.bf16.gmra.mxu0 %v9793
        %v11174 = vpop.f32.mrf.mxu0
        %v11175 = vadd.f32 %v11086, %v11174
        %v11176 = vpop.f32.mrf.mxu0
        %v11177 = vadd.f32 %v11088, %v11176
        %11178 = vmatmul.bf16.gmra.mxu0 %v9802
        %v11179 = vpop.f32.mrf.mxu0
        %v11180 = vadd.f32 %v11091, %v11179
        %v11181 = vpop.f32.mrf.mxu0
        %v11182 = vadd.f32 %v11093, %v11181
        %11183 = vmatmul.bf16.gmra.mxu0 %v9811
        %v11184 = vpop.f32.mrf.mxu0
        %v11185 = vadd.f32 %v11096, %v11184
        %v11186 = vpop.f32.mrf.mxu0
        %v11187 = vadd.f32 %v11098, %v11186
        %11188 = vdwg.mxu0
        %v11189 = vld [vmem:[%s5] sm:$0x1]
        %v11191 = vperm.slane %v11189, 0
        %v11193 = vmul.f32 %v11110, %v11191
        %v11194 = vmul.f32 %v11112, %v11191
        %v11195 = vmul.f32 %v11115, %v11191
        %v11196 = vmul.f32 %v11117, %v11191
        %v11197 = vmul.f32 %v11120, %v11191
        %v11198 = vmul.f32 %v11122, %v11191
        %v11199 = vmul.f32 %v11125, %v11191
        %v11200 = vmul.f32 %v11127, %v11191
        %v11201 = vmul.f32 %v11130, %v11191
        %v11202 = vmul.f32 %v11132, %v11191
        %v11203 = vmul.f32 %v11135, %v11191
        %v11204 = vmul.f32 %v11137, %v11191
        %v11205 = vmul.f32 %v11140, %v11191
        %v11206 = vmul.f32 %v11142, %v11191
        %v11207 = vmul.f32 %v11145, %v11191
        %v11208 = vmul.f32 %v11147, %v11191
        %v11209 = vmul.f32 %v11150, %v11191
        %v11210 = vmul.f32 %v11152, %v11191
        %v11211 = vmul.f32 %v11155, %v11191
        %v11212 = vmul.f32 %v11157, %v11191
        %v11213 = vmul.f32 %v11160, %v11191
        %v11214 = vmul.f32 %v11162, %v11191
        %v11215 = vmul.f32 %v11165, %v11191
        %v11216 = vmul.f32 %v11167, %v11191
        %v11217 = vmul.f32 %v11170, %v11191
        %v11218 = vmul.f32 %v11172, %v11191
        %v11219 = vmul.f32 %v11175, %v11191
        %v11220 = vmul.f32 %v11177, %v11191
        %v11221 = vmul.f32 %v11180, %v11191
        %v11222 = vmul.f32 %v11182, %v11191
        %v11223 = vmul.f32 %v11185, %v11191
        %v11224 = vmul.f32 %v11187, %v11191
        %v11225 = vld [vmem:[%s6] sm:$0x1]
        %v11227 = vperm.slane %v11225, 0
        %v11229 = vadd.f32 %v11193, %v11227
        %v11230 = vadd.f32 %v11194, %v11227
        %v11231 = vadd.f32 %v11195, %v11227
        %v11232 = vadd.f32 %v11196, %v11227
        %v11233 = vadd.f32 %v11197, %v11227
        %v11234 = vadd.f32 %v11198, %v11227
        %v11235 = vadd.f32 %v11199, %v11227
        %v11236 = vadd.f32 %v11200, %v11227
        %v11237 = vadd.f32 %v11201, %v11227
        %v11238 = vadd.f32 %v11202, %v11227
        %v11239 = vadd.f32 %v11203, %v11227
        %v11240 = vadd.f32 %v11204, %v11227
        %v11241 = vadd.f32 %v11205, %v11227
        %v11242 = vadd.f32 %v11206, %v11227
        %v11243 = vadd.f32 %v11207, %v11227
        %v11244 = vadd.f32 %v11208, %v11227
        %v11245 = vadd.f32 %v11209, %v11227
        %v11246 = vadd.f32 %v11210, %v11227
        %v11247 = vadd.f32 %v11211, %v11227
        %v11248 = vadd.f32 %v11212, %v11227
        %v11249 = vadd.f32 %v11213, %v11227
        %v11250 = vadd.f32 %v11214, %v11227
        %v11251 = vadd.f32 %v11215, %v11227
        %v11252 = vadd.f32 %v11216, %v11227
        %v11253 = vadd.f32 %v11217, %v11227
        %v11254 = vadd.f32 %v11218, %v11227
        %v11255 = vadd.f32 %v11219, %v11227
        %v11256 = vadd.f32 %v11220, %v11227
        %v11257 = vadd.f32 %v11221, %v11227
        %v11258 = vadd.f32 %v11222, %v11227
        %v11259 = vadd.f32 %v11223, %v11227
        %v11260 = vadd.f32 %v11224, %v11227
        %vm11261 = vcmask 130048
        %v11262 = vsel %vm11261, %v453, 0.0
        %v11263 = vsel %vm11261, %v454, 0.0
        %v11264 = vsel %vm11261, %v455, 0.0
        %v11265 = vsel %vm11261, %v456, 0.0
        %v11266 = vsel %vm11261, %v457, 0.0
        %v11267 = vsel %vm11261, %v458, 0.0
        %v11268 = vsel %vm11261, %v459, 0.0
        %v11269 = vsel %vm11261, %v460, 0.0
        %v11270 = vsel %vm11261, %v461, 0.0
        %v11271 = vsel %vm11261, %v462, 0.0
        %v11272 = vsel %vm11261, %v463, 0.0
        %v11273 = vsel %vm11261, %v464, 0.0
        %v11274 = vsel %vm11261, %v465, 0.0
        %v11275 = vsel %vm11261, %v466, 0.0
        %v11276 = vsel %vm11261, %v467, 0.0
        %v11277 = vsel %vm11261, %v468, 0.0
        %v11278 = vsel %vm11261, %v469, 0.0
        %v11279 = vsel %vm11261, %v470, 0.0
        %v11280 = vsel %vm11261, %v471, 0.0
        %v11281 = vsel %vm11261, %v472, 0.0
        %v11282 = vsel %vm11261, %v473, 0.0
        %v11283 = vsel %vm11261, %v474, 0.0
        %v11284 = vsel %vm11261, %v475, 0.0
        %v11285 = vsel %vm11261, %v476, 0.0
        %v11286 = vsel %vm11261, %v477, 0.0
        %v11287 = vsel %vm11261, %v478, 0.0
        %v11288 = vsel %vm11261, %v479, 0.0
        %v11289 = vsel %vm11261, %v480, 0.0
        %v11290 = vsel %vm11261, %v481, 0.0
        %v11291 = vsel %vm11261, %v482, 0.0
        %v11292 = vsel %vm11261, %v483, 0.0
        %v11293 = vsel %vm11261, %v484, 0.0
        %v11294 = vadd.f32 %v11229, %v11262
        %v11295 = vadd.f32 %v11230, %v11263
        %v11296 = vadd.f32 %v11231, %v11264
        %v11297 = vadd.f32 %v11232, %v11265
        %v11298 = vadd.f32 %v11233, %v11266
        %v11299 = vadd.f32 %v11234, %v11267
        %v11300 = vadd.f32 %v11235, %v11268
        %v11301 = vadd.f32 %v11236, %v11269
        %v11302 = vadd.f32 %v11237, %v11270
        %v11303 = vadd.f32 %v11238, %v11271
        %v11304 = vadd.f32 %v11239, %v11272
        %v11305 = vadd.f32 %v11240, %v11273
        %v11306 = vadd.f32 %v11241, %v11274
        %v11307 = vadd.f32 %v11242, %v11275
        %v11308 = vadd.f32 %v11243, %v11276
        %v11309 = vadd.f32 %v11244, %v11277
        %v11310 = vadd.f32 %v11245, %v11278
        %v11311 = vadd.f32 %v11246, %v11279
        %v11312 = vadd.f32 %v11247, %v11280
        %v11313 = vadd.f32 %v11248, %v11281
        %v11314 = vadd.f32 %v11249, %v11282
        %v11315 = vadd.f32 %v11250, %v11283
        %v11316 = vadd.f32 %v11251, %v11284
        %v11317 = vadd.f32 %v11252, %v11285
        %v11318 = vadd.f32 %v11253, %v11286
        %v11319 = vadd.f32 %v11254, %v11287
        %v11320 = vadd.f32 %v11255, %v11288
        %v11321 = vadd.f32 %v11256, %v11289
        %v11322 = vadd.f32 %v11257, %v11290
        %v11323 = vadd.f32 %v11258, %v11291
        %v11324 = vadd.f32 %v11259, %v11292
        %v11325 = vadd.f32 %v11260, %v11293
        %v11326 = vmax.f32 %v11294, 0.0
        %v11327 = vmax.f32 %v11295, 0.0
        %v11328 = vmax.f32 %v11296, 0.0
        %v11329 = vmax.f32 %v11297, 0.0
        %v11330 = vmax.f32 %v11298, 0.0
        %v11331 = vmax.f32 %v11299, 0.0
        %v11332 = vmax.f32 %v11300, 0.0
        %v11333 = vmax.f32 %v11301, 0.0
        %v11334 = vmax.f32 %v11302, 0.0
        %v11335 = vmax.f32 %v11303, 0.0
        %v11336 = vmax.f32 %v11304, 0.0
        %v11337 = vmax.f32 %v11305, 0.0
        %v11338 = vmax.f32 %v11306, 0.0
        %v11339 = vmax.f32 %v11307, 0.0
        %v11340 = vmax.f32 %v11308, 0.0
        %v11341 = vmax.f32 %v11309, 0.0
        %v11342 = vmax.f32 %v11310, 0.0
        %v11343 = vmax.f32 %v11311, 0.0
        %v11344 = vmax.f32 %v11312, 0.0
        %v11345 = vmax.f32 %v11313, 0.0
        %v11346 = vmax.f32 %v11314, 0.0
        %v11347 = vmax.f32 %v11315, 0.0
        %v11348 = vmax.f32 %v11316, 0.0
        %v11349 = vmax.f32 %v11317, 0.0
        %v11350 = vmax.f32 %v11318, 0.0
        %v11351 = vmax.f32 %v11319, 0.0
        %v11352 = vmax.f32 %v11320, 0.0
        %v11353 = vmax.f32 %v11321, 0.0
        %v11354 = vmax.f32 %v11322, 0.0
        %v11355 = vmax.f32 %v11323, 0.0
        %v11356 = vmax.f32 %v11324, 0.0
        %v11357 = vmax.f32 %v11325, 0.0
        %11358 = vst [vmem:[%s331] sm:$0xff] %v11326
        %11359 = vst [vmem:[%s331 + $0x8] sm:$0xff] %v11327
        %11360 = vst [vmem:[%s331 + $0x10] sm:$0xff] %v11328
        %11361 = vst [vmem:[%s331 + $0x18] sm:$0xff] %v11329
        %11362 = vst [vmem:[%s331 + $0x20] sm:$0xff] %v11330
        %11363 = vst [vmem:[%s331 + $0x28] sm:$0xff] %v11331
        %11364 = vst [vmem:[%s331 + $0x30] sm:$0xff] %v11332
        %11365 = vst [vmem:[%s331 + $0x38] sm:$0xff] %v11333
        %11366 = vst [vmem:[%s331 + $0x40] sm:$0xff] %v11334
        %11367 = vst [vmem:[%s331 + $0x48] sm:$0xff] %v11335
        %11368 = vst [vmem:[%s331 + $0x50] sm:$0xff] %v11336
        %11369 = vst [vmem:[%s331 + $0x58] sm:$0xff] %v11337
        %11370 = vst [vmem:[%s331 + $0x60] sm:$0xff] %v11338
        %11371 = vst [vmem:[%s331 + $0x68] sm:$0xff] %v11339
        %11372 = vst [vmem:[%s331 + $0x70] sm:$0xff] %v11340
        %11373 = vst [vmem:[%s331 + $0x78] sm:$0xff] %v11341
        %11374 = vst [vmem:[%s331 + $0x80] sm:$0xff] %v11342
        %11375 = vst [vmem:[%s331 + $0x88] sm:$0xff] %v11343
        %11376 = vst [vmem:[%s331 + $0x90] sm:$0xff] %v11344
        %11377 = vst [vmem:[%s331 + $0x98] sm:$0xff] %v11345
        %11378 = vst [vmem:[%s331 + $0xa0] sm:$0xff] %v11346
        %11379 = vst [vmem:[%s331 + $0xa8] sm:$0xff] %v11347
        %11380 = vst [vmem:[%s331 + $0xb0] sm:$0xff] %v11348
        %11381 = vst [vmem:[%s331 + $0xb8] sm:$0xff] %v11349
        %11382 = vst [vmem:[%s331 + $0xc0] sm:$0xff] %v11350
        %11383 = vst [vmem:[%s331 + $0xc8] sm:$0xff] %v11351
        %11384 = vst [vmem:[%s331 + $0xd0] sm:$0xff] %v11352
        %11385 = vst [vmem:[%s331 + $0xd8] sm:$0xff] %v11353
        %11386 = vst [vmem:[%s331 + $0xe0] sm:$0xff] %v11354
        %11387 = vst [vmem:[%s331 + $0xe8] sm:$0xff] %v11355
        %11388 = vst [vmem:[%s331 + $0xf0] sm:$0xff] %v11356
        %11389 = vst [vmem:[%s331 + $0xf8] sm:$0xff] %v11357
        %s11390 = sand.u32 %s185, 1
        %s11391 = scalar_lea.sflag [#allocation6], %s11390
        %s11392 = sand.u32 %s185, 1
        %s11393 = smul.addr %s11392, 256
        %s11394 = scalar_lea.vmem [#allocation10], %s11393
        // Predicated region
        $region61: #{tpu_custom_call.1} parent=47 // pred_check
          %p11395 = pneg %p195
        $region62: #{tpu_custom_call.1} parent=47 // pred_check_branch
          %11397 = sbr.rel (%p11395) target = $region64
        $region63: #{tpu_custom_call.1} parent=47 // pred_region
          %11399 = vsyncadd %s11391, 0
          %s11400 = smul.addr %s25, 32
          %s11401 = smul.addr %s11400, 8
          %s11402 = scalar_lea.hbm %s7, %s11401
          %s11403 = sshll.u32 %s11394, 4
          %s11404 = int_to_ptr.vmem [resolvable:$true] %s11403
          %s11405 = sshll.u32 %s11402, 4
          %s11406 = int_to_ptr.hbm [resolvable:$true] %s11405
          %11411 = dma.vmem_to_hbm [thread:$0]  %s11404, 4096, %s11406, %s11391, 128, 128, 8
        $region64: #{tpu_custom_call.1} parent=47 // pred_fallthru
          _
      $region48: #{tpu_custom_call.1} parent=5 // pred_fallthru
        _
      %p11412 = scmp.le.s32.totalorder 2, %s20
      // Predicated region
      $region65: #{tpu_custom_call.1} parent=5 // pred_check
        %p11413 = pneg %p11412
      $region66: #{tpu_custom_call.1} parent=5 // pred_check_branch
        %11415 = sbr.rel (%p11413) target = $region68
      $region67: #{tpu_custom_call.1} parent=5 // pred_region
        %s11416 = ssub.s32 %s20, 2
        // Predicated region
        $region69: #{tpu_custom_call.1} parent=67 // pred_check
          %p11417 = pneg %p201
        $region70: #{tpu_custom_call.1} parent=67 // pred_check_branch
          %11419 = sbr.rel (%p11417) target = $region72
        $region71: #{tpu_custom_call.1} parent=67 // pred_region
          %s11420 = sand.u32 %s186, 1
          %s11421 = scalar_lea.sflag [#allocation6], %s11420
          %s11422 = sand.u32 %s186, 1
          %s11423 = smul.addr %s11422, 256
          %s11424 = scalar_lea.vmem [#allocation10], %s11423
          %11426 = dma.done %s11421, 4096
        $region72: #{tpu_custom_call.1} parent=67 // pred_fallthru
          _
      $region68: #{tpu_custom_call.1} parent=5 // pred_fallthru
        _
    $region6: #{tpu_custom_call.1} parent=1 // loop_footer
      %s24 = sadd.s32 1, %s20
    $region7: #{tpu_custom_call.1} parent=1 // loop_footer_branch
      %19 = sbr.rel target = $region3
    $region8: #{tpu_custom_call.1} parent=1 // loop_exit
      _
    %11427 = vsyncpa [#allocation5], 1
    %s11428 = scalar_lea.sflag [#allocation5], 1
    %11429 = vsyncpa %s11428, 1
    %11430 = vsyncpa [#allocation8], 1
    %11431 = vsyncpa [#allocation6], 1
    %s11432 = scalar_lea.sflag [#allocation6], 1
    %11433 = vsyncpa %s11432, 1

</llo_original>
